<compile_context>
chip_gen: v7x
topology: tpu7x:2x2x1
jax: 0.10.0
libtpu: 0.0.40
codegen_flags: <defaults>
</compile_context>

<pallas_src>
import functools

import jax
import jax.numpy as jnp
from jax.experimental import pallas as pl
from jax.experimental.pallas import tpu as pltpu


# -----------------------------------------------------------------------------
# Fused forward kernel.
#   x_ref      : (S*B, E)        time-major embedded tokens (row = t*B + b)
#   w_ih{l}    : (D_l, 6H)       input->gate weights, cols [f_r|f_z|f_n|b_r|b_z|b_n]
#   b_ih{l}    : (1, 6H)
#   w_hh{l}    : (6, H, H)       hidden->gate weights, leading (dir*gate) axis
#   b_hh{l}    : (6, 1, H)
#   head refs  : ln_g/ln_b (1,4H), w_res (4H,H), b_res (1,H),
#                wf1 (4H,H), bf1 (1,H), wf2 (H,O), bf2 (1,O)
#   out_ref    : (B, O)
# -----------------------------------------------------------------------------
def rnn_fused_kernel(x_ref,
                     w_ih1_ref, b_ih1_ref, w_hh1_ref, b_hh1_ref,
                     w_ih2_ref, b_ih2_ref, w_hh2_ref, b_hh2_ref,
                     ln_g_ref, ln_b_ref, w_res_ref, b_res_ref,
                     wf1_ref, bf1_ref, wf2_ref, bf2_ref,
                     out_ref, *, seq_len, batch, hidden):
    S, B, H = seq_len, batch, hidden

    def dir_gates(gi, d):
        # gi: (rows, 6H) -> 3 per-gate lane slices for direction d.  These slices
        # never depend on h, so they sit off the serial recurrence chain.
        return [gi[:, (3 * d + g) * H:(3 * d + g + 1) * H] for g in range(3)]

    def load_dir(w_ref, b_ref, d):
        # Per-gate (H, H) slabs (loaded once, loop-invariant) -> per-step gh results
        # are lane-0 aligned; no lane select/rotate inside the recurrence.
        return ([w_ref[3 * d + g] for g in range(3)],
                [b_ref[3 * d + g] for g in range(3)])

    def cell(gi_t, h, w, b):
        # PyTorch GRU cell, gate order r, z, n;  n uses r * (W_hn h + b_hn).
        gh_r = jnp.dot(h, w[0], preferred_element_type=jnp.float32) + b[0]
        gh_z = jnp.dot(h, w[1], preferred_element_type=jnp.float32) + b[1]
        gh_n = jnp.dot(h, w[2], preferred_element_type=jnp.float32) + b[2]
        r = jax.nn.sigmoid(gi_t[0] + gh_r)
        z = jax.nn.sigmoid(gi_t[1] + gh_z)
        n = jnp.tanh(gi_t[2] + r * gh_n)
        return (1.0 - z) * n + z * h

    # ------------------------------- layer 1 -------------------------------
    # Hoisted input projection: ONE contraction for all timesteps & both directions.
    gi1 = jnp.dot(x_ref[...], w_ih1_ref[...],
                  preferred_element_type=jnp.float32) + b_ih1_ref[...]   # (S*B, 6H)
    gi1_f, gi1_b = dir_gates(gi1, 0), dir_gates(gi1, 1)
    w1f, b1f = load_dir(w_hh1_ref, b_hh1_ref, 0)
    w1b, b1b = load_dir(w_hh1_ref, b_hh1_ref, 1)

    h_f = jnp.zeros((B, H), jnp.float32)
    h_b = jnp.zeros((B, H), jnp.float32)
    out_f = [None] * S
    out_b = [None] * S
    for s in range(S):                 # interleaved fwd/bwd chains, static unroll (S=8)
        tf, tb = s, S - 1 - s
        h_f = cell([g[tf * B:(tf + 1) * B] for g in gi1_f], h_f, w1f, b1f)
        h_b = cell([g[tb * B:(tb + 1) * B] for g in gi1_b], h_b, w1b, b1b)
        out_f[tf] = h_f
        out_b[tb] = h_b

    # ------------------------------- layer 2 -------------------------------
    # Layer-1 outputs never leave registers.  Per-timestep input projection is a single
    # contraction over the fused 2H width (no per-slab dot + VPU add).
    gi2 = [jnp.dot(jnp.concatenate([out_f[t], out_b[t]], axis=-1), w_ih2_ref[...],
                   preferred_element_type=jnp.float32) + b_ih2_ref[...]
           for t in range(S)]                                            # S x (B, 6H)
    w2f, b2f = load_dir(w_hh2_ref, b_hh2_ref, 0)
    w2b, b2b = load_dir(w_hh2_ref, b_hh2_ref, 1)

    h_f = jnp.zeros((B, H), jnp.float32)
    h_b = jnp.zeros((B, H), jnp.float32)
    sum_f = jnp.zeros((B, H), jnp.float32)
    sum_b = jnp.zeros((B, H), jnp.float32)
    max_f = jnp.full((B, H), -jnp.inf, jnp.float32)
    max_b = jnp.full((B, H), -jnp.inf, jnp.float32)
    for s in range(S):                              # fused mean/max pooling epilogue
        tf, tb = s, S - 1 - s
        h_f = cell(dir_gates(gi2[tf], 0), h_f, w2f, b2f)
        h_b = cell(dir_gates(gi2[tb], 1), h_b, w2b, b2b)
        sum_f = sum_f + h_f
        sum_b = sum_b + h_b
        max_f = jnp.maximum(max_f, h_f)
        max_b = jnp.maximum(max_b, h_b)

    # -------------------------------- head ---------------------------------
    # pooled = [mean (fwd|bwd) | max (fwd|bwd)] -> (B, 4H) = 128 lanes (lane-dense).
    pooled = jnp.concatenate(
        [sum_f * (1.0 / S), sum_b * (1.0 / S), max_f, max_b], axis=-1)
    mu = jnp.mean(pooled, axis=-1, keepdims=True)
    var = jnp.mean((pooled - mu) ** 2, axis=-1, keepdims=True)
    normed = (pooled - mu) * jax.lax.rsqrt(var + 1e-5)
    normed = normed * ln_g_ref[...] + ln_b_ref[...]

    residual = jnp.dot(normed, w_res_ref[...],
                       preferred_element_type=jnp.float32) + b_res_ref[...]
    hid = jnp.dot(normed, wf1_ref[...],
                  preferred_element_type=jnp.float32) + bf1_ref[...]
    hid = jnp.maximum(hid, 0.0) + residual
    # eval-mode dropout -> (fc2(x) + fc2(x)) / 2 == fc2(x)
    out = jnp.dot(hid, wf2_ref[...],
                  preferred_element_type=jnp.float32) + bf2_ref[...]
    out_ref[...] = out.astype(out_ref.dtype)


# -----------------------------------------------------------------------------
# Parameter init (deterministic; shapes mirror the PyTorch module, stored in the
# pre-transposed / per-gate-slab layout the kernel consumes).
# -----------------------------------------------------------------------------
def init_params(key, vocab_size, embedding_dim, hidden_dim, output_dim):
    H = hidden_dim
    keys = iter(jax.random.split(key, 32))

    def uni(k, shape, scale):
        return jax.random.uniform(k, shape, jnp.float32, -scale, scale)

    # Embedding (padding_idx=0 -> row 0 zeroed).
    emb = jax.random.normal(next(keys), (vocab_size, embedding_dim), jnp.float32)
    emb = emb.at[0].set(0.0)

    # 2-layer bidirectional GRU.  Input weights as (D, 6H) with gate/dir columns
    # [f_r|f_z|f_n|b_r|b_z|b_n]; hidden weights as (6, H, H) per-(dir,gate) slabs.
    gru_scale = 1.0 / (H ** 0.5)
    gru_layers = []
    for D in (embedding_dim, 2 * H):        # layer-2 input = [fwd | bwd] of layer 1
        gru_layers.append({
            "w_ih": uni(next(keys), (D, 6 * H), gru_scale),
            "b_ih": uni(next(keys), (1, 6 * H), gru_scale),
            "w_hh": uni(next(keys), (6, H, H), gru_scale),
            "b_hh": uni(next(keys), (6, 1, H), gru_scale),
        })

    pooled_dim = 4 * H
    ps = 1.0 / (pooled_dim ** 0.5)
    hs = 1.0 / (H ** 0.5)
    head = {
        "ln_g": jnp.ones((1, pooled_dim), jnp.float32),
        "ln_b": jnp.zeros((1, pooled_dim), jnp.float32),
        "w_res": uni(next(keys), (pooled_dim, H), ps),
        "b_res": uni(next(keys), (1, H), ps),
        "w1": uni(next(keys), (pooled_dim, H), ps),
        "b1": uni(next(keys), (1, H), ps),
        "w2": uni(next(keys), (H, output_dim), hs),
        "b2": uni(next(keys), (1, output_dim), hs),
    }
    return {"embedding": emb, "gru": gru_layers, "head": head}


@functools.partial(jax.jit, static_argnums=(2,))
def rnn_classifier_forward(input_ids, params, output_dim):
    B, S = input_ids.shape
    H = params["gru"][0]["w_hh"].shape[-1]

    # Embedding lookup in XLA (tiny data-dependent gather); time-major flatten so
    # row t*B + b holds token (b, t).  Dropout == identity at inference.
    ids_tm = input_ids.T.reshape(-1)
    x = jnp.take(params["embedding"], ids_tm, axis=0)            # (S*B, E)

    g1, g2, head = params["gru"][0], params["gru"][1], params["head"]
    vmem = pl.BlockSpec(memory_space=pltpu.MemorySpace.VMEM)
    kernel = functools.partial(rnn_fused_kernel, seq_len=S, batch=B, hidden=H)
    return pl.pallas_call(
        kernel,
        out_shape=jax.ShapeDtypeStruct((B, output_dim), jnp.float32),
        in_specs=[vmem] * 17,
        out_specs=vmem,
    )(x,
      g1["w_ih"], g1["b_ih"], g1["w_hh"], g1["b_hh"],
      g2["w_ih"], g2["b_ih"], g2["w_hh"], g2["b_hh"],
      head["ln_g"], head["ln_b"], head["w_res"], head["b_res"],
      head["w1"], head["b1"], head["w2"], head["b2"])


if __name__ == "__main__":
    VOCAB = 64
    EMBED = 32
    HIDDEN = 32
    OUTPUT = 4
    B, S = 2, 8

    key = jax.random.PRNGKey(0)
    k_param, k_ids = jax.random.split(key)
    params = init_params(k_param, VOCAB, EMBED, HIDDEN, OUTPUT)
    input_ids = jax.random.randint(k_ids, (B, S), 0, VOCAB, dtype=jnp.int32)

    out = rnn_classifier_forward(input_ids, params, OUTPUT)
    jax.block_until_ready(out)
    assert out.shape == (B, OUTPUT) and out.dtype == jnp.float32
    print("KERNEL_OK")
</pallas_src>

<mosaic_0001>
module attributes {stable_mosaic.version = 11 : i64} {
  func.func @rnn_fused_kernel(%arg0: memref<16x32xf32, #tpu.memory_space<vmem>>, %arg1: memref<32x192xf32, #tpu.memory_space<vmem>>, %arg2: memref<1x192xf32, #tpu.memory_space<vmem>>, %arg3: memref<6x32x32xf32, #tpu.memory_space<vmem>>, %arg4: memref<6x1x32xf32, #tpu.memory_space<vmem>>, %arg5: memref<64x192xf32, #tpu.memory_space<vmem>>, %arg6: memref<1x192xf32, #tpu.memory_space<vmem>>, %arg7: memref<6x32x32xf32, #tpu.memory_space<vmem>>, %arg8: memref<6x1x32xf32, #tpu.memory_space<vmem>>, %arg9: memref<1x128xf32, #tpu.memory_space<vmem>>, %arg10: memref<1x128xf32, #tpu.memory_space<vmem>>, %arg11: memref<128x32xf32, #tpu.memory_space<vmem>>, %arg12: memref<1x32xf32, #tpu.memory_space<vmem>>, %arg13: memref<128x32xf32, #tpu.memory_space<vmem>>, %arg14: memref<1x32xf32, #tpu.memory_space<vmem>>, %arg15: memref<32x4xf32, #tpu.memory_space<vmem>>, %arg16: memref<1x4xf32, #tpu.memory_space<vmem>>, %arg17: memref<2x4xf32, #tpu.memory_space<vmem>>) attributes {dimension_semantics = [], scalar_prefetch = 0 : i64, scratch_operands = 0 : i64, tpu.core_type = #tpu.core_type<tc>} {
    %c0 = arith.constant 0 : index
    %c0_0 = arith.constant 0 : index
    %0 = vector.load %arg0[%c0, %c0_0] : memref<16x32xf32, #tpu.memory_space<vmem>>, vector<16x32xf32>
    %c0_1 = arith.constant 0 : index
    %c0_2 = arith.constant 0 : index
    %1 = vector.load %arg1[%c0_1, %c0_2] : memref<32x192xf32, #tpu.memory_space<vmem>>, vector<32x192xf32>
    %cst = arith.constant dense<0.000000e+00> : vector<16x192xf32>
    %2 = tpu.matmul %0, %1, %cst {dimension_numbers = #tpu.dot_dimension_numbers<[1], [0], [0], [1], [0, 0, 1, 1], [], []>} : vector<16x32xf32>, vector<32x192xf32>, vector<16x192xf32> -> vector<16x192xf32>
    %c0_3 = arith.constant 0 : index
    %c0_4 = arith.constant 0 : index
    %3 = vector.load %arg2[%c0_3, %c0_4] : memref<1x192xf32, #tpu.memory_space<vmem>>, vector<1x192xf32>
    %4 = vector.broadcast %3 : vector<1x192xf32> to vector<16x192xf32>
    %5 = arith.addf %2, %4 : vector<16x192xf32>
    %6 = vector.extract_strided_slice %5 {offsets = [0, 0], sizes = [16, 32], strides = [1, 1]} : vector<16x192xf32> to vector<16x32xf32>
    %7 = vector.extract_strided_slice %5 {offsets = [0, 32], sizes = [16, 32], strides = [1, 1]} : vector<16x192xf32> to vector<16x32xf32>
    %8 = vector.extract_strided_slice %5 {offsets = [0, 64], sizes = [16, 32], strides = [1, 1]} : vector<16x192xf32> to vector<16x32xf32>
    %9 = vector.extract_strided_slice %5 {offsets = [0, 96], sizes = [16, 32], strides = [1, 1]} : vector<16x192xf32> to vector<16x32xf32>
    %10 = vector.extract_strided_slice %5 {offsets = [0, 128], sizes = [16, 32], strides = [1, 1]} : vector<16x192xf32> to vector<16x32xf32>
    %11 = vector.extract_strided_slice %5 {offsets = [0, 160], sizes = [16, 32], strides = [1, 1]} : vector<16x192xf32> to vector<16x32xf32>
    %c0_5 = arith.constant 0 : index
    %c0_6 = arith.constant 0 : index
    %c0_7 = arith.constant 0 : index
    %12 = vector.load %arg3[%c0_5, %c0_6, %c0_7] : memref<6x32x32xf32, #tpu.memory_space<vmem>>, vector<1x32x32xf32>
    %13 = vector.shape_cast %12 : vector<1x32x32xf32> to vector<32x32xf32>
    %c1 = arith.constant 1 : index
    %c0_8 = arith.constant 0 : index
    %c0_9 = arith.constant 0 : index
    %14 = vector.load %arg3[%c1, %c0_8, %c0_9] : memref<6x32x32xf32, #tpu.memory_space<vmem>>, vector<1x32x32xf32>
    %15 = vector.shape_cast %14 : vector<1x32x32xf32> to vector<32x32xf32>
    %c2 = arith.constant 2 : index
    %c0_10 = arith.constant 0 : index
    %c0_11 = arith.constant 0 : index
    %16 = vector.load %arg3[%c2, %c0_10, %c0_11] : memref<6x32x32xf32, #tpu.memory_space<vmem>>, vector<1x32x32xf32>
    %17 = vector.shape_cast %16 : vector<1x32x32xf32> to vector<32x32xf32>
    %c0_12 = arith.constant 0 : index
    %c0_13 = arith.constant 0 : index
    %c0_14 = arith.constant 0 : index
    %18 = vector.load %arg4[%c0_12, %c0_13, %c0_14] : memref<6x1x32xf32, #tpu.memory_space<vmem>>, vector<1x1x32xf32>
    %19 = vector.shape_cast %18 : vector<1x1x32xf32> to vector<1x32xf32>
    %c1_15 = arith.constant 1 : index
    %c0_16 = arith.constant 0 : index
    %c0_17 = arith.constant 0 : index
    %20 = vector.load %arg4[%c1_15, %c0_16, %c0_17] : memref<6x1x32xf32, #tpu.memory_space<vmem>>, vector<1x1x32xf32>
    %21 = vector.shape_cast %20 : vector<1x1x32xf32> to vector<1x32xf32>
    %c2_18 = arith.constant 2 : index
    %c0_19 = arith.constant 0 : index
    %c0_20 = arith.constant 0 : index
    %22 = vector.load %arg4[%c2_18, %c0_19, %c0_20] : memref<6x1x32xf32, #tpu.memory_space<vmem>>, vector<1x1x32xf32>
    %23 = vector.shape_cast %22 : vector<1x1x32xf32> to vector<1x32xf32>
    %c3 = arith.constant 3 : index
    %c0_21 = arith.constant 0 : index
    %c0_22 = arith.constant 0 : index
    %24 = vector.load %arg3[%c3, %c0_21, %c0_22] : memref<6x32x32xf32, #tpu.memory_space<vmem>>, vector<1x32x32xf32>
    %25 = vector.shape_cast %24 : vector<1x32x32xf32> to vector<32x32xf32>
    %c4 = arith.constant 4 : index
    %c0_23 = arith.constant 0 : index
    %c0_24 = arith.constant 0 : index
    %26 = vector.load %arg3[%c4, %c0_23, %c0_24] : memref<6x32x32xf32, #tpu.memory_space<vmem>>, vector<1x32x32xf32>
    %27 = vector.shape_cast %26 : vector<1x32x32xf32> to vector<32x32xf32>
    %c5 = arith.constant 5 : index
    %c0_25 = arith.constant 0 : index
    %c0_26 = arith.constant 0 : index
    %28 = vector.load %arg3[%c5, %c0_25, %c0_26] : memref<6x32x32xf32, #tpu.memory_space<vmem>>, vector<1x32x32xf32>
    %29 = vector.shape_cast %28 : vector<1x32x32xf32> to vector<32x32xf32>
    %c3_27 = arith.constant 3 : index
    %c0_28 = arith.constant 0 : index
    %c0_29 = arith.constant 0 : index
    %30 = vector.load %arg4[%c3_27, %c0_28, %c0_29] : memref<6x1x32xf32, #tpu.memory_space<vmem>>, vector<1x1x32xf32>
    %31 = vector.shape_cast %30 : vector<1x1x32xf32> to vector<1x32xf32>
    %c4_30 = arith.constant 4 : index
    %c0_31 = arith.constant 0 : index
    %c0_32 = arith.constant 0 : index
    %32 = vector.load %arg4[%c4_30, %c0_31, %c0_32] : memref<6x1x32xf32, #tpu.memory_space<vmem>>, vector<1x1x32xf32>
    %33 = vector.shape_cast %32 : vector<1x1x32xf32> to vector<1x32xf32>
    %c5_33 = arith.constant 5 : index
    %c0_34 = arith.constant 0 : index
    %c0_35 = arith.constant 0 : index
    %34 = vector.load %arg4[%c5_33, %c0_34, %c0_35] : memref<6x1x32xf32, #tpu.memory_space<vmem>>, vector<1x1x32xf32>
    %35 = vector.shape_cast %34 : vector<1x1x32xf32> to vector<1x32xf32>
    %cst_36 = arith.constant 0.000000e+00 : f32
    %36 = vector.broadcast %cst_36 : f32 to vector<2x32xf32>
    %cst_37 = arith.constant 0.000000e+00 : f32
    %37 = vector.broadcast %cst_37 : f32 to vector<2x32xf32>
    %38 = vector.extract_strided_slice %6 {offsets = [0, 0], sizes = [2, 32], strides = [1, 1]} : vector<16x32xf32> to vector<2x32xf32>
    %39 = vector.extract_strided_slice %7 {offsets = [0, 0], sizes = [2, 32], strides = [1, 1]} : vector<16x32xf32> to vector<2x32xf32>
    %40 = vector.extract_strided_slice %8 {offsets = [0, 0], sizes = [2, 32], strides = [1, 1]} : vector<16x32xf32> to vector<2x32xf32>
    %cst_38 = arith.constant dense<0.000000e+00> : vector<2x32xf32>
    %41 = tpu.matmul %36, %13, %cst_38 {dimension_numbers = #tpu.dot_dimension_numbers<[1], [0], [0], [1], [0, 0, 1, 1], [], []>} : vector<2x32xf32>, vector<32x32xf32>, vector<2x32xf32> -> vector<2x32xf32>
    %42 = vector.broadcast %19 : vector<1x32xf32> to vector<2x32xf32>
    %43 = arith.addf %41, %42 : vector<2x32xf32>
    %cst_39 = arith.constant dense<0.000000e+00> : vector<2x32xf32>
    %44 = tpu.matmul %36, %15, %cst_39 {dimension_numbers = #tpu.dot_dimension_numbers<[1], [0], [0], [1], [0, 0, 1, 1], [], []>} : vector<2x32xf32>, vector<32x32xf32>, vector<2x32xf32> -> vector<2x32xf32>
    %45 = vector.broadcast %21 : vector<1x32xf32> to vector<2x32xf32>
    %46 = arith.addf %44, %45 : vector<2x32xf32>
    %cst_40 = arith.constant dense<0.000000e+00> : vector<2x32xf32>
    %47 = tpu.matmul %36, %17, %cst_40 {dimension_numbers = #tpu.dot_dimension_numbers<[1], [0], [0], [1], [0, 0, 1, 1], [], []>} : vector<2x32xf32>, vector<32x32xf32>, vector<2x32xf32> -> vector<2x32xf32>
    %48 = vector.broadcast %23 : vector<1x32xf32> to vector<2x32xf32>
    %49 = arith.addf %47, %48 : vector<2x32xf32>
    %50 = arith.addf %38, %43 : vector<2x32xf32>
    %51 = arith.negf %50 : vector<2x32xf32>
    %52 = math.exp %51 : vector<2x32xf32>
    %cst_41 = arith.constant 1.000000e+00 : f32
    %53 = vector.broadcast %cst_41 : f32 to vector<2x32xf32>
    %54 = arith.addf %53, %52 : vector<2x32xf32>
    %55 = arith.divf %53, %54 : vector<2x32xf32>
    %56 = arith.addf %39, %46 : vector<2x32xf32>
    %57 = arith.negf %56 : vector<2x32xf32>
    %58 = math.exp %57 : vector<2x32xf32>
    %cst_42 = arith.constant 1.000000e+00 : f32
    %59 = vector.broadcast %cst_42 : f32 to vector<2x32xf32>
    %60 = arith.addf %59, %58 : vector<2x32xf32>
    %61 = arith.divf %59, %60 : vector<2x32xf32>
    %62 = arith.mulf %55, %49 : vector<2x32xf32>
    %63 = arith.addf %40, %62 : vector<2x32xf32>
    %64 = math.tanh %63 : vector<2x32xf32>
    %cst_43 = arith.constant 1.000000e+00 : f32
    %65 = vector.broadcast %cst_43 : f32 to vector<2x32xf32>
    %66 = arith.subf %65, %61 : vector<2x32xf32>
    %67 = arith.mulf %66, %64 : vector<2x32xf32>
    %68 = arith.mulf %61, %36 : vector<2x32xf32>
    %69 = arith.addf %67, %68 : vector<2x32xf32>
    %70 = vector.extract_strided_slice %9 {offsets = [14, 0], sizes = [2, 32], strides = [1, 1]} : vector<16x32xf32> to vector<2x32xf32>
    %71 = vector.extract_strided_slice %10 {offsets = [14, 0], sizes = [2, 32], strides = [1, 1]} : vector<16x32xf32> to vector<2x32xf32>
    %72 = vector.extract_strided_slice %11 {offsets = [14, 0], sizes = [2, 32], strides = [1, 1]} : vector<16x32xf32> to vector<2x32xf32>
    %cst_44 = arith.constant dense<0.000000e+00> : vector<2x32xf32>
    %73 = tpu.matmul %37, %25, %cst_44 {dimension_numbers = #tpu.dot_dimension_numbers<[1], [0], [0], [1], [0, 0, 1, 1], [], []>} : vector<2x32xf32>, vector<32x32xf32>, vector<2x32xf32> -> vector<2x32xf32>
    %74 = vector.broadcast %31 : vector<1x32xf32> to vector<2x32xf32>
    %75 = arith.addf %73, %74 : vector<2x32xf32>
    %cst_45 = arith.constant dense<0.000000e+00> : vector<2x32xf32>
    %76 = tpu.matmul %37, %27, %cst_45 {dimension_numbers = #tpu.dot_dimension_numbers<[1], [0], [0], [1], [0, 0, 1, 1], [], []>} : vector<2x32xf32>, vector<32x32xf32>, vector<2x32xf32> -> vector<2x32xf32>
    %77 = vector.broadcast %33 : vector<1x32xf32> to vector<2x32xf32>
    %78 = arith.addf %76, %77 : vector<2x32xf32>
    %cst_46 = arith.constant dense<0.000000e+00> : vector<2x32xf32>
    %79 = tpu.matmul %37, %29, %cst_46 {dimension_numbers = #tpu.dot_dimension_numbers<[1], [0], [0], [1], [0, 0, 1, 1], [], []>} : vector<2x32xf32>, vector<32x32xf32>, vector<2x32xf32> -> vector<2x32xf32>
    %80 = vector.broadcast %35 : vector<1x32xf32> to vector<2x32xf32>
    %81 = arith.addf %79, %80 : vector<2x32xf32>
    %82 = arith.addf %70, %75 : vector<2x32xf32>
    %83 = arith.negf %82 : vector<2x32xf32>
    %84 = math.exp %83 : vector<2x32xf32>
    %cst_47 = arith.constant 1.000000e+00 : f32
    %85 = vector.broadcast %cst_47 : f32 to vector<2x32xf32>
    %86 = arith.addf %85, %84 : vector<2x32xf32>
    %87 = arith.divf %85, %86 : vector<2x32xf32>
    %88 = arith.addf %71, %78 : vector<2x32xf32>
    %89 = arith.negf %88 : vector<2x32xf32>
    %90 = math.exp %89 : vector<2x32xf32>
    %cst_48 = arith.constant 1.000000e+00 : f32
    %91 = vector.broadcast %cst_48 : f32 to vector<2x32xf32>
    %92 = arith.addf %91, %90 : vector<2x32xf32>
    %93 = arith.divf %91, %92 : vector<2x32xf32>
    %94 = arith.mulf %87, %81 : vector<2x32xf32>
    %95 = arith.addf %72, %94 : vector<2x32xf32>
    %96 = math.tanh %95 : vector<2x32xf32>
    %cst_49 = arith.constant 1.000000e+00 : f32
    %97 = vector.broadcast %cst_49 : f32 to vector<2x32xf32>
    %98 = arith.subf %97, %93 : vector<2x32xf32>
    %99 = arith.mulf %98, %96 : vector<2x32xf32>
    %100 = arith.mulf %93, %37 : vector<2x32xf32>
    %101 = arith.addf %99, %100 : vector<2x32xf32>
    %102 = vector.extract_strided_slice %6 {offsets = [2, 0], sizes = [2, 32], strides = [1, 1]} : vector<16x32xf32> to vector<2x32xf32>
    %103 = vector.extract_strided_slice %7 {offsets = [2, 0], sizes = [2, 32], strides = [1, 1]} : vector<16x32xf32> to vector<2x32xf32>
    %104 = vector.extract_strided_slice %8 {offsets = [2, 0], sizes = [2, 32], strides = [1, 1]} : vector<16x32xf32> to vector<2x32xf32>
    %cst_50 = arith.constant dense<0.000000e+00> : vector<2x32xf32>
    %105 = tpu.matmul %69, %13, %cst_50 {dimension_numbers = #tpu.dot_dimension_numbers<[1], [0], [0], [1], [0, 0, 1, 1], [], []>} : vector<2x32xf32>, vector<32x32xf32>, vector<2x32xf32> -> vector<2x32xf32>
    %106 = vector.broadcast %19 : vector<1x32xf32> to vector<2x32xf32>
    %107 = arith.addf %105, %106 : vector<2x32xf32>
    %cst_51 = arith.constant dense<0.000000e+00> : vector<2x32xf32>
    %108 = tpu.matmul %69, %15, %cst_51 {dimension_numbers = #tpu.dot_dimension_numbers<[1], [0], [0], [1], [0, 0, 1, 1], [], []>} : vector<2x32xf32>, vector<32x32xf32>, vector<2x32xf32> -> vector<2x32xf32>
    %109 = vector.broadcast %21 : vector<1x32xf32> to vector<2x32xf32>
    %110 = arith.addf %108, %109 : vector<2x32xf32>
    %cst_52 = arith.constant dense<0.000000e+00> : vector<2x32xf32>
    %111 = tpu.matmul %69, %17, %cst_52 {dimension_numbers = #tpu.dot_dimension_numbers<[1], [0], [0], [1], [0, 0, 1, 1], [], []>} : vector<2x32xf32>, vector<32x32xf32>, vector<2x32xf32> -> vector<2x32xf32>
    %112 = vector.broadcast %23 : vector<1x32xf32> to vector<2x32xf32>
    %113 = arith.addf %111, %112 : vector<2x32xf32>
    %114 = arith.addf %102, %107 : vector<2x32xf32>
    %115 = arith.negf %114 : vector<2x32xf32>
    %116 = math.exp %115 : vector<2x32xf32>
    %cst_53 = arith.constant 1.000000e+00 : f32
    %117 = vector.broadcast %cst_53 : f32 to vector<2x32xf32>
    %118 = arith.addf %117, %116 : vector<2x32xf32>
    %119 = arith.divf %117, %118 : vector<2x32xf32>
    %120 = arith.addf %103, %110 : vector<2x32xf32>
    %121 = arith.negf %120 : vector<2x32xf32>
    %122 = math.exp %121 : vector<2x32xf32>
    %cst_54 = arith.constant 1.000000e+00 : f32
    %123 = vector.broadcast %cst_54 : f32 to vector<2x32xf32>
    %124 = arith.addf %123, %122 : vector<2x32xf32>
    %125 = arith.divf %123, %124 : vector<2x32xf32>
    %126 = arith.mulf %119, %113 : vector<2x32xf32>
    %127 = arith.addf %104, %126 : vector<2x32xf32>
    %128 = math.tanh %127 : vector<2x32xf32>
    %cst_55 = arith.constant 1.000000e+00 : f32
    %129 = vector.broadcast %cst_55 : f32 to vector<2x32xf32>
    %130 = arith.subf %129, %125 : vector<2x32xf32>
    %131 = arith.mulf %130, %128 : vector<2x32xf32>
    %132 = arith.mulf %125, %69 : vector<2x32xf32>
    %133 = arith.addf %131, %132 : vector<2x32xf32>
    %134 = vector.extract_strided_slice %9 {offsets = [12, 0], sizes = [2, 32], strides = [1, 1]} : vector<16x32xf32> to vector<2x32xf32>
    %135 = vector.extract_strided_slice %10 {offsets = [12, 0], sizes = [2, 32], strides = [1, 1]} : vector<16x32xf32> to vector<2x32xf32>
    %136 = vector.extract_strided_slice %11 {offsets = [12, 0], sizes = [2, 32], strides = [1, 1]} : vector<16x32xf32> to vector<2x32xf32>
    %cst_56 = arith.constant dense<0.000000e+00> : vector<2x32xf32>
    %137 = tpu.matmul %101, %25, %cst_56 {dimension_numbers = #tpu.dot_dimension_numbers<[1], [0], [0], [1], [0, 0, 1, 1], [], []>} : vector<2x32xf32>, vector<32x32xf32>, vector<2x32xf32> -> vector<2x32xf32>
    %138 = vector.broadcast %31 : vector<1x32xf32> to vector<2x32xf32>
    %139 = arith.addf %137, %138 : vector<2x32xf32>
    %cst_57 = arith.constant dense<0.000000e+00> : vector<2x32xf32>
    %140 = tpu.matmul %101, %27, %cst_57 {dimension_numbers = #tpu.dot_dimension_numbers<[1], [0], [0], [1], [0, 0, 1, 1], [], []>} : vector<2x32xf32>, vector<32x32xf32>, vector<2x32xf32> -> vector<2x32xf32>
    %141 = vector.broadcast %33 : vector<1x32xf32> to vector<2x32xf32>
    %142 = arith.addf %140, %141 : vector<2x32xf32>
    %cst_58 = arith.constant dense<0.000000e+00> : vector<2x32xf32>
    %143 = tpu.matmul %101, %29, %cst_58 {dimension_numbers = #tpu.dot_dimension_numbers<[1], [0], [0], [1], [0, 0, 1, 1], [], []>} : vector<2x32xf32>, vector<32x32xf32>, vector<2x32xf32> -> vector<2x32xf32>
    %144 = vector.broadcast %35 : vector<1x32xf32> to vector<2x32xf32>
    %145 = arith.addf %143, %144 : vector<2x32xf32>
    %146 = arith.addf %134, %139 : vector<2x32xf32>
    %147 = arith.negf %146 : vector<2x32xf32>
    %148 = math.exp %147 : vector<2x32xf32>
    %cst_59 = arith.constant 1.000000e+00 : f32
    %149 = vector.broadcast %cst_59 : f32 to vector<2x32xf32>
    %150 = arith.addf %149, %148 : vector<2x32xf32>
    %151 = arith.divf %149, %150 : vector<2x32xf32>
    %152 = arith.addf %135, %142 : vector<2x32xf32>
    %153 = arith.negf %152 : vector<2x32xf32>
    %154 = math.exp %153 : vector<2x32xf32>
    %cst_60 = arith.constant 1.000000e+00 : f32
    %155 = vector.broadcast %cst_60 : f32 to vector<2x32xf32>
    %156 = arith.addf %155, %154 : vector<2x32xf32>
    %157 = arith.divf %155, %156 : vector<2x32xf32>
    %158 = arith.mulf %151, %145 : vector<2x32xf32>
    %159 = arith.addf %136, %158 : vector<2x32xf32>
    %160 = math.tanh %159 : vector<2x32xf32>
    %cst_61 = arith.constant 1.000000e+00 : f32
    %161 = vector.broadcast %cst_61 : f32 to vector<2x32xf32>
    %162 = arith.subf %161, %157 : vector<2x32xf32>
    %163 = arith.mulf %162, %160 : vector<2x32xf32>
    %164 = arith.mulf %157, %101 : vector<2x32xf32>
    %165 = arith.addf %163, %164 : vector<2x32xf32>
    %166 = vector.extract_strided_slice %6 {offsets = [4, 0], sizes = [2, 32], strides = [1, 1]} : vector<16x32xf32> to vector<2x32xf32>
    %167 = vector.extract_strided_slice %7 {offsets = [4, 0], sizes = [2, 32], strides = [1, 1]} : vector<16x32xf32> to vector<2x32xf32>
    %168 = vector.extract_strided_slice %8 {offsets = [4, 0], sizes = [2, 32], strides = [1, 1]} : vector<16x32xf32> to vector<2x32xf32>
    %cst_62 = arith.constant dense<0.000000e+00> : vector<2x32xf32>
    %169 = tpu.matmul %133, %13, %cst_62 {dimension_numbers = #tpu.dot_dimension_numbers<[1], [0], [0], [1], [0, 0, 1, 1], [], []>} : vector<2x32xf32>, vector<32x32xf32>, vector<2x32xf32> -> vector<2x32xf32>
    %170 = vector.broadcast %19 : vector<1x32xf32> to vector<2x32xf32>
    %171 = arith.addf %169, %170 : vector<2x32xf32>
    %cst_63 = arith.constant dense<0.000000e+00> : vector<2x32xf32>
    %172 = tpu.matmul %133, %15, %cst_63 {dimension_numbers = #tpu.dot_dimension_numbers<[1], [0], [0], [1], [0, 0, 1, 1], [], []>} : vector<2x32xf32>, vector<32x32xf32>, vector<2x32xf32> -> vector<2x32xf32>
    %173 = vector.broadcast %21 : vector<1x32xf32> to vector<2x32xf32>
    %174 = arith.addf %172, %173 : vector<2x32xf32>
    %cst_64 = arith.constant dense<0.000000e+00> : vector<2x32xf32>
    %175 = tpu.matmul %133, %17, %cst_64 {dimension_numbers = #tpu.dot_dimension_numbers<[1], [0], [0], [1], [0, 0, 1, 1], [], []>} : vector<2x32xf32>, vector<32x32xf32>, vector<2x32xf32> -> vector<2x32xf32>
    %176 = vector.broadcast %23 : vector<1x32xf32> to vector<2x32xf32>
    %177 = arith.addf %175, %176 : vector<2x32xf32>
    %178 = arith.addf %166, %171 : vector<2x32xf32>
    %179 = arith.negf %178 : vector<2x32xf32>
    %180 = math.exp %179 : vector<2x32xf32>
    %cst_65 = arith.constant 1.000000e+00 : f32
    %181 = vector.broadcast %cst_65 : f32 to vector<2x32xf32>
    %182 = arith.addf %181, %180 : vector<2x32xf32>
    %183 = arith.divf %181, %182 : vector<2x32xf32>
    %184 = arith.addf %167, %174 : vector<2x32xf32>
    %185 = arith.negf %184 : vector<2x32xf32>
    %186 = math.exp %185 : vector<2x32xf32>
    %cst_66 = arith.constant 1.000000e+00 : f32
    %187 = vector.broadcast %cst_66 : f32 to vector<2x32xf32>
    %188 = arith.addf %187, %186 : vector<2x32xf32>
    %189 = arith.divf %187, %188 : vector<2x32xf32>
    %190 = arith.mulf %183, %177 : vector<2x32xf32>
    %191 = arith.addf %168, %190 : vector<2x32xf32>
    %192 = math.tanh %191 : vector<2x32xf32>
    %cst_67 = arith.constant 1.000000e+00 : f32
    %193 = vector.broadcast %cst_67 : f32 to vector<2x32xf32>
    %194 = arith.subf %193, %189 : vector<2x32xf32>
    %195 = arith.mulf %194, %192 : vector<2x32xf32>
    %196 = arith.mulf %189, %133 : vector<2x32xf32>
    %197 = arith.addf %195, %196 : vector<2x32xf32>
    %198 = vector.extract_strided_slice %9 {offsets = [10, 0], sizes = [2, 32], strides = [1, 1]} : vector<16x32xf32> to vector<2x32xf32>
    %199 = vector.extract_strided_slice %10 {offsets = [10, 0], sizes = [2, 32], strides = [1, 1]} : vector<16x32xf32> to vector<2x32xf32>
    %200 = vector.extract_strided_slice %11 {offsets = [10, 0], sizes = [2, 32], strides = [1, 1]} : vector<16x32xf32> to vector<2x32xf32>
    %cst_68 = arith.constant dense<0.000000e+00> : vector<2x32xf32>
    %201 = tpu.matmul %165, %25, %cst_68 {dimension_numbers = #tpu.dot_dimension_numbers<[1], [0], [0], [1], [0, 0, 1, 1], [], []>} : vector<2x32xf32>, vector<32x32xf32>, vector<2x32xf32> -> vector<2x32xf32>
    %202 = vector.broadcast %31 : vector<1x32xf32> to vector<2x32xf32>
    %203 = arith.addf %201, %202 : vector<2x32xf32>
    %cst_69 = arith.constant dense<0.000000e+00> : vector<2x32xf32>
    %204 = tpu.matmul %165, %27, %cst_69 {dimension_numbers = #tpu.dot_dimension_numbers<[1], [0], [0], [1], [0, 0, 1, 1], [], []>} : vector<2x32xf32>, vector<32x32xf32>, vector<2x32xf32> -> vector<2x32xf32>
    %205 = vector.broadcast %33 : vector<1x32xf32> to vector<2x32xf32>
    %206 = arith.addf %204, %205 : vector<2x32xf32>
    %cst_70 = arith.constant dense<0.000000e+00> : vector<2x32xf32>
    %207 = tpu.matmul %165, %29, %cst_70 {dimension_numbers = #tpu.dot_dimension_numbers<[1], [0], [0], [1], [0, 0, 1, 1], [], []>} : vector<2x32xf32>, vector<32x32xf32>, vector<2x32xf32> -> vector<2x32xf32>
    %208 = vector.broadcast %35 : vector<1x32xf32> to vector<2x32xf32>
    %209 = arith.addf %207, %208 : vector<2x32xf32>
    %210 = arith.addf %198, %203 : vector<2x32xf32>
    %211 = arith.negf %210 : vector<2x32xf32>
    %212 = math.exp %211 : vector<2x32xf32>
    %cst_71 = arith.constant 1.000000e+00 : f32
    %213 = vector.broadcast %cst_71 : f32 to vector<2x32xf32>
    %214 = arith.addf %213, %212 : vector<2x32xf32>
    %215 = arith.divf %213, %214 : vector<2x32xf32>
    %216 = arith.addf %199, %206 : vector<2x32xf32>
    %217 = arith.negf %216 : vector<2x32xf32>
    %218 = math.exp %217 : vector<2x32xf32>
    %cst_72 = arith.constant 1.000000e+00 : f32
    %219 = vector.broadcast %cst_72 : f32 to vector<2x32xf32>
    %220 = arith.addf %219, %218 : vector<2x32xf32>
    %221 = arith.divf %219, %220 : vector<2x32xf32>
    %222 = arith.mulf %215, %209 : vector<2x32xf32>
    %223 = arith.addf %200, %222 : vector<2x32xf32>
    %224 = math.tanh %223 : vector<2x32xf32>
    %cst_73 = arith.constant 1.000000e+00 : f32
    %225 = vector.broadcast %cst_73 : f32 to vector<2x32xf32>
    %226 = arith.subf %225, %221 : vector<2x32xf32>
    %227 = arith.mulf %226, %224 : vector<2x32xf32>
    %228 = arith.mulf %221, %165 : vector<2x32xf32>
    %229 = arith.addf %227, %228 : vector<2x32xf32>
    %230 = vector.extract_strided_slice %6 {offsets = [6, 0], sizes = [2, 32], strides = [1, 1]} : vector<16x32xf32> to vector<2x32xf32>
    %231 = vector.extract_strided_slice %7 {offsets = [6, 0], sizes = [2, 32], strides = [1, 1]} : vector<16x32xf32> to vector<2x32xf32>
    %232 = vector.extract_strided_slice %8 {offsets = [6, 0], sizes = [2, 32], strides = [1, 1]} : vector<16x32xf32> to vector<2x32xf32>
    %cst_74 = arith.constant dense<0.000000e+00> : vector<2x32xf32>
    %233 = tpu.matmul %197, %13, %cst_74 {dimension_numbers = #tpu.dot_dimension_numbers<[1], [0], [0], [1], [0, 0, 1, 1], [], []>} : vector<2x32xf32>, vector<32x32xf32>, vector<2x32xf32> -> vector<2x32xf32>
    %234 = vector.broadcast %19 : vector<1x32xf32> to vector<2x32xf32>
    %235 = arith.addf %233, %234 : vector<2x32xf32>
    %cst_75 = arith.constant dense<0.000000e+00> : vector<2x32xf32>
    %236 = tpu.matmul %197, %15, %cst_75 {dimension_numbers = #tpu.dot_dimension_numbers<[1], [0], [0], [1], [0, 0, 1, 1], [], []>} : vector<2x32xf32>, vector<32x32xf32>, vector<2x32xf32> -> vector<2x32xf32>
    %237 = vector.broadcast %21 : vector<1x32xf32> to vector<2x32xf32>
    %238 = arith.addf %236, %237 : vector<2x32xf32>
    %cst_76 = arith.constant dense<0.000000e+00> : vector<2x32xf32>
    %239 = tpu.matmul %197, %17, %cst_76 {dimension_numbers = #tpu.dot_dimension_numbers<[1], [0], [0], [1], [0, 0, 1, 1], [], []>} : vector<2x32xf32>, vector<32x32xf32>, vector<2x32xf32> -> vector<2x32xf32>
    %240 = vector.broadcast %23 : vector<1x32xf32> to vector<2x32xf32>
    %241 = arith.addf %239, %240 : vector<2x32xf32>
    %242 = arith.addf %230, %235 : vector<2x32xf32>
    %243 = arith.negf %242 : vector<2x32xf32>
    %244 = math.exp %243 : vector<2x32xf32>
    %cst_77 = arith.constant 1.000000e+00 : f32
    %245 = vector.broadcast %cst_77 : f32 to vector<2x32xf32>
    %246 = arith.addf %245, %244 : vector<2x32xf32>
    %247 = arith.divf %245, %246 : vector<2x32xf32>
    %248 = arith.addf %231, %238 : vector<2x32xf32>
    %249 = arith.negf %248 : vector<2x32xf32>
    %250 = math.exp %249 : vector<2x32xf32>
    %cst_78 = arith.constant 1.000000e+00 : f32
    %251 = vector.broadcast %cst_78 : f32 to vector<2x32xf32>
    %252 = arith.addf %251, %250 : vector<2x32xf32>
    %253 = arith.divf %251, %252 : vector<2x32xf32>
    %254 = arith.mulf %247, %241 : vector<2x32xf32>
    %255 = arith.addf %232, %254 : vector<2x32xf32>
    %256 = math.tanh %255 : vector<2x32xf32>
    %cst_79 = arith.constant 1.000000e+00 : f32
    %257 = vector.broadcast %cst_79 : f32 to vector<2x32xf32>
    %258 = arith.subf %257, %253 : vector<2x32xf32>
    %259 = arith.mulf %258, %256 : vector<2x32xf32>
    %260 = arith.mulf %253, %197 : vector<2x32xf32>
    %261 = arith.addf %259, %260 : vector<2x32xf32>
    %262 = vector.extract_strided_slice %9 {offsets = [8, 0], sizes = [2, 32], strides = [1, 1]} : vector<16x32xf32> to vector<2x32xf32>
    %263 = vector.extract_strided_slice %10 {offsets = [8, 0], sizes = [2, 32], strides = [1, 1]} : vector<16x32xf32> to vector<2x32xf32>
    %264 = vector.extract_strided_slice %11 {offsets = [8, 0], sizes = [2, 32], strides = [1, 1]} : vector<16x32xf32> to vector<2x32xf32>
    %cst_80 = arith.constant dense<0.000000e+00> : vector<2x32xf32>
    %265 = tpu.matmul %229, %25, %cst_80 {dimension_numbers = #tpu.dot_dimension_numbers<[1], [0], [0], [1], [0, 0, 1, 1], [], []>} : vector<2x32xf32>, vector<32x32xf32>, vector<2x32xf32> -> vector<2x32xf32>
    %266 = vector.broadcast %31 : vector<1x32xf32> to vector<2x32xf32>
    %267 = arith.addf %265, %266 : vector<2x32xf32>
    %cst_81 = arith.constant dense<0.000000e+00> : vector<2x32xf32>
    %268 = tpu.matmul %229, %27, %cst_81 {dimension_numbers = #tpu.dot_dimension_numbers<[1], [0], [0], [1], [0, 0, 1, 1], [], []>} : vector<2x32xf32>, vector<32x32xf32>, vector<2x32xf32> -> vector<2x32xf32>
    %269 = vector.broadcast %33 : vector<1x32xf32> to vector<2x32xf32>
    %270 = arith.addf %268, %269 : vector<2x32xf32>
    %cst_82 = arith.constant dense<0.000000e+00> : vector<2x32xf32>
    %271 = tpu.matmul %229, %29, %cst_82 {dimension_numbers = #tpu.dot_dimension_numbers<[1], [0], [0], [1], [0, 0, 1, 1], [], []>} : vector<2x32xf32>, vector<32x32xf32>, vector<2x32xf32> -> vector<2x32xf32>
    %272 = vector.broadcast %35 : vector<1x32xf32> to vector<2x32xf32>
    %273 = arith.addf %271, %272 : vector<2x32xf32>
    %274 = arith.addf %262, %267 : vector<2x32xf32>
    %275 = arith.negf %274 : vector<2x32xf32>
    %276 = math.exp %275 : vector<2x32xf32>
    %cst_83 = arith.constant 1.000000e+00 : f32
    %277 = vector.broadcast %cst_83 : f32 to vector<2x32xf32>
    %278 = arith.addf %277, %276 : vector<2x32xf32>
    %279 = arith.divf %277, %278 : vector<2x32xf32>
    %280 = arith.addf %263, %270 : vector<2x32xf32>
    %281 = arith.negf %280 : vector<2x32xf32>
    %282 = math.exp %281 : vector<2x32xf32>
    %cst_84 = arith.constant 1.000000e+00 : f32
    %283 = vector.broadcast %cst_84 : f32 to vector<2x32xf32>
    %284 = arith.addf %283, %282 : vector<2x32xf32>
    %285 = arith.divf %283, %284 : vector<2x32xf32>
    %286 = arith.mulf %279, %273 : vector<2x32xf32>
    %287 = arith.addf %264, %286 : vector<2x32xf32>
    %288 = math.tanh %287 : vector<2x32xf32>
    %cst_85 = arith.constant 1.000000e+00 : f32
    %289 = vector.broadcast %cst_85 : f32 to vector<2x32xf32>
    %290 = arith.subf %289, %285 : vector<2x32xf32>
    %291 = arith.mulf %290, %288 : vector<2x32xf32>
    %292 = arith.mulf %285, %229 : vector<2x32xf32>
    %293 = arith.addf %291, %292 : vector<2x32xf32>
    %294 = vector.extract_strided_slice %6 {offsets = [8, 0], sizes = [2, 32], strides = [1, 1]} : vector<16x32xf32> to vector<2x32xf32>
    %295 = vector.extract_strided_slice %7 {offsets = [8, 0], sizes = [2, 32], strides = [1, 1]} : vector<16x32xf32> to vector<2x32xf32>
    %296 = vector.extract_strided_slice %8 {offsets = [8, 0], sizes = [2, 32], strides = [1, 1]} : vector<16x32xf32> to vector<2x32xf32>
    %cst_86 = arith.constant dense<0.000000e+00> : vector<2x32xf32>
    %297 = tpu.matmul %261, %13, %cst_86 {dimension_numbers = #tpu.dot_dimension_numbers<[1], [0], [0], [1], [0, 0, 1, 1], [], []>} : vector<2x32xf32>, vector<32x32xf32>, vector<2x32xf32> -> vector<2x32xf32>
    %298 = vector.broadcast %19 : vector<1x32xf32> to vector<2x32xf32>
    %299 = arith.addf %297, %298 : vector<2x32xf32>
    %cst_87 = arith.constant dense<0.000000e+00> : vector<2x32xf32>
    %300 = tpu.matmul %261, %15, %cst_87 {dimension_numbers = #tpu.dot_dimension_numbers<[1], [0], [0], [1], [0, 0, 1, 1], [], []>} : vector<2x32xf32>, vector<32x32xf32>, vector<2x32xf32> -> vector<2x32xf32>
    %301 = vector.broadcast %21 : vector<1x32xf32> to vector<2x32xf32>
    %302 = arith.addf %300, %301 : vector<2x32xf32>
    %cst_88 = arith.constant dense<0.000000e+00> : vector<2x32xf32>
    %303 = tpu.matmul %261, %17, %cst_88 {dimension_numbers = #tpu.dot_dimension_numbers<[1], [0], [0], [1], [0, 0, 1, 1], [], []>} : vector<2x32xf32>, vector<32x32xf32>, vector<2x32xf32> -> vector<2x32xf32>
    %304 = vector.broadcast %23 : vector<1x32xf32> to vector<2x32xf32>
    %305 = arith.addf %303, %304 : vector<2x32xf32>
    %306 = arith.addf %294, %299 : vector<2x32xf32>
    %307 = arith.negf %306 : vector<2x32xf32>
    %308 = math.exp %307 : vector<2x32xf32>
    %cst_89 = arith.constant 1.000000e+00 : f32
    %309 = vector.broadcast %cst_89 : f32 to vector<2x32xf32>
    %310 = arith.addf %309, %308 : vector<2x32xf32>
    %311 = arith.divf %309, %310 : vector<2x32xf32>
    %312 = arith.addf %295, %302 : vector<2x32xf32>
    %313 = arith.negf %312 : vector<2x32xf32>
    %314 = math.exp %313 : vector<2x32xf32>
    %cst_90 = arith.constant 1.000000e+00 : f32
    %315 = vector.broadcast %cst_90 : f32 to vector<2x32xf32>
    %316 = arith.addf %315, %314 : vector<2x32xf32>
    %317 = arith.divf %315, %316 : vector<2x32xf32>
    %318 = arith.mulf %311, %305 : vector<2x32xf32>
    %319 = arith.addf %296, %318 : vector<2x32xf32>
    %320 = math.tanh %319 : vector<2x32xf32>
    %cst_91 = arith.constant 1.000000e+00 : f32
    %321 = vector.broadcast %cst_91 : f32 to vector<2x32xf32>
    %322 = arith.subf %321, %317 : vector<2x32xf32>
    %323 = arith.mulf %322, %320 : vector<2x32xf32>
    %324 = arith.mulf %317, %261 : vector<2x32xf32>
    %325 = arith.addf %323, %324 : vector<2x32xf32>
    %326 = vector.extract_strided_slice %9 {offsets = [6, 0], sizes = [2, 32], strides = [1, 1]} : vector<16x32xf32> to vector<2x32xf32>
    %327 = vector.extract_strided_slice %10 {offsets = [6, 0], sizes = [2, 32], strides = [1, 1]} : vector<16x32xf32> to vector<2x32xf32>
    %328 = vector.extract_strided_slice %11 {offsets = [6, 0], sizes = [2, 32], strides = [1, 1]} : vector<16x32xf32> to vector<2x32xf32>
    %cst_92 = arith.constant dense<0.000000e+00> : vector<2x32xf32>
    %329 = tpu.matmul %293, %25, %cst_92 {dimension_numbers = #tpu.dot_dimension_numbers<[1], [0], [0], [1], [0, 0, 1, 1], [], []>} : vector<2x32xf32>, vector<32x32xf32>, vector<2x32xf32> -> vector<2x32xf32>
    %330 = vector.broadcast %31 : vector<1x32xf32> to vector<2x32xf32>
    %331 = arith.addf %329, %330 : vector<2x32xf32>
    %cst_93 = arith.constant dense<0.000000e+00> : vector<2x32xf32>
    %332 = tpu.matmul %293, %27, %cst_93 {dimension_numbers = #tpu.dot_dimension_numbers<[1], [0], [0], [1], [0, 0, 1, 1], [], []>} : vector<2x32xf32>, vector<32x32xf32>, vector<2x32xf32> -> vector<2x32xf32>
    %333 = vector.broadcast %33 : vector<1x32xf32> to vector<2x32xf32>
    %334 = arith.addf %332, %333 : vector<2x32xf32>
    %cst_94 = arith.constant dense<0.000000e+00> : vector<2x32xf32>
    %335 = tpu.matmul %293, %29, %cst_94 {dimension_numbers = #tpu.dot_dimension_numbers<[1], [0], [0], [1], [0, 0, 1, 1], [], []>} : vector<2x32xf32>, vector<32x32xf32>, vector<2x32xf32> -> vector<2x32xf32>
    %336 = vector.broadcast %35 : vector<1x32xf32> to vector<2x32xf32>
    %337 = arith.addf %335, %336 : vector<2x32xf32>
    %338 = arith.addf %326, %331 : vector<2x32xf32>
    %339 = arith.negf %338 : vector<2x32xf32>
    %340 = math.exp %339 : vector<2x32xf32>
    %cst_95 = arith.constant 1.000000e+00 : f32
    %341 = vector.broadcast %cst_95 : f32 to vector<2x32xf32>
    %342 = arith.addf %341, %340 : vector<2x32xf32>
    %343 = arith.divf %341, %342 : vector<2x32xf32>
    %344 = arith.addf %327, %334 : vector<2x32xf32>
    %345 = arith.negf %344 : vector<2x32xf32>
    %346 = math.exp %345 : vector<2x32xf32>
    %cst_96 = arith.constant 1.000000e+00 : f32
    %347 = vector.broadcast %cst_96 : f32 to vector<2x32xf32>
    %348 = arith.addf %347, %346 : vector<2x32xf32>
    %349 = arith.divf %347, %348 : vector<2x32xf32>
    %350 = arith.mulf %343, %337 : vector<2x32xf32>
    %351 = arith.addf %328, %350 : vector<2x32xf32>
    %352 = math.tanh %351 : vector<2x32xf32>
    %cst_97 = arith.constant 1.000000e+00 : f32
    %353 = vector.broadcast %cst_97 : f32 to vector<2x32xf32>
    %354 = arith.subf %353, %349 : vector<2x32xf32>
    %355 = arith.mulf %354, %352 : vector<2x32xf32>
    %356 = arith.mulf %349, %293 : vector<2x32xf32>
    %357 = arith.addf %355, %356 : vector<2x32xf32>
    %358 = vector.extract_strided_slice %6 {offsets = [10, 0], sizes = [2, 32], strides = [1, 1]} : vector<16x32xf32> to vector<2x32xf32>
    %359 = vector.extract_strided_slice %7 {offsets = [10, 0], sizes = [2, 32], strides = [1, 1]} : vector<16x32xf32> to vector<2x32xf32>
    %360 = vector.extract_strided_slice %8 {offsets = [10, 0], sizes = [2, 32], strides = [1, 1]} : vector<16x32xf32> to vector<2x32xf32>
    %cst_98 = arith.constant dense<0.000000e+00> : vector<2x32xf32>
    %361 = tpu.matmul %325, %13, %cst_98 {dimension_numbers = #tpu.dot_dimension_numbers<[1], [0], [0], [1], [0, 0, 1, 1], [], []>} : vector<2x32xf32>, vector<32x32xf32>, vector<2x32xf32> -> vector<2x32xf32>
    %362 = vector.broadcast %19 : vector<1x32xf32> to vector<2x32xf32>
    %363 = arith.addf %361, %362 : vector<2x32xf32>
    %cst_99 = arith.constant dense<0.000000e+00> : vector<2x32xf32>
    %364 = tpu.matmul %325, %15, %cst_99 {dimension_numbers = #tpu.dot_dimension_numbers<[1], [0], [0], [1], [0, 0, 1, 1], [], []>} : vector<2x32xf32>, vector<32x32xf32>, vector<2x32xf32> -> vector<2x32xf32>
    %365 = vector.broadcast %21 : vector<1x32xf32> to vector<2x32xf32>
    %366 = arith.addf %364, %365 : vector<2x32xf32>
    %cst_100 = arith.constant dense<0.000000e+00> : vector<2x32xf32>
    %367 = tpu.matmul %325, %17, %cst_100 {dimension_numbers = #tpu.dot_dimension_numbers<[1], [0], [0], [1], [0, 0, 1, 1], [], []>} : vector<2x32xf32>, vector<32x32xf32>, vector<2x32xf32> -> vector<2x32xf32>
    %368 = vector.broadcast %23 : vector<1x32xf32> to vector<2x32xf32>
    %369 = arith.addf %367, %368 : vector<2x32xf32>
    %370 = arith.addf %358, %363 : vector<2x32xf32>
    %371 = arith.negf %370 : vector<2x32xf32>
    %372 = math.exp %371 : vector<2x32xf32>
    %cst_101 = arith.constant 1.000000e+00 : f32
    %373 = vector.broadcast %cst_101 : f32 to vector<2x32xf32>
    %374 = arith.addf %373, %372 : vector<2x32xf32>
    %375 = arith.divf %373, %374 : vector<2x32xf32>
    %376 = arith.addf %359, %366 : vector<2x32xf32>
    %377 = arith.negf %376 : vector<2x32xf32>
    %378 = math.exp %377 : vector<2x32xf32>
    %cst_102 = arith.constant 1.000000e+00 : f32
    %379 = vector.broadcast %cst_102 : f32 to vector<2x32xf32>
    %380 = arith.addf %379, %378 : vector<2x32xf32>
    %381 = arith.divf %379, %380 : vector<2x32xf32>
    %382 = arith.mulf %375, %369 : vector<2x32xf32>
    %383 = arith.addf %360, %382 : vector<2x32xf32>
    %384 = math.tanh %383 : vector<2x32xf32>
    %cst_103 = arith.constant 1.000000e+00 : f32
    %385 = vector.broadcast %cst_103 : f32 to vector<2x32xf32>
    %386 = arith.subf %385, %381 : vector<2x32xf32>
    %387 = arith.mulf %386, %384 : vector<2x32xf32>
    %388 = arith.mulf %381, %325 : vector<2x32xf32>
    %389 = arith.addf %387, %388 : vector<2x32xf32>
    %390 = vector.extract_strided_slice %9 {offsets = [4, 0], sizes = [2, 32], strides = [1, 1]} : vector<16x32xf32> to vector<2x32xf32>
    %391 = vector.extract_strided_slice %10 {offsets = [4, 0], sizes = [2, 32], strides = [1, 1]} : vector<16x32xf32> to vector<2x32xf32>
    %392 = vector.extract_strided_slice %11 {offsets = [4, 0], sizes = [2, 32], strides = [1, 1]} : vector<16x32xf32> to vector<2x32xf32>
    %cst_104 = arith.constant dense<0.000000e+00> : vector<2x32xf32>
    %393 = tpu.matmul %357, %25, %cst_104 {dimension_numbers = #tpu.dot_dimension_numbers<[1], [0], [0], [1], [0, 0, 1, 1], [], []>} : vector<2x32xf32>, vector<32x32xf32>, vector<2x32xf32> -> vector<2x32xf32>
    %394 = vector.broadcast %31 : vector<1x32xf32> to vector<2x32xf32>
    %395 = arith.addf %393, %394 : vector<2x32xf32>
    %cst_105 = arith.constant dense<0.000000e+00> : vector<2x32xf32>
    %396 = tpu.matmul %357, %27, %cst_105 {dimension_numbers = #tpu.dot_dimension_numbers<[1], [0], [0], [1], [0, 0, 1, 1], [], []>} : vector<2x32xf32>, vector<32x32xf32>, vector<2x32xf32> -> vector<2x32xf32>
    %397 = vector.broadcast %33 : vector<1x32xf32> to vector<2x32xf32>
    %398 = arith.addf %396, %397 : vector<2x32xf32>
    %cst_106 = arith.constant dense<0.000000e+00> : vector<2x32xf32>
    %399 = tpu.matmul %357, %29, %cst_106 {dimension_numbers = #tpu.dot_dimension_numbers<[1], [0], [0], [1], [0, 0, 1, 1], [], []>} : vector<2x32xf32>, vector<32x32xf32>, vector<2x32xf32> -> vector<2x32xf32>
    %400 = vector.broadcast %35 : vector<1x32xf32> to vector<2x32xf32>
    %401 = arith.addf %399, %400 : vector<2x32xf32>
    %402 = arith.addf %390, %395 : vector<2x32xf32>
    %403 = arith.negf %402 : vector<2x32xf32>
    %404 = math.exp %403 : vector<2x32xf32>
    %cst_107 = arith.constant 1.000000e+00 : f32
    %405 = vector.broadcast %cst_107 : f32 to vector<2x32xf32>
    %406 = arith.addf %405, %404 : vector<2x32xf32>
    %407 = arith.divf %405, %406 : vector<2x32xf32>
    %408 = arith.addf %391, %398 : vector<2x32xf32>
    %409 = arith.negf %408 : vector<2x32xf32>
    %410 = math.exp %409 : vector<2x32xf32>
    %cst_108 = arith.constant 1.000000e+00 : f32
    %411 = vector.broadcast %cst_108 : f32 to vector<2x32xf32>
    %412 = arith.addf %411, %410 : vector<2x32xf32>
    %413 = arith.divf %411, %412 : vector<2x32xf32>
    %414 = arith.mulf %407, %401 : vector<2x32xf32>
    %415 = arith.addf %392, %414 : vector<2x32xf32>
    %416 = math.tanh %415 : vector<2x32xf32>
    %cst_109 = arith.constant 1.000000e+00 : f32
    %417 = vector.broadcast %cst_109 : f32 to vector<2x32xf32>
    %418 = arith.subf %417, %413 : vector<2x32xf32>
    %419 = arith.mulf %418, %416 : vector<2x32xf32>
    %420 = arith.mulf %413, %357 : vector<2x32xf32>
    %421 = arith.addf %419, %420 : vector<2x32xf32>
    %422 = vector.extract_strided_slice %6 {offsets = [12, 0], sizes = [2, 32], strides = [1, 1]} : vector<16x32xf32> to vector<2x32xf32>
    %423 = vector.extract_strided_slice %7 {offsets = [12, 0], sizes = [2, 32], strides = [1, 1]} : vector<16x32xf32> to vector<2x32xf32>
    %424 = vector.extract_strided_slice %8 {offsets = [12, 0], sizes = [2, 32], strides = [1, 1]} : vector<16x32xf32> to vector<2x32xf32>
    %cst_110 = arith.constant dense<0.000000e+00> : vector<2x32xf32>
    %425 = tpu.matmul %389, %13, %cst_110 {dimension_numbers = #tpu.dot_dimension_numbers<[1], [0], [0], [1], [0, 0, 1, 1], [], []>} : vector<2x32xf32>, vector<32x32xf32>, vector<2x32xf32> -> vector<2x32xf32>
    %426 = vector.broadcast %19 : vector<1x32xf32> to vector<2x32xf32>
    %427 = arith.addf %425, %426 : vector<2x32xf32>
    %cst_111 = arith.constant dense<0.000000e+00> : vector<2x32xf32>
    %428 = tpu.matmul %389, %15, %cst_111 {dimension_numbers = #tpu.dot_dimension_numbers<[1], [0], [0], [1], [0, 0, 1, 1], [], []>} : vector<2x32xf32>, vector<32x32xf32>, vector<2x32xf32> -> vector<2x32xf32>
    %429 = vector.broadcast %21 : vector<1x32xf32> to vector<2x32xf32>
    %430 = arith.addf %428, %429 : vector<2x32xf32>
    %cst_112 = arith.constant dense<0.000000e+00> : vector<2x32xf32>
    %431 = tpu.matmul %389, %17, %cst_112 {dimension_numbers = #tpu.dot_dimension_numbers<[1], [0], [0], [1], [0, 0, 1, 1], [], []>} : vector<2x32xf32>, vector<32x32xf32>, vector<2x32xf32> -> vector<2x32xf32>
    %432 = vector.broadcast %23 : vector<1x32xf32> to vector<2x32xf32>
    %433 = arith.addf %431, %432 : vector<2x32xf32>
    %434 = arith.addf %422, %427 : vector<2x32xf32>
    %435 = arith.negf %434 : vector<2x32xf32>
    %436 = math.exp %435 : vector<2x32xf32>
    %cst_113 = arith.constant 1.000000e+00 : f32
    %437 = vector.broadcast %cst_113 : f32 to vector<2x32xf32>
    %438 = arith.addf %437, %436 : vector<2x32xf32>
    %439 = arith.divf %437, %438 : vector<2x32xf32>
    %440 = arith.addf %423, %430 : vector<2x32xf32>
    %441 = arith.negf %440 : vector<2x32xf32>
    %442 = math.exp %441 : vector<2x32xf32>
    %cst_114 = arith.constant 1.000000e+00 : f32
    %443 = vector.broadcast %cst_114 : f32 to vector<2x32xf32>
    %444 = arith.addf %443, %442 : vector<2x32xf32>
    %445 = arith.divf %443, %444 : vector<2x32xf32>
    %446 = arith.mulf %439, %433 : vector<2x32xf32>
    %447 = arith.addf %424, %446 : vector<2x32xf32>
    %448 = math.tanh %447 : vector<2x32xf32>
    %cst_115 = arith.constant 1.000000e+00 : f32
    %449 = vector.broadcast %cst_115 : f32 to vector<2x32xf32>
    %450 = arith.subf %449, %445 : vector<2x32xf32>
    %451 = arith.mulf %450, %448 : vector<2x32xf32>
    %452 = arith.mulf %445, %389 : vector<2x32xf32>
    %453 = arith.addf %451, %452 : vector<2x32xf32>
    %454 = vector.extract_strided_slice %9 {offsets = [2, 0], sizes = [2, 32], strides = [1, 1]} : vector<16x32xf32> to vector<2x32xf32>
    %455 = vector.extract_strided_slice %10 {offsets = [2, 0], sizes = [2, 32], strides = [1, 1]} : vector<16x32xf32> to vector<2x32xf32>
    %456 = vector.extract_strided_slice %11 {offsets = [2, 0], sizes = [2, 32], strides = [1, 1]} : vector<16x32xf32> to vector<2x32xf32>
    %cst_116 = arith.constant dense<0.000000e+00> : vector<2x32xf32>
    %457 = tpu.matmul %421, %25, %cst_116 {dimension_numbers = #tpu.dot_dimension_numbers<[1], [0], [0], [1], [0, 0, 1, 1], [], []>} : vector<2x32xf32>, vector<32x32xf32>, vector<2x32xf32> -> vector<2x32xf32>
    %458 = vector.broadcast %31 : vector<1x32xf32> to vector<2x32xf32>
    %459 = arith.addf %457, %458 : vector<2x32xf32>
    %cst_117 = arith.constant dense<0.000000e+00> : vector<2x32xf32>
    %460 = tpu.matmul %421, %27, %cst_117 {dimension_numbers = #tpu.dot_dimension_numbers<[1], [0], [0], [1], [0, 0, 1, 1], [], []>} : vector<2x32xf32>, vector<32x32xf32>, vector<2x32xf32> -> vector<2x32xf32>
    %461 = vector.broadcast %33 : vector<1x32xf32> to vector<2x32xf32>
    %462 = arith.addf %460, %461 : vector<2x32xf32>
    %cst_118 = arith.constant dense<0.000000e+00> : vector<2x32xf32>
    %463 = tpu.matmul %421, %29, %cst_118 {dimension_numbers = #tpu.dot_dimension_numbers<[1], [0], [0], [1], [0, 0, 1, 1], [], []>} : vector<2x32xf32>, vector<32x32xf32>, vector<2x32xf32> -> vector<2x32xf32>
    %464 = vector.broadcast %35 : vector<1x32xf32> to vector<2x32xf32>
    %465 = arith.addf %463, %464 : vector<2x32xf32>
    %466 = arith.addf %454, %459 : vector<2x32xf32>
    %467 = arith.negf %466 : vector<2x32xf32>
    %468 = math.exp %467 : vector<2x32xf32>
    %cst_119 = arith.constant 1.000000e+00 : f32
    %469 = vector.broadcast %cst_119 : f32 to vector<2x32xf32>
    %470 = arith.addf %469, %468 : vector<2x32xf32>
    %471 = arith.divf %469, %470 : vector<2x32xf32>
    %472 = arith.addf %455, %462 : vector<2x32xf32>
    %473 = arith.negf %472 : vector<2x32xf32>
    %474 = math.exp %473 : vector<2x32xf32>
    %cst_120 = arith.constant 1.000000e+00 : f32
    %475 = vector.broadcast %cst_120 : f32 to vector<2x32xf32>
    %476 = arith.addf %475, %474 : vector<2x32xf32>
    %477 = arith.divf %475, %476 : vector<2x32xf32>
    %478 = arith.mulf %471, %465 : vector<2x32xf32>
    %479 = arith.addf %456, %478 : vector<2x32xf32>
    %480 = math.tanh %479 : vector<2x32xf32>
    %cst_121 = arith.constant 1.000000e+00 : f32
    %481 = vector.broadcast %cst_121 : f32 to vector<2x32xf32>
    %482 = arith.subf %481, %477 : vector<2x32xf32>
    %483 = arith.mulf %482, %480 : vector<2x32xf32>
    %484 = arith.mulf %477, %421 : vector<2x32xf32>
    %485 = arith.addf %483, %484 : vector<2x32xf32>
    %486 = vector.extract_strided_slice %6 {offsets = [14, 0], sizes = [2, 32], strides = [1, 1]} : vector<16x32xf32> to vector<2x32xf32>
    %487 = vector.extract_strided_slice %7 {offsets = [14, 0], sizes = [2, 32], strides = [1, 1]} : vector<16x32xf32> to vector<2x32xf32>
    %488 = vector.extract_strided_slice %8 {offsets = [14, 0], sizes = [2, 32], strides = [1, 1]} : vector<16x32xf32> to vector<2x32xf32>
    %cst_122 = arith.constant dense<0.000000e+00> : vector<2x32xf32>
    %489 = tpu.matmul %453, %13, %cst_122 {dimension_numbers = #tpu.dot_dimension_numbers<[1], [0], [0], [1], [0, 0, 1, 1], [], []>} : vector<2x32xf32>, vector<32x32xf32>, vector<2x32xf32> -> vector<2x32xf32>
    %490 = vector.broadcast %19 : vector<1x32xf32> to vector<2x32xf32>
    %491 = arith.addf %489, %490 : vector<2x32xf32>
    %cst_123 = arith.constant dense<0.000000e+00> : vector<2x32xf32>
    %492 = tpu.matmul %453, %15, %cst_123 {dimension_numbers = #tpu.dot_dimension_numbers<[1], [0], [0], [1], [0, 0, 1, 1], [], []>} : vector<2x32xf32>, vector<32x32xf32>, vector<2x32xf32> -> vector<2x32xf32>
    %493 = vector.broadcast %21 : vector<1x32xf32> to vector<2x32xf32>
    %494 = arith.addf %492, %493 : vector<2x32xf32>
    %cst_124 = arith.constant dense<0.000000e+00> : vector<2x32xf32>
    %495 = tpu.matmul %453, %17, %cst_124 {dimension_numbers = #tpu.dot_dimension_numbers<[1], [0], [0], [1], [0, 0, 1, 1], [], []>} : vector<2x32xf32>, vector<32x32xf32>, vector<2x32xf32> -> vector<2x32xf32>
    %496 = vector.broadcast %23 : vector<1x32xf32> to vector<2x32xf32>
    %497 = arith.addf %495, %496 : vector<2x32xf32>
    %498 = arith.addf %486, %491 : vector<2x32xf32>
    %499 = arith.negf %498 : vector<2x32xf32>
    %500 = math.exp %499 : vector<2x32xf32>
    %cst_125 = arith.constant 1.000000e+00 : f32
    %501 = vector.broadcast %cst_125 : f32 to vector<2x32xf32>
    %502 = arith.addf %501, %500 : vector<2x32xf32>
    %503 = arith.divf %501, %502 : vector<2x32xf32>
    %504 = arith.addf %487, %494 : vector<2x32xf32>
    %505 = arith.negf %504 : vector<2x32xf32>
    %506 = math.exp %505 : vector<2x32xf32>
    %cst_126 = arith.constant 1.000000e+00 : f32
    %507 = vector.broadcast %cst_126 : f32 to vector<2x32xf32>
    %508 = arith.addf %507, %506 : vector<2x32xf32>
    %509 = arith.divf %507, %508 : vector<2x32xf32>
    %510 = arith.mulf %503, %497 : vector<2x32xf32>
    %511 = arith.addf %488, %510 : vector<2x32xf32>
    %512 = math.tanh %511 : vector<2x32xf32>
    %cst_127 = arith.constant 1.000000e+00 : f32
    %513 = vector.broadcast %cst_127 : f32 to vector<2x32xf32>
    %514 = arith.subf %513, %509 : vector<2x32xf32>
    %515 = arith.mulf %514, %512 : vector<2x32xf32>
    %516 = arith.mulf %509, %453 : vector<2x32xf32>
    %517 = arith.addf %515, %516 : vector<2x32xf32>
    %518 = vector.extract_strided_slice %9 {offsets = [0, 0], sizes = [2, 32], strides = [1, 1]} : vector<16x32xf32> to vector<2x32xf32>
    %519 = vector.extract_strided_slice %10 {offsets = [0, 0], sizes = [2, 32], strides = [1, 1]} : vector<16x32xf32> to vector<2x32xf32>
    %520 = vector.extract_strided_slice %11 {offsets = [0, 0], sizes = [2, 32], strides = [1, 1]} : vector<16x32xf32> to vector<2x32xf32>
    %cst_128 = arith.constant dense<0.000000e+00> : vector<2x32xf32>
    %521 = tpu.matmul %485, %25, %cst_128 {dimension_numbers = #tpu.dot_dimension_numbers<[1], [0], [0], [1], [0, 0, 1, 1], [], []>} : vector<2x32xf32>, vector<32x32xf32>, vector<2x32xf32> -> vector<2x32xf32>
    %522 = vector.broadcast %31 : vector<1x32xf32> to vector<2x32xf32>
    %523 = arith.addf %521, %522 : vector<2x32xf32>
    %cst_129 = arith.constant dense<0.000000e+00> : vector<2x32xf32>
    %524 = tpu.matmul %485, %27, %cst_129 {dimension_numbers = #tpu.dot_dimension_numbers<[1], [0], [0], [1], [0, 0, 1, 1], [], []>} : vector<2x32xf32>, vector<32x32xf32>, vector<2x32xf32> -> vector<2x32xf32>
    %525 = vector.broadcast %33 : vector<1x32xf32> to vector<2x32xf32>
    %526 = arith.addf %524, %525 : vector<2x32xf32>
    %cst_130 = arith.constant dense<0.000000e+00> : vector<2x32xf32>
    %527 = tpu.matmul %485, %29, %cst_130 {dimension_numbers = #tpu.dot_dimension_numbers<[1], [0], [0], [1], [0, 0, 1, 1], [], []>} : vector<2x32xf32>, vector<32x32xf32>, vector<2x32xf32> -> vector<2x32xf32>
    %528 = vector.broadcast %35 : vector<1x32xf32> to vector<2x32xf32>
    %529 = arith.addf %527, %528 : vector<2x32xf32>
    %530 = arith.addf %518, %523 : vector<2x32xf32>
    %531 = arith.negf %530 : vector<2x32xf32>
    %532 = math.exp %531 : vector<2x32xf32>
    %cst_131 = arith.constant 1.000000e+00 : f32
    %533 = vector.broadcast %cst_131 : f32 to vector<2x32xf32>
    %534 = arith.addf %533, %532 : vector<2x32xf32>
    %535 = arith.divf %533, %534 : vector<2x32xf32>
    %536 = arith.addf %519, %526 : vector<2x32xf32>
    %537 = arith.negf %536 : vector<2x32xf32>
    %538 = math.exp %537 : vector<2x32xf32>
    %cst_132 = arith.constant 1.000000e+00 : f32
    %539 = vector.broadcast %cst_132 : f32 to vector<2x32xf32>
    %540 = arith.addf %539, %538 : vector<2x32xf32>
    %541 = arith.divf %539, %540 : vector<2x32xf32>
    %542 = arith.mulf %535, %529 : vector<2x32xf32>
    %543 = arith.addf %520, %542 : vector<2x32xf32>
    %544 = math.tanh %543 : vector<2x32xf32>
    %cst_133 = arith.constant 1.000000e+00 : f32
    %545 = vector.broadcast %cst_133 : f32 to vector<2x32xf32>
    %546 = arith.subf %545, %541 : vector<2x32xf32>
    %547 = arith.mulf %546, %544 : vector<2x32xf32>
    %548 = arith.mulf %541, %485 : vector<2x32xf32>
    %549 = arith.addf %547, %548 : vector<2x32xf32>
    %550 = tpu.concatenate %69, %549 in 1 : vector<2x32xf32>, vector<2x32xf32> -> vector<2x64xf32>
    %c0_134 = arith.constant 0 : index
    %c0_135 = arith.constant 0 : index
    %551 = vector.load %arg5[%c0_134, %c0_135] : memref<64x192xf32, #tpu.memory_space<vmem>>, vector<64x192xf32>
    %cst_136 = arith.constant dense<0.000000e+00> : vector<2x192xf32>
    %552 = tpu.matmul %550, %551, %cst_136 {dimension_numbers = #tpu.dot_dimension_numbers<[1], [0], [0], [1], [0, 0, 1, 1], [], []>} : vector<2x64xf32>, vector<64x192xf32>, vector<2x192xf32> -> vector<2x192xf32>
    %c0_137 = arith.constant 0 : index
    %c0_138 = arith.constant 0 : index
    %553 = vector.load %arg6[%c0_137, %c0_138] : memref<1x192xf32, #tpu.memory_space<vmem>>, vector<1x192xf32>
    %554 = vector.broadcast %553 : vector<1x192xf32> to vector<2x192xf32>
    %555 = arith.addf %552, %554 : vector<2x192xf32>
    %556 = tpu.concatenate %133, %485 in 1 : vector<2x32xf32>, vector<2x32xf32> -> vector<2x64xf32>
    %c0_139 = arith.constant 0 : index
    %c0_140 = arith.constant 0 : index
    %557 = vector.load %arg5[%c0_139, %c0_140] : memref<64x192xf32, #tpu.memory_space<vmem>>, vector<64x192xf32>
    %cst_141 = arith.constant dense<0.000000e+00> : vector<2x192xf32>
    %558 = tpu.matmul %556, %557, %cst_141 {dimension_numbers = #tpu.dot_dimension_numbers<[1], [0], [0], [1], [0, 0, 1, 1], [], []>} : vector<2x64xf32>, vector<64x192xf32>, vector<2x192xf32> -> vector<2x192xf32>
    %c0_142 = arith.constant 0 : index
    %c0_143 = arith.constant 0 : index
    %559 = vector.load %arg6[%c0_142, %c0_143] : memref<1x192xf32, #tpu.memory_space<vmem>>, vector<1x192xf32>
    %560 = vector.broadcast %559 : vector<1x192xf32> to vector<2x192xf32>
    %561 = arith.addf %558, %560 : vector<2x192xf32>
    %562 = tpu.concatenate %197, %421 in 1 : vector<2x32xf32>, vector<2x32xf32> -> vector<2x64xf32>
    %c0_144 = arith.constant 0 : index
    %c0_145 = arith.constant 0 : index
    %563 = vector.load %arg5[%c0_144, %c0_145] : memref<64x192xf32, #tpu.memory_space<vmem>>, vector<64x192xf32>
    %cst_146 = arith.constant dense<0.000000e+00> : vector<2x192xf32>
    %564 = tpu.matmul %562, %563, %cst_146 {dimension_numbers = #tpu.dot_dimension_numbers<[1], [0], [0], [1], [0, 0, 1, 1], [], []>} : vector<2x64xf32>, vector<64x192xf32>, vector<2x192xf32> -> vector<2x192xf32>
    %c0_147 = arith.constant 0 : index
    %c0_148 = arith.constant 0 : index
    %565 = vector.load %arg6[%c0_147, %c0_148] : memref<1x192xf32, #tpu.memory_space<vmem>>, vector<1x192xf32>
    %566 = vector.broadcast %565 : vector<1x192xf32> to vector<2x192xf32>
    %567 = arith.addf %564, %566 : vector<2x192xf32>
    %568 = tpu.concatenate %261, %357 in 1 : vector<2x32xf32>, vector<2x32xf32> -> vector<2x64xf32>
    %c0_149 = arith.constant 0 : index
    %c0_150 = arith.constant 0 : index
    %569 = vector.load %arg5[%c0_149, %c0_150] : memref<64x192xf32, #tpu.memory_space<vmem>>, vector<64x192xf32>
    %cst_151 = arith.constant dense<0.000000e+00> : vector<2x192xf32>
    %570 = tpu.matmul %568, %569, %cst_151 {dimension_numbers = #tpu.dot_dimension_numbers<[1], [0], [0], [1], [0, 0, 1, 1], [], []>} : vector<2x64xf32>, vector<64x192xf32>, vector<2x192xf32> -> vector<2x192xf32>
    %c0_152 = arith.constant 0 : index
    %c0_153 = arith.constant 0 : index
    %571 = vector.load %arg6[%c0_152, %c0_153] : memref<1x192xf32, #tpu.memory_space<vmem>>, vector<1x192xf32>
    %572 = vector.broadcast %571 : vector<1x192xf32> to vector<2x192xf32>
    %573 = arith.addf %570, %572 : vector<2x192xf32>
    %574 = tpu.concatenate %325, %293 in 1 : vector<2x32xf32>, vector<2x32xf32> -> vector<2x64xf32>
    %c0_154 = arith.constant 0 : index
    %c0_155 = arith.constant 0 : index
    %575 = vector.load %arg5[%c0_154, %c0_155] : memref<64x192xf32, #tpu.memory_space<vmem>>, vector<64x192xf32>
    %cst_156 = arith.constant dense<0.000000e+00> : vector<2x192xf32>
    %576 = tpu.matmul %574, %575, %cst_156 {dimension_numbers = #tpu.dot_dimension_numbers<[1], [0], [0], [1], [0, 0, 1, 1], [], []>} : vector<2x64xf32>, vector<64x192xf32>, vector<2x192xf32> -> vector<2x192xf32>
    %c0_157 = arith.constant 0 : index
    %c0_158 = arith.constant 0 : index
    %577 = vector.load %arg6[%c0_157, %c0_158] : memref<1x192xf32, #tpu.memory_space<vmem>>, vector<1x192xf32>
    %578 = vector.broadcast %577 : vector<1x192xf32> to vector<2x192xf32>
    %579 = arith.addf %576, %578 : vector<2x192xf32>
    %580 = tpu.concatenate %389, %229 in 1 : vector<2x32xf32>, vector<2x32xf32> -> vector<2x64xf32>
    %c0_159 = arith.constant 0 : index
    %c0_160 = arith.constant 0 : index
    %581 = vector.load %arg5[%c0_159, %c0_160] : memref<64x192xf32, #tpu.memory_space<vmem>>, vector<64x192xf32>
    %cst_161 = arith.constant dense<0.000000e+00> : vector<2x192xf32>
    %582 = tpu.matmul %580, %581, %cst_161 {dimension_numbers = #tpu.dot_dimension_numbers<[1], [0], [0], [1], [0, 0, 1, 1], [], []>} : vector<2x64xf32>, vector<64x192xf32>, vector<2x192xf32> -> vector<2x192xf32>
    %c0_162 = arith.constant 0 : index
    %c0_163 = arith.constant 0 : index
    %583 = vector.load %arg6[%c0_162, %c0_163] : memref<1x192xf32, #tpu.memory_space<vmem>>, vector<1x192xf32>
    %584 = vector.broadcast %583 : vector<1x192xf32> to vector<2x192xf32>
    %585 = arith.addf %582, %584 : vector<2x192xf32>
    %586 = tpu.concatenate %453, %165 in 1 : vector<2x32xf32>, vector<2x32xf32> -> vector<2x64xf32>
    %c0_164 = arith.constant 0 : index
    %c0_165 = arith.constant 0 : index
    %587 = vector.load %arg5[%c0_164, %c0_165] : memref<64x192xf32, #tpu.memory_space<vmem>>, vector<64x192xf32>
    %cst_166 = arith.constant dense<0.000000e+00> : vector<2x192xf32>
    %588 = tpu.matmul %586, %587, %cst_166 {dimension_numbers = #tpu.dot_dimension_numbers<[1], [0], [0], [1], [0, 0, 1, 1], [], []>} : vector<2x64xf32>, vector<64x192xf32>, vector<2x192xf32> -> vector<2x192xf32>
    %c0_167 = arith.constant 0 : index
    %c0_168 = arith.constant 0 : index
    %589 = vector.load %arg6[%c0_167, %c0_168] : memref<1x192xf32, #tpu.memory_space<vmem>>, vector<1x192xf32>
    %590 = vector.broadcast %589 : vector<1x192xf32> to vector<2x192xf32>
    %591 = arith.addf %588, %590 : vector<2x192xf32>
    %592 = tpu.concatenate %517, %101 in 1 : vector<2x32xf32>, vector<2x32xf32> -> vector<2x64xf32>
    %c0_169 = arith.constant 0 : index
    %c0_170 = arith.constant 0 : index
    %593 = vector.load %arg5[%c0_169, %c0_170] : memref<64x192xf32, #tpu.memory_space<vmem>>, vector<64x192xf32>
    %cst_171 = arith.constant dense<0.000000e+00> : vector<2x192xf32>
    %594 = tpu.matmul %592, %593, %cst_171 {dimension_numbers = #tpu.dot_dimension_numbers<[1], [0], [0], [1], [0, 0, 1, 1], [], []>} : vector<2x64xf32>, vector<64x192xf32>, vector<2x192xf32> -> vector<2x192xf32>
    %c0_172 = arith.constant 0 : index
    %c0_173 = arith.constant 0 : index
    %595 = vector.load %arg6[%c0_172, %c0_173] : memref<1x192xf32, #tpu.memory_space<vmem>>, vector<1x192xf32>
    %596 = vector.broadcast %595 : vector<1x192xf32> to vector<2x192xf32>
    %597 = arith.addf %594, %596 : vector<2x192xf32>
    %c0_174 = arith.constant 0 : index
    %c0_175 = arith.constant 0 : index
    %c0_176 = arith.constant 0 : index
    %598 = vector.load %arg7[%c0_174, %c0_175, %c0_176] : memref<6x32x32xf32, #tpu.memory_space<vmem>>, vector<1x32x32xf32>
    %599 = vector.shape_cast %598 : vector<1x32x32xf32> to vector<32x32xf32>
    %c1_177 = arith.constant 1 : index
    %c0_178 = arith.constant 0 : index
    %c0_179 = arith.constant 0 : index
    %600 = vector.load %arg7[%c1_177, %c0_178, %c0_179] : memref<6x32x32xf32, #tpu.memory_space<vmem>>, vector<1x32x32xf32>
    %601 = vector.shape_cast %600 : vector<1x32x32xf32> to vector<32x32xf32>
    %c2_180 = arith.constant 2 : index
    %c0_181 = arith.constant 0 : index
    %c0_182 = arith.constant 0 : index
    %602 = vector.load %arg7[%c2_180, %c0_181, %c0_182] : memref<6x32x32xf32, #tpu.memory_space<vmem>>, vector<1x32x32xf32>
    %603 = vector.shape_cast %602 : vector<1x32x32xf32> to vector<32x32xf32>
    %c0_183 = arith.constant 0 : index
    %c0_184 = arith.constant 0 : index
    %c0_185 = arith.constant 0 : index
    %604 = vector.load %arg8[%c0_183, %c0_184, %c0_185] : memref<6x1x32xf32, #tpu.memory_space<vmem>>, vector<1x1x32xf32>
    %605 = vector.shape_cast %604 : vector<1x1x32xf32> to vector<1x32xf32>
    %c1_186 = arith.constant 1 : index
    %c0_187 = arith.constant 0 : index
    %c0_188 = arith.constant 0 : index
    %606 = vector.load %arg8[%c1_186, %c0_187, %c0_188] : memref<6x1x32xf32, #tpu.memory_space<vmem>>, vector<1x1x32xf32>
    %607 = vector.shape_cast %606 : vector<1x1x32xf32> to vector<1x32xf32>
    %c2_189 = arith.constant 2 : index
    %c0_190 = arith.constant 0 : index
    %c0_191 = arith.constant 0 : index
    %608 = vector.load %arg8[%c2_189, %c0_190, %c0_191] : memref<6x1x32xf32, #tpu.memory_space<vmem>>, vector<1x1x32xf32>
    %609 = vector.shape_cast %608 : vector<1x1x32xf32> to vector<1x32xf32>
    %c3_192 = arith.constant 3 : index
    %c0_193 = arith.constant 0 : index
    %c0_194 = arith.constant 0 : index
    %610 = vector.load %arg7[%c3_192, %c0_193, %c0_194] : memref<6x32x32xf32, #tpu.memory_space<vmem>>, vector<1x32x32xf32>
    %611 = vector.shape_cast %610 : vector<1x32x32xf32> to vector<32x32xf32>
    %c4_195 = arith.constant 4 : index
    %c0_196 = arith.constant 0 : index
    %c0_197 = arith.constant 0 : index
    %612 = vector.load %arg7[%c4_195, %c0_196, %c0_197] : memref<6x32x32xf32, #tpu.memory_space<vmem>>, vector<1x32x32xf32>
    %613 = vector.shape_cast %612 : vector<1x32x32xf32> to vector<32x32xf32>
    %c5_198 = arith.constant 5 : index
    %c0_199 = arith.constant 0 : index
    %c0_200 = arith.constant 0 : index
    %614 = vector.load %arg7[%c5_198, %c0_199, %c0_200] : memref<6x32x32xf32, #tpu.memory_space<vmem>>, vector<1x32x32xf32>
    %615 = vector.shape_cast %614 : vector<1x32x32xf32> to vector<32x32xf32>
    %c3_201 = arith.constant 3 : index
    %c0_202 = arith.constant 0 : index
    %c0_203 = arith.constant 0 : index
    %616 = vector.load %arg8[%c3_201, %c0_202, %c0_203] : memref<6x1x32xf32, #tpu.memory_space<vmem>>, vector<1x1x32xf32>
    %617 = vector.shape_cast %616 : vector<1x1x32xf32> to vector<1x32xf32>
    %c4_204 = arith.constant 4 : index
    %c0_205 = arith.constant 0 : index
    %c0_206 = arith.constant 0 : index
    %618 = vector.load %arg8[%c4_204, %c0_205, %c0_206] : memref<6x1x32xf32, #tpu.memory_space<vmem>>, vector<1x1x32xf32>
    %619 = vector.shape_cast %618 : vector<1x1x32xf32> to vector<1x32xf32>
    %c5_207 = arith.constant 5 : index
    %c0_208 = arith.constant 0 : index
    %c0_209 = arith.constant 0 : index
    %620 = vector.load %arg8[%c5_207, %c0_208, %c0_209] : memref<6x1x32xf32, #tpu.memory_space<vmem>>, vector<1x1x32xf32>
    %621 = vector.shape_cast %620 : vector<1x1x32xf32> to vector<1x32xf32>
    %cst_210 = arith.constant 0.000000e+00 : f32
    %622 = vector.broadcast %cst_210 : f32 to vector<2x32xf32>
    %cst_211 = arith.constant 0.000000e+00 : f32
    %623 = vector.broadcast %cst_211 : f32 to vector<2x32xf32>
    %cst_212 = arith.constant 0.000000e+00 : f32
    %624 = vector.broadcast %cst_212 : f32 to vector<2x32xf32>
    %cst_213 = arith.constant 0.000000e+00 : f32
    %625 = vector.broadcast %cst_213 : f32 to vector<2x32xf32>
    %cst_214 = arith.constant 0xFF800000 : f32
    %626 = vector.broadcast %cst_214 : f32 to vector<2x32xf32>
    %cst_215 = arith.constant 0xFF800000 : f32
    %627 = vector.broadcast %cst_215 : f32 to vector<2x32xf32>
    %628 = vector.extract_strided_slice %555 {offsets = [0, 0], sizes = [2, 32], strides = [1, 1]} : vector<2x192xf32> to vector<2x32xf32>
    %629 = vector.extract_strided_slice %555 {offsets = [0, 32], sizes = [2, 32], strides = [1, 1]} : vector<2x192xf32> to vector<2x32xf32>
    %630 = vector.extract_strided_slice %555 {offsets = [0, 64], sizes = [2, 32], strides = [1, 1]} : vector<2x192xf32> to vector<2x32xf32>
    %cst_216 = arith.constant dense<0.000000e+00> : vector<2x32xf32>
    %631 = tpu.matmul %622, %599, %cst_216 {dimension_numbers = #tpu.dot_dimension_numbers<[1], [0], [0], [1], [0, 0, 1, 1], [], []>} : vector<2x32xf32>, vector<32x32xf32>, vector<2x32xf32> -> vector<2x32xf32>
    %632 = vector.broadcast %605 : vector<1x32xf32> to vector<2x32xf32>
    %633 = arith.addf %631, %632 : vector<2x32xf32>
    %cst_217 = arith.constant dense<0.000000e+00> : vector<2x32xf32>
    %634 = tpu.matmul %622, %601, %cst_217 {dimension_numbers = #tpu.dot_dimension_numbers<[1], [0], [0], [1], [0, 0, 1, 1], [], []>} : vector<2x32xf32>, vector<32x32xf32>, vector<2x32xf32> -> vector<2x32xf32>
    %635 = vector.broadcast %607 : vector<1x32xf32> to vector<2x32xf32>
    %636 = arith.addf %634, %635 : vector<2x32xf32>
    %cst_218 = arith.constant dense<0.000000e+00> : vector<2x32xf32>
    %637 = tpu.matmul %622, %603, %cst_218 {dimension_numbers = #tpu.dot_dimension_numbers<[1], [0], [0], [1], [0, 0, 1, 1], [], []>} : vector<2x32xf32>, vector<32x32xf32>, vector<2x32xf32> -> vector<2x32xf32>
    %638 = vector.broadcast %609 : vector<1x32xf32> to vector<2x32xf32>
    %639 = arith.addf %637, %638 : vector<2x32xf32>
    %640 = arith.addf %628, %633 : vector<2x32xf32>
    %641 = arith.negf %640 : vector<2x32xf32>
    %642 = math.exp %641 : vector<2x32xf32>
    %cst_219 = arith.constant 1.000000e+00 : f32
    %643 = vector.broadcast %cst_219 : f32 to vector<2x32xf32>
    %644 = arith.addf %643, %642 : vector<2x32xf32>
    %645 = arith.divf %643, %644 : vector<2x32xf32>
    %646 = arith.addf %629, %636 : vector<2x32xf32>
    %647 = arith.negf %646 : vector<2x32xf32>
    %648 = math.exp %647 : vector<2x32xf32>
    %cst_220 = arith.constant 1.000000e+00 : f32
    %649 = vector.broadcast %cst_220 : f32 to vector<2x32xf32>
    %650 = arith.addf %649, %648 : vector<2x32xf32>
    %651 = arith.divf %649, %650 : vector<2x32xf32>
    %652 = arith.mulf %645, %639 : vector<2x32xf32>
    %653 = arith.addf %630, %652 : vector<2x32xf32>
    %654 = math.tanh %653 : vector<2x32xf32>
    %cst_221 = arith.constant 1.000000e+00 : f32
    %655 = vector.broadcast %cst_221 : f32 to vector<2x32xf32>
    %656 = arith.subf %655, %651 : vector<2x32xf32>
    %657 = arith.mulf %656, %654 : vector<2x32xf32>
    %658 = arith.mulf %651, %622 : vector<2x32xf32>
    %659 = arith.addf %657, %658 : vector<2x32xf32>
    %660 = vector.extract_strided_slice %597 {offsets = [0, 96], sizes = [2, 32], strides = [1, 1]} : vector<2x192xf32> to vector<2x32xf32>
    %661 = vector.extract_strided_slice %597 {offsets = [0, 128], sizes = [2, 32], strides = [1, 1]} : vector<2x192xf32> to vector<2x32xf32>
    %662 = vector.extract_strided_slice %597 {offsets = [0, 160], sizes = [2, 32], strides = [1, 1]} : vector<2x192xf32> to vector<2x32xf32>
    %cst_222 = arith.constant dense<0.000000e+00> : vector<2x32xf32>
    %663 = tpu.matmul %623, %611, %cst_222 {dimension_numbers = #tpu.dot_dimension_numbers<[1], [0], [0], [1], [0, 0, 1, 1], [], []>} : vector<2x32xf32>, vector<32x32xf32>, vector<2x32xf32> -> vector<2x32xf32>
    %664 = vector.broadcast %617 : vector<1x32xf32> to vector<2x32xf32>
    %665 = arith.addf %663, %664 : vector<2x32xf32>
    %cst_223 = arith.constant dense<0.000000e+00> : vector<2x32xf32>
    %666 = tpu.matmul %623, %613, %cst_223 {dimension_numbers = #tpu.dot_dimension_numbers<[1], [0], [0], [1], [0, 0, 1, 1], [], []>} : vector<2x32xf32>, vector<32x32xf32>, vector<2x32xf32> -> vector<2x32xf32>
    %667 = vector.broadcast %619 : vector<1x32xf32> to vector<2x32xf32>
    %668 = arith.addf %666, %667 : vector<2x32xf32>
    %cst_224 = arith.constant dense<0.000000e+00> : vector<2x32xf32>
    %669 = tpu.matmul %623, %615, %cst_224 {dimension_numbers = #tpu.dot_dimension_numbers<[1], [0], [0], [1], [0, 0, 1, 1], [], []>} : vector<2x32xf32>, vector<32x32xf32>, vector<2x32xf32> -> vector<2x32xf32>
    %670 = vector.broadcast %621 : vector<1x32xf32> to vector<2x32xf32>
    %671 = arith.addf %669, %670 : vector<2x32xf32>
    %672 = arith.addf %660, %665 : vector<2x32xf32>
    %673 = arith.negf %672 : vector<2x32xf32>
    %674 = math.exp %673 : vector<2x32xf32>
    %cst_225 = arith.constant 1.000000e+00 : f32
    %675 = vector.broadcast %cst_225 : f32 to vector<2x32xf32>
    %676 = arith.addf %675, %674 : vector<2x32xf32>
    %677 = arith.divf %675, %676 : vector<2x32xf32>
    %678 = arith.addf %661, %668 : vector<2x32xf32>
    %679 = arith.negf %678 : vector<2x32xf32>
    %680 = math.exp %679 : vector<2x32xf32>
    %cst_226 = arith.constant 1.000000e+00 : f32
    %681 = vector.broadcast %cst_226 : f32 to vector<2x32xf32>
    %682 = arith.addf %681, %680 : vector<2x32xf32>
    %683 = arith.divf %681, %682 : vector<2x32xf32>
    %684 = arith.mulf %677, %671 : vector<2x32xf32>
    %685 = arith.addf %662, %684 : vector<2x32xf32>
    %686 = math.tanh %685 : vector<2x32xf32>
    %cst_227 = arith.constant 1.000000e+00 : f32
    %687 = vector.broadcast %cst_227 : f32 to vector<2x32xf32>
    %688 = arith.subf %687, %683 : vector<2x32xf32>
    %689 = arith.mulf %688, %686 : vector<2x32xf32>
    %690 = arith.mulf %683, %623 : vector<2x32xf32>
    %691 = arith.addf %689, %690 : vector<2x32xf32>
    %692 = arith.addf %624, %659 : vector<2x32xf32>
    %693 = arith.addf %625, %691 : vector<2x32xf32>
    %694 = arith.maximumf %626, %659 : vector<2x32xf32>
    %695 = arith.maximumf %627, %691 : vector<2x32xf32>
    %696 = vector.extract_strided_slice %561 {offsets = [0, 0], sizes = [2, 32], strides = [1, 1]} : vector<2x192xf32> to vector<2x32xf32>
    %697 = vector.extract_strided_slice %561 {offsets = [0, 32], sizes = [2, 32], strides = [1, 1]} : vector<2x192xf32> to vector<2x32xf32>
    %698 = vector.extract_strided_slice %561 {offsets = [0, 64], sizes = [2, 32], strides = [1, 1]} : vector<2x192xf32> to vector<2x32xf32>
    %cst_228 = arith.constant dense<0.000000e+00> : vector<2x32xf32>
    %699 = tpu.matmul %659, %599, %cst_228 {dimension_numbers = #tpu.dot_dimension_numbers<[1], [0], [0], [1], [0, 0, 1, 1], [], []>} : vector<2x32xf32>, vector<32x32xf32>, vector<2x32xf32> -> vector<2x32xf32>
    %700 = vector.broadcast %605 : vector<1x32xf32> to vector<2x32xf32>
    %701 = arith.addf %699, %700 : vector<2x32xf32>
    %cst_229 = arith.constant dense<0.000000e+00> : vector<2x32xf32>
    %702 = tpu.matmul %659, %601, %cst_229 {dimension_numbers = #tpu.dot_dimension_numbers<[1], [0], [0], [1], [0, 0, 1, 1], [], []>} : vector<2x32xf32>, vector<32x32xf32>, vector<2x32xf32> -> vector<2x32xf32>
    %703 = vector.broadcast %607 : vector<1x32xf32> to vector<2x32xf32>
    %704 = arith.addf %702, %703 : vector<2x32xf32>
    %cst_230 = arith.constant dense<0.000000e+00> : vector<2x32xf32>
    %705 = tpu.matmul %659, %603, %cst_230 {dimension_numbers = #tpu.dot_dimension_numbers<[1], [0], [0], [1], [0, 0, 1, 1], [], []>} : vector<2x32xf32>, vector<32x32xf32>, vector<2x32xf32> -> vector<2x32xf32>
    %706 = vector.broadcast %609 : vector<1x32xf32> to vector<2x32xf32>
    %707 = arith.addf %705, %706 : vector<2x32xf32>
    %708 = arith.addf %696, %701 : vector<2x32xf32>
    %709 = arith.negf %708 : vector<2x32xf32>
    %710 = math.exp %709 : vector<2x32xf32>
    %cst_231 = arith.constant 1.000000e+00 : f32
    %711 = vector.broadcast %cst_231 : f32 to vector<2x32xf32>
    %712 = arith.addf %711, %710 : vector<2x32xf32>
    %713 = arith.divf %711, %712 : vector<2x32xf32>
    %714 = arith.addf %697, %704 : vector<2x32xf32>
    %715 = arith.negf %714 : vector<2x32xf32>
    %716 = math.exp %715 : vector<2x32xf32>
    %cst_232 = arith.constant 1.000000e+00 : f32
    %717 = vector.broadcast %cst_232 : f32 to vector<2x32xf32>
    %718 = arith.addf %717, %716 : vector<2x32xf32>
    %719 = arith.divf %717, %718 : vector<2x32xf32>
    %720 = arith.mulf %713, %707 : vector<2x32xf32>
    %721 = arith.addf %698, %720 : vector<2x32xf32>
    %722 = math.tanh %721 : vector<2x32xf32>
    %cst_233 = arith.constant 1.000000e+00 : f32
    %723 = vector.broadcast %cst_233 : f32 to vector<2x32xf32>
    %724 = arith.subf %723, %719 : vector<2x32xf32>
    %725 = arith.mulf %724, %722 : vector<2x32xf32>
    %726 = arith.mulf %719, %659 : vector<2x32xf32>
    %727 = arith.addf %725, %726 : vector<2x32xf32>
    %728 = vector.extract_strided_slice %591 {offsets = [0, 96], sizes = [2, 32], strides = [1, 1]} : vector<2x192xf32> to vector<2x32xf32>
    %729 = vector.extract_strided_slice %591 {offsets = [0, 128], sizes = [2, 32], strides = [1, 1]} : vector<2x192xf32> to vector<2x32xf32>
    %730 = vector.extract_strided_slice %591 {offsets = [0, 160], sizes = [2, 32], strides = [1, 1]} : vector<2x192xf32> to vector<2x32xf32>
    %cst_234 = arith.constant dense<0.000000e+00> : vector<2x32xf32>
    %731 = tpu.matmul %691, %611, %cst_234 {dimension_numbers = #tpu.dot_dimension_numbers<[1], [0], [0], [1], [0, 0, 1, 1], [], []>} : vector<2x32xf32>, vector<32x32xf32>, vector<2x32xf32> -> vector<2x32xf32>
    %732 = vector.broadcast %617 : vector<1x32xf32> to vector<2x32xf32>
    %733 = arith.addf %731, %732 : vector<2x32xf32>
    %cst_235 = arith.constant dense<0.000000e+00> : vector<2x32xf32>
    %734 = tpu.matmul %691, %613, %cst_235 {dimension_numbers = #tpu.dot_dimension_numbers<[1], [0], [0], [1], [0, 0, 1, 1], [], []>} : vector<2x32xf32>, vector<32x32xf32>, vector<2x32xf32> -> vector<2x32xf32>
    %735 = vector.broadcast %619 : vector<1x32xf32> to vector<2x32xf32>
    %736 = arith.addf %734, %735 : vector<2x32xf32>
    %cst_236 = arith.constant dense<0.000000e+00> : vector<2x32xf32>
    %737 = tpu.matmul %691, %615, %cst_236 {dimension_numbers = #tpu.dot_dimension_numbers<[1], [0], [0], [1], [0, 0, 1, 1], [], []>} : vector<2x32xf32>, vector<32x32xf32>, vector<2x32xf32> -> vector<2x32xf32>
    %738 = vector.broadcast %621 : vector<1x32xf32> to vector<2x32xf32>
    %739 = arith.addf %737, %738 : vector<2x32xf32>
    %740 = arith.addf %728, %733 : vector<2x32xf32>
    %741 = arith.negf %740 : vector<2x32xf32>
    %742 = math.exp %741 : vector<2x32xf32>
    %cst_237 = arith.constant 1.000000e+00 : f32
    %743 = vector.broadcast %cst_237 : f32 to vector<2x32xf32>
    %744 = arith.addf %743, %742 : vector<2x32xf32>
    %745 = arith.divf %743, %744 : vector<2x32xf32>
    %746 = arith.addf %729, %736 : vector<2x32xf32>
    %747 = arith.negf %746 : vector<2x32xf32>
    %748 = math.exp %747 : vector<2x32xf32>
    %cst_238 = arith.constant 1.000000e+00 : f32
    %749 = vector.broadcast %cst_238 : f32 to vector<2x32xf32>
    %750 = arith.addf %749, %748 : vector<2x32xf32>
    %751 = arith.divf %749, %750 : vector<2x32xf32>
    %752 = arith.mulf %745, %739 : vector<2x32xf32>
    %753 = arith.addf %730, %752 : vector<2x32xf32>
    %754 = math.tanh %753 : vector<2x32xf32>
    %cst_239 = arith.constant 1.000000e+00 : f32
    %755 = vector.broadcast %cst_239 : f32 to vector<2x32xf32>
    %756 = arith.subf %755, %751 : vector<2x32xf32>
    %757 = arith.mulf %756, %754 : vector<2x32xf32>
    %758 = arith.mulf %751, %691 : vector<2x32xf32>
    %759 = arith.addf %757, %758 : vector<2x32xf32>
    %760 = arith.addf %692, %727 : vector<2x32xf32>
    %761 = arith.addf %693, %759 : vector<2x32xf32>
    %762 = arith.maximumf %694, %727 : vector<2x32xf32>
    %763 = arith.maximumf %695, %759 : vector<2x32xf32>
    %764 = vector.extract_strided_slice %567 {offsets = [0, 0], sizes = [2, 32], strides = [1, 1]} : vector<2x192xf32> to vector<2x32xf32>
    %765 = vector.extract_strided_slice %567 {offsets = [0, 32], sizes = [2, 32], strides = [1, 1]} : vector<2x192xf32> to vector<2x32xf32>
    %766 = vector.extract_strided_slice %567 {offsets = [0, 64], sizes = [2, 32], strides = [1, 1]} : vector<2x192xf32> to vector<2x32xf32>
    %cst_240 = arith.constant dense<0.000000e+00> : vector<2x32xf32>
    %767 = tpu.matmul %727, %599, %cst_240 {dimension_numbers = #tpu.dot_dimension_numbers<[1], [0], [0], [1], [0, 0, 1, 1], [], []>} : vector<2x32xf32>, vector<32x32xf32>, vector<2x32xf32> -> vector<2x32xf32>
    %768 = vector.broadcast %605 : vector<1x32xf32> to vector<2x32xf32>
    %769 = arith.addf %767, %768 : vector<2x32xf32>
    %cst_241 = arith.constant dense<0.000000e+00> : vector<2x32xf32>
    %770 = tpu.matmul %727, %601, %cst_241 {dimension_numbers = #tpu.dot_dimension_numbers<[1], [0], [0], [1], [0, 0, 1, 1], [], []>} : vector<2x32xf32>, vector<32x32xf32>, vector<2x32xf32> -> vector<2x32xf32>
    %771 = vector.broadcast %607 : vector<1x32xf32> to vector<2x32xf32>
    %772 = arith.addf %770, %771 : vector<2x32xf32>
    %cst_242 = arith.constant dense<0.000000e+00> : vector<2x32xf32>
    %773 = tpu.matmul %727, %603, %cst_242 {dimension_numbers = #tpu.dot_dimension_numbers<[1], [0], [0], [1], [0, 0, 1, 1], [], []>} : vector<2x32xf32>, vector<32x32xf32>, vector<2x32xf32> -> vector<2x32xf32>
    %774 = vector.broadcast %609 : vector<1x32xf32> to vector<2x32xf32>
    %775 = arith.addf %773, %774 : vector<2x32xf32>
    %776 = arith.addf %764, %769 : vector<2x32xf32>
    %777 = arith.negf %776 : vector<2x32xf32>
    %778 = math.exp %777 : vector<2x32xf32>
    %cst_243 = arith.constant 1.000000e+00 : f32
    %779 = vector.broadcast %cst_243 : f32 to vector<2x32xf32>
    %780 = arith.addf %779, %778 : vector<2x32xf32>
    %781 = arith.divf %779, %780 : vector<2x32xf32>
    %782 = arith.addf %765, %772 : vector<2x32xf32>
    %783 = arith.negf %782 : vector<2x32xf32>
    %784 = math.exp %783 : vector<2x32xf32>
    %cst_244 = arith.constant 1.000000e+00 : f32
    %785 = vector.broadcast %cst_244 : f32 to vector<2x32xf32>
    %786 = arith.addf %785, %784 : vector<2x32xf32>
    %787 = arith.divf %785, %786 : vector<2x32xf32>
    %788 = arith.mulf %781, %775 : vector<2x32xf32>
    %789 = arith.addf %766, %788 : vector<2x32xf32>
    %790 = math.tanh %789 : vector<2x32xf32>
    %cst_245 = arith.constant 1.000000e+00 : f32
    %791 = vector.broadcast %cst_245 : f32 to vector<2x32xf32>
    %792 = arith.subf %791, %787 : vector<2x32xf32>
    %793 = arith.mulf %792, %790 : vector<2x32xf32>
    %794 = arith.mulf %787, %727 : vector<2x32xf32>
    %795 = arith.addf %793, %794 : vector<2x32xf32>
    %796 = vector.extract_strided_slice %585 {offsets = [0, 96], sizes = [2, 32], strides = [1, 1]} : vector<2x192xf32> to vector<2x32xf32>
    %797 = vector.extract_strided_slice %585 {offsets = [0, 128], sizes = [2, 32], strides = [1, 1]} : vector<2x192xf32> to vector<2x32xf32>
    %798 = vector.extract_strided_slice %585 {offsets = [0, 160], sizes = [2, 32], strides = [1, 1]} : vector<2x192xf32> to vector<2x32xf32>
    %cst_246 = arith.constant dense<0.000000e+00> : vector<2x32xf32>
    %799 = tpu.matmul %759, %611, %cst_246 {dimension_numbers = #tpu.dot_dimension_numbers<[1], [0], [0], [1], [0, 0, 1, 1], [], []>} : vector<2x32xf32>, vector<32x32xf32>, vector<2x32xf32> -> vector<2x32xf32>
    %800 = vector.broadcast %617 : vector<1x32xf32> to vector<2x32xf32>
    %801 = arith.addf %799, %800 : vector<2x32xf32>
    %cst_247 = arith.constant dense<0.000000e+00> : vector<2x32xf32>
    %802 = tpu.matmul %759, %613, %cst_247 {dimension_numbers = #tpu.dot_dimension_numbers<[1], [0], [0], [1], [0, 0, 1, 1], [], []>} : vector<2x32xf32>, vector<32x32xf32>, vector<2x32xf32> -> vector<2x32xf32>
    %803 = vector.broadcast %619 : vector<1x32xf32> to vector<2x32xf32>
    %804 = arith.addf %802, %803 : vector<2x32xf32>
    %cst_248 = arith.constant dense<0.000000e+00> : vector<2x32xf32>
    %805 = tpu.matmul %759, %615, %cst_248 {dimension_numbers = #tpu.dot_dimension_numbers<[1], [0], [0], [1], [0, 0, 1, 1], [], []>} : vector<2x32xf32>, vector<32x32xf32>, vector<2x32xf32> -> vector<2x32xf32>
    %806 = vector.broadcast %621 : vector<1x32xf32> to vector<2x32xf32>
    %807 = arith.addf %805, %806 : vector<2x32xf32>
    %808 = arith.addf %796, %801 : vector<2x32xf32>
    %809 = arith.negf %808 : vector<2x32xf32>
    %810 = math.exp %809 : vector<2x32xf32>
    %cst_249 = arith.constant 1.000000e+00 : f32
    %811 = vector.broadcast %cst_249 : f32 to vector<2x32xf32>
    %812 = arith.addf %811, %810 : vector<2x32xf32>
    %813 = arith.divf %811, %812 : vector<2x32xf32>
    %814 = arith.addf %797, %804 : vector<2x32xf32>
    %815 = arith.negf %814 : vector<2x32xf32>
    %816 = math.exp %815 : vector<2x32xf32>
    %cst_250 = arith.constant 1.000000e+00 : f32
    %817 = vector.broadcast %cst_250 : f32 to vector<2x32xf32>
    %818 = arith.addf %817, %816 : vector<2x32xf32>
    %819 = arith.divf %817, %818 : vector<2x32xf32>
    %820 = arith.mulf %813, %807 : vector<2x32xf32>
    %821 = arith.addf %798, %820 : vector<2x32xf32>
    %822 = math.tanh %821 : vector<2x32xf32>
    %cst_251 = arith.constant 1.000000e+00 : f32
    %823 = vector.broadcast %cst_251 : f32 to vector<2x32xf32>
    %824 = arith.subf %823, %819 : vector<2x32xf32>
    %825 = arith.mulf %824, %822 : vector<2x32xf32>
    %826 = arith.mulf %819, %759 : vector<2x32xf32>
    %827 = arith.addf %825, %826 : vector<2x32xf32>
    %828 = arith.addf %760, %795 : vector<2x32xf32>
    %829 = arith.addf %761, %827 : vector<2x32xf32>
    %830 = arith.maximumf %762, %795 : vector<2x32xf32>
    %831 = arith.maximumf %763, %827 : vector<2x32xf32>
    %832 = vector.extract_strided_slice %573 {offsets = [0, 0], sizes = [2, 32], strides = [1, 1]} : vector<2x192xf32> to vector<2x32xf32>
    %833 = vector.extract_strided_slice %573 {offsets = [0, 32], sizes = [2, 32], strides = [1, 1]} : vector<2x192xf32> to vector<2x32xf32>
    %834 = vector.extract_strided_slice %573 {offsets = [0, 64], sizes = [2, 32], strides = [1, 1]} : vector<2x192xf32> to vector<2x32xf32>
    %cst_252 = arith.constant dense<0.000000e+00> : vector<2x32xf32>
    %835 = tpu.matmul %795, %599, %cst_252 {dimension_numbers = #tpu.dot_dimension_numbers<[1], [0], [0], [1], [0, 0, 1, 1], [], []>} : vector<2x32xf32>, vector<32x32xf32>, vector<2x32xf32> -> vector<2x32xf32>
    %836 = vector.broadcast %605 : vector<1x32xf32> to vector<2x32xf32>
    %837 = arith.addf %835, %836 : vector<2x32xf32>
    %cst_253 = arith.constant dense<0.000000e+00> : vector<2x32xf32>
    %838 = tpu.matmul %795, %601, %cst_253 {dimension_numbers = #tpu.dot_dimension_numbers<[1], [0], [0], [1], [0, 0, 1, 1], [], []>} : vector<2x32xf32>, vector<32x32xf32>, vector<2x32xf32> -> vector<2x32xf32>
    %839 = vector.broadcast %607 : vector<1x32xf32> to vector<2x32xf32>
    %840 = arith.addf %838, %839 : vector<2x32xf32>
    %cst_254 = arith.constant dense<0.000000e+00> : vector<2x32xf32>
    %841 = tpu.matmul %795, %603, %cst_254 {dimension_numbers = #tpu.dot_dimension_numbers<[1], [0], [0], [1], [0, 0, 1, 1], [], []>} : vector<2x32xf32>, vector<32x32xf32>, vector<2x32xf32> -> vector<2x32xf32>
    %842 = vector.broadcast %609 : vector<1x32xf32> to vector<2x32xf32>
    %843 = arith.addf %841, %842 : vector<2x32xf32>
    %844 = arith.addf %832, %837 : vector<2x32xf32>
    %845 = arith.negf %844 : vector<2x32xf32>
    %846 = math.exp %845 : vector<2x32xf32>
    %cst_255 = arith.constant 1.000000e+00 : f32
    %847 = vector.broadcast %cst_255 : f32 to vector<2x32xf32>
    %848 = arith.addf %847, %846 : vector<2x32xf32>
    %849 = arith.divf %847, %848 : vector<2x32xf32>
    %850 = arith.addf %833, %840 : vector<2x32xf32>
    %851 = arith.negf %850 : vector<2x32xf32>
    %852 = math.exp %851 : vector<2x32xf32>
    %cst_256 = arith.constant 1.000000e+00 : f32
    %853 = vector.broadcast %cst_256 : f32 to vector<2x32xf32>
    %854 = arith.addf %853, %852 : vector<2x32xf32>
    %855 = arith.divf %853, %854 : vector<2x32xf32>
    %856 = arith.mulf %849, %843 : vector<2x32xf32>
    %857 = arith.addf %834, %856 : vector<2x32xf32>
    %858 = math.tanh %857 : vector<2x32xf32>
    %cst_257 = arith.constant 1.000000e+00 : f32
    %859 = vector.broadcast %cst_257 : f32 to vector<2x32xf32>
    %860 = arith.subf %859, %855 : vector<2x32xf32>
    %861 = arith.mulf %860, %858 : vector<2x32xf32>
    %862 = arith.mulf %855, %795 : vector<2x32xf32>
    %863 = arith.addf %861, %862 : vector<2x32xf32>
    %864 = vector.extract_strided_slice %579 {offsets = [0, 96], sizes = [2, 32], strides = [1, 1]} : vector<2x192xf32> to vector<2x32xf32>
    %865 = vector.extract_strided_slice %579 {offsets = [0, 128], sizes = [2, 32], strides = [1, 1]} : vector<2x192xf32> to vector<2x32xf32>
    %866 = vector.extract_strided_slice %579 {offsets = [0, 160], sizes = [2, 32], strides = [1, 1]} : vector<2x192xf32> to vector<2x32xf32>
    %cst_258 = arith.constant dense<0.000000e+00> : vector<2x32xf32>
    %867 = tpu.matmul %827, %611, %cst_258 {dimension_numbers = #tpu.dot_dimension_numbers<[1], [0], [0], [1], [0, 0, 1, 1], [], []>} : vector<2x32xf32>, vector<32x32xf32>, vector<2x32xf32> -> vector<2x32xf32>
    %868 = vector.broadcast %617 : vector<1x32xf32> to vector<2x32xf32>
    %869 = arith.addf %867, %868 : vector<2x32xf32>
    %cst_259 = arith.constant dense<0.000000e+00> : vector<2x32xf32>
    %870 = tpu.matmul %827, %613, %cst_259 {dimension_numbers = #tpu.dot_dimension_numbers<[1], [0], [0], [1], [0, 0, 1, 1], [], []>} : vector<2x32xf32>, vector<32x32xf32>, vector<2x32xf32> -> vector<2x32xf32>
    %871 = vector.broadcast %619 : vector<1x32xf32> to vector<2x32xf32>
    %872 = arith.addf %870, %871 : vector<2x32xf32>
    %cst_260 = arith.constant dense<0.000000e+00> : vector<2x32xf32>
    %873 = tpu.matmul %827, %615, %cst_260 {dimension_numbers = #tpu.dot_dimension_numbers<[1], [0], [0], [1], [0, 0, 1, 1], [], []>} : vector<2x32xf32>, vector<32x32xf32>, vector<2x32xf32> -> vector<2x32xf32>
    %874 = vector.broadcast %621 : vector<1x32xf32> to vector<2x32xf32>
    %875 = arith.addf %873, %874 : vector<2x32xf32>
    %876 = arith.addf %864, %869 : vector<2x32xf32>
    %877 = arith.negf %876 : vector<2x32xf32>
    %878 = math.exp %877 : vector<2x32xf32>
    %cst_261 = arith.constant 1.000000e+00 : f32
    %879 = vector.broadcast %cst_261 : f32 to vector<2x32xf32>
    %880 = arith.addf %879, %878 : vector<2x32xf32>
    %881 = arith.divf %879, %880 : vector<2x32xf32>
    %882 = arith.addf %865, %872 : vector<2x32xf32>
    %883 = arith.negf %882 : vector<2x32xf32>
    %884 = math.exp %883 : vector<2x32xf32>
    %cst_262 = arith.constant 1.000000e+00 : f32
    %885 = vector.broadcast %cst_262 : f32 to vector<2x32xf32>
    %886 = arith.addf %885, %884 : vector<2x32xf32>
    %887 = arith.divf %885, %886 : vector<2x32xf32>
    %888 = arith.mulf %881, %875 : vector<2x32xf32>
    %889 = arith.addf %866, %888 : vector<2x32xf32>
    %890 = math.tanh %889 : vector<2x32xf32>
    %cst_263 = arith.constant 1.000000e+00 : f32
    %891 = vector.broadcast %cst_263 : f32 to vector<2x32xf32>
    %892 = arith.subf %891, %887 : vector<2x32xf32>
    %893 = arith.mulf %892, %890 : vector<2x32xf32>
    %894 = arith.mulf %887, %827 : vector<2x32xf32>
    %895 = arith.addf %893, %894 : vector<2x32xf32>
    %896 = arith.addf %828, %863 : vector<2x32xf32>
    %897 = arith.addf %829, %895 : vector<2x32xf32>
    %898 = arith.maximumf %830, %863 : vector<2x32xf32>
    %899 = arith.maximumf %831, %895 : vector<2x32xf32>
    %900 = vector.extract_strided_slice %579 {offsets = [0, 0], sizes = [2, 32], strides = [1, 1]} : vector<2x192xf32> to vector<2x32xf32>
    %901 = vector.extract_strided_slice %579 {offsets = [0, 32], sizes = [2, 32], strides = [1, 1]} : vector<2x192xf32> to vector<2x32xf32>
    %902 = vector.extract_strided_slice %579 {offsets = [0, 64], sizes = [2, 32], strides = [1, 1]} : vector<2x192xf32> to vector<2x32xf32>
    %cst_264 = arith.constant dense<0.000000e+00> : vector<2x32xf32>
    %903 = tpu.matmul %863, %599, %cst_264 {dimension_numbers = #tpu.dot_dimension_numbers<[1], [0], [0], [1], [0, 0, 1, 1], [], []>} : vector<2x32xf32>, vector<32x32xf32>, vector<2x32xf32> -> vector<2x32xf32>
    %904 = vector.broadcast %605 : vector<1x32xf32> to vector<2x32xf32>
    %905 = arith.addf %903, %904 : vector<2x32xf32>
    %cst_265 = arith.constant dense<0.000000e+00> : vector<2x32xf32>
    %906 = tpu.matmul %863, %601, %cst_265 {dimension_numbers = #tpu.dot_dimension_numbers<[1], [0], [0], [1], [0, 0, 1, 1], [], []>} : vector<2x32xf32>, vector<32x32xf32>, vector<2x32xf32> -> vector<2x32xf32>
    %907 = vector.broadcast %607 : vector<1x32xf32> to vector<2x32xf32>
    %908 = arith.addf %906, %907 : vector<2x32xf32>
    %cst_266 = arith.constant dense<0.000000e+00> : vector<2x32xf32>
    %909 = tpu.matmul %863, %603, %cst_266 {dimension_numbers = #tpu.dot_dimension_numbers<[1], [0], [0], [1], [0, 0, 1, 1], [], []>} : vector<2x32xf32>, vector<32x32xf32>, vector<2x32xf32> -> vector<2x32xf32>
    %910 = vector.broadcast %609 : vector<1x32xf32> to vector<2x32xf32>
    %911 = arith.addf %909, %910 : vector<2x32xf32>
    %912 = arith.addf %900, %905 : vector<2x32xf32>
    %913 = arith.negf %912 : vector<2x32xf32>
    %914 = math.exp %913 : vector<2x32xf32>
    %cst_267 = arith.constant 1.000000e+00 : f32
    %915 = vector.broadcast %cst_267 : f32 to vector<2x32xf32>
    %916 = arith.addf %915, %914 : vector<2x32xf32>
    %917 = arith.divf %915, %916 : vector<2x32xf32>
    %918 = arith.addf %901, %908 : vector<2x32xf32>
    %919 = arith.negf %918 : vector<2x32xf32>
    %920 = math.exp %919 : vector<2x32xf32>
    %cst_268 = arith.constant 1.000000e+00 : f32
    %921 = vector.broadcast %cst_268 : f32 to vector<2x32xf32>
    %922 = arith.addf %921, %920 : vector<2x32xf32>
    %923 = arith.divf %921, %922 : vector<2x32xf32>
    %924 = arith.mulf %917, %911 : vector<2x32xf32>
    %925 = arith.addf %902, %924 : vector<2x32xf32>
    %926 = math.tanh %925 : vector<2x32xf32>
    %cst_269 = arith.constant 1.000000e+00 : f32
    %927 = vector.broadcast %cst_269 : f32 to vector<2x32xf32>
    %928 = arith.subf %927, %923 : vector<2x32xf32>
    %929 = arith.mulf %928, %926 : vector<2x32xf32>
    %930 = arith.mulf %923, %863 : vector<2x32xf32>
    %931 = arith.addf %929, %930 : vector<2x32xf32>
    %932 = vector.extract_strided_slice %573 {offsets = [0, 96], sizes = [2, 32], strides = [1, 1]} : vector<2x192xf32> to vector<2x32xf32>
    %933 = vector.extract_strided_slice %573 {offsets = [0, 128], sizes = [2, 32], strides = [1, 1]} : vector<2x192xf32> to vector<2x32xf32>
    %934 = vector.extract_strided_slice %573 {offsets = [0, 160], sizes = [2, 32], strides = [1, 1]} : vector<2x192xf32> to vector<2x32xf32>
    %cst_270 = arith.constant dense<0.000000e+00> : vector<2x32xf32>
    %935 = tpu.matmul %895, %611, %cst_270 {dimension_numbers = #tpu.dot_dimension_numbers<[1], [0], [0], [1], [0, 0, 1, 1], [], []>} : vector<2x32xf32>, vector<32x32xf32>, vector<2x32xf32> -> vector<2x32xf32>
    %936 = vector.broadcast %617 : vector<1x32xf32> to vector<2x32xf32>
    %937 = arith.addf %935, %936 : vector<2x32xf32>
    %cst_271 = arith.constant dense<0.000000e+00> : vector<2x32xf32>
    %938 = tpu.matmul %895, %613, %cst_271 {dimension_numbers = #tpu.dot_dimension_numbers<[1], [0], [0], [1], [0, 0, 1, 1], [], []>} : vector<2x32xf32>, vector<32x32xf32>, vector<2x32xf32> -> vector<2x32xf32>
    %939 = vector.broadcast %619 : vector<1x32xf32> to vector<2x32xf32>
    %940 = arith.addf %938, %939 : vector<2x32xf32>
    %cst_272 = arith.constant dense<0.000000e+00> : vector<2x32xf32>
    %941 = tpu.matmul %895, %615, %cst_272 {dimension_numbers = #tpu.dot_dimension_numbers<[1], [0], [0], [1], [0, 0, 1, 1], [], []>} : vector<2x32xf32>, vector<32x32xf32>, vector<2x32xf32> -> vector<2x32xf32>
    %942 = vector.broadcast %621 : vector<1x32xf32> to vector<2x32xf32>
    %943 = arith.addf %941, %942 : vector<2x32xf32>
    %944 = arith.addf %932, %937 : vector<2x32xf32>
    %945 = arith.negf %944 : vector<2x32xf32>
    %946 = math.exp %945 : vector<2x32xf32>
    %cst_273 = arith.constant 1.000000e+00 : f32
    %947 = vector.broadcast %cst_273 : f32 to vector<2x32xf32>
    %948 = arith.addf %947, %946 : vector<2x32xf32>
    %949 = arith.divf %947, %948 : vector<2x32xf32>
    %950 = arith.addf %933, %940 : vector<2x32xf32>
    %951 = arith.negf %950 : vector<2x32xf32>
    %952 = math.exp %951 : vector<2x32xf32>
    %cst_274 = arith.constant 1.000000e+00 : f32
    %953 = vector.broadcast %cst_274 : f32 to vector<2x32xf32>
    %954 = arith.addf %953, %952 : vector<2x32xf32>
    %955 = arith.divf %953, %954 : vector<2x32xf32>
    %956 = arith.mulf %949, %943 : vector<2x32xf32>
    %957 = arith.addf %934, %956 : vector<2x32xf32>
    %958 = math.tanh %957 : vector<2x32xf32>
    %cst_275 = arith.constant 1.000000e+00 : f32
    %959 = vector.broadcast %cst_275 : f32 to vector<2x32xf32>
    %960 = arith.subf %959, %955 : vector<2x32xf32>
    %961 = arith.mulf %960, %958 : vector<2x32xf32>
    %962 = arith.mulf %955, %895 : vector<2x32xf32>
    %963 = arith.addf %961, %962 : vector<2x32xf32>
    %964 = arith.addf %896, %931 : vector<2x32xf32>
    %965 = arith.addf %897, %963 : vector<2x32xf32>
    %966 = arith.maximumf %898, %931 : vector<2x32xf32>
    %967 = arith.maximumf %899, %963 : vector<2x32xf32>
    %968 = vector.extract_strided_slice %585 {offsets = [0, 0], sizes = [2, 32], strides = [1, 1]} : vector<2x192xf32> to vector<2x32xf32>
    %969 = vector.extract_strided_slice %585 {offsets = [0, 32], sizes = [2, 32], strides = [1, 1]} : vector<2x192xf32> to vector<2x32xf32>
    %970 = vector.extract_strided_slice %585 {offsets = [0, 64], sizes = [2, 32], strides = [1, 1]} : vector<2x192xf32> to vector<2x32xf32>
    %cst_276 = arith.constant dense<0.000000e+00> : vector<2x32xf32>
    %971 = tpu.matmul %931, %599, %cst_276 {dimension_numbers = #tpu.dot_dimension_numbers<[1], [0], [0], [1], [0, 0, 1, 1], [], []>} : vector<2x32xf32>, vector<32x32xf32>, vector<2x32xf32> -> vector<2x32xf32>
    %972 = vector.broadcast %605 : vector<1x32xf32> to vector<2x32xf32>
    %973 = arith.addf %971, %972 : vector<2x32xf32>
    %cst_277 = arith.constant dense<0.000000e+00> : vector<2x32xf32>
    %974 = tpu.matmul %931, %601, %cst_277 {dimension_numbers = #tpu.dot_dimension_numbers<[1], [0], [0], [1], [0, 0, 1, 1], [], []>} : vector<2x32xf32>, vector<32x32xf32>, vector<2x32xf32> -> vector<2x32xf32>
    %975 = vector.broadcast %607 : vector<1x32xf32> to vector<2x32xf32>
    %976 = arith.addf %974, %975 : vector<2x32xf32>
    %cst_278 = arith.constant dense<0.000000e+00> : vector<2x32xf32>
    %977 = tpu.matmul %931, %603, %cst_278 {dimension_numbers = #tpu.dot_dimension_numbers<[1], [0], [0], [1], [0, 0, 1, 1], [], []>} : vector<2x32xf32>, vector<32x32xf32>, vector<2x32xf32> -> vector<2x32xf32>
    %978 = vector.broadcast %609 : vector<1x32xf32> to vector<2x32xf32>
    %979 = arith.addf %977, %978 : vector<2x32xf32>
    %980 = arith.addf %968, %973 : vector<2x32xf32>
    %981 = arith.negf %980 : vector<2x32xf32>
    %982 = math.exp %981 : vector<2x32xf32>
    %cst_279 = arith.constant 1.000000e+00 : f32
    %983 = vector.broadcast %cst_279 : f32 to vector<2x32xf32>
    %984 = arith.addf %983, %982 : vector<2x32xf32>
    %985 = arith.divf %983, %984 : vector<2x32xf32>
    %986 = arith.addf %969, %976 : vector<2x32xf32>
    %987 = arith.negf %986 : vector<2x32xf32>
    %988 = math.exp %987 : vector<2x32xf32>
    %cst_280 = arith.constant 1.000000e+00 : f32
    %989 = vector.broadcast %cst_280 : f32 to vector<2x32xf32>
    %990 = arith.addf %989, %988 : vector<2x32xf32>
    %991 = arith.divf %989, %990 : vector<2x32xf32>
    %992 = arith.mulf %985, %979 : vector<2x32xf32>
    %993 = arith.addf %970, %992 : vector<2x32xf32>
    %994 = math.tanh %993 : vector<2x32xf32>
    %cst_281 = arith.constant 1.000000e+00 : f32
    %995 = vector.broadcast %cst_281 : f32 to vector<2x32xf32>
    %996 = arith.subf %995, %991 : vector<2x32xf32>
    %997 = arith.mulf %996, %994 : vector<2x32xf32>
    %998 = arith.mulf %991, %931 : vector<2x32xf32>
    %999 = arith.addf %997, %998 : vector<2x32xf32>
    %1000 = vector.extract_strided_slice %567 {offsets = [0, 96], sizes = [2, 32], strides = [1, 1]} : vector<2x192xf32> to vector<2x32xf32>
    %1001 = vector.extract_strided_slice %567 {offsets = [0, 128], sizes = [2, 32], strides = [1, 1]} : vector<2x192xf32> to vector<2x32xf32>
    %1002 = vector.extract_strided_slice %567 {offsets = [0, 160], sizes = [2, 32], strides = [1, 1]} : vector<2x192xf32> to vector<2x32xf32>
    %cst_282 = arith.constant dense<0.000000e+00> : vector<2x32xf32>
    %1003 = tpu.matmul %963, %611, %cst_282 {dimension_numbers = #tpu.dot_dimension_numbers<[1], [0], [0], [1], [0, 0, 1, 1], [], []>} : vector<2x32xf32>, vector<32x32xf32>, vector<2x32xf32> -> vector<2x32xf32>
    %1004 = vector.broadcast %617 : vector<1x32xf32> to vector<2x32xf32>
    %1005 = arith.addf %1003, %1004 : vector<2x32xf32>
    %cst_283 = arith.constant dense<0.000000e+00> : vector<2x32xf32>
    %1006 = tpu.matmul %963, %613, %cst_283 {dimension_numbers = #tpu.dot_dimension_numbers<[1], [0], [0], [1], [0, 0, 1, 1], [], []>} : vector<2x32xf32>, vector<32x32xf32>, vector<2x32xf32> -> vector<2x32xf32>
    %1007 = vector.broadcast %619 : vector<1x32xf32> to vector<2x32xf32>
    %1008 = arith.addf %1006, %1007 : vector<2x32xf32>
    %cst_284 = arith.constant dense<0.000000e+00> : vector<2x32xf32>
    %1009 = tpu.matmul %963, %615, %cst_284 {dimension_numbers = #tpu.dot_dimension_numbers<[1], [0], [0], [1], [0, 0, 1, 1], [], []>} : vector<2x32xf32>, vector<32x32xf32>, vector<2x32xf32> -> vector<2x32xf32>
    %1010 = vector.broadcast %621 : vector<1x32xf32> to vector<2x32xf32>
    %1011 = arith.addf %1009, %1010 : vector<2x32xf32>
    %1012 = arith.addf %1000, %1005 : vector<2x32xf32>
    %1013 = arith.negf %1012 : vector<2x32xf32>
    %1014 = math.exp %1013 : vector<2x32xf32>
    %cst_285 = arith.constant 1.000000e+00 : f32
    %1015 = vector.broadcast %cst_285 : f32 to vector<2x32xf32>
    %1016 = arith.addf %1015, %1014 : vector<2x32xf32>
    %1017 = arith.divf %1015, %1016 : vector<2x32xf32>
    %1018 = arith.addf %1001, %1008 : vector<2x32xf32>
    %1019 = arith.negf %1018 : vector<2x32xf32>
    %1020 = math.exp %1019 : vector<2x32xf32>
    %cst_286 = arith.constant 1.000000e+00 : f32
    %1021 = vector.broadcast %cst_286 : f32 to vector<2x32xf32>
    %1022 = arith.addf %1021, %1020 : vector<2x32xf32>
    %1023 = arith.divf %1021, %1022 : vector<2x32xf32>
    %1024 = arith.mulf %1017, %1011 : vector<2x32xf32>
    %1025 = arith.addf %1002, %1024 : vector<2x32xf32>
    %1026 = math.tanh %1025 : vector<2x32xf32>
    %cst_287 = arith.constant 1.000000e+00 : f32
    %1027 = vector.broadcast %cst_287 : f32 to vector<2x32xf32>
    %1028 = arith.subf %1027, %1023 : vector<2x32xf32>
    %1029 = arith.mulf %1028, %1026 : vector<2x32xf32>
    %1030 = arith.mulf %1023, %963 : vector<2x32xf32>
    %1031 = arith.addf %1029, %1030 : vector<2x32xf32>
    %1032 = arith.addf %964, %999 : vector<2x32xf32>
    %1033 = arith.addf %965, %1031 : vector<2x32xf32>
    %1034 = arith.maximumf %966, %999 : vector<2x32xf32>
    %1035 = arith.maximumf %967, %1031 : vector<2x32xf32>
    %1036 = vector.extract_strided_slice %591 {offsets = [0, 0], sizes = [2, 32], strides = [1, 1]} : vector<2x192xf32> to vector<2x32xf32>
    %1037 = vector.extract_strided_slice %591 {offsets = [0, 32], sizes = [2, 32], strides = [1, 1]} : vector<2x192xf32> to vector<2x32xf32>
    %1038 = vector.extract_strided_slice %591 {offsets = [0, 64], sizes = [2, 32], strides = [1, 1]} : vector<2x192xf32> to vector<2x32xf32>
    %cst_288 = arith.constant dense<0.000000e+00> : vector<2x32xf32>
    %1039 = tpu.matmul %999, %599, %cst_288 {dimension_numbers = #tpu.dot_dimension_numbers<[1], [0], [0], [1], [0, 0, 1, 1], [], []>} : vector<2x32xf32>, vector<32x32xf32>, vector<2x32xf32> -> vector<2x32xf32>
    %1040 = vector.broadcast %605 : vector<1x32xf32> to vector<2x32xf32>
    %1041 = arith.addf %1039, %1040 : vector<2x32xf32>
    %cst_289 = arith.constant dense<0.000000e+00> : vector<2x32xf32>
    %1042 = tpu.matmul %999, %601, %cst_289 {dimension_numbers = #tpu.dot_dimension_numbers<[1], [0], [0], [1], [0, 0, 1, 1], [], []>} : vector<2x32xf32>, vector<32x32xf32>, vector<2x32xf32> -> vector<2x32xf32>
    %1043 = vector.broadcast %607 : vector<1x32xf32> to vector<2x32xf32>
    %1044 = arith.addf %1042, %1043 : vector<2x32xf32>
    %cst_290 = arith.constant dense<0.000000e+00> : vector<2x32xf32>
    %1045 = tpu.matmul %999, %603, %cst_290 {dimension_numbers = #tpu.dot_dimension_numbers<[1], [0], [0], [1], [0, 0, 1, 1], [], []>} : vector<2x32xf32>, vector<32x32xf32>, vector<2x32xf32> -> vector<2x32xf32>
    %1046 = vector.broadcast %609 : vector<1x32xf32> to vector<2x32xf32>
    %1047 = arith.addf %1045, %1046 : vector<2x32xf32>
    %1048 = arith.addf %1036, %1041 : vector<2x32xf32>
    %1049 = arith.negf %1048 : vector<2x32xf32>
    %1050 = math.exp %1049 : vector<2x32xf32>
    %cst_291 = arith.constant 1.000000e+00 : f32
    %1051 = vector.broadcast %cst_291 : f32 to vector<2x32xf32>
    %1052 = arith.addf %1051, %1050 : vector<2x32xf32>
    %1053 = arith.divf %1051, %1052 : vector<2x32xf32>
    %1054 = arith.addf %1037, %1044 : vector<2x32xf32>
    %1055 = arith.negf %1054 : vector<2x32xf32>
    %1056 = math.exp %1055 : vector<2x32xf32>
    %cst_292 = arith.constant 1.000000e+00 : f32
    %1057 = vector.broadcast %cst_292 : f32 to vector<2x32xf32>
    %1058 = arith.addf %1057, %1056 : vector<2x32xf32>
    %1059 = arith.divf %1057, %1058 : vector<2x32xf32>
    %1060 = arith.mulf %1053, %1047 : vector<2x32xf32>
    %1061 = arith.addf %1038, %1060 : vector<2x32xf32>
    %1062 = math.tanh %1061 : vector<2x32xf32>
    %cst_293 = arith.constant 1.000000e+00 : f32
    %1063 = vector.broadcast %cst_293 : f32 to vector<2x32xf32>
    %1064 = arith.subf %1063, %1059 : vector<2x32xf32>
    %1065 = arith.mulf %1064, %1062 : vector<2x32xf32>
    %1066 = arith.mulf %1059, %999 : vector<2x32xf32>
    %1067 = arith.addf %1065, %1066 : vector<2x32xf32>
    %1068 = vector.extract_strided_slice %561 {offsets = [0, 96], sizes = [2, 32], strides = [1, 1]} : vector<2x192xf32> to vector<2x32xf32>
    %1069 = vector.extract_strided_slice %561 {offsets = [0, 128], sizes = [2, 32], strides = [1, 1]} : vector<2x192xf32> to vector<2x32xf32>
    %1070 = vector.extract_strided_slice %561 {offsets = [0, 160], sizes = [2, 32], strides = [1, 1]} : vector<2x192xf32> to vector<2x32xf32>
    %cst_294 = arith.constant dense<0.000000e+00> : vector<2x32xf32>
    %1071 = tpu.matmul %1031, %611, %cst_294 {dimension_numbers = #tpu.dot_dimension_numbers<[1], [0], [0], [1], [0, 0, 1, 1], [], []>} : vector<2x32xf32>, vector<32x32xf32>, vector<2x32xf32> -> vector<2x32xf32>
    %1072 = vector.broadcast %617 : vector<1x32xf32> to vector<2x32xf32>
    %1073 = arith.addf %1071, %1072 : vector<2x32xf32>
    %cst_295 = arith.constant dense<0.000000e+00> : vector<2x32xf32>
    %1074 = tpu.matmul %1031, %613, %cst_295 {dimension_numbers = #tpu.dot_dimension_numbers<[1], [0], [0], [1], [0, 0, 1, 1], [], []>} : vector<2x32xf32>, vector<32x32xf32>, vector<2x32xf32> -> vector<2x32xf32>
    %1075 = vector.broadcast %619 : vector<1x32xf32> to vector<2x32xf32>
    %1076 = arith.addf %1074, %1075 : vector<2x32xf32>
    %cst_296 = arith.constant dense<0.000000e+00> : vector<2x32xf32>
    %1077 = tpu.matmul %1031, %615, %cst_296 {dimension_numbers = #tpu.dot_dimension_numbers<[1], [0], [0], [1], [0, 0, 1, 1], [], []>} : vector<2x32xf32>, vector<32x32xf32>, vector<2x32xf32> -> vector<2x32xf32>
    %1078 = vector.broadcast %621 : vector<1x32xf32> to vector<2x32xf32>
    %1079 = arith.addf %1077, %1078 : vector<2x32xf32>
    %1080 = arith.addf %1068, %1073 : vector<2x32xf32>
    %1081 = arith.negf %1080 : vector<2x32xf32>
    %1082 = math.exp %1081 : vector<2x32xf32>
    %cst_297 = arith.constant 1.000000e+00 : f32
    %1083 = vector.broadcast %cst_297 : f32 to vector<2x32xf32>
    %1084 = arith.addf %1083, %1082 : vector<2x32xf32>
    %1085 = arith.divf %1083, %1084 : vector<2x32xf32>
    %1086 = arith.addf %1069, %1076 : vector<2x32xf32>
    %1087 = arith.negf %1086 : vector<2x32xf32>
    %1088 = math.exp %1087 : vector<2x32xf32>
    %cst_298 = arith.constant 1.000000e+00 : f32
    %1089 = vector.broadcast %cst_298 : f32 to vector<2x32xf32>
    %1090 = arith.addf %1089, %1088 : vector<2x32xf32>
    %1091 = arith.divf %1089, %1090 : vector<2x32xf32>
    %1092 = arith.mulf %1085, %1079 : vector<2x32xf32>
    %1093 = arith.addf %1070, %1092 : vector<2x32xf32>
    %1094 = math.tanh %1093 : vector<2x32xf32>
    %cst_299 = arith.constant 1.000000e+00 : f32
    %1095 = vector.broadcast %cst_299 : f32 to vector<2x32xf32>
    %1096 = arith.subf %1095, %1091 : vector<2x32xf32>
    %1097 = arith.mulf %1096, %1094 : vector<2x32xf32>
    %1098 = arith.mulf %1091, %1031 : vector<2x32xf32>
    %1099 = arith.addf %1097, %1098 : vector<2x32xf32>
    %1100 = arith.addf %1032, %1067 : vector<2x32xf32>
    %1101 = arith.addf %1033, %1099 : vector<2x32xf32>
    %1102 = arith.maximumf %1034, %1067 : vector<2x32xf32>
    %1103 = arith.maximumf %1035, %1099 : vector<2x32xf32>
    %1104 = vector.extract_strided_slice %597 {offsets = [0, 0], sizes = [2, 32], strides = [1, 1]} : vector<2x192xf32> to vector<2x32xf32>
    %1105 = vector.extract_strided_slice %597 {offsets = [0, 32], sizes = [2, 32], strides = [1, 1]} : vector<2x192xf32> to vector<2x32xf32>
    %1106 = vector.extract_strided_slice %597 {offsets = [0, 64], sizes = [2, 32], strides = [1, 1]} : vector<2x192xf32> to vector<2x32xf32>
    %cst_300 = arith.constant dense<0.000000e+00> : vector<2x32xf32>
    %1107 = tpu.matmul %1067, %599, %cst_300 {dimension_numbers = #tpu.dot_dimension_numbers<[1], [0], [0], [1], [0, 0, 1, 1], [], []>} : vector<2x32xf32>, vector<32x32xf32>, vector<2x32xf32> -> vector<2x32xf32>
    %1108 = vector.broadcast %605 : vector<1x32xf32> to vector<2x32xf32>
    %1109 = arith.addf %1107, %1108 : vector<2x32xf32>
    %cst_301 = arith.constant dense<0.000000e+00> : vector<2x32xf32>
    %1110 = tpu.matmul %1067, %601, %cst_301 {dimension_numbers = #tpu.dot_dimension_numbers<[1], [0], [0], [1], [0, 0, 1, 1], [], []>} : vector<2x32xf32>, vector<32x32xf32>, vector<2x32xf32> -> vector<2x32xf32>
    %1111 = vector.broadcast %607 : vector<1x32xf32> to vector<2x32xf32>
    %1112 = arith.addf %1110, %1111 : vector<2x32xf32>
    %cst_302 = arith.constant dense<0.000000e+00> : vector<2x32xf32>
    %1113 = tpu.matmul %1067, %603, %cst_302 {dimension_numbers = #tpu.dot_dimension_numbers<[1], [0], [0], [1], [0, 0, 1, 1], [], []>} : vector<2x32xf32>, vector<32x32xf32>, vector<2x32xf32> -> vector<2x32xf32>
    %1114 = vector.broadcast %609 : vector<1x32xf32> to vector<2x32xf32>
    %1115 = arith.addf %1113, %1114 : vector<2x32xf32>
    %1116 = arith.addf %1104, %1109 : vector<2x32xf32>
    %1117 = arith.negf %1116 : vector<2x32xf32>
    %1118 = math.exp %1117 : vector<2x32xf32>
    %cst_303 = arith.constant 1.000000e+00 : f32
    %1119 = vector.broadcast %cst_303 : f32 to vector<2x32xf32>
    %1120 = arith.addf %1119, %1118 : vector<2x32xf32>
    %1121 = arith.divf %1119, %1120 : vector<2x32xf32>
    %1122 = arith.addf %1105, %1112 : vector<2x32xf32>
    %1123 = arith.negf %1122 : vector<2x32xf32>
    %1124 = math.exp %1123 : vector<2x32xf32>
    %cst_304 = arith.constant 1.000000e+00 : f32
    %1125 = vector.broadcast %cst_304 : f32 to vector<2x32xf32>
    %1126 = arith.addf %1125, %1124 : vector<2x32xf32>
    %1127 = arith.divf %1125, %1126 : vector<2x32xf32>
    %1128 = arith.mulf %1121, %1115 : vector<2x32xf32>
    %1129 = arith.addf %1106, %1128 : vector<2x32xf32>
    %1130 = math.tanh %1129 : vector<2x32xf32>
    %cst_305 = arith.constant 1.000000e+00 : f32
    %1131 = vector.broadcast %cst_305 : f32 to vector<2x32xf32>
    %1132 = arith.subf %1131, %1127 : vector<2x32xf32>
    %1133 = arith.mulf %1132, %1130 : vector<2x32xf32>
    %1134 = arith.mulf %1127, %1067 : vector<2x32xf32>
    %1135 = arith.addf %1133, %1134 : vector<2x32xf32>
    %1136 = vector.extract_strided_slice %555 {offsets = [0, 96], sizes = [2, 32], strides = [1, 1]} : vector<2x192xf32> to vector<2x32xf32>
    %1137 = vector.extract_strided_slice %555 {offsets = [0, 128], sizes = [2, 32], strides = [1, 1]} : vector<2x192xf32> to vector<2x32xf32>
    %1138 = vector.extract_strided_slice %555 {offsets = [0, 160], sizes = [2, 32], strides = [1, 1]} : vector<2x192xf32> to vector<2x32xf32>
    %cst_306 = arith.constant dense<0.000000e+00> : vector<2x32xf32>
    %1139 = tpu.matmul %1099, %611, %cst_306 {dimension_numbers = #tpu.dot_dimension_numbers<[1], [0], [0], [1], [0, 0, 1, 1], [], []>} : vector<2x32xf32>, vector<32x32xf32>, vector<2x32xf32> -> vector<2x32xf32>
    %1140 = vector.broadcast %617 : vector<1x32xf32> to vector<2x32xf32>
    %1141 = arith.addf %1139, %1140 : vector<2x32xf32>
    %cst_307 = arith.constant dense<0.000000e+00> : vector<2x32xf32>
    %1142 = tpu.matmul %1099, %613, %cst_307 {dimension_numbers = #tpu.dot_dimension_numbers<[1], [0], [0], [1], [0, 0, 1, 1], [], []>} : vector<2x32xf32>, vector<32x32xf32>, vector<2x32xf32> -> vector<2x32xf32>
    %1143 = vector.broadcast %619 : vector<1x32xf32> to vector<2x32xf32>
    %1144 = arith.addf %1142, %1143 : vector<2x32xf32>
    %cst_308 = arith.constant dense<0.000000e+00> : vector<2x32xf32>
    %1145 = tpu.matmul %1099, %615, %cst_308 {dimension_numbers = #tpu.dot_dimension_numbers<[1], [0], [0], [1], [0, 0, 1, 1], [], []>} : vector<2x32xf32>, vector<32x32xf32>, vector<2x32xf32> -> vector<2x32xf32>
    %1146 = vector.broadcast %621 : vector<1x32xf32> to vector<2x32xf32>
    %1147 = arith.addf %1145, %1146 : vector<2x32xf32>
    %1148 = arith.addf %1136, %1141 : vector<2x32xf32>
    %1149 = arith.negf %1148 : vector<2x32xf32>
    %1150 = math.exp %1149 : vector<2x32xf32>
    %cst_309 = arith.constant 1.000000e+00 : f32
    %1151 = vector.broadcast %cst_309 : f32 to vector<2x32xf32>
    %1152 = arith.addf %1151, %1150 : vector<2x32xf32>
    %1153 = arith.divf %1151, %1152 : vector<2x32xf32>
    %1154 = arith.addf %1137, %1144 : vector<2x32xf32>
    %1155 = arith.negf %1154 : vector<2x32xf32>
    %1156 = math.exp %1155 : vector<2x32xf32>
    %cst_310 = arith.constant 1.000000e+00 : f32
    %1157 = vector.broadcast %cst_310 : f32 to vector<2x32xf32>
    %1158 = arith.addf %1157, %1156 : vector<2x32xf32>
    %1159 = arith.divf %1157, %1158 : vector<2x32xf32>
    %1160 = arith.mulf %1153, %1147 : vector<2x32xf32>
    %1161 = arith.addf %1138, %1160 : vector<2x32xf32>
    %1162 = math.tanh %1161 : vector<2x32xf32>
    %cst_311 = arith.constant 1.000000e+00 : f32
    %1163 = vector.broadcast %cst_311 : f32 to vector<2x32xf32>
    %1164 = arith.subf %1163, %1159 : vector<2x32xf32>
    %1165 = arith.mulf %1164, %1162 : vector<2x32xf32>
    %1166 = arith.mulf %1159, %1099 : vector<2x32xf32>
    %1167 = arith.addf %1165, %1166 : vector<2x32xf32>
    %1168 = arith.addf %1100, %1135 : vector<2x32xf32>
    %1169 = arith.addf %1101, %1167 : vector<2x32xf32>
    %1170 = arith.maximumf %1102, %1135 : vector<2x32xf32>
    %1171 = arith.maximumf %1103, %1167 : vector<2x32xf32>
    %cst_312 = arith.constant 1.250000e-01 : f32
    %1172 = vector.broadcast %cst_312 : f32 to vector<2x32xf32>
    %1173 = arith.mulf %1168, %1172 : vector<2x32xf32>
    %cst_313 = arith.constant 1.250000e-01 : f32
    %1174 = vector.broadcast %cst_313 : f32 to vector<2x32xf32>
    %1175 = arith.mulf %1169, %1174 : vector<2x32xf32>
    %1176 = tpu.concatenate %1173, %1175, %1170, %1171 in 1 : vector<2x32xf32>, vector<2x32xf32>, vector<2x32xf32>, vector<2x32xf32> -> vector<2x128xf32>
    %cst_314 = arith.constant dense<0.000000e+00> : vector<2xf32>
    %1177 = vector.multi_reduction <add>, %1176, %cst_314 [1] : vector<2x128xf32> to vector<2xf32>
    %1178 = vector.shape_cast %1177 : vector<2xf32> to vector<2x1xf32>
    %cst_315 = arith.constant 1.280000e+02 : f32
    %1179 = vector.broadcast %cst_315 : f32 to vector<2x1xf32>
    %1180 = arith.divf %1178, %1179 : vector<2x1xf32>
    %1181 = vector.broadcast %1180 : vector<2x1xf32> to vector<2x128xf32>
    %1182 = arith.subf %1176, %1181 : vector<2x128xf32>
    %1183 = arith.mulf %1182, %1182 : vector<2x128xf32>
    %cst_316 = arith.constant dense<0.000000e+00> : vector<2xf32>
    %1184 = vector.multi_reduction <add>, %1183, %cst_316 [1] : vector<2x128xf32> to vector<2xf32>
    %1185 = vector.shape_cast %1184 : vector<2xf32> to vector<2x1xf32>
    %cst_317 = arith.constant 1.280000e+02 : f32
    %1186 = vector.broadcast %cst_317 : f32 to vector<2x1xf32>
    %1187 = arith.divf %1185, %1186 : vector<2x1xf32>
    %1188 = vector.broadcast %1180 : vector<2x1xf32> to vector<2x128xf32>
    %1189 = arith.subf %1176, %1188 : vector<2x128xf32>
    %cst_318 = arith.constant 9.99999974E-6 : f32
    %1190 = vector.broadcast %cst_318 : f32 to vector<2x1xf32>
    %1191 = arith.addf %1187, %1190 : vector<2x1xf32>
    %1192 = math.rsqrt %1191 : vector<2x1xf32>
    %1193 = vector.broadcast %1192 : vector<2x1xf32> to vector<2x128xf32>
    %1194 = arith.mulf %1189, %1193 : vector<2x128xf32>
    %c0_319 = arith.constant 0 : index
    %c0_320 = arith.constant 0 : index
    %1195 = vector.load %arg9[%c0_319, %c0_320] : memref<1x128xf32, #tpu.memory_space<vmem>>, vector<1x128xf32>
    %1196 = vector.broadcast %1195 : vector<1x128xf32> to vector<2x128xf32>
    %1197 = arith.mulf %1194, %1196 : vector<2x128xf32>
    %c0_321 = arith.constant 0 : index
    %c0_322 = arith.constant 0 : index
    %1198 = vector.load %arg10[%c0_321, %c0_322] : memref<1x128xf32, #tpu.memory_space<vmem>>, vector<1x128xf32>
    %1199 = vector.broadcast %1198 : vector<1x128xf32> to vector<2x128xf32>
    %1200 = arith.addf %1197, %1199 : vector<2x128xf32>
    %c0_323 = arith.constant 0 : index
    %c0_324 = arith.constant 0 : index
    %1201 = vector.load %arg11[%c0_323, %c0_324] : memref<128x32xf32, #tpu.memory_space<vmem>>, vector<128x32xf32>
    %cst_325 = arith.constant dense<0.000000e+00> : vector<2x32xf32>
    %1202 = tpu.matmul %1200, %1201, %cst_325 {dimension_numbers = #tpu.dot_dimension_numbers<[1], [0], [0], [1], [0, 0, 1, 1], [], []>} : vector<2x128xf32>, vector<128x32xf32>, vector<2x32xf32> -> vector<2x32xf32>
    %c0_326 = arith.constant 0 : index
    %c0_327 = arith.constant 0 : index
    %1203 = vector.load %arg12[%c0_326, %c0_327] : memref<1x32xf32, #tpu.memory_space<vmem>>, vector<1x32xf32>
    %1204 = vector.broadcast %1203 : vector<1x32xf32> to vector<2x32xf32>
    %1205 = arith.addf %1202, %1204 : vector<2x32xf32>
    %c0_328 = arith.constant 0 : index
    %c0_329 = arith.constant 0 : index
    %1206 = vector.load %arg13[%c0_328, %c0_329] : memref<128x32xf32, #tpu.memory_space<vmem>>, vector<128x32xf32>
    %cst_330 = arith.constant dense<0.000000e+00> : vector<2x32xf32>
    %1207 = tpu.matmul %1200, %1206, %cst_330 {dimension_numbers = #tpu.dot_dimension_numbers<[1], [0], [0], [1], [0, 0, 1, 1], [], []>} : vector<2x128xf32>, vector<128x32xf32>, vector<2x32xf32> -> vector<2x32xf32>
    %c0_331 = arith.constant 0 : index
    %c0_332 = arith.constant 0 : index
    %1208 = vector.load %arg14[%c0_331, %c0_332] : memref<1x32xf32, #tpu.memory_space<vmem>>, vector<1x32xf32>
    %1209 = vector.broadcast %1208 : vector<1x32xf32> to vector<2x32xf32>
    %1210 = arith.addf %1207, %1209 : vector<2x32xf32>
    %cst_333 = arith.constant 0.000000e+00 : f32
    %1211 = vector.broadcast %cst_333 : f32 to vector<2x32xf32>
    %1212 = arith.maximumf %1210, %1211 : vector<2x32xf32>
    %1213 = arith.addf %1212, %1205 : vector<2x32xf32>
    %c0_334 = arith.constant 0 : index
    %c0_335 = arith.constant 0 : index
    %1214 = vector.load %arg15[%c0_334, %c0_335] : memref<32x4xf32, #tpu.memory_space<vmem>>, vector<32x4xf32>
    %cst_336 = arith.constant dense<0.000000e+00> : vector<2x4xf32>
    %1215 = tpu.matmul %1213, %1214, %cst_336 {dimension_numbers = #tpu.dot_dimension_numbers<[1], [0], [0], [1], [0, 0, 1, 1], [], []>} : vector<2x32xf32>, vector<32x4xf32>, vector<2x4xf32> -> vector<2x4xf32>
    %c0_337 = arith.constant 0 : index
    %c0_338 = arith.constant 0 : index
    %1216 = vector.load %arg16[%c0_337, %c0_338] : memref<1x4xf32, #tpu.memory_space<vmem>>, vector<1x4xf32>
    %1217 = vector.broadcast %1216 : vector<1x4xf32> to vector<2x4xf32>
    %1218 = arith.addf %1215, %1217 : vector<2x4xf32>
    %c0_339 = arith.constant 0 : index
    %c0_340 = arith.constant 0 : index
    %1219 = vector.load %arg17[%c0_339, %c0_340] : memref<2x4xf32, #tpu.memory_space<vmem>>, vector<2x4xf32>
    tpu.vector_store %arg17[%c0_339, %c0_340], %1218 {strides = array<i32>} : memref<2x4xf32, #tpu.memory_space<vmem>>, vector<2x4xf32>,
    return
  }
}

</mosaic_0001>

<llo_original>
// kernel: rnn_classifier_forward.1
$region0: #{rnn_classifier_forward.1}
  #allocation0 [shape = 'u32[]', space=smem, size = 0x4, offset = 0x4, fixed_abs, tag = 'smem constant byte address 0x4 - core index']
  #allocation1 [shape = 'u32[144,128]{1,0:T(1,128)}', space=vmem, size = 0x12000, scoped, tag = 'internal scratch']
  %s0 = inlined_call_operand.vmem [shape: f32[16,32], index: 0, kind: input, shape index: {}]
  %s1 = inlined_call_operand.vmem [shape: f32[32,192], index: 1, kind: input, shape index: {}]
  %s2 = inlined_call_operand.hbm [shape: f32[1,192], index: 2, kind: input, shape index: {}]
  %s3 = inlined_call_operand.vmem [shape: f32[6,32,32], index: 3, kind: input, shape index: {}]
  %s4 = inlined_call_operand.vmem [shape: f32[6,1,32], index: 4, kind: input, shape index: {}]
  %s5 = inlined_call_operand.vmem [shape: f32[64,192], index: 5, kind: input, shape index: {}]
  %s6 = inlined_call_operand.vmem [shape: f32[1,192], index: 6, kind: input, shape index: {}]
  %s7 = inlined_call_operand.vmem [shape: f32[6,32,32], index: 7, kind: input, shape index: {}]
  %s8 = inlined_call_operand.vmem [shape: f32[6,1,32], index: 8, kind: input, shape index: {}]
  %s9 = inlined_call_operand.vmem [shape: f32[1,128], index: 9, kind: input, shape index: {}]
  %s10 = inlined_call_operand.vmem [shape: f32[1,128], index: 10, kind: input, shape index: {}]
  %s11 = inlined_call_operand.vmem [shape: f32[128,32], index: 11, kind: input, shape index: {}]
  %s12 = inlined_call_operand.vmem [shape: f32[1,32], index: 12, kind: input, shape index: {}]
  %s13 = inlined_call_operand.vmem [shape: f32[128,32], index: 13, kind: input, shape index: {}]
  %s14 = inlined_call_operand.vmem [shape: f32[1,32], index: 14, kind: input, shape index: {}]
  %s15 = inlined_call_operand.vmem [shape: f32[32,4], index: 15, kind: input, shape index: {}]
  %s16 = inlined_call_operand.vmem [shape: f32[1,4], index: 16, kind: input, shape index: {}]
  %s17 = inlined_call_operand.hbm [shape: f32[2,4], index: 17, kind: output, shape index: {}]
  %s18 = sld [smem:[#allocation0]]
  $region82: #{rnn_classifier_forward.1} parent=0
    _
  %s20 = ssub.s32 1, %s18
  %s21 = scalar_select 0, %s20, %s18
  $region1: #{rnn_classifier_forward.1} parent=0
    #allocation2 [shape = 'u8[1024]{0}', space=vmem, size = 0x400, scoped, tag = 'input window, operand 2, single buffered']
    #allocation3 [shape = 's32[1]{0}', space=sflag, size = 0x4, scoped, tag = 'scoped memory for rnn_classifier_forward.1']
    #allocation4 [shape = 's32[1]{0}', space=sflag, size = 0x4, scoped, tag = 'scoped memory for rnn_classifier_forward.1']
    #allocation5 [shape = 'u8[1024]{0}', space=vmem, size = 0x400, scoped, tag = 'output window, operand 0, single buffered']
    %22 = vsyncpa [#allocation3], 0
    %23 = vsyncpa [#allocation4], 0
    // Predicated region
    $region2: #{rnn_classifier_forward.1} parent=1 // pred_check
      _
    $region3: #{rnn_classifier_forward.1} parent=1 // pred_check_branch
      %25 = sbr.rel (0) target = $region5
    $region4: #{rnn_classifier_forward.1} parent=1 // pred_region
      _
    $region5: #{rnn_classifier_forward.1} parent=1 // pred_fallthru
      _
    // Predicated region
    $region6: #{rnn_classifier_forward.1} parent=1 // pred_check
      _
    $region7: #{rnn_classifier_forward.1} parent=1 // pred_check_branch
      %27 = sbr.rel (0) target = $region9
    $region8: #{rnn_classifier_forward.1} parent=1 // pred_region
      _
    $region9: #{rnn_classifier_forward.1} parent=1 // pred_fallthru
      _
    // Predicated region
    $region10: #{rnn_classifier_forward.1} parent=1 // pred_check
      _
    $region11: #{rnn_classifier_forward.1} parent=1 // pred_check_branch
      %29 = sbr.rel (0) target = $region13
    $region12: #{rnn_classifier_forward.1} parent=1 // pred_region
      %s31 = ssub.s32 32, 32
      %32 = vsyncadd [#allocation3], %s31
      %s34 = sshll.u32 [#allocation2], 4
      %s35 = int_to_ptr.vmem [resolvable:$true] %s34
      %37 = dma.hbm_to_vmem [thread:$0]  %s2, 32, %s35, [#allocation3]
    $region13: #{rnn_classifier_forward.1} parent=1 // pred_fallthru
      _
    // Predicated region
    $region14: #{rnn_classifier_forward.1} parent=1 // pred_check
      _
    $region15: #{rnn_classifier_forward.1} parent=1 // pred_check_branch
      %39 = sbr.rel (0) target = $region17
    $region16: #{rnn_classifier_forward.1} parent=1 // pred_region
      _
    $region17: #{rnn_classifier_forward.1} parent=1 // pred_fallthru
      _
    // Predicated region
    $region18: #{rnn_classifier_forward.1} parent=1 // pred_check
      _
    $region19: #{rnn_classifier_forward.1} parent=1 // pred_check_branch
      %41 = sbr.rel (0) target = $region21
    $region20: #{rnn_classifier_forward.1} parent=1 // pred_region
      _
    $region21: #{rnn_classifier_forward.1} parent=1 // pred_fallthru
      _
    // Predicated region
    $region22: #{rnn_classifier_forward.1} parent=1 // pred_check
      _
    $region23: #{rnn_classifier_forward.1} parent=1 // pred_check_branch
      %43 = sbr.rel (0) target = $region25
    $region24: #{rnn_classifier_forward.1} parent=1 // pred_region
      _
    $region25: #{rnn_classifier_forward.1} parent=1 // pred_fallthru
      _
    // Predicated region
    $region26: #{rnn_classifier_forward.1} parent=1 // pred_check
      _
    $region27: #{rnn_classifier_forward.1} parent=1 // pred_check_branch
      %45 = sbr.rel (0) target = $region29
    $region28: #{rnn_classifier_forward.1} parent=1 // pred_region
      _
    $region29: #{rnn_classifier_forward.1} parent=1 // pred_fallthru
      _
    // Predicated region
    $region30: #{rnn_classifier_forward.1} parent=1 // pred_check
      _
    $region31: #{rnn_classifier_forward.1} parent=1 // pred_check_branch
      %47 = sbr.rel (0) target = $region33
    $region32: #{rnn_classifier_forward.1} parent=1 // pred_region
      _
    $region33: #{rnn_classifier_forward.1} parent=1 // pred_fallthru
      _
    // Predicated region
    $region34: #{rnn_classifier_forward.1} parent=1 // pred_check
      _
    $region35: #{rnn_classifier_forward.1} parent=1 // pred_check_branch
      %49 = sbr.rel (0) target = $region37
    $region36: #{rnn_classifier_forward.1} parent=1 // pred_region
      _
    $region37: #{rnn_classifier_forward.1} parent=1 // pred_fallthru
      _
    // Predicated region
    $region38: #{rnn_classifier_forward.1} parent=1 // pred_check
      _
    $region39: #{rnn_classifier_forward.1} parent=1 // pred_check_branch
      %51 = sbr.rel (0) target = $region41
    $region40: #{rnn_classifier_forward.1} parent=1 // pred_region
      _
    $region41: #{rnn_classifier_forward.1} parent=1 // pred_fallthru
      _
    // Predicated region
    $region42: #{rnn_classifier_forward.1} parent=1 // pred_check
      _
    $region43: #{rnn_classifier_forward.1} parent=1 // pred_check_branch
      %53 = sbr.rel (0) target = $region45
    $region44: #{rnn_classifier_forward.1} parent=1 // pred_region
      _
    $region45: #{rnn_classifier_forward.1} parent=1 // pred_fallthru
      _
    // Predicated region
    $region46: #{rnn_classifier_forward.1} parent=1 // pred_check
      _
    $region47: #{rnn_classifier_forward.1} parent=1 // pred_check_branch
      %55 = sbr.rel (0) target = $region49
    $region48: #{rnn_classifier_forward.1} parent=1 // pred_region
      _
    $region49: #{rnn_classifier_forward.1} parent=1 // pred_fallthru
      _
    // Predicated region
    $region50: #{rnn_classifier_forward.1} parent=1 // pred_check
      _
    $region51: #{rnn_classifier_forward.1} parent=1 // pred_check_branch
      %57 = sbr.rel (0) target = $region53
    $region52: #{rnn_classifier_forward.1} parent=1 // pred_region
      _
    $region53: #{rnn_classifier_forward.1} parent=1 // pred_fallthru
      _
    // Predicated region
    $region54: #{rnn_classifier_forward.1} parent=1 // pred_check
      _
    $region55: #{rnn_classifier_forward.1} parent=1 // pred_check_branch
      %59 = sbr.rel (0) target = $region57
    $region56: #{rnn_classifier_forward.1} parent=1 // pred_region
      _
    $region57: #{rnn_classifier_forward.1} parent=1 // pred_fallthru
      _
    // Predicated region
    $region58: #{rnn_classifier_forward.1} parent=1 // pred_check
      _
    $region59: #{rnn_classifier_forward.1} parent=1 // pred_check_branch
      %61 = sbr.rel (0) target = $region61
    $region60: #{rnn_classifier_forward.1} parent=1 // pred_region
      _
    $region61: #{rnn_classifier_forward.1} parent=1 // pred_fallthru
      _
    // Predicated region
    $region62: #{rnn_classifier_forward.1} parent=1 // pred_check
      _
    $region63: #{rnn_classifier_forward.1} parent=1 // pred_check_branch
      %63 = sbr.rel (0) target = $region65
    $region64: #{rnn_classifier_forward.1} parent=1 // pred_region
      _
    $region65: #{rnn_classifier_forward.1} parent=1 // pred_fallthru
      _
    // Predicated region
    $region66: #{rnn_classifier_forward.1} parent=1 // pred_check
      _
    $region67: #{rnn_classifier_forward.1} parent=1 // pred_check_branch
      %65 = sbr.rel (0) target = $region69
    $region68: #{rnn_classifier_forward.1} parent=1 // pred_region
      _
    $region69: #{rnn_classifier_forward.1} parent=1 // pred_fallthru
      _
    // Predicated region
    $region70: #{rnn_classifier_forward.1} parent=1 // pred_check
      _
    $region71: #{rnn_classifier_forward.1} parent=1 // pred_check_branch
      %67 = sbr.rel (0) target = $region73
    $region72: #{rnn_classifier_forward.1} parent=1 // pred_region
      %68 = dma.done [#allocation3], 32
    $region73: #{rnn_classifier_forward.1} parent=1 // pred_fallthru
      _
    %v69 = vld [vmem:[%s0] sm:$0xff]
    %v70 = vld [vmem:[%s0 + $0x8] sm:$0xff]
    %v71 = vld [vmem:[%s1] sm:$0xff]
    %v72 = vld [vmem:[%s1 + $0x8] sm:$0xff]
    %v73 = vld [vmem:[%s1 + $0x10] sm:$0xff]
    %v74 = vld [vmem:[%s1 + $0x18] sm:$0xff]
    %v75 = vld [vmem:[%s1 + $0x20] sm:$0xff]
    %v76 = vld [vmem:[%s1 + $0x28] sm:$0xff]
    %v77 = vld [vmem:[%s1 + $0x30] sm:$0xff]
    %v78 = vld [vmem:[%s1 + $0x38] sm:$0xff]
    %v79 = vld [vmem:[#allocation2] sm:$0x3]
    %v81 = vlaneseq
    %v82 = vshrl.u32 %v81, 7
    %v83 = vsub.s32 0, %v82
    %v84 = vrot.slane %v79, %v83
    %v85 = vlaneseq
    %v86 = vshrl.u32 %v85, 7
    %v87 = vsub.s32 1, %v86
    %v88 = vrot.slane %v79, %v87
    %vm91 = vcmask 261120
    %v93 = vsel %vm91, %v69, 0
    %v96 = vsel %vm91, %v70, 0
    %98 = vmatprep.subr.mxu0 %v72
    %99 = vmatpush1.msra.mxu0 %v71
    %100 = vmatprep.subr.mxu0 %v74
    %101 = vmatpush1.msra.mxu0 %v73
    %102 = vmatprep.subr.mxu0 %v76
    %103 = vmatpush1.msra.mxu0 %v75
    %104 = vmatprep.subr.mxu0 %v78
    %105 = vmatpush1.msra.mxu0 %v77
    %106 = vmatprep.subr.mxu0 0.0
    %107 = vmatpush1.msra.mxu0 0.0
    %108 = vmatprep.subr.mxu0 0.0
    %109 = vmatpush1.msra.mxu0 0.0
    %110 = vmatprep.subr.mxu0 0.0
    %111 = vmatpush1.msra.mxu0 0.0
    %112 = vmatprep.subr.mxu0 0.0
    %113 = vmatpush1.msra.mxu0 0.0
    %114 = vmatprep.subr.mxu0 0.0
    %115 = vmatpush1.msra.mxu0 0.0
    %116 = vmatprep.subr.mxu0 0.0
    %117 = vmatpush1.msra.mxu0 0.0
    %118 = vmatprep.subr.mxu0 0.0
    %119 = vmatpush1.msra.mxu0 0.0
    %120 = vmatprep.subr.mxu0 0.0
    %121 = vmatpush1.msra.mxu0 0.0
    %122 = vmatprep.subr.mxu0 0.0
    %123 = vmatpush1.msra.mxu0 0.0
    %124 = vmatprep.subr.mxu0 0.0
    %125 = vmatpush1.msra.mxu0 0.0
    %126 = vmatprep.subr.mxu0 0.0
    %127 = vmatpush1.msra.mxu0 0.0
    %128 = vmatprep.subr.mxu0 0.0
    %129 = vmatpush1.msra.mxu0 0.0
    %130 = vmatprep.subr.mxu0 0.0
    %131 = vmatpush1.msra.mxu0 0.0
    %132 = vmatprep.subr.mxu0 0.0
    %133 = vmatpush1.msra.mxu0 0.0
    %134 = vmatprep.subr.mxu0 0.0
    %135 = vmatpush1.msra.mxu0 0.0
    %136 = vmatprep.subr.mxu0 0.0
    %137 = vmatpush1.msra.mxu0 0.0
    %138 = vmatprep.subr.mxu0 0.0
    %139 = vmatpush1.msra.mxu0 0.0
    %140 = vmatprep.subr.mxu0 0.0
    %141 = vmatpush1.msra.mxu0 0.0
    %142 = vmatprep.subr.mxu0 0.0
    %143 = vmatpush1.msra.mxu0 0.0
    %144 = vmatprep.subr.mxu0 0.0
    %145 = vmatpush1.msra.mxu0 0.0
    %146 = vmatprep.subr.mxu0 0.0
    %147 = vmatpush1.msra.mxu0 0.0
    %148 = vmatprep.subr.mxu0 0.0
    %149 = vmatpush1.msra.mxu0 0.0
    %150 = vmatprep.subr.mxu0 0.0
    %151 = vmatpush1.msra.mxu0 0.0
    %152 = vmatprep.subr.mxu0 0.0
    %153 = vmatpush1.msra.mxu0 0.0
    %154 = vmatprep.subr.mxu0 0.0
    %155 = vmatpush1.msra.mxu0 0.0
    %156 = vmatprep.subr.mxu0 0.0
    %157 = vmatpush1.msra.mxu0 0.0
    %158 = vmatprep.subr.mxu0 0.0
    %159 = vmatpush1.msra.mxu0 0.0
    %160 = vmatprep.subr.mxu0 0.0
    %161 = vmatpush1.msra.mxu0 0.0
    %162 = vmatprep.mubr.f32.mxu0 0.0
    %163 = vmatmul.mubr.f32.gmra.mrb[0].mxu0 %v93
    %v164 = vpop.f32.mrb[0].mxu0
    %v165 = vadd.f32 %v84, %v164
    %v166 = vpop.f32.mrb[0].mxu0
    %v167 = vadd.f32 %v88, %v166
    %168 = vmatprep.mubr.f32.mxu0 0.0
    %169 = vmatmul.mubr.f32.gmra.mrb[0].mxu0 %v96
    %v170 = vpop.f32.mrb[0].mxu0
    %v171 = vadd.f32 %v84, %v170
    %v172 = vpop.f32.mrb[0].mxu0
    %v173 = vadd.f32 %v88, %v172
    %174 = vdwg.mxu0
    %v175 = vld [vmem:[%s3] sm:$0xff]
    %v176 = vld [vmem:[%s3 + $0x8] sm:$0xff]
    %v177 = vld [vmem:[%s3 + $0x10] sm:$0xff]
    %v178 = vld [vmem:[%s3 + $0x18] sm:$0xff]
    %s179 = scalar_lea.vmem %s3, 32
    %v180 = vld [vmem:[%s179] sm:$0xff]
    %v181 = vld [vmem:[%s179 + $0x8] sm:$0xff]
    %v182 = vld [vmem:[%s179 + $0x10] sm:$0xff]
    %v183 = vld [vmem:[%s179 + $0x18] sm:$0xff]
    %s184 = scalar_lea.vmem %s3, 64
    %v185 = vld [vmem:[%s184] sm:$0xff]
    %v186 = vld [vmem:[%s184 + $0x8] sm:$0xff]
    %v187 = vld [vmem:[%s184 + $0x10] sm:$0xff]
    %v188 = vld [vmem:[%s184 + $0x18] sm:$0xff]
    %v189 = vld [vmem:[%s4] sm:$0x1]
    %s190 = scalar_lea.vmem %s4, 1
    %v191 = vld [vmem:[%s190] sm:$0x1]
    %s192 = scalar_lea.vmem %s4, 2
    %v193 = vld [vmem:[%s192] sm:$0x1]
    %s194 = scalar_lea.vmem %s3, 96
    %v195 = vld [vmem:[%s194] sm:$0xff]
    %v196 = vld [vmem:[%s194 + $0x8] sm:$0xff]
    %v197 = vld [vmem:[%s194 + $0x10] sm:$0xff]
    %v198 = vld [vmem:[%s194 + $0x18] sm:$0xff]
    %s199 = scalar_lea.vmem %s3, 128
    %v200 = vld [vmem:[%s199] sm:$0xff]
    %v201 = vld [vmem:[%s199 + $0x8] sm:$0xff]
    %v202 = vld [vmem:[%s199 + $0x10] sm:$0xff]
    %v203 = vld [vmem:[%s199 + $0x18] sm:$0xff]
    %s204 = scalar_lea.vmem %s3, 160
    %v205 = vld [vmem:[%s204] sm:$0xff]
    %v206 = vld [vmem:[%s204 + $0x8] sm:$0xff]
    %v207 = vld [vmem:[%s204 + $0x10] sm:$0xff]
    %v208 = vld [vmem:[%s204 + $0x18] sm:$0xff]
    %s209 = scalar_lea.vmem %s4, 3
    %v210 = vld [vmem:[%s209] sm:$0x1]
    %s211 = scalar_lea.vmem %s4, 4
    %v212 = vld [vmem:[%s211] sm:$0x1]
    %s213 = scalar_lea.vmem %s4, 5
    %v214 = vld [vmem:[%s213] sm:$0x1]
    %v216 = vlaneseq
    %v217 = vshrl.u32 %v216, 7
    %v218 = vsub.s32 0, %v217
    %v219 = vrot.slane %v189, %v218
    %v222 = vsel %vm91, 0.0, 0
    %224 = vmatprep.subr.mxu0 0.0
    %225 = vmatpush1.msra.mxu0 %v175
    %226 = vmatprep.subr.mxu0 0.0
    %227 = vmatpush1.msra.mxu0 %v176
    %228 = vmatprep.subr.mxu0 0.0
    %229 = vmatpush1.msra.mxu0 %v177
    %230 = vmatprep.subr.mxu0 0.0
    %231 = vmatpush1.msra.mxu0 %v178
    %232 = vmatprep.subr.mxu0 0.0
    %233 = vmatpush1.msra.mxu0 0.0
    %234 = vmatprep.subr.mxu0 0.0
    %235 = vmatpush1.msra.mxu0 0.0
    %236 = vmatprep.subr.mxu0 0.0
    %237 = vmatpush1.msra.mxu0 0.0
    %238 = vmatprep.subr.mxu0 0.0
    %239 = vmatpush1.msra.mxu0 0.0
    %240 = vmatprep.subr.mxu0 0.0
    %241 = vmatpush1.msra.mxu0 0.0
    %242 = vmatprep.subr.mxu0 0.0
    %243 = vmatpush1.msra.mxu0 0.0
    %244 = vmatprep.subr.mxu0 0.0
    %245 = vmatpush1.msra.mxu0 0.0
    %246 = vmatprep.subr.mxu0 0.0
    %247 = vmatpush1.msra.mxu0 0.0
    %248 = vmatprep.subr.mxu0 0.0
    %249 = vmatpush1.msra.mxu0 0.0
    %250 = vmatprep.subr.mxu0 0.0
    %251 = vmatpush1.msra.mxu0 0.0
    %252 = vmatprep.subr.mxu0 0.0
    %253 = vmatpush1.msra.mxu0 0.0
    %254 = vmatprep.subr.mxu0 0.0
    %255 = vmatpush1.msra.mxu0 0.0
    %256 = vmatprep.subr.mxu0 0.0
    %257 = vmatpush1.msra.mxu0 0.0
    %258 = vmatprep.subr.mxu0 0.0
    %259 = vmatpush1.msra.mxu0 0.0
    %260 = vmatprep.subr.mxu0 0.0
    %261 = vmatpush1.msra.mxu0 0.0
    %262 = vmatprep.subr.mxu0 0.0
    %263 = vmatpush1.msra.mxu0 0.0
    %264 = vmatprep.subr.mxu0 0.0
    %265 = vmatpush1.msra.mxu0 0.0
    %266 = vmatprep.subr.mxu0 0.0
    %267 = vmatpush1.msra.mxu0 0.0
    %268 = vmatprep.subr.mxu0 0.0
    %269 = vmatpush1.msra.mxu0 0.0
    %270 = vmatprep.subr.mxu0 0.0
    %271 = vmatpush1.msra.mxu0 0.0
    %272 = vmatprep.subr.mxu0 0.0
    %273 = vmatpush1.msra.mxu0 0.0
    %274 = vmatprep.subr.mxu0 0.0
    %275 = vmatpush1.msra.mxu0 0.0
    %276 = vmatprep.subr.mxu0 0.0
    %277 = vmatpush1.msra.mxu0 0.0
    %278 = vmatprep.subr.mxu0 0.0
    %279 = vmatpush1.msra.mxu0 0.0
    %280 = vmatprep.subr.mxu0 0.0
    %281 = vmatpush1.msra.mxu0 0.0
    %282 = vmatprep.subr.mxu0 0.0
    %283 = vmatpush1.msra.mxu0 0.0
    %284 = vmatprep.subr.mxu0 0.0
    %285 = vmatpush1.msra.mxu0 0.0
    %286 = vmatprep.subr.mxu0 0.0
    %287 = vmatpush1.msra.mxu0 0.0
    %288 = vmatprep.mubr.f32.mxu0 0.0
    %289 = vmatmul.mubr.f32.gmra.mrb[0].mxu0 %v222
    %v290 = vpop.f32.mrb[0].mxu0
    %v291 = vadd.f32 %v219, %v290
    %v292 = vpop.f32.mrb[0].mxu0
    %293 = vdwg.mxu0
    %v295 = vlaneseq
    %v296 = vshrl.u32 %v295, 7
    %v297 = vsub.s32 0, %v296
    %v298 = vrot.slane %v191, %v297
    %300 = vmatprep.subr.mxu0 0.0
    %301 = vmatpush1.msra.mxu0 %v180
    %302 = vmatprep.subr.mxu0 0.0
    %303 = vmatpush1.msra.mxu0 %v181
    %304 = vmatprep.subr.mxu0 0.0
    %305 = vmatpush1.msra.mxu0 %v182
    %306 = vmatprep.subr.mxu0 0.0
    %307 = vmatpush1.msra.mxu0 %v183
    %308 = vmatprep.subr.mxu0 0.0
    %309 = vmatpush1.msra.mxu0 0.0
    %310 = vmatprep.subr.mxu0 0.0
    %311 = vmatpush1.msra.mxu0 0.0
    %312 = vmatprep.subr.mxu0 0.0
    %313 = vmatpush1.msra.mxu0 0.0
    %314 = vmatprep.subr.mxu0 0.0
    %315 = vmatpush1.msra.mxu0 0.0
    %316 = vmatprep.subr.mxu0 0.0
    %317 = vmatpush1.msra.mxu0 0.0
    %318 = vmatprep.subr.mxu0 0.0
    %319 = vmatpush1.msra.mxu0 0.0
    %320 = vmatprep.subr.mxu0 0.0
    %321 = vmatpush1.msra.mxu0 0.0
    %322 = vmatprep.subr.mxu0 0.0
    %323 = vmatpush1.msra.mxu0 0.0
    %324 = vmatprep.subr.mxu0 0.0
    %325 = vmatpush1.msra.mxu0 0.0
    %326 = vmatprep.subr.mxu0 0.0
    %327 = vmatpush1.msra.mxu0 0.0
    %328 = vmatprep.subr.mxu0 0.0
    %329 = vmatpush1.msra.mxu0 0.0
    %330 = vmatprep.subr.mxu0 0.0
    %331 = vmatpush1.msra.mxu0 0.0
    %332 = vmatprep.subr.mxu0 0.0
    %333 = vmatpush1.msra.mxu0 0.0
    %334 = vmatprep.subr.mxu0 0.0
    %335 = vmatpush1.msra.mxu0 0.0
    %336 = vmatprep.subr.mxu0 0.0
    %337 = vmatpush1.msra.mxu0 0.0
    %338 = vmatprep.subr.mxu0 0.0
    %339 = vmatpush1.msra.mxu0 0.0
    %340 = vmatprep.subr.mxu0 0.0
    %341 = vmatpush1.msra.mxu0 0.0
    %342 = vmatprep.subr.mxu0 0.0
    %343 = vmatpush1.msra.mxu0 0.0
    %344 = vmatprep.subr.mxu0 0.0
    %345 = vmatpush1.msra.mxu0 0.0
    %346 = vmatprep.subr.mxu0 0.0
    %347 = vmatpush1.msra.mxu0 0.0
    %348 = vmatprep.subr.mxu0 0.0
    %349 = vmatpush1.msra.mxu0 0.0
    %350 = vmatprep.subr.mxu0 0.0
    %351 = vmatpush1.msra.mxu0 0.0
    %352 = vmatprep.subr.mxu0 0.0
    %353 = vmatpush1.msra.mxu0 0.0
    %354 = vmatprep.subr.mxu0 0.0
    %355 = vmatpush1.msra.mxu0 0.0
    %356 = vmatprep.subr.mxu0 0.0
    %357 = vmatpush1.msra.mxu0 0.0
    %358 = vmatprep.subr.mxu0 0.0
    %359 = vmatpush1.msra.mxu0 0.0
    %360 = vmatprep.subr.mxu0 0.0
    %361 = vmatpush1.msra.mxu0 0.0
    %362 = vmatprep.subr.mxu0 0.0
    %363 = vmatpush1.msra.mxu0 0.0
    %364 = vmatprep.mubr.f32.mxu0 0.0
    %365 = vmatmul.mubr.f32.gmra.mrb[0].mxu0 %v222
    %v366 = vpop.f32.mrb[0].mxu0
    %v367 = vadd.f32 %v298, %v366
    %v368 = vpop.f32.mrb[0].mxu0
    %369 = vdwg.mxu0
    %v371 = vlaneseq
    %v372 = vshrl.u32 %v371, 7
    %v373 = vsub.s32 0, %v372
    %v374 = vrot.slane %v193, %v373
    %376 = vmatprep.subr.mxu0 0.0
    %377 = vmatpush1.msra.mxu0 %v185
    %378 = vmatprep.subr.mxu0 0.0
    %379 = vmatpush1.msra.mxu0 %v186
    %380 = vmatprep.subr.mxu0 0.0
    %381 = vmatpush1.msra.mxu0 %v187
    %382 = vmatprep.subr.mxu0 0.0
    %383 = vmatpush1.msra.mxu0 %v188
    %384 = vmatprep.subr.mxu0 0.0
    %385 = vmatpush1.msra.mxu0 0.0
    %386 = vmatprep.subr.mxu0 0.0
    %387 = vmatpush1.msra.mxu0 0.0
    %388 = vmatprep.subr.mxu0 0.0
    %389 = vmatpush1.msra.mxu0 0.0
    %390 = vmatprep.subr.mxu0 0.0
    %391 = vmatpush1.msra.mxu0 0.0
    %392 = vmatprep.subr.mxu0 0.0
    %393 = vmatpush1.msra.mxu0 0.0
    %394 = vmatprep.subr.mxu0 0.0
    %395 = vmatpush1.msra.mxu0 0.0
    %396 = vmatprep.subr.mxu0 0.0
    %397 = vmatpush1.msra.mxu0 0.0
    %398 = vmatprep.subr.mxu0 0.0
    %399 = vmatpush1.msra.mxu0 0.0
    %400 = vmatprep.subr.mxu0 0.0
    %401 = vmatpush1.msra.mxu0 0.0
    %402 = vmatprep.subr.mxu0 0.0
    %403 = vmatpush1.msra.mxu0 0.0
    %404 = vmatprep.subr.mxu0 0.0
    %405 = vmatpush1.msra.mxu0 0.0
    %406 = vmatprep.subr.mxu0 0.0
    %407 = vmatpush1.msra.mxu0 0.0
    %408 = vmatprep.subr.mxu0 0.0
    %409 = vmatpush1.msra.mxu0 0.0
    %410 = vmatprep.subr.mxu0 0.0
    %411 = vmatpush1.msra.mxu0 0.0
    %412 = vmatprep.subr.mxu0 0.0
    %413 = vmatpush1.msra.mxu0 0.0
    %414 = vmatprep.subr.mxu0 0.0
    %415 = vmatpush1.msra.mxu0 0.0
    %416 = vmatprep.subr.mxu0 0.0
    %417 = vmatpush1.msra.mxu0 0.0
    %418 = vmatprep.subr.mxu0 0.0
    %419 = vmatpush1.msra.mxu0 0.0
    %420 = vmatprep.subr.mxu0 0.0
    %421 = vmatpush1.msra.mxu0 0.0
    %422 = vmatprep.subr.mxu0 0.0
    %423 = vmatpush1.msra.mxu0 0.0
    %424 = vmatprep.subr.mxu0 0.0
    %425 = vmatpush1.msra.mxu0 0.0
    %426 = vmatprep.subr.mxu0 0.0
    %427 = vmatpush1.msra.mxu0 0.0
    %428 = vmatprep.subr.mxu0 0.0
    %429 = vmatpush1.msra.mxu0 0.0
    %430 = vmatprep.subr.mxu0 0.0
    %431 = vmatpush1.msra.mxu0 0.0
    %432 = vmatprep.subr.mxu0 0.0
    %433 = vmatpush1.msra.mxu0 0.0
    %434 = vmatprep.subr.mxu0 0.0
    %435 = vmatpush1.msra.mxu0 0.0
    %436 = vmatprep.subr.mxu0 0.0
    %437 = vmatpush1.msra.mxu0 0.0
    %438 = vmatprep.subr.mxu0 0.0
    %439 = vmatpush1.msra.mxu0 0.0
    %440 = vmatprep.mubr.f32.mxu0 0.0
    %441 = vmatmul.mubr.f32.gmra.mrb[0].mxu0 %v222
    %v442 = vpop.f32.mrb[0].mxu0
    %v443 = vadd.f32 %v374, %v442
    %v444 = vpop.f32.mrb[0].mxu0
    %445 = vdwg.mxu0
    %v446 = vadd.f32 %v165, %v291
    %v447 = vxor.u32 %v446, 2147483648
    %v448 = vmul.f32 %v447, 1.442695
    %v449 = vpow.pop %v448
    %v450 = vadd.f32 %v449, 1.0
    %v451 = vrcp.pop %v450
    %v452 = vmul.f32 1.0, %v451
    %454 = vrot.lane.b32.xlu0 %v367, 32
    %v455 = vpop.permute.xlu0 %454
    %v457 = vadd.f32 %v165, %v455
    %v458 = vxor.u32 %v457, 2147483648
    %v459 = vmul.f32 %v458, 1.442695
    %v460 = vpow.pop %v459
    %v461 = vadd.f32 %v460, 1.0
    %v462 = vrcp.pop %v461
    %v463 = vmul.f32 1.0, %v462
    %v464 = vmul.f32 %v452, %v443
    %466 = vrot.lane.b32.xlu0 %v464, 64
    %v467 = vpop.permute.xlu0 %466
    %v469 = vadd.f32 %v165, %v467
    %v470 = vtanh.pop %v469
    %v471 = vsub.f32 1.0, %v463
    %473 = vrot.lane.b32.xlu0 %v470, 96
    %v474 = vpop.permute.xlu0 %473
    %v476 = vmul.f32 %v471, %v474
    %v477 = vmul.f32 %v463, 0.0
    %v478 = vadd.f32 %v476, %v477
    %v480 = vlaneseq
    %v481 = vshrl.u32 %v480, 7
    %v482 = vsub.s32 0, %v481
    %v483 = vrot.slane %v210, %v482
    %485 = vmatprep.subr.mxu0 0.0
    %486 = vmatpush1.msra.mxu0 %v195
    %487 = vmatprep.subr.mxu0 0.0
    %488 = vmatpush1.msra.mxu0 %v196
    %489 = vmatprep.subr.mxu0 0.0
    %490 = vmatpush1.msra.mxu0 %v197
    %491 = vmatprep.subr.mxu0 0.0
    %492 = vmatpush1.msra.mxu0 %v198
    %493 = vmatprep.subr.mxu0 0.0
    %494 = vmatpush1.msra.mxu0 0.0
    %495 = vmatprep.subr.mxu0 0.0
    %496 = vmatpush1.msra.mxu0 0.0
    %497 = vmatprep.subr.mxu0 0.0
    %498 = vmatpush1.msra.mxu0 0.0
    %499 = vmatprep.subr.mxu0 0.0
    %500 = vmatpush1.msra.mxu0 0.0
    %501 = vmatprep.subr.mxu0 0.0
    %502 = vmatpush1.msra.mxu0 0.0
    %503 = vmatprep.subr.mxu0 0.0
    %504 = vmatpush1.msra.mxu0 0.0
    %505 = vmatprep.subr.mxu0 0.0
    %506 = vmatpush1.msra.mxu0 0.0
    %507 = vmatprep.subr.mxu0 0.0
    %508 = vmatpush1.msra.mxu0 0.0
    %509 = vmatprep.subr.mxu0 0.0
    %510 = vmatpush1.msra.mxu0 0.0
    %511 = vmatprep.subr.mxu0 0.0
    %512 = vmatpush1.msra.mxu0 0.0
    %513 = vmatprep.subr.mxu0 0.0
    %514 = vmatpush1.msra.mxu0 0.0
    %515 = vmatprep.subr.mxu0 0.0
    %516 = vmatpush1.msra.mxu0 0.0
    %517 = vmatprep.subr.mxu0 0.0
    %518 = vmatpush1.msra.mxu0 0.0
    %519 = vmatprep.subr.mxu0 0.0
    %520 = vmatpush1.msra.mxu0 0.0
    %521 = vmatprep.subr.mxu0 0.0
    %522 = vmatpush1.msra.mxu0 0.0
    %523 = vmatprep.subr.mxu0 0.0
    %524 = vmatpush1.msra.mxu0 0.0
    %525 = vmatprep.subr.mxu0 0.0
    %526 = vmatpush1.msra.mxu0 0.0
    %527 = vmatprep.subr.mxu0 0.0
    %528 = vmatpush1.msra.mxu0 0.0
    %529 = vmatprep.subr.mxu0 0.0
    %530 = vmatpush1.msra.mxu0 0.0
    %531 = vmatprep.subr.mxu0 0.0
    %532 = vmatpush1.msra.mxu0 0.0
    %533 = vmatprep.subr.mxu0 0.0
    %534 = vmatpush1.msra.mxu0 0.0
    %535 = vmatprep.subr.mxu0 0.0
    %536 = vmatpush1.msra.mxu0 0.0
    %537 = vmatprep.subr.mxu0 0.0
    %538 = vmatpush1.msra.mxu0 0.0
    %539 = vmatprep.subr.mxu0 0.0
    %540 = vmatpush1.msra.mxu0 0.0
    %541 = vmatprep.subr.mxu0 0.0
    %542 = vmatpush1.msra.mxu0 0.0
    %543 = vmatprep.subr.mxu0 0.0
    %544 = vmatpush1.msra.mxu0 0.0
    %545 = vmatprep.subr.mxu0 0.0
    %546 = vmatpush1.msra.mxu0 0.0
    %547 = vmatprep.subr.mxu0 0.0
    %548 = vmatpush1.msra.mxu0 0.0
    %549 = vmatprep.mubr.f32.mxu0 0.0
    %550 = vmatmul.mubr.f32.gmra.mrb[0].mxu0 %v222
    %v551 = vpop.f32.mrb[0].mxu0
    %v552 = vadd.f32 %v483, %v551
    %v553 = vpop.f32.mrb[0].mxu0
    %554 = vdwg.mxu0
    %v556 = vlaneseq
    %v557 = vshrl.u32 %v556, 7
    %v558 = vsub.s32 0, %v557
    %v559 = vrot.slane %v212, %v558
    %561 = vmatprep.subr.mxu0 0.0
    %562 = vmatpush1.msra.mxu0 %v200
    %563 = vmatprep.subr.mxu0 0.0
    %564 = vmatpush1.msra.mxu0 %v201
    %565 = vmatprep.subr.mxu0 0.0
    %566 = vmatpush1.msra.mxu0 %v202
    %567 = vmatprep.subr.mxu0 0.0
    %568 = vmatpush1.msra.mxu0 %v203
    %569 = vmatprep.subr.mxu0 0.0
    %570 = vmatpush1.msra.mxu0 0.0
    %571 = vmatprep.subr.mxu0 0.0
    %572 = vmatpush1.msra.mxu0 0.0
    %573 = vmatprep.subr.mxu0 0.0
    %574 = vmatpush1.msra.mxu0 0.0
    %575 = vmatprep.subr.mxu0 0.0
    %576 = vmatpush1.msra.mxu0 0.0
    %577 = vmatprep.subr.mxu0 0.0
    %578 = vmatpush1.msra.mxu0 0.0
    %579 = vmatprep.subr.mxu0 0.0
    %580 = vmatpush1.msra.mxu0 0.0
    %581 = vmatprep.subr.mxu0 0.0
    %582 = vmatpush1.msra.mxu0 0.0
    %583 = vmatprep.subr.mxu0 0.0
    %584 = vmatpush1.msra.mxu0 0.0
    %585 = vmatprep.subr.mxu0 0.0
    %586 = vmatpush1.msra.mxu0 0.0
    %587 = vmatprep.subr.mxu0 0.0
    %588 = vmatpush1.msra.mxu0 0.0
    %589 = vmatprep.subr.mxu0 0.0
    %590 = vmatpush1.msra.mxu0 0.0
    %591 = vmatprep.subr.mxu0 0.0
    %592 = vmatpush1.msra.mxu0 0.0
    %593 = vmatprep.subr.mxu0 0.0
    %594 = vmatpush1.msra.mxu0 0.0
    %595 = vmatprep.subr.mxu0 0.0
    %596 = vmatpush1.msra.mxu0 0.0
    %597 = vmatprep.subr.mxu0 0.0
    %598 = vmatpush1.msra.mxu0 0.0
    %599 = vmatprep.subr.mxu0 0.0
    %600 = vmatpush1.msra.mxu0 0.0
    %601 = vmatprep.subr.mxu0 0.0
    %602 = vmatpush1.msra.mxu0 0.0
    %603 = vmatprep.subr.mxu0 0.0
    %604 = vmatpush1.msra.mxu0 0.0
    %605 = vmatprep.subr.mxu0 0.0
    %606 = vmatpush1.msra.mxu0 0.0
    %607 = vmatprep.subr.mxu0 0.0
    %608 = vmatpush1.msra.mxu0 0.0
    %609 = vmatprep.subr.mxu0 0.0
    %610 = vmatpush1.msra.mxu0 0.0
    %611 = vmatprep.subr.mxu0 0.0
    %612 = vmatpush1.msra.mxu0 0.0
    %613 = vmatprep.subr.mxu0 0.0
    %614 = vmatpush1.msra.mxu0 0.0
    %615 = vmatprep.subr.mxu0 0.0
    %616 = vmatpush1.msra.mxu0 0.0
    %617 = vmatprep.subr.mxu0 0.0
    %618 = vmatpush1.msra.mxu0 0.0
    %619 = vmatprep.subr.mxu0 0.0
    %620 = vmatpush1.msra.mxu0 0.0
    %621 = vmatprep.subr.mxu0 0.0
    %622 = vmatpush1.msra.mxu0 0.0
    %623 = vmatprep.subr.mxu0 0.0
    %624 = vmatpush1.msra.mxu0 0.0
    %625 = vmatprep.mubr.f32.mxu0 0.0
    %626 = vmatmul.mubr.f32.gmra.mrb[0].mxu0 %v222
    %v627 = vpop.f32.mrb[0].mxu0
    %v628 = vadd.f32 %v559, %v627
    %v629 = vpop.f32.mrb[0].mxu0
    %630 = vdwg.mxu0
    %v632 = vlaneseq
    %v633 = vshrl.u32 %v632, 7
    %v634 = vsub.s32 0, %v633
    %v635 = vrot.slane %v214, %v634
    %637 = vmatprep.subr.mxu0 0.0
    %638 = vmatpush1.msra.mxu0 %v205
    %639 = vmatprep.subr.mxu0 0.0
    %640 = vmatpush1.msra.mxu0 %v206
    %641 = vmatprep.subr.mxu0 0.0
    %642 = vmatpush1.msra.mxu0 %v207
    %643 = vmatprep.subr.mxu0 0.0
    %644 = vmatpush1.msra.mxu0 %v208
    %645 = vmatprep.subr.mxu0 0.0
    %646 = vmatpush1.msra.mxu0 0.0
    %647 = vmatprep.subr.mxu0 0.0
    %648 = vmatpush1.msra.mxu0 0.0
    %649 = vmatprep.subr.mxu0 0.0
    %650 = vmatpush1.msra.mxu0 0.0
    %651 = vmatprep.subr.mxu0 0.0
    %652 = vmatpush1.msra.mxu0 0.0
    %653 = vmatprep.subr.mxu0 0.0
    %654 = vmatpush1.msra.mxu0 0.0
    %655 = vmatprep.subr.mxu0 0.0
    %656 = vmatpush1.msra.mxu0 0.0
    %657 = vmatprep.subr.mxu0 0.0
    %658 = vmatpush1.msra.mxu0 0.0
    %659 = vmatprep.subr.mxu0 0.0
    %660 = vmatpush1.msra.mxu0 0.0
    %661 = vmatprep.subr.mxu0 0.0
    %662 = vmatpush1.msra.mxu0 0.0
    %663 = vmatprep.subr.mxu0 0.0
    %664 = vmatpush1.msra.mxu0 0.0
    %665 = vmatprep.subr.mxu0 0.0
    %666 = vmatpush1.msra.mxu0 0.0
    %667 = vmatprep.subr.mxu0 0.0
    %668 = vmatpush1.msra.mxu0 0.0
    %669 = vmatprep.subr.mxu0 0.0
    %670 = vmatpush1.msra.mxu0 0.0
    %671 = vmatprep.subr.mxu0 0.0
    %672 = vmatpush1.msra.mxu0 0.0
    %673 = vmatprep.subr.mxu0 0.0
    %674 = vmatpush1.msra.mxu0 0.0
    %675 = vmatprep.subr.mxu0 0.0
    %676 = vmatpush1.msra.mxu0 0.0
    %677 = vmatprep.subr.mxu0 0.0
    %678 = vmatpush1.msra.mxu0 0.0
    %679 = vmatprep.subr.mxu0 0.0
    %680 = vmatpush1.msra.mxu0 0.0
    %681 = vmatprep.subr.mxu0 0.0
    %682 = vmatpush1.msra.mxu0 0.0
    %683 = vmatprep.subr.mxu0 0.0
    %684 = vmatpush1.msra.mxu0 0.0
    %685 = vmatprep.subr.mxu0 0.0
    %686 = vmatpush1.msra.mxu0 0.0
    %687 = vmatprep.subr.mxu0 0.0
    %688 = vmatpush1.msra.mxu0 0.0
    %689 = vmatprep.subr.mxu0 0.0
    %690 = vmatpush1.msra.mxu0 0.0
    %691 = vmatprep.subr.mxu0 0.0
    %692 = vmatpush1.msra.mxu0 0.0
    %693 = vmatprep.subr.mxu0 0.0
    %694 = vmatpush1.msra.mxu0 0.0
    %695 = vmatprep.subr.mxu0 0.0
    %696 = vmatpush1.msra.mxu0 0.0
    %697 = vmatprep.subr.mxu0 0.0
    %698 = vmatpush1.msra.mxu0 0.0
    %699 = vmatprep.subr.mxu0 0.0
    %700 = vmatpush1.msra.mxu0 0.0
    %701 = vmatprep.mubr.f32.mxu0 0.0
    %702 = vmatmul.mubr.f32.gmra.mrb[0].mxu0 %v222
    %v703 = vpop.f32.mrb[0].mxu0
    %v704 = vadd.f32 %v635, %v703
    %v705 = vpop.f32.mrb[0].mxu0
    %706 = vdwg.mxu0
    %v708 = vrot.slane %v552, 2
    %709 = vrot.lane.b32.xlu0 %v708, 96
    %v710 = vpop.permute.xlu0 %709
    %v712 = vadd.f32 %v171, %v710
    %v713 = vxor.u32 %v712, 2147483648
    %v714 = vmul.f32 %v713, 1.442695
    %v715 = vpow.pop %v714
    %v716 = vadd.f32 %v715, 1.0
    %v717 = vrcp.pop %v716
    %v718 = vmul.f32 1.0, %v717
    %v720 = vrot.slane %v628, 2
    %v722 = vadd.f32 %v173, %v720
    %v723 = vxor.u32 %v722, 2147483648
    %v724 = vmul.f32 %v723, 1.442695
    %v725 = vpow.pop %v724
    %v726 = vadd.f32 %v725, 1.0
    %v727 = vrcp.pop %v726
    %v728 = vmul.f32 1.0, %v727
    %v730 = vrot.slane %v704, 2
    %731 = vrot.lane.b32.xlu0 %v730, 96
    %v732 = vpop.permute.xlu0 %731
    %v734 = vmul.f32 %v718, %v732
    %736 = vrot.lane.b32.xlu0 %v734, 64
    %v737 = vpop.permute.xlu0 %736
    %v739 = vadd.f32 %v173, %v737
    %v740 = vtanh.pop %v739
    %v741 = vsub.f32 1.0, %v728
    %743 = vrot.lane.b32.xlu0 %v740, 96
    %v744 = vpop.permute.xlu0 %743
    %v746 = vmul.f32 %v741, %v744
    %v747 = vmul.f32 %v728, 0.0
    %v748 = vadd.f32 %v746, %v747
    %750 = vrot.lane.b32.xlu0 %v478, 96
    %v751 = vpop.permute.xlu0 %750
    %v752 = vsel %vm91, %v751, 0
    %754 = vmatprep.subr.mxu0 0.0
    %755 = vmatpush1.msra.mxu0 %v175
    %756 = vmatprep.subr.mxu0 0.0
    %757 = vmatpush1.msra.mxu0 %v176
    %758 = vmatprep.subr.mxu0 0.0
    %759 = vmatpush1.msra.mxu0 %v177
    %760 = vmatprep.subr.mxu0 0.0
    %761 = vmatpush1.msra.mxu0 %v178
    %762 = vmatprep.subr.mxu0 0.0
    %763 = vmatpush1.msra.mxu0 0.0
    %764 = vmatprep.subr.mxu0 0.0
    %765 = vmatpush1.msra.mxu0 0.0
    %766 = vmatprep.subr.mxu0 0.0
    %767 = vmatpush1.msra.mxu0 0.0
    %768 = vmatprep.subr.mxu0 0.0
    %769 = vmatpush1.msra.mxu0 0.0
    %770 = vmatprep.subr.mxu0 0.0
    %771 = vmatpush1.msra.mxu0 0.0
    %772 = vmatprep.subr.mxu0 0.0
    %773 = vmatpush1.msra.mxu0 0.0
    %774 = vmatprep.subr.mxu0 0.0
    %775 = vmatpush1.msra.mxu0 0.0
    %776 = vmatprep.subr.mxu0 0.0
    %777 = vmatpush1.msra.mxu0 0.0
    %778 = vmatprep.subr.mxu0 0.0
    %779 = vmatpush1.msra.mxu0 0.0
    %780 = vmatprep.subr.mxu0 0.0
    %781 = vmatpush1.msra.mxu0 0.0
    %782 = vmatprep.subr.mxu0 0.0
    %783 = vmatpush1.msra.mxu0 0.0
    %784 = vmatprep.subr.mxu0 0.0
    %785 = vmatpush1.msra.mxu0 0.0
    %786 = vmatprep.subr.mxu0 0.0
    %787 = vmatpush1.msra.mxu0 0.0
    %788 = vmatprep.subr.mxu0 0.0
    %789 = vmatpush1.msra.mxu0 0.0
    %790 = vmatprep.subr.mxu0 0.0
    %791 = vmatpush1.msra.mxu0 0.0
    %792 = vmatprep.subr.mxu0 0.0
    %793 = vmatpush1.msra.mxu0 0.0
    %794 = vmatprep.subr.mxu0 0.0
    %795 = vmatpush1.msra.mxu0 0.0
    %796 = vmatprep.subr.mxu0 0.0
    %797 = vmatpush1.msra.mxu0 0.0
    %798 = vmatprep.subr.mxu0 0.0
    %799 = vmatpush1.msra.mxu0 0.0
    %800 = vmatprep.subr.mxu0 0.0
    %801 = vmatpush1.msra.mxu0 0.0
    %802 = vmatprep.subr.mxu0 0.0
    %803 = vmatpush1.msra.mxu0 0.0
    %804 = vmatprep.subr.mxu0 0.0
    %805 = vmatpush1.msra.mxu0 0.0
    %806 = vmatprep.subr.mxu0 0.0
    %807 = vmatpush1.msra.mxu0 0.0
    %808 = vmatprep.subr.mxu0 0.0
    %809 = vmatpush1.msra.mxu0 0.0
    %810 = vmatprep.subr.mxu0 0.0
    %811 = vmatpush1.msra.mxu0 0.0
    %812 = vmatprep.subr.mxu0 0.0
    %813 = vmatpush1.msra.mxu0 0.0
    %814 = vmatprep.subr.mxu0 0.0
    %815 = vmatpush1.msra.mxu0 0.0
    %816 = vmatprep.subr.mxu0 0.0
    %817 = vmatpush1.msra.mxu0 0.0
    %818 = vmatprep.mubr.f32.mxu0 0.0
    %819 = vmatmul.mubr.f32.gmra.mrb[0].mxu0 %v752
    %v820 = vpop.f32.mrb[0].mxu0
    %v821 = vadd.f32 %v219, %v820
    %v822 = vpop.f32.mrb[0].mxu0
    %823 = vdwg.mxu0
    %824 = vmatprep.subr.mxu0 0.0
    %825 = vmatpush1.msra.mxu0 %v180
    %826 = vmatprep.subr.mxu0 0.0
    %827 = vmatpush1.msra.mxu0 %v181
    %828 = vmatprep.subr.mxu0 0.0
    %829 = vmatpush1.msra.mxu0 %v182
    %830 = vmatprep.subr.mxu0 0.0
    %831 = vmatpush1.msra.mxu0 %v183
    %832 = vmatprep.subr.mxu0 0.0
    %833 = vmatpush1.msra.mxu0 0.0
    %834 = vmatprep.subr.mxu0 0.0
    %835 = vmatpush1.msra.mxu0 0.0
    %836 = vmatprep.subr.mxu0 0.0
    %837 = vmatpush1.msra.mxu0 0.0
    %838 = vmatprep.subr.mxu0 0.0
    %839 = vmatpush1.msra.mxu0 0.0
    %840 = vmatprep.subr.mxu0 0.0
    %841 = vmatpush1.msra.mxu0 0.0
    %842 = vmatprep.subr.mxu0 0.0
    %843 = vmatpush1.msra.mxu0 0.0
    %844 = vmatprep.subr.mxu0 0.0
    %845 = vmatpush1.msra.mxu0 0.0
    %846 = vmatprep.subr.mxu0 0.0
    %847 = vmatpush1.msra.mxu0 0.0
    %848 = vmatprep.subr.mxu0 0.0
    %849 = vmatpush1.msra.mxu0 0.0
    %850 = vmatprep.subr.mxu0 0.0
    %851 = vmatpush1.msra.mxu0 0.0
    %852 = vmatprep.subr.mxu0 0.0
    %853 = vmatpush1.msra.mxu0 0.0
    %854 = vmatprep.subr.mxu0 0.0
    %855 = vmatpush1.msra.mxu0 0.0
    %856 = vmatprep.subr.mxu0 0.0
    %857 = vmatpush1.msra.mxu0 0.0
    %858 = vmatprep.subr.mxu0 0.0
    %859 = vmatpush1.msra.mxu0 0.0
    %860 = vmatprep.subr.mxu0 0.0
    %861 = vmatpush1.msra.mxu0 0.0
    %862 = vmatprep.subr.mxu0 0.0
    %863 = vmatpush1.msra.mxu0 0.0
    %864 = vmatprep.subr.mxu0 0.0
    %865 = vmatpush1.msra.mxu0 0.0
    %866 = vmatprep.subr.mxu0 0.0
    %867 = vmatpush1.msra.mxu0 0.0
    %868 = vmatprep.subr.mxu0 0.0
    %869 = vmatpush1.msra.mxu0 0.0
    %870 = vmatprep.subr.mxu0 0.0
    %871 = vmatpush1.msra.mxu0 0.0
    %872 = vmatprep.subr.mxu0 0.0
    %873 = vmatpush1.msra.mxu0 0.0
    %874 = vmatprep.subr.mxu0 0.0
    %875 = vmatpush1.msra.mxu0 0.0
    %876 = vmatprep.subr.mxu0 0.0
    %877 = vmatpush1.msra.mxu0 0.0
    %878 = vmatprep.subr.mxu0 0.0
    %879 = vmatpush1.msra.mxu0 0.0
    %880 = vmatprep.subr.mxu0 0.0
    %881 = vmatpush1.msra.mxu0 0.0
    %882 = vmatprep.subr.mxu0 0.0
    %883 = vmatpush1.msra.mxu0 0.0
    %884 = vmatprep.subr.mxu0 0.0
    %885 = vmatpush1.msra.mxu0 0.0
    %886 = vmatprep.subr.mxu0 0.0
    %887 = vmatpush1.msra.mxu0 0.0
    %888 = vmatprep.mubr.f32.mxu0 0.0
    %889 = vmatmul.mubr.f32.gmra.mrb[0].mxu0 %v752
    %v890 = vpop.f32.mrb[0].mxu0
    %v891 = vadd.f32 %v298, %v890
    %v892 = vpop.f32.mrb[0].mxu0
    %893 = vdwg.mxu0
    %894 = vmatprep.subr.mxu0 0.0
    %895 = vmatpush1.msra.mxu0 %v185
    %896 = vmatprep.subr.mxu0 0.0
    %897 = vmatpush1.msra.mxu0 %v186
    %898 = vmatprep.subr.mxu0 0.0
    %899 = vmatpush1.msra.mxu0 %v187
    %900 = vmatprep.subr.mxu0 0.0
    %901 = vmatpush1.msra.mxu0 %v188
    %902 = vmatprep.subr.mxu0 0.0
    %903 = vmatpush1.msra.mxu0 0.0
    %904 = vmatprep.subr.mxu0 0.0
    %905 = vmatpush1.msra.mxu0 0.0
    %906 = vmatprep.subr.mxu0 0.0
    %907 = vmatpush1.msra.mxu0 0.0
    %908 = vmatprep.subr.mxu0 0.0
    %909 = vmatpush1.msra.mxu0 0.0
    %910 = vmatprep.subr.mxu0 0.0
    %911 = vmatpush1.msra.mxu0 0.0
    %912 = vmatprep.subr.mxu0 0.0
    %913 = vmatpush1.msra.mxu0 0.0
    %914 = vmatprep.subr.mxu0 0.0
    %915 = vmatpush1.msra.mxu0 0.0
    %916 = vmatprep.subr.mxu0 0.0
    %917 = vmatpush1.msra.mxu0 0.0
    %918 = vmatprep.subr.mxu0 0.0
    %919 = vmatpush1.msra.mxu0 0.0
    %920 = vmatprep.subr.mxu0 0.0
    %921 = vmatpush1.msra.mxu0 0.0
    %922 = vmatprep.subr.mxu0 0.0
    %923 = vmatpush1.msra.mxu0 0.0
    %924 = vmatprep.subr.mxu0 0.0
    %925 = vmatpush1.msra.mxu0 0.0
    %926 = vmatprep.subr.mxu0 0.0
    %927 = vmatpush1.msra.mxu0 0.0
    %928 = vmatprep.subr.mxu0 0.0
    %929 = vmatpush1.msra.mxu0 0.0
    %930 = vmatprep.subr.mxu0 0.0
    %931 = vmatpush1.msra.mxu0 0.0
    %932 = vmatprep.subr.mxu0 0.0
    %933 = vmatpush1.msra.mxu0 0.0
    %934 = vmatprep.subr.mxu0 0.0
    %935 = vmatpush1.msra.mxu0 0.0
    %936 = vmatprep.subr.mxu0 0.0
    %937 = vmatpush1.msra.mxu0 0.0
    %938 = vmatprep.subr.mxu0 0.0
    %939 = vmatpush1.msra.mxu0 0.0
    %940 = vmatprep.subr.mxu0 0.0
    %941 = vmatpush1.msra.mxu0 0.0
    %942 = vmatprep.subr.mxu0 0.0
    %943 = vmatpush1.msra.mxu0 0.0
    %944 = vmatprep.subr.mxu0 0.0
    %945 = vmatpush1.msra.mxu0 0.0
    %946 = vmatprep.subr.mxu0 0.0
    %947 = vmatpush1.msra.mxu0 0.0
    %948 = vmatprep.subr.mxu0 0.0
    %949 = vmatpush1.msra.mxu0 0.0
    %950 = vmatprep.subr.mxu0 0.0
    %951 = vmatpush1.msra.mxu0 0.0
    %952 = vmatprep.subr.mxu0 0.0
    %953 = vmatpush1.msra.mxu0 0.0
    %954 = vmatprep.subr.mxu0 0.0
    %955 = vmatpush1.msra.mxu0 0.0
    %956 = vmatprep.subr.mxu0 0.0
    %957 = vmatpush1.msra.mxu0 0.0
    %958 = vmatprep.mubr.f32.mxu0 0.0
    %959 = vmatmul.mubr.f32.gmra.mrb[0].mxu0 %v752
    %v960 = vpop.f32.mrb[0].mxu0
    %v961 = vadd.f32 %v374, %v960
    %v962 = vpop.f32.mrb[0].mxu0
    %963 = vdwg.mxu0
    %v965 = vrot.slane %v821, 6
    %v967 = vadd.f32 %v165, %v965
    %v968 = vxor.u32 %v967, 2147483648
    %v969 = vmul.f32 %v968, 1.442695
    %v970 = vpow.pop %v969
    %v971 = vadd.f32 %v970, 1.0
    %v972 = vrcp.pop %v971
    %v973 = vmul.f32 1.0, %v972
    %v975 = vrot.slane %v891, 6
    %976 = vrot.lane.b32.xlu0 %v975, 32
    %v977 = vpop.permute.xlu0 %976
    %v979 = vadd.f32 %v165, %v977
    %v980 = vxor.u32 %v979, 2147483648
    %v981 = vmul.f32 %v980, 1.442695
    %v982 = vpow.pop %v981
    %v983 = vadd.f32 %v982, 1.0
    %v984 = vrcp.pop %v983
    %v985 = vmul.f32 1.0, %v984
    %v987 = vrot.slane %v961, 6
    %v989 = vmul.f32 %v973, %v987
    %991 = vrot.lane.b32.xlu0 %v989, 64
    %v992 = vpop.permute.xlu0 %991
    %v994 = vadd.f32 %v165, %v992
    %v995 = vtanh.pop %v994
    %v996 = vsub.f32 1.0, %v985
    %998 = vrot.lane.b32.xlu0 %v995, 96
    %v999 = vpop.permute.xlu0 %998
    %v1001 = vmul.f32 %v996, %v999
    %v1002 = vrot.slane %v478, 6
    %v1004 = vmul.f32 %v985, %v1002
    %v1005 = vadd.f32 %v1001, %v1004
    %v1007 = vrot.slane %v748, 6
    %v1008 = vsel %vm91, %v1007, 0
    %1010 = vmatprep.subr.mxu0 0.0
    %1011 = vmatpush1.msra.mxu0 %v195
    %1012 = vmatprep.subr.mxu0 0.0
    %1013 = vmatpush1.msra.mxu0 %v196
    %1014 = vmatprep.subr.mxu0 0.0
    %1015 = vmatpush1.msra.mxu0 %v197
    %1016 = vmatprep.subr.mxu0 0.0
    %1017 = vmatpush1.msra.mxu0 %v198
    %1018 = vmatprep.subr.mxu0 0.0
    %1019 = vmatpush1.msra.mxu0 0.0
    %1020 = vmatprep.subr.mxu0 0.0
    %1021 = vmatpush1.msra.mxu0 0.0
    %1022 = vmatprep.subr.mxu0 0.0
    %1023 = vmatpush1.msra.mxu0 0.0
    %1024 = vmatprep.subr.mxu0 0.0
    %1025 = vmatpush1.msra.mxu0 0.0
    %1026 = vmatprep.subr.mxu0 0.0
    %1027 = vmatpush1.msra.mxu0 0.0
    %1028 = vmatprep.subr.mxu0 0.0
    %1029 = vmatpush1.msra.mxu0 0.0
    %1030 = vmatprep.subr.mxu0 0.0
    %1031 = vmatpush1.msra.mxu0 0.0
    %1032 = vmatprep.subr.mxu0 0.0
    %1033 = vmatpush1.msra.mxu0 0.0
    %1034 = vmatprep.subr.mxu0 0.0
    %1035 = vmatpush1.msra.mxu0 0.0
    %1036 = vmatprep.subr.mxu0 0.0
    %1037 = vmatpush1.msra.mxu0 0.0
    %1038 = vmatprep.subr.mxu0 0.0
    %1039 = vmatpush1.msra.mxu0 0.0
    %1040 = vmatprep.subr.mxu0 0.0
    %1041 = vmatpush1.msra.mxu0 0.0
    %1042 = vmatprep.subr.mxu0 0.0
    %1043 = vmatpush1.msra.mxu0 0.0
    %1044 = vmatprep.subr.mxu0 0.0
    %1045 = vmatpush1.msra.mxu0 0.0
    %1046 = vmatprep.subr.mxu0 0.0
    %1047 = vmatpush1.msra.mxu0 0.0
    %1048 = vmatprep.subr.mxu0 0.0
    %1049 = vmatpush1.msra.mxu0 0.0
    %1050 = vmatprep.subr.mxu0 0.0
    %1051 = vmatpush1.msra.mxu0 0.0
    %1052 = vmatprep.subr.mxu0 0.0
    %1053 = vmatpush1.msra.mxu0 0.0
    %1054 = vmatprep.subr.mxu0 0.0
    %1055 = vmatpush1.msra.mxu0 0.0
    %1056 = vmatprep.subr.mxu0 0.0
    %1057 = vmatpush1.msra.mxu0 0.0
    %1058 = vmatprep.subr.mxu0 0.0
    %1059 = vmatpush1.msra.mxu0 0.0
    %1060 = vmatprep.subr.mxu0 0.0
    %1061 = vmatpush1.msra.mxu0 0.0
    %1062 = vmatprep.subr.mxu0 0.0
    %1063 = vmatpush1.msra.mxu0 0.0
    %1064 = vmatprep.subr.mxu0 0.0
    %1065 = vmatpush1.msra.mxu0 0.0
    %1066 = vmatprep.subr.mxu0 0.0
    %1067 = vmatpush1.msra.mxu0 0.0
    %1068 = vmatprep.subr.mxu0 0.0
    %1069 = vmatpush1.msra.mxu0 0.0
    %1070 = vmatprep.subr.mxu0 0.0
    %1071 = vmatpush1.msra.mxu0 0.0
    %1072 = vmatprep.subr.mxu0 0.0
    %1073 = vmatpush1.msra.mxu0 0.0
    %1074 = vmatprep.mubr.f32.mxu0 0.0
    %1075 = vmatmul.mubr.f32.gmra.mrb[0].mxu0 %v1008
    %v1076 = vpop.f32.mrb[0].mxu0
    %v1077 = vadd.f32 %v483, %v1076
    %v1078 = vpop.f32.mrb[0].mxu0
    %1079 = vdwg.mxu0
    %1080 = vmatprep.subr.mxu0 0.0
    %1081 = vmatpush1.msra.mxu0 %v200
    %1082 = vmatprep.subr.mxu0 0.0
    %1083 = vmatpush1.msra.mxu0 %v201
    %1084 = vmatprep.subr.mxu0 0.0
    %1085 = vmatpush1.msra.mxu0 %v202
    %1086 = vmatprep.subr.mxu0 0.0
    %1087 = vmatpush1.msra.mxu0 %v203
    %1088 = vmatprep.subr.mxu0 0.0
    %1089 = vmatpush1.msra.mxu0 0.0
    %1090 = vmatprep.subr.mxu0 0.0
    %1091 = vmatpush1.msra.mxu0 0.0
    %1092 = vmatprep.subr.mxu0 0.0
    %1093 = vmatpush1.msra.mxu0 0.0
    %1094 = vmatprep.subr.mxu0 0.0
    %1095 = vmatpush1.msra.mxu0 0.0
    %1096 = vmatprep.subr.mxu0 0.0
    %1097 = vmatpush1.msra.mxu0 0.0
    %1098 = vmatprep.subr.mxu0 0.0
    %1099 = vmatpush1.msra.mxu0 0.0
    %1100 = vmatprep.subr.mxu0 0.0
    %1101 = vmatpush1.msra.mxu0 0.0
    %1102 = vmatprep.subr.mxu0 0.0
    %1103 = vmatpush1.msra.mxu0 0.0
    %1104 = vmatprep.subr.mxu0 0.0
    %1105 = vmatpush1.msra.mxu0 0.0
    %1106 = vmatprep.subr.mxu0 0.0
    %1107 = vmatpush1.msra.mxu0 0.0
    %1108 = vmatprep.subr.mxu0 0.0
    %1109 = vmatpush1.msra.mxu0 0.0
    %1110 = vmatprep.subr.mxu0 0.0
    %1111 = vmatpush1.msra.mxu0 0.0
    %1112 = vmatprep.subr.mxu0 0.0
    %1113 = vmatpush1.msra.mxu0 0.0
    %1114 = vmatprep.subr.mxu0 0.0
    %1115 = vmatpush1.msra.mxu0 0.0
    %1116 = vmatprep.subr.mxu0 0.0
    %1117 = vmatpush1.msra.mxu0 0.0
    %1118 = vmatprep.subr.mxu0 0.0
    %1119 = vmatpush1.msra.mxu0 0.0
    %1120 = vmatprep.subr.mxu0 0.0
    %1121 = vmatpush1.msra.mxu0 0.0
    %1122 = vmatprep.subr.mxu0 0.0
    %1123 = vmatpush1.msra.mxu0 0.0
    %1124 = vmatprep.subr.mxu0 0.0
    %1125 = vmatpush1.msra.mxu0 0.0
    %1126 = vmatprep.subr.mxu0 0.0
    %1127 = vmatpush1.msra.mxu0 0.0
    %1128 = vmatprep.subr.mxu0 0.0
    %1129 = vmatpush1.msra.mxu0 0.0
    %1130 = vmatprep.subr.mxu0 0.0
    %1131 = vmatpush1.msra.mxu0 0.0
    %1132 = vmatprep.subr.mxu0 0.0
    %1133 = vmatpush1.msra.mxu0 0.0
    %1134 = vmatprep.subr.mxu0 0.0
    %1135 = vmatpush1.msra.mxu0 0.0
    %1136 = vmatprep.subr.mxu0 0.0
    %1137 = vmatpush1.msra.mxu0 0.0
    %1138 = vmatprep.subr.mxu0 0.0
    %1139 = vmatpush1.msra.mxu0 0.0
    %1140 = vmatprep.subr.mxu0 0.0
    %1141 = vmatpush1.msra.mxu0 0.0
    %1142 = vmatprep.subr.mxu0 0.0
    %1143 = vmatpush1.msra.mxu0 0.0
    %1144 = vmatprep.mubr.f32.mxu0 0.0
    %1145 = vmatmul.mubr.f32.gmra.mrb[0].mxu0 %v1008
    %v1146 = vpop.f32.mrb[0].mxu0
    %v1147 = vadd.f32 %v559, %v1146
    %v1148 = vpop.f32.mrb[0].mxu0
    %1149 = vdwg.mxu0
    %1150 = vmatprep.subr.mxu0 0.0
    %1151 = vmatpush1.msra.mxu0 %v205
    %1152 = vmatprep.subr.mxu0 0.0
    %1153 = vmatpush1.msra.mxu0 %v206
    %1154 = vmatprep.subr.mxu0 0.0
    %1155 = vmatpush1.msra.mxu0 %v207
    %1156 = vmatprep.subr.mxu0 0.0
    %1157 = vmatpush1.msra.mxu0 %v208
    %1158 = vmatprep.subr.mxu0 0.0
    %1159 = vmatpush1.msra.mxu0 0.0
    %1160 = vmatprep.subr.mxu0 0.0
    %1161 = vmatpush1.msra.mxu0 0.0
    %1162 = vmatprep.subr.mxu0 0.0
    %1163 = vmatpush1.msra.mxu0 0.0
    %1164 = vmatprep.subr.mxu0 0.0
    %1165 = vmatpush1.msra.mxu0 0.0
    %1166 = vmatprep.subr.mxu0 0.0
    %1167 = vmatpush1.msra.mxu0 0.0
    %1168 = vmatprep.subr.mxu0 0.0
    %1169 = vmatpush1.msra.mxu0 0.0
    %1170 = vmatprep.subr.mxu0 0.0
    %1171 = vmatpush1.msra.mxu0 0.0
    %1172 = vmatprep.subr.mxu0 0.0
    %1173 = vmatpush1.msra.mxu0 0.0
    %1174 = vmatprep.subr.mxu0 0.0
    %1175 = vmatpush1.msra.mxu0 0.0
    %1176 = vmatprep.subr.mxu0 0.0
    %1177 = vmatpush1.msra.mxu0 0.0
    %1178 = vmatprep.subr.mxu0 0.0
    %1179 = vmatpush1.msra.mxu0 0.0
    %1180 = vmatprep.subr.mxu0 0.0
    %1181 = vmatpush1.msra.mxu0 0.0
    %1182 = vmatprep.subr.mxu0 0.0
    %1183 = vmatpush1.msra.mxu0 0.0
    %1184 = vmatprep.subr.mxu0 0.0
    %1185 = vmatpush1.msra.mxu0 0.0
    %1186 = vmatprep.subr.mxu0 0.0
    %1187 = vmatpush1.msra.mxu0 0.0
    %1188 = vmatprep.subr.mxu0 0.0
    %1189 = vmatpush1.msra.mxu0 0.0
    %1190 = vmatprep.subr.mxu0 0.0
    %1191 = vmatpush1.msra.mxu0 0.0
    %1192 = vmatprep.subr.mxu0 0.0
    %1193 = vmatpush1.msra.mxu0 0.0
    %1194 = vmatprep.subr.mxu0 0.0
    %1195 = vmatpush1.msra.mxu0 0.0
    %1196 = vmatprep.subr.mxu0 0.0
    %1197 = vmatpush1.msra.mxu0 0.0
    %1198 = vmatprep.subr.mxu0 0.0
    %1199 = vmatpush1.msra.mxu0 0.0
    %1200 = vmatprep.subr.mxu0 0.0
    %1201 = vmatpush1.msra.mxu0 0.0
    %1202 = vmatprep.subr.mxu0 0.0
    %1203 = vmatpush1.msra.mxu0 0.0
    %1204 = vmatprep.subr.mxu0 0.0
    %1205 = vmatpush1.msra.mxu0 0.0
    %1206 = vmatprep.subr.mxu0 0.0
    %1207 = vmatpush1.msra.mxu0 0.0
    %1208 = vmatprep.subr.mxu0 0.0
    %1209 = vmatpush1.msra.mxu0 0.0
    %1210 = vmatprep.subr.mxu0 0.0
    %1211 = vmatpush1.msra.mxu0 0.0
    %1212 = vmatprep.subr.mxu0 0.0
    %1213 = vmatpush1.msra.mxu0 0.0
    %1214 = vmatprep.mubr.f32.mxu0 0.0
    %1215 = vmatmul.mubr.f32.gmra.mrb[0].mxu0 %v1008
    %v1216 = vpop.f32.mrb[0].mxu0
    %v1217 = vadd.f32 %v635, %v1216
    %v1218 = vpop.f32.mrb[0].mxu0
    %1219 = vdwg.mxu0
    %v1221 = vrot.slane %v1077, 4
    %1222 = vrot.lane.b32.xlu0 %v1221, 96
    %v1223 = vpop.permute.xlu0 %1222
    %v1225 = vadd.f32 %v171, %v1223
    %v1226 = vxor.u32 %v1225, 2147483648
    %v1227 = vmul.f32 %v1226, 1.442695
    %v1228 = vpow.pop %v1227
    %v1229 = vadd.f32 %v1228, 1.0
    %v1230 = vrcp.pop %v1229
    %v1231 = vmul.f32 1.0, %v1230
    %v1233 = vrot.slane %v1147, 4
    %v1235 = vadd.f32 %v173, %v1233
    %v1236 = vxor.u32 %v1235, 2147483648
    %v1237 = vmul.f32 %v1236, 1.442695
    %v1238 = vpow.pop %v1237
    %v1239 = vadd.f32 %v1238, 1.0
    %v1240 = vrcp.pop %v1239
    %v1241 = vmul.f32 1.0, %v1240
    %v1243 = vrot.slane %v1217, 4
    %1244 = vrot.lane.b32.xlu0 %v1243, 96
    %v1245 = vpop.permute.xlu0 %1244
    %v1247 = vmul.f32 %v1231, %v1245
    %1249 = vrot.lane.b32.xlu0 %v1247, 64
    %v1250 = vpop.permute.xlu0 %1249
    %v1252 = vadd.f32 %v173, %v1250
    %v1253 = vtanh.pop %v1252
    %v1254 = vsub.f32 1.0, %v1241
    %1256 = vrot.lane.b32.xlu0 %v1253, 96
    %v1257 = vpop.permute.xlu0 %1256
    %v1259 = vmul.f32 %v1254, %v1257
    %v1260 = vrot.slane %v748, 2
    %v1262 = vmul.f32 %v1241, %v1260
    %v1263 = vadd.f32 %v1259, %v1262
    %v1265 = vrot.slane %v1005, 2
    %1266 = vrot.lane.b32.xlu0 %v1265, 96
    %v1267 = vpop.permute.xlu0 %1266
    %v1268 = vsel %vm91, %v1267, 0
    %1270 = vmatprep.subr.mxu0 0.0
    %1271 = vmatpush1.msra.mxu0 %v175
    %1272 = vmatprep.subr.mxu0 0.0
    %1273 = vmatpush1.msra.mxu0 %v176
    %1274 = vmatprep.subr.mxu0 0.0
    %1275 = vmatpush1.msra.mxu0 %v177
    %1276 = vmatprep.subr.mxu0 0.0
    %1277 = vmatpush1.msra.mxu0 %v178
    %1278 = vmatprep.subr.mxu0 0.0
    %1279 = vmatpush1.msra.mxu0 0.0
    %1280 = vmatprep.subr.mxu0 0.0
    %1281 = vmatpush1.msra.mxu0 0.0
    %1282 = vmatprep.subr.mxu0 0.0
    %1283 = vmatpush1.msra.mxu0 0.0
    %1284 = vmatprep.subr.mxu0 0.0
    %1285 = vmatpush1.msra.mxu0 0.0
    %1286 = vmatprep.subr.mxu0 0.0
    %1287 = vmatpush1.msra.mxu0 0.0
    %1288 = vmatprep.subr.mxu0 0.0
    %1289 = vmatpush1.msra.mxu0 0.0
    %1290 = vmatprep.subr.mxu0 0.0
    %1291 = vmatpush1.msra.mxu0 0.0
    %1292 = vmatprep.subr.mxu0 0.0
    %1293 = vmatpush1.msra.mxu0 0.0
    %1294 = vmatprep.subr.mxu0 0.0
    %1295 = vmatpush1.msra.mxu0 0.0
    %1296 = vmatprep.subr.mxu0 0.0
    %1297 = vmatpush1.msra.mxu0 0.0
    %1298 = vmatprep.subr.mxu0 0.0
    %1299 = vmatpush1.msra.mxu0 0.0
    %1300 = vmatprep.subr.mxu0 0.0
    %1301 = vmatpush1.msra.mxu0 0.0
    %1302 = vmatprep.subr.mxu0 0.0
    %1303 = vmatpush1.msra.mxu0 0.0
    %1304 = vmatprep.subr.mxu0 0.0
    %1305 = vmatpush1.msra.mxu0 0.0
    %1306 = vmatprep.subr.mxu0 0.0
    %1307 = vmatpush1.msra.mxu0 0.0
    %1308 = vmatprep.subr.mxu0 0.0
    %1309 = vmatpush1.msra.mxu0 0.0
    %1310 = vmatprep.subr.mxu0 0.0
    %1311 = vmatpush1.msra.mxu0 0.0
    %1312 = vmatprep.subr.mxu0 0.0
    %1313 = vmatpush1.msra.mxu0 0.0
    %1314 = vmatprep.subr.mxu0 0.0
    %1315 = vmatpush1.msra.mxu0 0.0
    %1316 = vmatprep.subr.mxu0 0.0
    %1317 = vmatpush1.msra.mxu0 0.0
    %1318 = vmatprep.subr.mxu0 0.0
    %1319 = vmatpush1.msra.mxu0 0.0
    %1320 = vmatprep.subr.mxu0 0.0
    %1321 = vmatpush1.msra.mxu0 0.0
    %1322 = vmatprep.subr.mxu0 0.0
    %1323 = vmatpush1.msra.mxu0 0.0
    %1324 = vmatprep.subr.mxu0 0.0
    %1325 = vmatpush1.msra.mxu0 0.0
    %1326 = vmatprep.subr.mxu0 0.0
    %1327 = vmatpush1.msra.mxu0 0.0
    %1328 = vmatprep.subr.mxu0 0.0
    %1329 = vmatpush1.msra.mxu0 0.0
    %1330 = vmatprep.subr.mxu0 0.0
    %1331 = vmatpush1.msra.mxu0 0.0
    %1332 = vmatprep.subr.mxu0 0.0
    %1333 = vmatpush1.msra.mxu0 0.0
    %1334 = vmatprep.mubr.f32.mxu0 0.0
    %1335 = vmatmul.mubr.f32.gmra.mrb[0].mxu0 %v1268
    %v1336 = vpop.f32.mrb[0].mxu0
    %v1337 = vadd.f32 %v219, %v1336
    %v1338 = vpop.f32.mrb[0].mxu0
    %1339 = vdwg.mxu0
    %1340 = vmatprep.subr.mxu0 0.0
    %1341 = vmatpush1.msra.mxu0 %v180
    %1342 = vmatprep.subr.mxu0 0.0
    %1343 = vmatpush1.msra.mxu0 %v181
    %1344 = vmatprep.subr.mxu0 0.0
    %1345 = vmatpush1.msra.mxu0 %v182
    %1346 = vmatprep.subr.mxu0 0.0
    %1347 = vmatpush1.msra.mxu0 %v183
    %1348 = vmatprep.subr.mxu0 0.0
    %1349 = vmatpush1.msra.mxu0 0.0
    %1350 = vmatprep.subr.mxu0 0.0
    %1351 = vmatpush1.msra.mxu0 0.0
    %1352 = vmatprep.subr.mxu0 0.0
    %1353 = vmatpush1.msra.mxu0 0.0
    %1354 = vmatprep.subr.mxu0 0.0
    %1355 = vmatpush1.msra.mxu0 0.0
    %1356 = vmatprep.subr.mxu0 0.0
    %1357 = vmatpush1.msra.mxu0 0.0
    %1358 = vmatprep.subr.mxu0 0.0
    %1359 = vmatpush1.msra.mxu0 0.0
    %1360 = vmatprep.subr.mxu0 0.0
    %1361 = vmatpush1.msra.mxu0 0.0
    %1362 = vmatprep.subr.mxu0 0.0
    %1363 = vmatpush1.msra.mxu0 0.0
    %1364 = vmatprep.subr.mxu0 0.0
    %1365 = vmatpush1.msra.mxu0 0.0
    %1366 = vmatprep.subr.mxu0 0.0
    %1367 = vmatpush1.msra.mxu0 0.0
    %1368 = vmatprep.subr.mxu0 0.0
    %1369 = vmatpush1.msra.mxu0 0.0
    %1370 = vmatprep.subr.mxu0 0.0
    %1371 = vmatpush1.msra.mxu0 0.0
    %1372 = vmatprep.subr.mxu0 0.0
    %1373 = vmatpush1.msra.mxu0 0.0
    %1374 = vmatprep.subr.mxu0 0.0
    %1375 = vmatpush1.msra.mxu0 0.0
    %1376 = vmatprep.subr.mxu0 0.0
    %1377 = vmatpush1.msra.mxu0 0.0
    %1378 = vmatprep.subr.mxu0 0.0
    %1379 = vmatpush1.msra.mxu0 0.0
    %1380 = vmatprep.subr.mxu0 0.0
    %1381 = vmatpush1.msra.mxu0 0.0
    %1382 = vmatprep.subr.mxu0 0.0
    %1383 = vmatpush1.msra.mxu0 0.0
    %1384 = vmatprep.subr.mxu0 0.0
    %1385 = vmatpush1.msra.mxu0 0.0
    %1386 = vmatprep.subr.mxu0 0.0
    %1387 = vmatpush1.msra.mxu0 0.0
    %1388 = vmatprep.subr.mxu0 0.0
    %1389 = vmatpush1.msra.mxu0 0.0
    %1390 = vmatprep.subr.mxu0 0.0
    %1391 = vmatpush1.msra.mxu0 0.0
    %1392 = vmatprep.subr.mxu0 0.0
    %1393 = vmatpush1.msra.mxu0 0.0
    %1394 = vmatprep.subr.mxu0 0.0
    %1395 = vmatpush1.msra.mxu0 0.0
    %1396 = vmatprep.subr.mxu0 0.0
    %1397 = vmatpush1.msra.mxu0 0.0
    %1398 = vmatprep.subr.mxu0 0.0
    %1399 = vmatpush1.msra.mxu0 0.0
    %1400 = vmatprep.subr.mxu0 0.0
    %1401 = vmatpush1.msra.mxu0 0.0
    %1402 = vmatprep.subr.mxu0 0.0
    %1403 = vmatpush1.msra.mxu0 0.0
    %1404 = vmatprep.mubr.f32.mxu0 0.0
    %1405 = vmatmul.mubr.f32.gmra.mrb[0].mxu0 %v1268
    %v1406 = vpop.f32.mrb[0].mxu0
    %v1407 = vadd.f32 %v298, %v1406
    %v1408 = vpop.f32.mrb[0].mxu0
    %1409 = vdwg.mxu0
    %1410 = vmatprep.subr.mxu0 0.0
    %1411 = vmatpush1.msra.mxu0 %v185
    %1412 = vmatprep.subr.mxu0 0.0
    %1413 = vmatpush1.msra.mxu0 %v186
    %1414 = vmatprep.subr.mxu0 0.0
    %1415 = vmatpush1.msra.mxu0 %v187
    %1416 = vmatprep.subr.mxu0 0.0
    %1417 = vmatpush1.msra.mxu0 %v188
    %1418 = vmatprep.subr.mxu0 0.0
    %1419 = vmatpush1.msra.mxu0 0.0
    %1420 = vmatprep.subr.mxu0 0.0
    %1421 = vmatpush1.msra.mxu0 0.0
    %1422 = vmatprep.subr.mxu0 0.0
    %1423 = vmatpush1.msra.mxu0 0.0
    %1424 = vmatprep.subr.mxu0 0.0
    %1425 = vmatpush1.msra.mxu0 0.0
    %1426 = vmatprep.subr.mxu0 0.0
    %1427 = vmatpush1.msra.mxu0 0.0
    %1428 = vmatprep.subr.mxu0 0.0
    %1429 = vmatpush1.msra.mxu0 0.0
    %1430 = vmatprep.subr.mxu0 0.0
    %1431 = vmatpush1.msra.mxu0 0.0
    %1432 = vmatprep.subr.mxu0 0.0
    %1433 = vmatpush1.msra.mxu0 0.0
    %1434 = vmatprep.subr.mxu0 0.0
    %1435 = vmatpush1.msra.mxu0 0.0
    %1436 = vmatprep.subr.mxu0 0.0
    %1437 = vmatpush1.msra.mxu0 0.0
    %1438 = vmatprep.subr.mxu0 0.0
    %1439 = vmatpush1.msra.mxu0 0.0
    %1440 = vmatprep.subr.mxu0 0.0
    %1441 = vmatpush1.msra.mxu0 0.0
    %1442 = vmatprep.subr.mxu0 0.0
    %1443 = vmatpush1.msra.mxu0 0.0
    %1444 = vmatprep.subr.mxu0 0.0
    %1445 = vmatpush1.msra.mxu0 0.0
    %1446 = vmatprep.subr.mxu0 0.0
    %1447 = vmatpush1.msra.mxu0 0.0
    %1448 = vmatprep.subr.mxu0 0.0
    %1449 = vmatpush1.msra.mxu0 0.0
    %1450 = vmatprep.subr.mxu0 0.0
    %1451 = vmatpush1.msra.mxu0 0.0
    %1452 = vmatprep.subr.mxu0 0.0
    %1453 = vmatpush1.msra.mxu0 0.0
    %1454 = vmatprep.subr.mxu0 0.0
    %1455 = vmatpush1.msra.mxu0 0.0
    %1456 = vmatprep.subr.mxu0 0.0
    %1457 = vmatpush1.msra.mxu0 0.0
    %1458 = vmatprep.subr.mxu0 0.0
    %1459 = vmatpush1.msra.mxu0 0.0
    %1460 = vmatprep.subr.mxu0 0.0
    %1461 = vmatpush1.msra.mxu0 0.0
    %1462 = vmatprep.subr.mxu0 0.0
    %1463 = vmatpush1.msra.mxu0 0.0
    %1464 = vmatprep.subr.mxu0 0.0
    %1465 = vmatpush1.msra.mxu0 0.0
    %1466 = vmatprep.subr.mxu0 0.0
    %1467 = vmatpush1.msra.mxu0 0.0
    %1468 = vmatprep.subr.mxu0 0.0
    %1469 = vmatpush1.msra.mxu0 0.0
    %1470 = vmatprep.subr.mxu0 0.0
    %1471 = vmatpush1.msra.mxu0 0.0
    %1472 = vmatprep.subr.mxu0 0.0
    %1473 = vmatpush1.msra.mxu0 0.0
    %1474 = vmatprep.mubr.f32.mxu0 0.0
    %1475 = vmatmul.mubr.f32.gmra.mrb[0].mxu0 %v1268
    %v1476 = vpop.f32.mrb[0].mxu0
    %v1477 = vadd.f32 %v374, %v1476
    %v1478 = vpop.f32.mrb[0].mxu0
    %1479 = vdwg.mxu0
    %v1481 = vrot.slane %v1337, 4
    %v1483 = vadd.f32 %v165, %v1481
    %v1484 = vxor.u32 %v1483, 2147483648
    %v1485 = vmul.f32 %v1484, 1.442695
    %v1486 = vpow.pop %v1485
    %v1487 = vadd.f32 %v1486, 1.0
    %v1488 = vrcp.pop %v1487
    %v1489 = vmul.f32 1.0, %v1488
    %v1491 = vrot.slane %v1407, 4
    %1492 = vrot.lane.b32.xlu0 %v1491, 32
    %v1493 = vpop.permute.xlu0 %1492
    %v1495 = vadd.f32 %v165, %v1493
    %v1496 = vxor.u32 %v1495, 2147483648
    %v1497 = vmul.f32 %v1496, 1.442695
    %v1498 = vpow.pop %v1497
    %v1499 = vadd.f32 %v1498, 1.0
    %v1500 = vrcp.pop %v1499
    %v1501 = vmul.f32 1.0, %v1500
    %v1503 = vrot.slane %v1477, 4
    %v1505 = vmul.f32 %v1489, %v1503
    %1507 = vrot.lane.b32.xlu0 %v1505, 64
    %v1508 = vpop.permute.xlu0 %1507
    %v1510 = vadd.f32 %v165, %v1508
    %v1511 = vtanh.pop %v1510
    %v1512 = vsub.f32 1.0, %v1501
    %1514 = vrot.lane.b32.xlu0 %v1511, 96
    %v1515 = vpop.permute.xlu0 %1514
    %v1517 = vmul.f32 %v1512, %v1515
    %v1518 = vrot.slane %v1005, 6
    %v1520 = vmul.f32 %v1501, %v1518
    %v1521 = vadd.f32 %v1517, %v1520
    %v1523 = vrot.slane %v1263, 4
    %v1524 = vsel %vm91, %v1523, 0
    %1526 = vmatprep.subr.mxu0 0.0
    %1527 = vmatpush1.msra.mxu0 %v195
    %1528 = vmatprep.subr.mxu0 0.0
    %1529 = vmatpush1.msra.mxu0 %v196
    %1530 = vmatprep.subr.mxu0 0.0
    %1531 = vmatpush1.msra.mxu0 %v197
    %1532 = vmatprep.subr.mxu0 0.0
    %1533 = vmatpush1.msra.mxu0 %v198
    %1534 = vmatprep.subr.mxu0 0.0
    %1535 = vmatpush1.msra.mxu0 0.0
    %1536 = vmatprep.subr.mxu0 0.0
    %1537 = vmatpush1.msra.mxu0 0.0
    %1538 = vmatprep.subr.mxu0 0.0
    %1539 = vmatpush1.msra.mxu0 0.0
    %1540 = vmatprep.subr.mxu0 0.0
    %1541 = vmatpush1.msra.mxu0 0.0
    %1542 = vmatprep.subr.mxu0 0.0
    %1543 = vmatpush1.msra.mxu0 0.0
    %1544 = vmatprep.subr.mxu0 0.0
    %1545 = vmatpush1.msra.mxu0 0.0
    %1546 = vmatprep.subr.mxu0 0.0
    %1547 = vmatpush1.msra.mxu0 0.0
    %1548 = vmatprep.subr.mxu0 0.0
    %1549 = vmatpush1.msra.mxu0 0.0
    %1550 = vmatprep.subr.mxu0 0.0
    %1551 = vmatpush1.msra.mxu0 0.0
    %1552 = vmatprep.subr.mxu0 0.0
    %1553 = vmatpush1.msra.mxu0 0.0
    %1554 = vmatprep.subr.mxu0 0.0
    %1555 = vmatpush1.msra.mxu0 0.0
    %1556 = vmatprep.subr.mxu0 0.0
    %1557 = vmatpush1.msra.mxu0 0.0
    %1558 = vmatprep.subr.mxu0 0.0
    %1559 = vmatpush1.msra.mxu0 0.0
    %1560 = vmatprep.subr.mxu0 0.0
    %1561 = vmatpush1.msra.mxu0 0.0
    %1562 = vmatprep.subr.mxu0 0.0
    %1563 = vmatpush1.msra.mxu0 0.0
    %1564 = vmatprep.subr.mxu0 0.0
    %1565 = vmatpush1.msra.mxu0 0.0
    %1566 = vmatprep.subr.mxu0 0.0
    %1567 = vmatpush1.msra.mxu0 0.0
    %1568 = vmatprep.subr.mxu0 0.0
    %1569 = vmatpush1.msra.mxu0 0.0
    %1570 = vmatprep.subr.mxu0 0.0
    %1571 = vmatpush1.msra.mxu0 0.0
    %1572 = vmatprep.subr.mxu0 0.0
    %1573 = vmatpush1.msra.mxu0 0.0
    %1574 = vmatprep.subr.mxu0 0.0
    %1575 = vmatpush1.msra.mxu0 0.0
    %1576 = vmatprep.subr.mxu0 0.0
    %1577 = vmatpush1.msra.mxu0 0.0
    %1578 = vmatprep.subr.mxu0 0.0
    %1579 = vmatpush1.msra.mxu0 0.0
    %1580 = vmatprep.subr.mxu0 0.0
    %1581 = vmatpush1.msra.mxu0 0.0
    %1582 = vmatprep.subr.mxu0 0.0
    %1583 = vmatpush1.msra.mxu0 0.0
    %1584 = vmatprep.subr.mxu0 0.0
    %1585 = vmatpush1.msra.mxu0 0.0
    %1586 = vmatprep.subr.mxu0 0.0
    %1587 = vmatpush1.msra.mxu0 0.0
    %1588 = vmatprep.subr.mxu0 0.0
    %1589 = vmatpush1.msra.mxu0 0.0
    %1590 = vmatprep.mubr.f32.mxu0 0.0
    %1591 = vmatmul.mubr.f32.gmra.mrb[0].mxu0 %v1524
    %v1592 = vpop.f32.mrb[0].mxu0
    %v1593 = vadd.f32 %v483, %v1592
    %v1594 = vpop.f32.mrb[0].mxu0
    %1595 = vdwg.mxu0
    %1596 = vmatprep.subr.mxu0 0.0
    %1597 = vmatpush1.msra.mxu0 %v200
    %1598 = vmatprep.subr.mxu0 0.0
    %1599 = vmatpush1.msra.mxu0 %v201
    %1600 = vmatprep.subr.mxu0 0.0
    %1601 = vmatpush1.msra.mxu0 %v202
    %1602 = vmatprep.subr.mxu0 0.0
    %1603 = vmatpush1.msra.mxu0 %v203
    %1604 = vmatprep.subr.mxu0 0.0
    %1605 = vmatpush1.msra.mxu0 0.0
    %1606 = vmatprep.subr.mxu0 0.0
    %1607 = vmatpush1.msra.mxu0 0.0
    %1608 = vmatprep.subr.mxu0 0.0
    %1609 = vmatpush1.msra.mxu0 0.0
    %1610 = vmatprep.subr.mxu0 0.0
    %1611 = vmatpush1.msra.mxu0 0.0
    %1612 = vmatprep.subr.mxu0 0.0
    %1613 = vmatpush1.msra.mxu0 0.0
    %1614 = vmatprep.subr.mxu0 0.0
    %1615 = vmatpush1.msra.mxu0 0.0
    %1616 = vmatprep.subr.mxu0 0.0
    %1617 = vmatpush1.msra.mxu0 0.0
    %1618 = vmatprep.subr.mxu0 0.0
    %1619 = vmatpush1.msra.mxu0 0.0
    %1620 = vmatprep.subr.mxu0 0.0
    %1621 = vmatpush1.msra.mxu0 0.0
    %1622 = vmatprep.subr.mxu0 0.0
    %1623 = vmatpush1.msra.mxu0 0.0
    %1624 = vmatprep.subr.mxu0 0.0
    %1625 = vmatpush1.msra.mxu0 0.0
    %1626 = vmatprep.subr.mxu0 0.0
    %1627 = vmatpush1.msra.mxu0 0.0
    %1628 = vmatprep.subr.mxu0 0.0
    %1629 = vmatpush1.msra.mxu0 0.0
    %1630 = vmatprep.subr.mxu0 0.0
    %1631 = vmatpush1.msra.mxu0 0.0
    %1632 = vmatprep.subr.mxu0 0.0
    %1633 = vmatpush1.msra.mxu0 0.0
    %1634 = vmatprep.subr.mxu0 0.0
    %1635 = vmatpush1.msra.mxu0 0.0
    %1636 = vmatprep.subr.mxu0 0.0
    %1637 = vmatpush1.msra.mxu0 0.0
    %1638 = vmatprep.subr.mxu0 0.0
    %1639 = vmatpush1.msra.mxu0 0.0
    %1640 = vmatprep.subr.mxu0 0.0
    %1641 = vmatpush1.msra.mxu0 0.0
    %1642 = vmatprep.subr.mxu0 0.0
    %1643 = vmatpush1.msra.mxu0 0.0
    %1644 = vmatprep.subr.mxu0 0.0
    %1645 = vmatpush1.msra.mxu0 0.0
    %1646 = vmatprep.subr.mxu0 0.0
    %1647 = vmatpush1.msra.mxu0 0.0
    %1648 = vmatprep.subr.mxu0 0.0
    %1649 = vmatpush1.msra.mxu0 0.0
    %1650 = vmatprep.subr.mxu0 0.0
    %1651 = vmatpush1.msra.mxu0 0.0
    %1652 = vmatprep.subr.mxu0 0.0
    %1653 = vmatpush1.msra.mxu0 0.0
    %1654 = vmatprep.subr.mxu0 0.0
    %1655 = vmatpush1.msra.mxu0 0.0
    %1656 = vmatprep.subr.mxu0 0.0
    %1657 = vmatpush1.msra.mxu0 0.0
    %1658 = vmatprep.subr.mxu0 0.0
    %1659 = vmatpush1.msra.mxu0 0.0
    %1660 = vmatprep.mubr.f32.mxu0 0.0
    %1661 = vmatmul.mubr.f32.gmra.mrb[0].mxu0 %v1524
    %v1662 = vpop.f32.mrb[0].mxu0
    %v1663 = vadd.f32 %v559, %v1662
    %v1664 = vpop.f32.mrb[0].mxu0
    %1665 = vdwg.mxu0
    %1666 = vmatprep.subr.mxu0 0.0
    %1667 = vmatpush1.msra.mxu0 %v205
    %1668 = vmatprep.subr.mxu0 0.0
    %1669 = vmatpush1.msra.mxu0 %v206
    %1670 = vmatprep.subr.mxu0 0.0
    %1671 = vmatpush1.msra.mxu0 %v207
    %1672 = vmatprep.subr.mxu0 0.0
    %1673 = vmatpush1.msra.mxu0 %v208
    %1674 = vmatprep.subr.mxu0 0.0
    %1675 = vmatpush1.msra.mxu0 0.0
    %1676 = vmatprep.subr.mxu0 0.0
    %1677 = vmatpush1.msra.mxu0 0.0
    %1678 = vmatprep.subr.mxu0 0.0
    %1679 = vmatpush1.msra.mxu0 0.0
    %1680 = vmatprep.subr.mxu0 0.0
    %1681 = vmatpush1.msra.mxu0 0.0
    %1682 = vmatprep.subr.mxu0 0.0
    %1683 = vmatpush1.msra.mxu0 0.0
    %1684 = vmatprep.subr.mxu0 0.0
    %1685 = vmatpush1.msra.mxu0 0.0
    %1686 = vmatprep.subr.mxu0 0.0
    %1687 = vmatpush1.msra.mxu0 0.0
    %1688 = vmatprep.subr.mxu0 0.0
    %1689 = vmatpush1.msra.mxu0 0.0
    %1690 = vmatprep.subr.mxu0 0.0
    %1691 = vmatpush1.msra.mxu0 0.0
    %1692 = vmatprep.subr.mxu0 0.0
    %1693 = vmatpush1.msra.mxu0 0.0
    %1694 = vmatprep.subr.mxu0 0.0
    %1695 = vmatpush1.msra.mxu0 0.0
    %1696 = vmatprep.subr.mxu0 0.0
    %1697 = vmatpush1.msra.mxu0 0.0
    %1698 = vmatprep.subr.mxu0 0.0
    %1699 = vmatpush1.msra.mxu0 0.0
    %1700 = vmatprep.subr.mxu0 0.0
    %1701 = vmatpush1.msra.mxu0 0.0
    %1702 = vmatprep.subr.mxu0 0.0
    %1703 = vmatpush1.msra.mxu0 0.0
    %1704 = vmatprep.subr.mxu0 0.0
    %1705 = vmatpush1.msra.mxu0 0.0
    %1706 = vmatprep.subr.mxu0 0.0
    %1707 = vmatpush1.msra.mxu0 0.0
    %1708 = vmatprep.subr.mxu0 0.0
    %1709 = vmatpush1.msra.mxu0 0.0
    %1710 = vmatprep.subr.mxu0 0.0
    %1711 = vmatpush1.msra.mxu0 0.0
    %1712 = vmatprep.subr.mxu0 0.0
    %1713 = vmatpush1.msra.mxu0 0.0
    %1714 = vmatprep.subr.mxu0 0.0
    %1715 = vmatpush1.msra.mxu0 0.0
    %1716 = vmatprep.subr.mxu0 0.0
    %1717 = vmatpush1.msra.mxu0 0.0
    %1718 = vmatprep.subr.mxu0 0.0
    %1719 = vmatpush1.msra.mxu0 0.0
    %1720 = vmatprep.subr.mxu0 0.0
    %1721 = vmatpush1.msra.mxu0 0.0
    %1722 = vmatprep.subr.mxu0 0.0
    %1723 = vmatpush1.msra.mxu0 0.0
    %1724 = vmatprep.subr.mxu0 0.0
    %1725 = vmatpush1.msra.mxu0 0.0
    %1726 = vmatprep.subr.mxu0 0.0
    %1727 = vmatpush1.msra.mxu0 0.0
    %1728 = vmatprep.subr.mxu0 0.0
    %1729 = vmatpush1.msra.mxu0 0.0
    %1730 = vmatprep.mubr.f32.mxu0 0.0
    %1731 = vmatmul.mubr.f32.gmra.mrb[0].mxu0 %v1524
    %v1732 = vpop.f32.mrb[0].mxu0
    %v1733 = vadd.f32 %v635, %v1732
    %v1734 = vpop.f32.mrb[0].mxu0
    %1735 = vdwg.mxu0
    %v1737 = vrot.slane %v1593, 6
    %1738 = vrot.lane.b32.xlu0 %v1737, 96
    %v1739 = vpop.permute.xlu0 %1738
    %v1741 = vadd.f32 %v171, %v1739
    %v1742 = vxor.u32 %v1741, 2147483648
    %v1743 = vmul.f32 %v1742, 1.442695
    %v1744 = vpow.pop %v1743
    %v1745 = vadd.f32 %v1744, 1.0
    %v1746 = vrcp.pop %v1745
    %v1747 = vmul.f32 1.0, %v1746
    %v1749 = vrot.slane %v1663, 6
    %v1751 = vadd.f32 %v173, %v1749
    %v1752 = vxor.u32 %v1751, 2147483648
    %v1753 = vmul.f32 %v1752, 1.442695
    %v1754 = vpow.pop %v1753
    %v1755 = vadd.f32 %v1754, 1.0
    %v1756 = vrcp.pop %v1755
    %v1757 = vmul.f32 1.0, %v1756
    %v1759 = vrot.slane %v1733, 6
    %1760 = vrot.lane.b32.xlu0 %v1759, 96
    %v1761 = vpop.permute.xlu0 %1760
    %v1763 = vmul.f32 %v1747, %v1761
    %1765 = vrot.lane.b32.xlu0 %v1763, 64
    %v1766 = vpop.permute.xlu0 %1765
    %v1768 = vadd.f32 %v173, %v1766
    %v1769 = vtanh.pop %v1768
    %v1770 = vsub.f32 1.0, %v1757
    %1772 = vrot.lane.b32.xlu0 %v1769, 96
    %v1773 = vpop.permute.xlu0 %1772
    %v1775 = vmul.f32 %v1770, %v1773
    %v1776 = vrot.slane %v1263, 2
    %v1778 = vmul.f32 %v1757, %v1776
    %v1779 = vadd.f32 %v1775, %v1778
    %v1781 = vrot.slane %v1521, 4
    %1782 = vrot.lane.b32.xlu0 %v1781, 96
    %v1783 = vpop.permute.xlu0 %1782
    %v1784 = vsel %vm91, %v1783, 0
    %1786 = vmatprep.subr.mxu0 0.0
    %1787 = vmatpush1.msra.mxu0 %v175
    %1788 = vmatprep.subr.mxu0 0.0
    %1789 = vmatpush1.msra.mxu0 %v176
    %1790 = vmatprep.subr.mxu0 0.0
    %1791 = vmatpush1.msra.mxu0 %v177
    %1792 = vmatprep.subr.mxu0 0.0
    %1793 = vmatpush1.msra.mxu0 %v178
    %1794 = vmatprep.subr.mxu0 0.0
    %1795 = vmatpush1.msra.mxu0 0.0
    %1796 = vmatprep.subr.mxu0 0.0
    %1797 = vmatpush1.msra.mxu0 0.0
    %1798 = vmatprep.subr.mxu0 0.0
    %1799 = vmatpush1.msra.mxu0 0.0
    %1800 = vmatprep.subr.mxu0 0.0
    %1801 = vmatpush1.msra.mxu0 0.0
    %1802 = vmatprep.subr.mxu0 0.0
    %1803 = vmatpush1.msra.mxu0 0.0
    %1804 = vmatprep.subr.mxu0 0.0
    %1805 = vmatpush1.msra.mxu0 0.0
    %1806 = vmatprep.subr.mxu0 0.0
    %1807 = vmatpush1.msra.mxu0 0.0
    %1808 = vmatprep.subr.mxu0 0.0
    %1809 = vmatpush1.msra.mxu0 0.0
    %1810 = vmatprep.subr.mxu0 0.0
    %1811 = vmatpush1.msra.mxu0 0.0
    %1812 = vmatprep.subr.mxu0 0.0
    %1813 = vmatpush1.msra.mxu0 0.0
    %1814 = vmatprep.subr.mxu0 0.0
    %1815 = vmatpush1.msra.mxu0 0.0
    %1816 = vmatprep.subr.mxu0 0.0
    %1817 = vmatpush1.msra.mxu0 0.0
    %1818 = vmatprep.subr.mxu0 0.0
    %1819 = vmatpush1.msra.mxu0 0.0
    %1820 = vmatprep.subr.mxu0 0.0
    %1821 = vmatpush1.msra.mxu0 0.0
    %1822 = vmatprep.subr.mxu0 0.0
    %1823 = vmatpush1.msra.mxu0 0.0
    %1824 = vmatprep.subr.mxu0 0.0
    %1825 = vmatpush1.msra.mxu0 0.0
    %1826 = vmatprep.subr.mxu0 0.0
    %1827 = vmatpush1.msra.mxu0 0.0
    %1828 = vmatprep.subr.mxu0 0.0
    %1829 = vmatpush1.msra.mxu0 0.0
    %1830 = vmatprep.subr.mxu0 0.0
    %1831 = vmatpush1.msra.mxu0 0.0
    %1832 = vmatprep.subr.mxu0 0.0
    %1833 = vmatpush1.msra.mxu0 0.0
    %1834 = vmatprep.subr.mxu0 0.0
    %1835 = vmatpush1.msra.mxu0 0.0
    %1836 = vmatprep.subr.mxu0 0.0
    %1837 = vmatpush1.msra.mxu0 0.0
    %1838 = vmatprep.subr.mxu0 0.0
    %1839 = vmatpush1.msra.mxu0 0.0
    %1840 = vmatprep.subr.mxu0 0.0
    %1841 = vmatpush1.msra.mxu0 0.0
    %1842 = vmatprep.subr.mxu0 0.0
    %1843 = vmatpush1.msra.mxu0 0.0
    %1844 = vmatprep.subr.mxu0 0.0
    %1845 = vmatpush1.msra.mxu0 0.0
    %1846 = vmatprep.subr.mxu0 0.0
    %1847 = vmatpush1.msra.mxu0 0.0
    %1848 = vmatprep.subr.mxu0 0.0
    %1849 = vmatpush1.msra.mxu0 0.0
    %1850 = vmatprep.mubr.f32.mxu0 0.0
    %1851 = vmatmul.mubr.f32.gmra.mrb[0].mxu0 %v1784
    %v1852 = vpop.f32.mrb[0].mxu0
    %v1853 = vadd.f32 %v219, %v1852
    %v1854 = vpop.f32.mrb[0].mxu0
    %1855 = vdwg.mxu0
    %1856 = vmatprep.subr.mxu0 0.0
    %1857 = vmatpush1.msra.mxu0 %v180
    %1858 = vmatprep.subr.mxu0 0.0
    %1859 = vmatpush1.msra.mxu0 %v181
    %1860 = vmatprep.subr.mxu0 0.0
    %1861 = vmatpush1.msra.mxu0 %v182
    %1862 = vmatprep.subr.mxu0 0.0
    %1863 = vmatpush1.msra.mxu0 %v183
    %1864 = vmatprep.subr.mxu0 0.0
    %1865 = vmatpush1.msra.mxu0 0.0
    %1866 = vmatprep.subr.mxu0 0.0
    %1867 = vmatpush1.msra.mxu0 0.0
    %1868 = vmatprep.subr.mxu0 0.0
    %1869 = vmatpush1.msra.mxu0 0.0
    %1870 = vmatprep.subr.mxu0 0.0
    %1871 = vmatpush1.msra.mxu0 0.0
    %1872 = vmatprep.subr.mxu0 0.0
    %1873 = vmatpush1.msra.mxu0 0.0
    %1874 = vmatprep.subr.mxu0 0.0
    %1875 = vmatpush1.msra.mxu0 0.0
    %1876 = vmatprep.subr.mxu0 0.0
    %1877 = vmatpush1.msra.mxu0 0.0
    %1878 = vmatprep.subr.mxu0 0.0
    %1879 = vmatpush1.msra.mxu0 0.0
    %1880 = vmatprep.subr.mxu0 0.0
    %1881 = vmatpush1.msra.mxu0 0.0
    %1882 = vmatprep.subr.mxu0 0.0
    %1883 = vmatpush1.msra.mxu0 0.0
    %1884 = vmatprep.subr.mxu0 0.0
    %1885 = vmatpush1.msra.mxu0 0.0
    %1886 = vmatprep.subr.mxu0 0.0
    %1887 = vmatpush1.msra.mxu0 0.0
    %1888 = vmatprep.subr.mxu0 0.0
    %1889 = vmatpush1.msra.mxu0 0.0
    %1890 = vmatprep.subr.mxu0 0.0
    %1891 = vmatpush1.msra.mxu0 0.0
    %1892 = vmatprep.subr.mxu0 0.0
    %1893 = vmatpush1.msra.mxu0 0.0
    %1894 = vmatprep.subr.mxu0 0.0
    %1895 = vmatpush1.msra.mxu0 0.0
    %1896 = vmatprep.subr.mxu0 0.0
    %1897 = vmatpush1.msra.mxu0 0.0
    %1898 = vmatprep.subr.mxu0 0.0
    %1899 = vmatpush1.msra.mxu0 0.0
    %1900 = vmatprep.subr.mxu0 0.0
    %1901 = vmatpush1.msra.mxu0 0.0
    %1902 = vmatprep.subr.mxu0 0.0
    %1903 = vmatpush1.msra.mxu0 0.0
    %1904 = vmatprep.subr.mxu0 0.0
    %1905 = vmatpush1.msra.mxu0 0.0
    %1906 = vmatprep.subr.mxu0 0.0
    %1907 = vmatpush1.msra.mxu0 0.0
    %1908 = vmatprep.subr.mxu0 0.0
    %1909 = vmatpush1.msra.mxu0 0.0
    %1910 = vmatprep.subr.mxu0 0.0
    %1911 = vmatpush1.msra.mxu0 0.0
    %1912 = vmatprep.subr.mxu0 0.0
    %1913 = vmatpush1.msra.mxu0 0.0
    %1914 = vmatprep.subr.mxu0 0.0
    %1915 = vmatpush1.msra.mxu0 0.0
    %1916 = vmatprep.subr.mxu0 0.0
    %1917 = vmatpush1.msra.mxu0 0.0
    %1918 = vmatprep.subr.mxu0 0.0
    %1919 = vmatpush1.msra.mxu0 0.0
    %1920 = vmatprep.mubr.f32.mxu0 0.0
    %1921 = vmatmul.mubr.f32.gmra.mrb[0].mxu0 %v1784
    %v1922 = vpop.f32.mrb[0].mxu0
    %v1923 = vadd.f32 %v298, %v1922
    %v1924 = vpop.f32.mrb[0].mxu0
    %1925 = vdwg.mxu0
    %1926 = vmatprep.subr.mxu0 0.0
    %1927 = vmatpush1.msra.mxu0 %v185
    %1928 = vmatprep.subr.mxu0 0.0
    %1929 = vmatpush1.msra.mxu0 %v186
    %1930 = vmatprep.subr.mxu0 0.0
    %1931 = vmatpush1.msra.mxu0 %v187
    %1932 = vmatprep.subr.mxu0 0.0
    %1933 = vmatpush1.msra.mxu0 %v188
    %1934 = vmatprep.subr.mxu0 0.0
    %1935 = vmatpush1.msra.mxu0 0.0
    %1936 = vmatprep.subr.mxu0 0.0
    %1937 = vmatpush1.msra.mxu0 0.0
    %1938 = vmatprep.subr.mxu0 0.0
    %1939 = vmatpush1.msra.mxu0 0.0
    %1940 = vmatprep.subr.mxu0 0.0
    %1941 = vmatpush1.msra.mxu0 0.0
    %1942 = vmatprep.subr.mxu0 0.0
    %1943 = vmatpush1.msra.mxu0 0.0
    %1944 = vmatprep.subr.mxu0 0.0
    %1945 = vmatpush1.msra.mxu0 0.0
    %1946 = vmatprep.subr.mxu0 0.0
    %1947 = vmatpush1.msra.mxu0 0.0
    %1948 = vmatprep.subr.mxu0 0.0
    %1949 = vmatpush1.msra.mxu0 0.0
    %1950 = vmatprep.subr.mxu0 0.0
    %1951 = vmatpush1.msra.mxu0 0.0
    %1952 = vmatprep.subr.mxu0 0.0
    %1953 = vmatpush1.msra.mxu0 0.0
    %1954 = vmatprep.subr.mxu0 0.0
    %1955 = vmatpush1.msra.mxu0 0.0
    %1956 = vmatprep.subr.mxu0 0.0
    %1957 = vmatpush1.msra.mxu0 0.0
    %1958 = vmatprep.subr.mxu0 0.0
    %1959 = vmatpush1.msra.mxu0 0.0
    %1960 = vmatprep.subr.mxu0 0.0
    %1961 = vmatpush1.msra.mxu0 0.0
    %1962 = vmatprep.subr.mxu0 0.0
    %1963 = vmatpush1.msra.mxu0 0.0
    %1964 = vmatprep.subr.mxu0 0.0
    %1965 = vmatpush1.msra.mxu0 0.0
    %1966 = vmatprep.subr.mxu0 0.0
    %1967 = vmatpush1.msra.mxu0 0.0
    %1968 = vmatprep.subr.mxu0 0.0
    %1969 = vmatpush1.msra.mxu0 0.0
    %1970 = vmatprep.subr.mxu0 0.0
    %1971 = vmatpush1.msra.mxu0 0.0
    %1972 = vmatprep.subr.mxu0 0.0
    %1973 = vmatpush1.msra.mxu0 0.0
    %1974 = vmatprep.subr.mxu0 0.0
    %1975 = vmatpush1.msra.mxu0 0.0
    %1976 = vmatprep.subr.mxu0 0.0
    %1977 = vmatpush1.msra.mxu0 0.0
    %1978 = vmatprep.subr.mxu0 0.0
    %1979 = vmatpush1.msra.mxu0 0.0
    %1980 = vmatprep.subr.mxu0 0.0
    %1981 = vmatpush1.msra.mxu0 0.0
    %1982 = vmatprep.subr.mxu0 0.0
    %1983 = vmatpush1.msra.mxu0 0.0
    %1984 = vmatprep.subr.mxu0 0.0
    %1985 = vmatpush1.msra.mxu0 0.0
    %1986 = vmatprep.subr.mxu0 0.0
    %1987 = vmatpush1.msra.mxu0 0.0
    %1988 = vmatprep.subr.mxu0 0.0
    %1989 = vmatpush1.msra.mxu0 0.0
    %1990 = vmatprep.mubr.f32.mxu0 0.0
    %1991 = vmatmul.mubr.f32.gmra.mrb[0].mxu0 %v1784
    %v1992 = vpop.f32.mrb[0].mxu0
    %v1993 = vadd.f32 %v374, %v1992
    %v1994 = vpop.f32.mrb[0].mxu0
    %1995 = vdwg.mxu0
    %v1997 = vrot.slane %v1853, 2
    %v1999 = vadd.f32 %v165, %v1997
    %v2000 = vxor.u32 %v1999, 2147483648
    %v2001 = vmul.f32 %v2000, 1.442695
    %v2002 = vpow.pop %v2001
    %v2003 = vadd.f32 %v2002, 1.0
    %v2004 = vrcp.pop %v2003
    %v2005 = vmul.f32 1.0, %v2004
    %v2007 = vrot.slane %v1923, 2
    %2008 = vrot.lane.b32.xlu0 %v2007, 32
    %v2009 = vpop.permute.xlu0 %2008
    %v2011 = vadd.f32 %v165, %v2009
    %v2012 = vxor.u32 %v2011, 2147483648
    %v2013 = vmul.f32 %v2012, 1.442695
    %v2014 = vpow.pop %v2013
    %v2015 = vadd.f32 %v2014, 1.0
    %v2016 = vrcp.pop %v2015
    %v2017 = vmul.f32 1.0, %v2016
    %v2019 = vrot.slane %v1993, 2
    %v2021 = vmul.f32 %v2005, %v2019
    %2023 = vrot.lane.b32.xlu0 %v2021, 64
    %v2024 = vpop.permute.xlu0 %2023
    %v2026 = vadd.f32 %v165, %v2024
    %v2027 = vtanh.pop %v2026
    %v2028 = vsub.f32 1.0, %v2017
    %2030 = vrot.lane.b32.xlu0 %v2027, 96
    %v2031 = vpop.permute.xlu0 %2030
    %v2033 = vmul.f32 %v2028, %v2031
    %v2034 = vrot.slane %v1521, 6
    %v2036 = vmul.f32 %v2017, %v2034
    %v2037 = vadd.f32 %v2033, %v2036
    %v2039 = vrot.slane %v1779, 2
    %v2040 = vsel %vm91, %v2039, 0
    %2042 = vmatprep.subr.mxu0 0.0
    %2043 = vmatpush1.msra.mxu0 %v195
    %2044 = vmatprep.subr.mxu0 0.0
    %2045 = vmatpush1.msra.mxu0 %v196
    %2046 = vmatprep.subr.mxu0 0.0
    %2047 = vmatpush1.msra.mxu0 %v197
    %2048 = vmatprep.subr.mxu0 0.0
    %2049 = vmatpush1.msra.mxu0 %v198
    %2050 = vmatprep.subr.mxu0 0.0
    %2051 = vmatpush1.msra.mxu0 0.0
    %2052 = vmatprep.subr.mxu0 0.0
    %2053 = vmatpush1.msra.mxu0 0.0
    %2054 = vmatprep.subr.mxu0 0.0
    %2055 = vmatpush1.msra.mxu0 0.0
    %2056 = vmatprep.subr.mxu0 0.0
    %2057 = vmatpush1.msra.mxu0 0.0
    %2058 = vmatprep.subr.mxu0 0.0
    %2059 = vmatpush1.msra.mxu0 0.0
    %2060 = vmatprep.subr.mxu0 0.0
    %2061 = vmatpush1.msra.mxu0 0.0
    %2062 = vmatprep.subr.mxu0 0.0
    %2063 = vmatpush1.msra.mxu0 0.0
    %2064 = vmatprep.subr.mxu0 0.0
    %2065 = vmatpush1.msra.mxu0 0.0
    %2066 = vmatprep.subr.mxu0 0.0
    %2067 = vmatpush1.msra.mxu0 0.0
    %2068 = vmatprep.subr.mxu0 0.0
    %2069 = vmatpush1.msra.mxu0 0.0
    %2070 = vmatprep.subr.mxu0 0.0
    %2071 = vmatpush1.msra.mxu0 0.0
    %2072 = vmatprep.subr.mxu0 0.0
    %2073 = vmatpush1.msra.mxu0 0.0
    %2074 = vmatprep.subr.mxu0 0.0
    %2075 = vmatpush1.msra.mxu0 0.0
    %2076 = vmatprep.subr.mxu0 0.0
    %2077 = vmatpush1.msra.mxu0 0.0
    %2078 = vmatprep.subr.mxu0 0.0
    %2079 = vmatpush1.msra.mxu0 0.0
    %2080 = vmatprep.subr.mxu0 0.0
    %2081 = vmatpush1.msra.mxu0 0.0
    %2082 = vmatprep.subr.mxu0 0.0
    %2083 = vmatpush1.msra.mxu0 0.0
    %2084 = vmatprep.subr.mxu0 0.0
    %2085 = vmatpush1.msra.mxu0 0.0
    %2086 = vmatprep.subr.mxu0 0.0
    %2087 = vmatpush1.msra.mxu0 0.0
    %2088 = vmatprep.subr.mxu0 0.0
    %2089 = vmatpush1.msra.mxu0 0.0
    %2090 = vmatprep.subr.mxu0 0.0
    %2091 = vmatpush1.msra.mxu0 0.0
    %2092 = vmatprep.subr.mxu0 0.0
    %2093 = vmatpush1.msra.mxu0 0.0
    %2094 = vmatprep.subr.mxu0 0.0
    %2095 = vmatpush1.msra.mxu0 0.0
    %2096 = vmatprep.subr.mxu0 0.0
    %2097 = vmatpush1.msra.mxu0 0.0
    %2098 = vmatprep.subr.mxu0 0.0
    %2099 = vmatpush1.msra.mxu0 0.0
    %2100 = vmatprep.subr.mxu0 0.0
    %2101 = vmatpush1.msra.mxu0 0.0
    %2102 = vmatprep.subr.mxu0 0.0
    %2103 = vmatpush1.msra.mxu0 0.0
    %2104 = vmatprep.subr.mxu0 0.0
    %2105 = vmatpush1.msra.mxu0 0.0
    %2106 = vmatprep.mubr.f32.mxu0 0.0
    %2107 = vmatmul.mubr.f32.gmra.mrb[0].mxu0 %v2040
    %v2108 = vpop.f32.mrb[0].mxu0
    %v2109 = vadd.f32 %v483, %v2108
    %v2110 = vpop.f32.mrb[0].mxu0
    %2111 = vdwg.mxu0
    %2112 = vmatprep.subr.mxu0 0.0
    %2113 = vmatpush1.msra.mxu0 %v200
    %2114 = vmatprep.subr.mxu0 0.0
    %2115 = vmatpush1.msra.mxu0 %v201
    %2116 = vmatprep.subr.mxu0 0.0
    %2117 = vmatpush1.msra.mxu0 %v202
    %2118 = vmatprep.subr.mxu0 0.0
    %2119 = vmatpush1.msra.mxu0 %v203
    %2120 = vmatprep.subr.mxu0 0.0
    %2121 = vmatpush1.msra.mxu0 0.0
    %2122 = vmatprep.subr.mxu0 0.0
    %2123 = vmatpush1.msra.mxu0 0.0
    %2124 = vmatprep.subr.mxu0 0.0
    %2125 = vmatpush1.msra.mxu0 0.0
    %2126 = vmatprep.subr.mxu0 0.0
    %2127 = vmatpush1.msra.mxu0 0.0
    %2128 = vmatprep.subr.mxu0 0.0
    %2129 = vmatpush1.msra.mxu0 0.0
    %2130 = vmatprep.subr.mxu0 0.0
    %2131 = vmatpush1.msra.mxu0 0.0
    %2132 = vmatprep.subr.mxu0 0.0
    %2133 = vmatpush1.msra.mxu0 0.0
    %2134 = vmatprep.subr.mxu0 0.0
    %2135 = vmatpush1.msra.mxu0 0.0
    %2136 = vmatprep.subr.mxu0 0.0
    %2137 = vmatpush1.msra.mxu0 0.0
    %2138 = vmatprep.subr.mxu0 0.0
    %2139 = vmatpush1.msra.mxu0 0.0
    %2140 = vmatprep.subr.mxu0 0.0
    %2141 = vmatpush1.msra.mxu0 0.0
    %2142 = vmatprep.subr.mxu0 0.0
    %2143 = vmatpush1.msra.mxu0 0.0
    %2144 = vmatprep.subr.mxu0 0.0
    %2145 = vmatpush1.msra.mxu0 0.0
    %2146 = vmatprep.subr.mxu0 0.0
    %2147 = vmatpush1.msra.mxu0 0.0
    %2148 = vmatprep.subr.mxu0 0.0
    %2149 = vmatpush1.msra.mxu0 0.0
    %2150 = vmatprep.subr.mxu0 0.0
    %2151 = vmatpush1.msra.mxu0 0.0
    %2152 = vmatprep.subr.mxu0 0.0
    %2153 = vmatpush1.msra.mxu0 0.0
    %2154 = vmatprep.subr.mxu0 0.0
    %2155 = vmatpush1.msra.mxu0 0.0
    %2156 = vmatprep.subr.mxu0 0.0
    %2157 = vmatpush1.msra.mxu0 0.0
    %2158 = vmatprep.subr.mxu0 0.0
    %2159 = vmatpush1.msra.mxu0 0.0
    %2160 = vmatprep.subr.mxu0 0.0
    %2161 = vmatpush1.msra.mxu0 0.0
    %2162 = vmatprep.subr.mxu0 0.0
    %2163 = vmatpush1.msra.mxu0 0.0
    %2164 = vmatprep.subr.mxu0 0.0
    %2165 = vmatpush1.msra.mxu0 0.0
    %2166 = vmatprep.subr.mxu0 0.0
    %2167 = vmatpush1.msra.mxu0 0.0
    %2168 = vmatprep.subr.mxu0 0.0
    %2169 = vmatpush1.msra.mxu0 0.0
    %2170 = vmatprep.subr.mxu0 0.0
    %2171 = vmatpush1.msra.mxu0 0.0
    %2172 = vmatprep.subr.mxu0 0.0
    %2173 = vmatpush1.msra.mxu0 0.0
    %2174 = vmatprep.subr.mxu0 0.0
    %2175 = vmatpush1.msra.mxu0 0.0
    %2176 = vmatprep.mubr.f32.mxu0 0.0
    %2177 = vmatmul.mubr.f32.gmra.mrb[0].mxu0 %v2040
    %v2178 = vpop.f32.mrb[0].mxu0
    %v2179 = vadd.f32 %v559, %v2178
    %v2180 = vpop.f32.mrb[0].mxu0
    %2181 = vdwg.mxu0
    %2182 = vmatprep.subr.mxu0 0.0
    %2183 = vmatpush1.msra.mxu0 %v205
    %2184 = vmatprep.subr.mxu0 0.0
    %2185 = vmatpush1.msra.mxu0 %v206
    %2186 = vmatprep.subr.mxu0 0.0
    %2187 = vmatpush1.msra.mxu0 %v207
    %2188 = vmatprep.subr.mxu0 0.0
    %2189 = vmatpush1.msra.mxu0 %v208
    %2190 = vmatprep.subr.mxu0 0.0
    %2191 = vmatpush1.msra.mxu0 0.0
    %2192 = vmatprep.subr.mxu0 0.0
    %2193 = vmatpush1.msra.mxu0 0.0
    %2194 = vmatprep.subr.mxu0 0.0
    %2195 = vmatpush1.msra.mxu0 0.0
    %2196 = vmatprep.subr.mxu0 0.0
    %2197 = vmatpush1.msra.mxu0 0.0
    %2198 = vmatprep.subr.mxu0 0.0
    %2199 = vmatpush1.msra.mxu0 0.0
    %2200 = vmatprep.subr.mxu0 0.0
    %2201 = vmatpush1.msra.mxu0 0.0
    %2202 = vmatprep.subr.mxu0 0.0
    %2203 = vmatpush1.msra.mxu0 0.0
    %2204 = vmatprep.subr.mxu0 0.0
    %2205 = vmatpush1.msra.mxu0 0.0
    %2206 = vmatprep.subr.mxu0 0.0
    %2207 = vmatpush1.msra.mxu0 0.0
    %2208 = vmatprep.subr.mxu0 0.0
    %2209 = vmatpush1.msra.mxu0 0.0
    %2210 = vmatprep.subr.mxu0 0.0
    %2211 = vmatpush1.msra.mxu0 0.0
    %2212 = vmatprep.subr.mxu0 0.0
    %2213 = vmatpush1.msra.mxu0 0.0
    %2214 = vmatprep.subr.mxu0 0.0
    %2215 = vmatpush1.msra.mxu0 0.0
    %2216 = vmatprep.subr.mxu0 0.0
    %2217 = vmatpush1.msra.mxu0 0.0
    %2218 = vmatprep.subr.mxu0 0.0
    %2219 = vmatpush1.msra.mxu0 0.0
    %2220 = vmatprep.subr.mxu0 0.0
    %2221 = vmatpush1.msra.mxu0 0.0
    %2222 = vmatprep.subr.mxu0 0.0
    %2223 = vmatpush1.msra.mxu0 0.0
    %2224 = vmatprep.subr.mxu0 0.0
    %2225 = vmatpush1.msra.mxu0 0.0
    %2226 = vmatprep.subr.mxu0 0.0
    %2227 = vmatpush1.msra.mxu0 0.0
    %2228 = vmatprep.subr.mxu0 0.0
    %2229 = vmatpush1.msra.mxu0 0.0
    %2230 = vmatprep.subr.mxu0 0.0
    %2231 = vmatpush1.msra.mxu0 0.0
    %2232 = vmatprep.subr.mxu0 0.0
    %2233 = vmatpush1.msra.mxu0 0.0
    %2234 = vmatprep.subr.mxu0 0.0
    %2235 = vmatpush1.msra.mxu0 0.0
    %2236 = vmatprep.subr.mxu0 0.0
    %2237 = vmatpush1.msra.mxu0 0.0
    %2238 = vmatprep.subr.mxu0 0.0
    %2239 = vmatpush1.msra.mxu0 0.0
    %2240 = vmatprep.subr.mxu0 0.0
    %2241 = vmatpush1.msra.mxu0 0.0
    %2242 = vmatprep.subr.mxu0 0.0
    %2243 = vmatpush1.msra.mxu0 0.0
    %2244 = vmatprep.subr.mxu0 0.0
    %2245 = vmatpush1.msra.mxu0 0.0
    %2246 = vmatprep.mubr.f32.mxu0 0.0
    %2247 = vmatmul.mubr.f32.gmra.mrb[0].mxu0 %v2040
    %v2248 = vpop.f32.mrb[0].mxu0
    %v2249 = vadd.f32 %v635, %v2248
    %v2250 = vpop.f32.mrb[0].mxu0
    %2251 = vdwg.mxu0
    %2253 = vrot.lane.b32.xlu0 %v2109, 96
    %v2254 = vpop.permute.xlu0 %2253
    %v2256 = vadd.f32 %v171, %v2254
    %v2257 = vxor.u32 %v2256, 2147483648
    %v2258 = vmul.f32 %v2257, 1.442695
    %v2259 = vpow.pop %v2258
    %v2260 = vadd.f32 %v2259, 1.0
    %v2261 = vrcp.pop %v2260
    %v2262 = vmul.f32 1.0, %v2261
    %v2263 = vadd.f32 %v173, %v2179
    %v2264 = vxor.u32 %v2263, 2147483648
    %v2265 = vmul.f32 %v2264, 1.442695
    %v2266 = vpow.pop %v2265
    %v2267 = vadd.f32 %v2266, 1.0
    %v2268 = vrcp.pop %v2267
    %v2269 = vmul.f32 1.0, %v2268
    %2271 = vrot.lane.b32.xlu0 %v2249, 96
    %v2272 = vpop.permute.xlu0 %2271
    %v2274 = vmul.f32 %v2262, %v2272
    %2276 = vrot.lane.b32.xlu0 %v2274, 64
    %v2277 = vpop.permute.xlu0 %2276
    %v2279 = vadd.f32 %v173, %v2277
    %v2280 = vtanh.pop %v2279
    %v2281 = vsub.f32 1.0, %v2269
    %2283 = vrot.lane.b32.xlu0 %v2280, 96
    %v2284 = vpop.permute.xlu0 %2283
    %v2286 = vmul.f32 %v2281, %v2284
    %v2288 = vmul.f32 %v2269, %v2039
    %v2289 = vadd.f32 %v2286, %v2288
    %v2291 = vrot.slane %v2037, 6
    %2292 = vrot.lane.b32.xlu0 %v2291, 96
    %v2293 = vpop.permute.xlu0 %2292
    %v2294 = vsel %vm91, %v2293, 0
    %2296 = vmatprep.subr.mxu0 0.0
    %2297 = vmatpush1.msra.mxu0 %v175
    %2298 = vmatprep.subr.mxu0 0.0
    %2299 = vmatpush1.msra.mxu0 %v176
    %2300 = vmatprep.subr.mxu0 0.0
    %2301 = vmatpush1.msra.mxu0 %v177
    %2302 = vmatprep.subr.mxu0 0.0
    %2303 = vmatpush1.msra.mxu0 %v178
    %2304 = vmatprep.subr.mxu0 0.0
    %2305 = vmatpush1.msra.mxu0 0.0
    %2306 = vmatprep.subr.mxu0 0.0
    %2307 = vmatpush1.msra.mxu0 0.0
    %2308 = vmatprep.subr.mxu0 0.0
    %2309 = vmatpush1.msra.mxu0 0.0
    %2310 = vmatprep.subr.mxu0 0.0
    %2311 = vmatpush1.msra.mxu0 0.0
    %2312 = vmatprep.subr.mxu0 0.0
    %2313 = vmatpush1.msra.mxu0 0.0
    %2314 = vmatprep.subr.mxu0 0.0
    %2315 = vmatpush1.msra.mxu0 0.0
    %2316 = vmatprep.subr.mxu0 0.0
    %2317 = vmatpush1.msra.mxu0 0.0
    %2318 = vmatprep.subr.mxu0 0.0
    %2319 = vmatpush1.msra.mxu0 0.0
    %2320 = vmatprep.subr.mxu0 0.0
    %2321 = vmatpush1.msra.mxu0 0.0
    %2322 = vmatprep.subr.mxu0 0.0
    %2323 = vmatpush1.msra.mxu0 0.0
    %2324 = vmatprep.subr.mxu0 0.0
    %2325 = vmatpush1.msra.mxu0 0.0
    %2326 = vmatprep.subr.mxu0 0.0
    %2327 = vmatpush1.msra.mxu0 0.0
    %2328 = vmatprep.subr.mxu0 0.0
    %2329 = vmatpush1.msra.mxu0 0.0
    %2330 = vmatprep.subr.mxu0 0.0
    %2331 = vmatpush1.msra.mxu0 0.0
    %2332 = vmatprep.subr.mxu0 0.0
    %2333 = vmatpush1.msra.mxu0 0.0
    %2334 = vmatprep.subr.mxu0 0.0
    %2335 = vmatpush1.msra.mxu0 0.0
    %2336 = vmatprep.subr.mxu0 0.0
    %2337 = vmatpush1.msra.mxu0 0.0
    %2338 = vmatprep.subr.mxu0 0.0
    %2339 = vmatpush1.msra.mxu0 0.0
    %2340 = vmatprep.subr.mxu0 0.0
    %2341 = vmatpush1.msra.mxu0 0.0
    %2342 = vmatprep.subr.mxu0 0.0
    %2343 = vmatpush1.msra.mxu0 0.0
    %2344 = vmatprep.subr.mxu0 0.0
    %2345 = vmatpush1.msra.mxu0 0.0
    %2346 = vmatprep.subr.mxu0 0.0
    %2347 = vmatpush1.msra.mxu0 0.0
    %2348 = vmatprep.subr.mxu0 0.0
    %2349 = vmatpush1.msra.mxu0 0.0
    %2350 = vmatprep.subr.mxu0 0.0
    %2351 = vmatpush1.msra.mxu0 0.0
    %2352 = vmatprep.subr.mxu0 0.0
    %2353 = vmatpush1.msra.mxu0 0.0
    %2354 = vmatprep.subr.mxu0 0.0
    %2355 = vmatpush1.msra.mxu0 0.0
    %2356 = vmatprep.subr.mxu0 0.0
    %2357 = vmatpush1.msra.mxu0 0.0
    %2358 = vmatprep.subr.mxu0 0.0
    %2359 = vmatpush1.msra.mxu0 0.0
    %2360 = vmatprep.mubr.f32.mxu0 0.0
    %2361 = vmatmul.mubr.f32.gmra.mrb[0].mxu0 %v2294
    %v2362 = vpop.f32.mrb[0].mxu0
    %v2363 = vadd.f32 %v219, %v2362
    %v2364 = vpop.f32.mrb[0].mxu0
    %2365 = vdwg.mxu0
    %2366 = vmatprep.subr.mxu0 0.0
    %2367 = vmatpush1.msra.mxu0 %v180
    %2368 = vmatprep.subr.mxu0 0.0
    %2369 = vmatpush1.msra.mxu0 %v181
    %2370 = vmatprep.subr.mxu0 0.0
    %2371 = vmatpush1.msra.mxu0 %v182
    %2372 = vmatprep.subr.mxu0 0.0
    %2373 = vmatpush1.msra.mxu0 %v183
    %2374 = vmatprep.subr.mxu0 0.0
    %2375 = vmatpush1.msra.mxu0 0.0
    %2376 = vmatprep.subr.mxu0 0.0
    %2377 = vmatpush1.msra.mxu0 0.0
    %2378 = vmatprep.subr.mxu0 0.0
    %2379 = vmatpush1.msra.mxu0 0.0
    %2380 = vmatprep.subr.mxu0 0.0
    %2381 = vmatpush1.msra.mxu0 0.0
    %2382 = vmatprep.subr.mxu0 0.0
    %2383 = vmatpush1.msra.mxu0 0.0
    %2384 = vmatprep.subr.mxu0 0.0
    %2385 = vmatpush1.msra.mxu0 0.0
    %2386 = vmatprep.subr.mxu0 0.0
    %2387 = vmatpush1.msra.mxu0 0.0
    %2388 = vmatprep.subr.mxu0 0.0
    %2389 = vmatpush1.msra.mxu0 0.0
    %2390 = vmatprep.subr.mxu0 0.0
    %2391 = vmatpush1.msra.mxu0 0.0
    %2392 = vmatprep.subr.mxu0 0.0
    %2393 = vmatpush1.msra.mxu0 0.0
    %2394 = vmatprep.subr.mxu0 0.0
    %2395 = vmatpush1.msra.mxu0 0.0
    %2396 = vmatprep.subr.mxu0 0.0
    %2397 = vmatpush1.msra.mxu0 0.0
    %2398 = vmatprep.subr.mxu0 0.0
    %2399 = vmatpush1.msra.mxu0 0.0
    %2400 = vmatprep.subr.mxu0 0.0
    %2401 = vmatpush1.msra.mxu0 0.0
    %2402 = vmatprep.subr.mxu0 0.0
    %2403 = vmatpush1.msra.mxu0 0.0
    %2404 = vmatprep.subr.mxu0 0.0
    %2405 = vmatpush1.msra.mxu0 0.0
    %2406 = vmatprep.subr.mxu0 0.0
    %2407 = vmatpush1.msra.mxu0 0.0
    %2408 = vmatprep.subr.mxu0 0.0
    %2409 = vmatpush1.msra.mxu0 0.0
    %2410 = vmatprep.subr.mxu0 0.0
    %2411 = vmatpush1.msra.mxu0 0.0
    %2412 = vmatprep.subr.mxu0 0.0
    %2413 = vmatpush1.msra.mxu0 0.0
    %2414 = vmatprep.subr.mxu0 0.0
    %2415 = vmatpush1.msra.mxu0 0.0
    %2416 = vmatprep.subr.mxu0 0.0
    %2417 = vmatpush1.msra.mxu0 0.0
    %2418 = vmatprep.subr.mxu0 0.0
    %2419 = vmatpush1.msra.mxu0 0.0
    %2420 = vmatprep.subr.mxu0 0.0
    %2421 = vmatpush1.msra.mxu0 0.0
    %2422 = vmatprep.subr.mxu0 0.0
    %2423 = vmatpush1.msra.mxu0 0.0
    %2424 = vmatprep.subr.mxu0 0.0
    %2425 = vmatpush1.msra.mxu0 0.0
    %2426 = vmatprep.subr.mxu0 0.0
    %2427 = vmatpush1.msra.mxu0 0.0
    %2428 = vmatprep.subr.mxu0 0.0
    %2429 = vmatpush1.msra.mxu0 0.0
    %2430 = vmatprep.mubr.f32.mxu0 0.0
    %2431 = vmatmul.mubr.f32.gmra.mrb[0].mxu0 %v2294
    %v2432 = vpop.f32.mrb[0].mxu0
    %v2433 = vadd.f32 %v298, %v2432
    %v2434 = vpop.f32.mrb[0].mxu0
    %2435 = vdwg.mxu0
    %2436 = vmatprep.subr.mxu0 0.0
    %2437 = vmatpush1.msra.mxu0 %v185
    %2438 = vmatprep.subr.mxu0 0.0
    %2439 = vmatpush1.msra.mxu0 %v186
    %2440 = vmatprep.subr.mxu0 0.0
    %2441 = vmatpush1.msra.mxu0 %v187
    %2442 = vmatprep.subr.mxu0 0.0
    %2443 = vmatpush1.msra.mxu0 %v188
    %2444 = vmatprep.subr.mxu0 0.0
    %2445 = vmatpush1.msra.mxu0 0.0
    %2446 = vmatprep.subr.mxu0 0.0
    %2447 = vmatpush1.msra.mxu0 0.0
    %2448 = vmatprep.subr.mxu0 0.0
    %2449 = vmatpush1.msra.mxu0 0.0
    %2450 = vmatprep.subr.mxu0 0.0
    %2451 = vmatpush1.msra.mxu0 0.0
    %2452 = vmatprep.subr.mxu0 0.0
    %2453 = vmatpush1.msra.mxu0 0.0
    %2454 = vmatprep.subr.mxu0 0.0
    %2455 = vmatpush1.msra.mxu0 0.0
    %2456 = vmatprep.subr.mxu0 0.0
    %2457 = vmatpush1.msra.mxu0 0.0
    %2458 = vmatprep.subr.mxu0 0.0
    %2459 = vmatpush1.msra.mxu0 0.0
    %2460 = vmatprep.subr.mxu0 0.0
    %2461 = vmatpush1.msra.mxu0 0.0
    %2462 = vmatprep.subr.mxu0 0.0
    %2463 = vmatpush1.msra.mxu0 0.0
    %2464 = vmatprep.subr.mxu0 0.0
    %2465 = vmatpush1.msra.mxu0 0.0
    %2466 = vmatprep.subr.mxu0 0.0
    %2467 = vmatpush1.msra.mxu0 0.0
    %2468 = vmatprep.subr.mxu0 0.0
    %2469 = vmatpush1.msra.mxu0 0.0
    %2470 = vmatprep.subr.mxu0 0.0
    %2471 = vmatpush1.msra.mxu0 0.0
    %2472 = vmatprep.subr.mxu0 0.0
    %2473 = vmatpush1.msra.mxu0 0.0
    %2474 = vmatprep.subr.mxu0 0.0
    %2475 = vmatpush1.msra.mxu0 0.0
    %2476 = vmatprep.subr.mxu0 0.0
    %2477 = vmatpush1.msra.mxu0 0.0
    %2478 = vmatprep.subr.mxu0 0.0
    %2479 = vmatpush1.msra.mxu0 0.0
    %2480 = vmatprep.subr.mxu0 0.0
    %2481 = vmatpush1.msra.mxu0 0.0
    %2482 = vmatprep.subr.mxu0 0.0
    %2483 = vmatpush1.msra.mxu0 0.0
    %2484 = vmatprep.subr.mxu0 0.0
    %2485 = vmatpush1.msra.mxu0 0.0
    %2486 = vmatprep.subr.mxu0 0.0
    %2487 = vmatpush1.msra.mxu0 0.0
    %2488 = vmatprep.subr.mxu0 0.0
    %2489 = vmatpush1.msra.mxu0 0.0
    %2490 = vmatprep.subr.mxu0 0.0
    %2491 = vmatpush1.msra.mxu0 0.0
    %2492 = vmatprep.subr.mxu0 0.0
    %2493 = vmatpush1.msra.mxu0 0.0
    %2494 = vmatprep.subr.mxu0 0.0
    %2495 = vmatpush1.msra.mxu0 0.0
    %2496 = vmatprep.subr.mxu0 0.0
    %2497 = vmatpush1.msra.mxu0 0.0
    %2498 = vmatprep.subr.mxu0 0.0
    %2499 = vmatpush1.msra.mxu0 0.0
    %2500 = vmatprep.mubr.f32.mxu0 0.0
    %2501 = vmatmul.mubr.f32.gmra.mrb[0].mxu0 %v2294
    %v2502 = vpop.f32.mrb[0].mxu0
    %v2503 = vadd.f32 %v374, %v2502
    %v2504 = vpop.f32.mrb[0].mxu0
    %2505 = vdwg.mxu0
    %v2506 = vadd.f32 %v171, %v2363
    %v2507 = vxor.u32 %v2506, 2147483648
    %v2508 = vmul.f32 %v2507, 1.442695
    %v2509 = vpow.pop %v2508
    %v2510 = vadd.f32 %v2509, 1.0
    %v2511 = vrcp.pop %v2510
    %v2512 = vmul.f32 1.0, %v2511
    %2514 = vrot.lane.b32.xlu0 %v2433, 32
    %v2515 = vpop.permute.xlu0 %2514
    %v2517 = vadd.f32 %v171, %v2515
    %v2518 = vxor.u32 %v2517, 2147483648
    %v2519 = vmul.f32 %v2518, 1.442695
    %v2520 = vpow.pop %v2519
    %v2521 = vadd.f32 %v2520, 1.0
    %v2522 = vrcp.pop %v2521
    %v2523 = vmul.f32 1.0, %v2522
    %v2524 = vmul.f32 %v2512, %v2503
    %2526 = vrot.lane.b32.xlu0 %v2524, 64
    %v2527 = vpop.permute.xlu0 %2526
    %v2529 = vadd.f32 %v171, %v2527
    %v2530 = vtanh.pop %v2529
    %v2531 = vsub.f32 1.0, %v2523
    %2533 = vrot.lane.b32.xlu0 %v2530, 96
    %v2534 = vpop.permute.xlu0 %2533
    %v2536 = vmul.f32 %v2531, %v2534
    %v2538 = vmul.f32 %v2523, %v2291
    %v2539 = vadd.f32 %v2536, %v2538
    %v2541 = vsel %vm91, %v2289, 0
    %2543 = vmatprep.subr.mxu0 0.0
    %2544 = vmatpush1.msra.mxu0 %v195
    %2545 = vmatprep.subr.mxu0 0.0
    %2546 = vmatpush1.msra.mxu0 %v196
    %2547 = vmatprep.subr.mxu0 0.0
    %2548 = vmatpush1.msra.mxu0 %v197
    %2549 = vmatprep.subr.mxu0 0.0
    %2550 = vmatpush1.msra.mxu0 %v198
    %2551 = vmatprep.subr.mxu0 0.0
    %2552 = vmatpush1.msra.mxu0 0.0
    %2553 = vmatprep.subr.mxu0 0.0
    %2554 = vmatpush1.msra.mxu0 0.0
    %2555 = vmatprep.subr.mxu0 0.0
    %2556 = vmatpush1.msra.mxu0 0.0
    %2557 = vmatprep.subr.mxu0 0.0
    %2558 = vmatpush1.msra.mxu0 0.0
    %2559 = vmatprep.subr.mxu0 0.0
    %2560 = vmatpush1.msra.mxu0 0.0
    %2561 = vmatprep.subr.mxu0 0.0
    %2562 = vmatpush1.msra.mxu0 0.0
    %2563 = vmatprep.subr.mxu0 0.0
    %2564 = vmatpush1.msra.mxu0 0.0
    %2565 = vmatprep.subr.mxu0 0.0
    %2566 = vmatpush1.msra.mxu0 0.0
    %2567 = vmatprep.subr.mxu0 0.0
    %2568 = vmatpush1.msra.mxu0 0.0
    %2569 = vmatprep.subr.mxu0 0.0
    %2570 = vmatpush1.msra.mxu0 0.0
    %2571 = vmatprep.subr.mxu0 0.0
    %2572 = vmatpush1.msra.mxu0 0.0
    %2573 = vmatprep.subr.mxu0 0.0
    %2574 = vmatpush1.msra.mxu0 0.0
    %2575 = vmatprep.subr.mxu0 0.0
    %2576 = vmatpush1.msra.mxu0 0.0
    %2577 = vmatprep.subr.mxu0 0.0
    %2578 = vmatpush1.msra.mxu0 0.0
    %2579 = vmatprep.subr.mxu0 0.0
    %2580 = vmatpush1.msra.mxu0 0.0
    %2581 = vmatprep.subr.mxu0 0.0
    %2582 = vmatpush1.msra.mxu0 0.0
    %2583 = vmatprep.subr.mxu0 0.0
    %2584 = vmatpush1.msra.mxu0 0.0
    %2585 = vmatprep.subr.mxu0 0.0
    %2586 = vmatpush1.msra.mxu0 0.0
    %2587 = vmatprep.subr.mxu0 0.0
    %2588 = vmatpush1.msra.mxu0 0.0
    %2589 = vmatprep.subr.mxu0 0.0
    %2590 = vmatpush1.msra.mxu0 0.0
    %2591 = vmatprep.subr.mxu0 0.0
    %2592 = vmatpush1.msra.mxu0 0.0
    %2593 = vmatprep.subr.mxu0 0.0
    %2594 = vmatpush1.msra.mxu0 0.0
    %2595 = vmatprep.subr.mxu0 0.0
    %2596 = vmatpush1.msra.mxu0 0.0
    %2597 = vmatprep.subr.mxu0 0.0
    %2598 = vmatpush1.msra.mxu0 0.0
    %2599 = vmatprep.subr.mxu0 0.0
    %2600 = vmatpush1.msra.mxu0 0.0
    %2601 = vmatprep.subr.mxu0 0.0
    %2602 = vmatpush1.msra.mxu0 0.0
    %2603 = vmatprep.subr.mxu0 0.0
    %2604 = vmatpush1.msra.mxu0 0.0
    %2605 = vmatprep.subr.mxu0 0.0
    %2606 = vmatpush1.msra.mxu0 0.0
    %2607 = vmatprep.mubr.f32.mxu0 0.0
    %2608 = vmatmul.mubr.f32.gmra.mrb[0].mxu0 %v2541
    %v2609 = vpop.f32.mrb[0].mxu0
    %v2610 = vadd.f32 %v483, %v2609
    %v2611 = vpop.f32.mrb[0].mxu0
    %2612 = vdwg.mxu0
    %2613 = vmatprep.subr.mxu0 0.0
    %2614 = vmatpush1.msra.mxu0 %v200
    %2615 = vmatprep.subr.mxu0 0.0
    %2616 = vmatpush1.msra.mxu0 %v201
    %2617 = vmatprep.subr.mxu0 0.0
    %2618 = vmatpush1.msra.mxu0 %v202
    %2619 = vmatprep.subr.mxu0 0.0
    %2620 = vmatpush1.msra.mxu0 %v203
    %2621 = vmatprep.subr.mxu0 0.0
    %2622 = vmatpush1.msra.mxu0 0.0
    %2623 = vmatprep.subr.mxu0 0.0
    %2624 = vmatpush1.msra.mxu0 0.0
    %2625 = vmatprep.subr.mxu0 0.0
    %2626 = vmatpush1.msra.mxu0 0.0
    %2627 = vmatprep.subr.mxu0 0.0
    %2628 = vmatpush1.msra.mxu0 0.0
    %2629 = vmatprep.subr.mxu0 0.0
    %2630 = vmatpush1.msra.mxu0 0.0
    %2631 = vmatprep.subr.mxu0 0.0
    %2632 = vmatpush1.msra.mxu0 0.0
    %2633 = vmatprep.subr.mxu0 0.0
    %2634 = vmatpush1.msra.mxu0 0.0
    %2635 = vmatprep.subr.mxu0 0.0
    %2636 = vmatpush1.msra.mxu0 0.0
    %2637 = vmatprep.subr.mxu0 0.0
    %2638 = vmatpush1.msra.mxu0 0.0
    %2639 = vmatprep.subr.mxu0 0.0
    %2640 = vmatpush1.msra.mxu0 0.0
    %2641 = vmatprep.subr.mxu0 0.0
    %2642 = vmatpush1.msra.mxu0 0.0
    %2643 = vmatprep.subr.mxu0 0.0
    %2644 = vmatpush1.msra.mxu0 0.0
    %2645 = vmatprep.subr.mxu0 0.0
    %2646 = vmatpush1.msra.mxu0 0.0
    %2647 = vmatprep.subr.mxu0 0.0
    %2648 = vmatpush1.msra.mxu0 0.0
    %2649 = vmatprep.subr.mxu0 0.0
    %2650 = vmatpush1.msra.mxu0 0.0
    %2651 = vmatprep.subr.mxu0 0.0
    %2652 = vmatpush1.msra.mxu0 0.0
    %2653 = vmatprep.subr.mxu0 0.0
    %2654 = vmatpush1.msra.mxu0 0.0
    %2655 = vmatprep.subr.mxu0 0.0
    %2656 = vmatpush1.msra.mxu0 0.0
    %2657 = vmatprep.subr.mxu0 0.0
    %2658 = vmatpush1.msra.mxu0 0.0
    %2659 = vmatprep.subr.mxu0 0.0
    %2660 = vmatpush1.msra.mxu0 0.0
    %2661 = vmatprep.subr.mxu0 0.0
    %2662 = vmatpush1.msra.mxu0 0.0
    %2663 = vmatprep.subr.mxu0 0.0
    %2664 = vmatpush1.msra.mxu0 0.0
    %2665 = vmatprep.subr.mxu0 0.0
    %2666 = vmatpush1.msra.mxu0 0.0
    %2667 = vmatprep.subr.mxu0 0.0
    %2668 = vmatpush1.msra.mxu0 0.0
    %2669 = vmatprep.subr.mxu0 0.0
    %2670 = vmatpush1.msra.mxu0 0.0
    %2671 = vmatprep.subr.mxu0 0.0
    %2672 = vmatpush1.msra.mxu0 0.0
    %2673 = vmatprep.subr.mxu0 0.0
    %2674 = vmatpush1.msra.mxu0 0.0
    %2675 = vmatprep.subr.mxu0 0.0
    %2676 = vmatpush1.msra.mxu0 0.0
    %2677 = vmatprep.mubr.f32.mxu0 0.0
    %2678 = vmatmul.mubr.f32.gmra.mrb[0].mxu0 %v2541
    %v2679 = vpop.f32.mrb[0].mxu0
    %v2680 = vadd.f32 %v559, %v2679
    %v2681 = vpop.f32.mrb[0].mxu0
    %2682 = vdwg.mxu0
    %2683 = vmatprep.subr.mxu0 0.0
    %2684 = vmatpush1.msra.mxu0 %v205
    %2685 = vmatprep.subr.mxu0 0.0
    %2686 = vmatpush1.msra.mxu0 %v206
    %2687 = vmatprep.subr.mxu0 0.0
    %2688 = vmatpush1.msra.mxu0 %v207
    %2689 = vmatprep.subr.mxu0 0.0
    %2690 = vmatpush1.msra.mxu0 %v208
    %2691 = vmatprep.subr.mxu0 0.0
    %2692 = vmatpush1.msra.mxu0 0.0
    %2693 = vmatprep.subr.mxu0 0.0
    %2694 = vmatpush1.msra.mxu0 0.0
    %2695 = vmatprep.subr.mxu0 0.0
    %2696 = vmatpush1.msra.mxu0 0.0
    %2697 = vmatprep.subr.mxu0 0.0
    %2698 = vmatpush1.msra.mxu0 0.0
    %2699 = vmatprep.subr.mxu0 0.0
    %2700 = vmatpush1.msra.mxu0 0.0
    %2701 = vmatprep.subr.mxu0 0.0
    %2702 = vmatpush1.msra.mxu0 0.0
    %2703 = vmatprep.subr.mxu0 0.0
    %2704 = vmatpush1.msra.mxu0 0.0
    %2705 = vmatprep.subr.mxu0 0.0
    %2706 = vmatpush1.msra.mxu0 0.0
    %2707 = vmatprep.subr.mxu0 0.0
    %2708 = vmatpush1.msra.mxu0 0.0
    %2709 = vmatprep.subr.mxu0 0.0
    %2710 = vmatpush1.msra.mxu0 0.0
    %2711 = vmatprep.subr.mxu0 0.0
    %2712 = vmatpush1.msra.mxu0 0.0
    %2713 = vmatprep.subr.mxu0 0.0
    %2714 = vmatpush1.msra.mxu0 0.0
    %2715 = vmatprep.subr.mxu0 0.0
    %2716 = vmatpush1.msra.mxu0 0.0
    %2717 = vmatprep.subr.mxu0 0.0
    %2718 = vmatpush1.msra.mxu0 0.0
    %2719 = vmatprep.subr.mxu0 0.0
    %2720 = vmatpush1.msra.mxu0 0.0
    %2721 = vmatprep.subr.mxu0 0.0
    %2722 = vmatpush1.msra.mxu0 0.0
    %2723 = vmatprep.subr.mxu0 0.0
    %2724 = vmatpush1.msra.mxu0 0.0
    %2725 = vmatprep.subr.mxu0 0.0
    %2726 = vmatpush1.msra.mxu0 0.0
    %2727 = vmatprep.subr.mxu0 0.0
    %2728 = vmatpush1.msra.mxu0 0.0
    %2729 = vmatprep.subr.mxu0 0.0
    %2730 = vmatpush1.msra.mxu0 0.0
    %2731 = vmatprep.subr.mxu0 0.0
    %2732 = vmatpush1.msra.mxu0 0.0
    %2733 = vmatprep.subr.mxu0 0.0
    %2734 = vmatpush1.msra.mxu0 0.0
    %2735 = vmatprep.subr.mxu0 0.0
    %2736 = vmatpush1.msra.mxu0 0.0
    %2737 = vmatprep.subr.mxu0 0.0
    %2738 = vmatpush1.msra.mxu0 0.0
    %2739 = vmatprep.subr.mxu0 0.0
    %2740 = vmatpush1.msra.mxu0 0.0
    %2741 = vmatprep.subr.mxu0 0.0
    %2742 = vmatpush1.msra.mxu0 0.0
    %2743 = vmatprep.subr.mxu0 0.0
    %2744 = vmatpush1.msra.mxu0 0.0
    %2745 = vmatprep.subr.mxu0 0.0
    %2746 = vmatpush1.msra.mxu0 0.0
    %2747 = vmatprep.mubr.f32.mxu0 0.0
    %2748 = vmatmul.mubr.f32.gmra.mrb[0].mxu0 %v2541
    %v2749 = vpop.f32.mrb[0].mxu0
    %v2750 = vadd.f32 %v635, %v2749
    %v2751 = vpop.f32.mrb[0].mxu0
    %2752 = vdwg.mxu0
    %v2754 = vrot.slane %v2610, 2
    %2755 = vrot.lane.b32.xlu0 %v2754, 96
    %v2756 = vpop.permute.xlu0 %2755
    %v2758 = vadd.f32 %v165, %v2756
    %v2759 = vxor.u32 %v2758, 2147483648
    %v2760 = vmul.f32 %v2759, 1.442695
    %v2761 = vpow.pop %v2760
    %v2762 = vadd.f32 %v2761, 1.0
    %v2763 = vrcp.pop %v2762
    %v2764 = vmul.f32 1.0, %v2763
    %v2766 = vrot.slane %v2680, 2
    %v2768 = vadd.f32 %v167, %v2766
    %v2769 = vxor.u32 %v2768, 2147483648
    %v2770 = vmul.f32 %v2769, 1.442695
    %v2771 = vpow.pop %v2770
    %v2772 = vadd.f32 %v2771, 1.0
    %v2773 = vrcp.pop %v2772
    %v2774 = vmul.f32 1.0, %v2773
    %v2776 = vrot.slane %v2750, 2
    %2777 = vrot.lane.b32.xlu0 %v2776, 96
    %v2778 = vpop.permute.xlu0 %2777
    %v2780 = vmul.f32 %v2764, %v2778
    %2782 = vrot.lane.b32.xlu0 %v2780, 64
    %v2783 = vpop.permute.xlu0 %2782
    %v2785 = vadd.f32 %v167, %v2783
    %v2786 = vtanh.pop %v2785
    %v2787 = vsub.f32 1.0, %v2774
    %2789 = vrot.lane.b32.xlu0 %v2786, 96
    %v2790 = vpop.permute.xlu0 %2789
    %v2792 = vmul.f32 %v2787, %v2790
    %v2793 = vrot.slane %v2289, 2
    %v2795 = vmul.f32 %v2774, %v2793
    %v2796 = vadd.f32 %v2792, %v2795
    %2798 = vrot.lane.b32.xlu0 %v2539, 96
    %v2799 = vpop.permute.xlu0 %2798
    %v2800 = vsel %vm91, %v2799, 0
    %2802 = vmatprep.subr.mxu0 0.0
    %2803 = vmatpush1.msra.mxu0 %v175
    %2804 = vmatprep.subr.mxu0 0.0
    %2805 = vmatpush1.msra.mxu0 %v176
    %2806 = vmatprep.subr.mxu0 0.0
    %2807 = vmatpush1.msra.mxu0 %v177
    %2808 = vmatprep.subr.mxu0 0.0
    %2809 = vmatpush1.msra.mxu0 %v178
    %2810 = vmatprep.subr.mxu0 0.0
    %2811 = vmatpush1.msra.mxu0 0.0
    %2812 = vmatprep.subr.mxu0 0.0
    %2813 = vmatpush1.msra.mxu0 0.0
    %2814 = vmatprep.subr.mxu0 0.0
    %2815 = vmatpush1.msra.mxu0 0.0
    %2816 = vmatprep.subr.mxu0 0.0
    %2817 = vmatpush1.msra.mxu0 0.0
    %2818 = vmatprep.subr.mxu0 0.0
    %2819 = vmatpush1.msra.mxu0 0.0
    %2820 = vmatprep.subr.mxu0 0.0
    %2821 = vmatpush1.msra.mxu0 0.0
    %2822 = vmatprep.subr.mxu0 0.0
    %2823 = vmatpush1.msra.mxu0 0.0
    %2824 = vmatprep.subr.mxu0 0.0
    %2825 = vmatpush1.msra.mxu0 0.0
    %2826 = vmatprep.subr.mxu0 0.0
    %2827 = vmatpush1.msra.mxu0 0.0
    %2828 = vmatprep.subr.mxu0 0.0
    %2829 = vmatpush1.msra.mxu0 0.0
    %2830 = vmatprep.subr.mxu0 0.0
    %2831 = vmatpush1.msra.mxu0 0.0
    %2832 = vmatprep.subr.mxu0 0.0
    %2833 = vmatpush1.msra.mxu0 0.0
    %2834 = vmatprep.subr.mxu0 0.0
    %2835 = vmatpush1.msra.mxu0 0.0
    %2836 = vmatprep.subr.mxu0 0.0
    %2837 = vmatpush1.msra.mxu0 0.0
    %2838 = vmatprep.subr.mxu0 0.0
    %2839 = vmatpush1.msra.mxu0 0.0
    %2840 = vmatprep.subr.mxu0 0.0
    %2841 = vmatpush1.msra.mxu0 0.0
    %2842 = vmatprep.subr.mxu0 0.0
    %2843 = vmatpush1.msra.mxu0 0.0
    %2844 = vmatprep.subr.mxu0 0.0
    %2845 = vmatpush1.msra.mxu0 0.0
    %2846 = vmatprep.subr.mxu0 0.0
    %2847 = vmatpush1.msra.mxu0 0.0
    %2848 = vmatprep.subr.mxu0 0.0
    %2849 = vmatpush1.msra.mxu0 0.0
    %2850 = vmatprep.subr.mxu0 0.0
    %2851 = vmatpush1.msra.mxu0 0.0
    %2852 = vmatprep.subr.mxu0 0.0
    %2853 = vmatpush1.msra.mxu0 0.0
    %2854 = vmatprep.subr.mxu0 0.0
    %2855 = vmatpush1.msra.mxu0 0.0
    %2856 = vmatprep.subr.mxu0 0.0
    %2857 = vmatpush1.msra.mxu0 0.0
    %2858 = vmatprep.subr.mxu0 0.0
    %2859 = vmatpush1.msra.mxu0 0.0
    %2860 = vmatprep.subr.mxu0 0.0
    %2861 = vmatpush1.msra.mxu0 0.0
    %2862 = vmatprep.subr.mxu0 0.0
    %2863 = vmatpush1.msra.mxu0 0.0
    %2864 = vmatprep.subr.mxu0 0.0
    %2865 = vmatpush1.msra.mxu0 0.0
    %2866 = vmatprep.mubr.f32.mxu0 0.0
    %2867 = vmatmul.mubr.f32.gmra.mrb[0].mxu0 %v2800
    %v2868 = vpop.f32.mrb[0].mxu0
    %v2869 = vadd.f32 %v219, %v2868
    %v2870 = vpop.f32.mrb[0].mxu0
    %2871 = vdwg.mxu0
    %2872 = vmatprep.subr.mxu0 0.0
    %2873 = vmatpush1.msra.mxu0 %v180
    %2874 = vmatprep.subr.mxu0 0.0
    %2875 = vmatpush1.msra.mxu0 %v181
    %2876 = vmatprep.subr.mxu0 0.0
    %2877 = vmatpush1.msra.mxu0 %v182
    %2878 = vmatprep.subr.mxu0 0.0
    %2879 = vmatpush1.msra.mxu0 %v183
    %2880 = vmatprep.subr.mxu0 0.0
    %2881 = vmatpush1.msra.mxu0 0.0
    %2882 = vmatprep.subr.mxu0 0.0
    %2883 = vmatpush1.msra.mxu0 0.0
    %2884 = vmatprep.subr.mxu0 0.0
    %2885 = vmatpush1.msra.mxu0 0.0
    %2886 = vmatprep.subr.mxu0 0.0
    %2887 = vmatpush1.msra.mxu0 0.0
    %2888 = vmatprep.subr.mxu0 0.0
    %2889 = vmatpush1.msra.mxu0 0.0
    %2890 = vmatprep.subr.mxu0 0.0
    %2891 = vmatpush1.msra.mxu0 0.0
    %2892 = vmatprep.subr.mxu0 0.0
    %2893 = vmatpush1.msra.mxu0 0.0
    %2894 = vmatprep.subr.mxu0 0.0
    %2895 = vmatpush1.msra.mxu0 0.0
    %2896 = vmatprep.subr.mxu0 0.0
    %2897 = vmatpush1.msra.mxu0 0.0
    %2898 = vmatprep.subr.mxu0 0.0
    %2899 = vmatpush1.msra.mxu0 0.0
    %2900 = vmatprep.subr.mxu0 0.0
    %2901 = vmatpush1.msra.mxu0 0.0
    %2902 = vmatprep.subr.mxu0 0.0
    %2903 = vmatpush1.msra.mxu0 0.0
    %2904 = vmatprep.subr.mxu0 0.0
    %2905 = vmatpush1.msra.mxu0 0.0
    %2906 = vmatprep.subr.mxu0 0.0
    %2907 = vmatpush1.msra.mxu0 0.0
    %2908 = vmatprep.subr.mxu0 0.0
    %2909 = vmatpush1.msra.mxu0 0.0
    %2910 = vmatprep.subr.mxu0 0.0
    %2911 = vmatpush1.msra.mxu0 0.0
    %2912 = vmatprep.subr.mxu0 0.0
    %2913 = vmatpush1.msra.mxu0 0.0
    %2914 = vmatprep.subr.mxu0 0.0
    %2915 = vmatpush1.msra.mxu0 0.0
    %2916 = vmatprep.subr.mxu0 0.0
    %2917 = vmatpush1.msra.mxu0 0.0
    %2918 = vmatprep.subr.mxu0 0.0
    %2919 = vmatpush1.msra.mxu0 0.0
    %2920 = vmatprep.subr.mxu0 0.0
    %2921 = vmatpush1.msra.mxu0 0.0
    %2922 = vmatprep.subr.mxu0 0.0
    %2923 = vmatpush1.msra.mxu0 0.0
    %2924 = vmatprep.subr.mxu0 0.0
    %2925 = vmatpush1.msra.mxu0 0.0
    %2926 = vmatprep.subr.mxu0 0.0
    %2927 = vmatpush1.msra.mxu0 0.0
    %2928 = vmatprep.subr.mxu0 0.0
    %2929 = vmatpush1.msra.mxu0 0.0
    %2930 = vmatprep.subr.mxu0 0.0
    %2931 = vmatpush1.msra.mxu0 0.0
    %2932 = vmatprep.subr.mxu0 0.0
    %2933 = vmatpush1.msra.mxu0 0.0
    %2934 = vmatprep.subr.mxu0 0.0
    %2935 = vmatpush1.msra.mxu0 0.0
    %2936 = vmatprep.mubr.f32.mxu0 0.0
    %2937 = vmatmul.mubr.f32.gmra.mrb[0].mxu0 %v2800
    %v2938 = vpop.f32.mrb[0].mxu0
    %v2939 = vadd.f32 %v298, %v2938
    %v2940 = vpop.f32.mrb[0].mxu0
    %2941 = vdwg.mxu0
    %2942 = vmatprep.subr.mxu0 0.0
    %2943 = vmatpush1.msra.mxu0 %v185
    %2944 = vmatprep.subr.mxu0 0.0
    %2945 = vmatpush1.msra.mxu0 %v186
    %2946 = vmatprep.subr.mxu0 0.0
    %2947 = vmatpush1.msra.mxu0 %v187
    %2948 = vmatprep.subr.mxu0 0.0
    %2949 = vmatpush1.msra.mxu0 %v188
    %2950 = vmatprep.subr.mxu0 0.0
    %2951 = vmatpush1.msra.mxu0 0.0
    %2952 = vmatprep.subr.mxu0 0.0
    %2953 = vmatpush1.msra.mxu0 0.0
    %2954 = vmatprep.subr.mxu0 0.0
    %2955 = vmatpush1.msra.mxu0 0.0
    %2956 = vmatprep.subr.mxu0 0.0
    %2957 = vmatpush1.msra.mxu0 0.0
    %2958 = vmatprep.subr.mxu0 0.0
    %2959 = vmatpush1.msra.mxu0 0.0
    %2960 = vmatprep.subr.mxu0 0.0
    %2961 = vmatpush1.msra.mxu0 0.0
    %2962 = vmatprep.subr.mxu0 0.0
    %2963 = vmatpush1.msra.mxu0 0.0
    %2964 = vmatprep.subr.mxu0 0.0
    %2965 = vmatpush1.msra.mxu0 0.0
    %2966 = vmatprep.subr.mxu0 0.0
    %2967 = vmatpush1.msra.mxu0 0.0
    %2968 = vmatprep.subr.mxu0 0.0
    %2969 = vmatpush1.msra.mxu0 0.0
    %2970 = vmatprep.subr.mxu0 0.0
    %2971 = vmatpush1.msra.mxu0 0.0
    %2972 = vmatprep.subr.mxu0 0.0
    %2973 = vmatpush1.msra.mxu0 0.0
    %2974 = vmatprep.subr.mxu0 0.0
    %2975 = vmatpush1.msra.mxu0 0.0
    %2976 = vmatprep.subr.mxu0 0.0
    %2977 = vmatpush1.msra.mxu0 0.0
    %2978 = vmatprep.subr.mxu0 0.0
    %2979 = vmatpush1.msra.mxu0 0.0
    %2980 = vmatprep.subr.mxu0 0.0
    %2981 = vmatpush1.msra.mxu0 0.0
    %2982 = vmatprep.subr.mxu0 0.0
    %2983 = vmatpush1.msra.mxu0 0.0
    %2984 = vmatprep.subr.mxu0 0.0
    %2985 = vmatpush1.msra.mxu0 0.0
    %2986 = vmatprep.subr.mxu0 0.0
    %2987 = vmatpush1.msra.mxu0 0.0
    %2988 = vmatprep.subr.mxu0 0.0
    %2989 = vmatpush1.msra.mxu0 0.0
    %2990 = vmatprep.subr.mxu0 0.0
    %2991 = vmatpush1.msra.mxu0 0.0
    %2992 = vmatprep.subr.mxu0 0.0
    %2993 = vmatpush1.msra.mxu0 0.0
    %2994 = vmatprep.subr.mxu0 0.0
    %2995 = vmatpush1.msra.mxu0 0.0
    %2996 = vmatprep.subr.mxu0 0.0
    %2997 = vmatpush1.msra.mxu0 0.0
    %2998 = vmatprep.subr.mxu0 0.0
    %2999 = vmatpush1.msra.mxu0 0.0
    %3000 = vmatprep.subr.mxu0 0.0
    %3001 = vmatpush1.msra.mxu0 0.0
    %3002 = vmatprep.subr.mxu0 0.0
    %3003 = vmatpush1.msra.mxu0 0.0
    %3004 = vmatprep.subr.mxu0 0.0
    %3005 = vmatpush1.msra.mxu0 0.0
    %3006 = vmatprep.mubr.f32.mxu0 0.0
    %3007 = vmatmul.mubr.f32.gmra.mrb[0].mxu0 %v2800
    %v3008 = vpop.f32.mrb[0].mxu0
    %v3009 = vadd.f32 %v374, %v3008
    %v3010 = vpop.f32.mrb[0].mxu0
    %3011 = vdwg.mxu0
    %v3013 = vrot.slane %v2869, 6
    %v3015 = vadd.f32 %v171, %v3013
    %v3016 = vxor.u32 %v3015, 2147483648
    %v3017 = vmul.f32 %v3016, 1.442695
    %v3018 = vpow.pop %v3017
    %v3019 = vadd.f32 %v3018, 1.0
    %v3020 = vrcp.pop %v3019
    %v3021 = vmul.f32 1.0, %v3020
    %v3023 = vrot.slane %v2939, 6
    %3024 = vrot.lane.b32.xlu0 %v3023, 32
    %v3025 = vpop.permute.xlu0 %3024
    %v3027 = vadd.f32 %v171, %v3025
    %v3028 = vxor.u32 %v3027, 2147483648
    %v3029 = vmul.f32 %v3028, 1.442695
    %v3030 = vpow.pop %v3029
    %v3031 = vadd.f32 %v3030, 1.0
    %v3032 = vrcp.pop %v3031
    %v3033 = vmul.f32 1.0, %v3032
    %v3035 = vrot.slane %v3009, 6
    %v3037 = vmul.f32 %v3021, %v3035
    %3039 = vrot.lane.b32.xlu0 %v3037, 64
    %v3040 = vpop.permute.xlu0 %3039
    %v3042 = vadd.f32 %v171, %v3040
    %v3043 = vtanh.pop %v3042
    %v3044 = vsub.f32 1.0, %v3033
    %3046 = vrot.lane.b32.xlu0 %v3043, 96
    %v3047 = vpop.permute.xlu0 %3046
    %v3049 = vmul.f32 %v3044, %v3047
    %v3050 = vrot.slane %v2539, 6
    %v3052 = vmul.f32 %v3033, %v3050
    %v3053 = vadd.f32 %v3049, %v3052
    %v3055 = vrot.slane %v2796, 6
    %v3056 = vsel %vm91, %v3055, 0
    %3058 = vmatprep.subr.mxu0 0.0
    %3059 = vmatpush1.msra.mxu0 %v195
    %3060 = vmatprep.subr.mxu0 0.0
    %3061 = vmatpush1.msra.mxu0 %v196
    %3062 = vmatprep.subr.mxu0 0.0
    %3063 = vmatpush1.msra.mxu0 %v197
    %3064 = vmatprep.subr.mxu0 0.0
    %3065 = vmatpush1.msra.mxu0 %v198
    %3066 = vmatprep.subr.mxu0 0.0
    %3067 = vmatpush1.msra.mxu0 0.0
    %3068 = vmatprep.subr.mxu0 0.0
    %3069 = vmatpush1.msra.mxu0 0.0
    %3070 = vmatprep.subr.mxu0 0.0
    %3071 = vmatpush1.msra.mxu0 0.0
    %3072 = vmatprep.subr.mxu0 0.0
    %3073 = vmatpush1.msra.mxu0 0.0
    %3074 = vmatprep.subr.mxu0 0.0
    %3075 = vmatpush1.msra.mxu0 0.0
    %3076 = vmatprep.subr.mxu0 0.0
    %3077 = vmatpush1.msra.mxu0 0.0
    %3078 = vmatprep.subr.mxu0 0.0
    %3079 = vmatpush1.msra.mxu0 0.0
    %3080 = vmatprep.subr.mxu0 0.0
    %3081 = vmatpush1.msra.mxu0 0.0
    %3082 = vmatprep.subr.mxu0 0.0
    %3083 = vmatpush1.msra.mxu0 0.0
    %3084 = vmatprep.subr.mxu0 0.0
    %3085 = vmatpush1.msra.mxu0 0.0
    %3086 = vmatprep.subr.mxu0 0.0
    %3087 = vmatpush1.msra.mxu0 0.0
    %3088 = vmatprep.subr.mxu0 0.0
    %3089 = vmatpush1.msra.mxu0 0.0
    %3090 = vmatprep.subr.mxu0 0.0
    %3091 = vmatpush1.msra.mxu0 0.0
    %3092 = vmatprep.subr.mxu0 0.0
    %3093 = vmatpush1.msra.mxu0 0.0
    %3094 = vmatprep.subr.mxu0 0.0
    %3095 = vmatpush1.msra.mxu0 0.0
    %3096 = vmatprep.subr.mxu0 0.0
    %3097 = vmatpush1.msra.mxu0 0.0
    %3098 = vmatprep.subr.mxu0 0.0
    %3099 = vmatpush1.msra.mxu0 0.0
    %3100 = vmatprep.subr.mxu0 0.0
    %3101 = vmatpush1.msra.mxu0 0.0
    %3102 = vmatprep.subr.mxu0 0.0
    %3103 = vmatpush1.msra.mxu0 0.0
    %3104 = vmatprep.subr.mxu0 0.0
    %3105 = vmatpush1.msra.mxu0 0.0
    %3106 = vmatprep.subr.mxu0 0.0
    %3107 = vmatpush1.msra.mxu0 0.0
    %3108 = vmatprep.subr.mxu0 0.0
    %3109 = vmatpush1.msra.mxu0 0.0
    %3110 = vmatprep.subr.mxu0 0.0
    %3111 = vmatpush1.msra.mxu0 0.0
    %3112 = vmatprep.subr.mxu0 0.0
    %3113 = vmatpush1.msra.mxu0 0.0
    %3114 = vmatprep.subr.mxu0 0.0
    %3115 = vmatpush1.msra.mxu0 0.0
    %3116 = vmatprep.subr.mxu0 0.0
    %3117 = vmatpush1.msra.mxu0 0.0
    %3118 = vmatprep.subr.mxu0 0.0
    %3119 = vmatpush1.msra.mxu0 0.0
    %3120 = vmatprep.subr.mxu0 0.0
    %3121 = vmatpush1.msra.mxu0 0.0
    %3122 = vmatprep.mubr.f32.mxu0 0.0
    %3123 = vmatmul.mubr.f32.gmra.mrb[0].mxu0 %v3056
    %v3124 = vpop.f32.mrb[0].mxu0
    %v3125 = vadd.f32 %v483, %v3124
    %v3126 = vpop.f32.mrb[0].mxu0
    %3127 = vdwg.mxu0
    %3128 = vmatprep.subr.mxu0 0.0
    %3129 = vmatpush1.msra.mxu0 %v200
    %3130 = vmatprep.subr.mxu0 0.0
    %3131 = vmatpush1.msra.mxu0 %v201
    %3132 = vmatprep.subr.mxu0 0.0
    %3133 = vmatpush1.msra.mxu0 %v202
    %3134 = vmatprep.subr.mxu0 0.0
    %3135 = vmatpush1.msra.mxu0 %v203
    %3136 = vmatprep.subr.mxu0 0.0
    %3137 = vmatpush1.msra.mxu0 0.0
    %3138 = vmatprep.subr.mxu0 0.0
    %3139 = vmatpush1.msra.mxu0 0.0
    %3140 = vmatprep.subr.mxu0 0.0
    %3141 = vmatpush1.msra.mxu0 0.0
    %3142 = vmatprep.subr.mxu0 0.0
    %3143 = vmatpush1.msra.mxu0 0.0
    %3144 = vmatprep.subr.mxu0 0.0
    %3145 = vmatpush1.msra.mxu0 0.0
    %3146 = vmatprep.subr.mxu0 0.0
    %3147 = vmatpush1.msra.mxu0 0.0
    %3148 = vmatprep.subr.mxu0 0.0
    %3149 = vmatpush1.msra.mxu0 0.0
    %3150 = vmatprep.subr.mxu0 0.0
    %3151 = vmatpush1.msra.mxu0 0.0
    %3152 = vmatprep.subr.mxu0 0.0
    %3153 = vmatpush1.msra.mxu0 0.0
    %3154 = vmatprep.subr.mxu0 0.0
    %3155 = vmatpush1.msra.mxu0 0.0
    %3156 = vmatprep.subr.mxu0 0.0
    %3157 = vmatpush1.msra.mxu0 0.0
    %3158 = vmatprep.subr.mxu0 0.0
    %3159 = vmatpush1.msra.mxu0 0.0
    %3160 = vmatprep.subr.mxu0 0.0
    %3161 = vmatpush1.msra.mxu0 0.0
    %3162 = vmatprep.subr.mxu0 0.0
    %3163 = vmatpush1.msra.mxu0 0.0
    %3164 = vmatprep.subr.mxu0 0.0
    %3165 = vmatpush1.msra.mxu0 0.0
    %3166 = vmatprep.subr.mxu0 0.0
    %3167 = vmatpush1.msra.mxu0 0.0
    %3168 = vmatprep.subr.mxu0 0.0
    %3169 = vmatpush1.msra.mxu0 0.0
    %3170 = vmatprep.subr.mxu0 0.0
    %3171 = vmatpush1.msra.mxu0 0.0
    %3172 = vmatprep.subr.mxu0 0.0
    %3173 = vmatpush1.msra.mxu0 0.0
    %3174 = vmatprep.subr.mxu0 0.0
    %3175 = vmatpush1.msra.mxu0 0.0
    %3176 = vmatprep.subr.mxu0 0.0
    %3177 = vmatpush1.msra.mxu0 0.0
    %3178 = vmatprep.subr.mxu0 0.0
    %3179 = vmatpush1.msra.mxu0 0.0
    %3180 = vmatprep.subr.mxu0 0.0
    %3181 = vmatpush1.msra.mxu0 0.0
    %3182 = vmatprep.subr.mxu0 0.0
    %3183 = vmatpush1.msra.mxu0 0.0
    %3184 = vmatprep.subr.mxu0 0.0
    %3185 = vmatpush1.msra.mxu0 0.0
    %3186 = vmatprep.subr.mxu0 0.0
    %3187 = vmatpush1.msra.mxu0 0.0
    %3188 = vmatprep.subr.mxu0 0.0
    %3189 = vmatpush1.msra.mxu0 0.0
    %3190 = vmatprep.subr.mxu0 0.0
    %3191 = vmatpush1.msra.mxu0 0.0
    %3192 = vmatprep.mubr.f32.mxu0 0.0
    %3193 = vmatmul.mubr.f32.gmra.mrb[0].mxu0 %v3056
    %v3194 = vpop.f32.mrb[0].mxu0
    %v3195 = vadd.f32 %v559, %v3194
    %v3196 = vpop.f32.mrb[0].mxu0
    %3197 = vdwg.mxu0
    %3198 = vmatprep.subr.mxu0 0.0
    %3199 = vmatpush1.msra.mxu0 %v205
    %3200 = vmatprep.subr.mxu0 0.0
    %3201 = vmatpush1.msra.mxu0 %v206
    %3202 = vmatprep.subr.mxu0 0.0
    %3203 = vmatpush1.msra.mxu0 %v207
    %3204 = vmatprep.subr.mxu0 0.0
    %3205 = vmatpush1.msra.mxu0 %v208
    %3206 = vmatprep.subr.mxu0 0.0
    %3207 = vmatpush1.msra.mxu0 0.0
    %3208 = vmatprep.subr.mxu0 0.0
    %3209 = vmatpush1.msra.mxu0 0.0
    %3210 = vmatprep.subr.mxu0 0.0
    %3211 = vmatpush1.msra.mxu0 0.0
    %3212 = vmatprep.subr.mxu0 0.0
    %3213 = vmatpush1.msra.mxu0 0.0
    %3214 = vmatprep.subr.mxu0 0.0
    %3215 = vmatpush1.msra.mxu0 0.0
    %3216 = vmatprep.subr.mxu0 0.0
    %3217 = vmatpush1.msra.mxu0 0.0
    %3218 = vmatprep.subr.mxu0 0.0
    %3219 = vmatpush1.msra.mxu0 0.0
    %3220 = vmatprep.subr.mxu0 0.0
    %3221 = vmatpush1.msra.mxu0 0.0
    %3222 = vmatprep.subr.mxu0 0.0
    %3223 = vmatpush1.msra.mxu0 0.0
    %3224 = vmatprep.subr.mxu0 0.0
    %3225 = vmatpush1.msra.mxu0 0.0
    %3226 = vmatprep.subr.mxu0 0.0
    %3227 = vmatpush1.msra.mxu0 0.0
    %3228 = vmatprep.subr.mxu0 0.0
    %3229 = vmatpush1.msra.mxu0 0.0
    %3230 = vmatprep.subr.mxu0 0.0
    %3231 = vmatpush1.msra.mxu0 0.0
    %3232 = vmatprep.subr.mxu0 0.0
    %3233 = vmatpush1.msra.mxu0 0.0
    %3234 = vmatprep.subr.mxu0 0.0
    %3235 = vmatpush1.msra.mxu0 0.0
    %3236 = vmatprep.subr.mxu0 0.0
    %3237 = vmatpush1.msra.mxu0 0.0
    %3238 = vmatprep.subr.mxu0 0.0
    %3239 = vmatpush1.msra.mxu0 0.0
    %3240 = vmatprep.subr.mxu0 0.0
    %3241 = vmatpush1.msra.mxu0 0.0
    %3242 = vmatprep.subr.mxu0 0.0
    %3243 = vmatpush1.msra.mxu0 0.0
    %3244 = vmatprep.subr.mxu0 0.0
    %3245 = vmatpush1.msra.mxu0 0.0
    %3246 = vmatprep.subr.mxu0 0.0
    %3247 = vmatpush1.msra.mxu0 0.0
    %3248 = vmatprep.subr.mxu0 0.0
    %3249 = vmatpush1.msra.mxu0 0.0
    %3250 = vmatprep.subr.mxu0 0.0
    %3251 = vmatpush1.msra.mxu0 0.0
    %3252 = vmatprep.subr.mxu0 0.0
    %3253 = vmatpush1.msra.mxu0 0.0
    %3254 = vmatprep.subr.mxu0 0.0
    %3255 = vmatpush1.msra.mxu0 0.0
    %3256 = vmatprep.subr.mxu0 0.0
    %3257 = vmatpush1.msra.mxu0 0.0
    %3258 = vmatprep.subr.mxu0 0.0
    %3259 = vmatpush1.msra.mxu0 0.0
    %3260 = vmatprep.subr.mxu0 0.0
    %3261 = vmatpush1.msra.mxu0 0.0
    %3262 = vmatprep.mubr.f32.mxu0 0.0
    %3263 = vmatmul.mubr.f32.gmra.mrb[0].mxu0 %v3056
    %v3264 = vpop.f32.mrb[0].mxu0
    %v3265 = vadd.f32 %v635, %v3264
    %v3266 = vpop.f32.mrb[0].mxu0
    %3267 = vdwg.mxu0
    %v3269 = vrot.slane %v3125, 4
    %3270 = vrot.lane.b32.xlu0 %v3269, 96
    %v3271 = vpop.permute.xlu0 %3270
    %v3273 = vadd.f32 %v165, %v3271
    %v3274 = vxor.u32 %v3273, 2147483648
    %v3275 = vmul.f32 %v3274, 1.442695
    %v3276 = vpow.pop %v3275
    %v3277 = vadd.f32 %v3276, 1.0
    %v3278 = vrcp.pop %v3277
    %v3279 = vmul.f32 1.0, %v3278
    %v3281 = vrot.slane %v3195, 4
    %v3283 = vadd.f32 %v167, %v3281
    %v3284 = vxor.u32 %v3283, 2147483648
    %v3285 = vmul.f32 %v3284, 1.442695
    %v3286 = vpow.pop %v3285
    %v3287 = vadd.f32 %v3286, 1.0
    %v3288 = vrcp.pop %v3287
    %v3289 = vmul.f32 1.0, %v3288
    %v3291 = vrot.slane %v3265, 4
    %3292 = vrot.lane.b32.xlu0 %v3291, 96
    %v3293 = vpop.permute.xlu0 %3292
    %v3295 = vmul.f32 %v3279, %v3293
    %3297 = vrot.lane.b32.xlu0 %v3295, 64
    %v3298 = vpop.permute.xlu0 %3297
    %v3300 = vadd.f32 %v167, %v3298
    %v3301 = vtanh.pop %v3300
    %v3302 = vsub.f32 1.0, %v3289
    %3304 = vrot.lane.b32.xlu0 %v3301, 96
    %v3305 = vpop.permute.xlu0 %3304
    %v3307 = vmul.f32 %v3302, %v3305
    %v3308 = vrot.slane %v2796, 2
    %v3310 = vmul.f32 %v3289, %v3308
    %v3311 = vadd.f32 %v3307, %v3310
    %v3313 = vrot.slane %v3053, 2
    %3314 = vrot.lane.b32.xlu0 %v3313, 96
    %v3315 = vpop.permute.xlu0 %3314
    %v3316 = vsel %vm91, %v3315, 0
    %3318 = vmatprep.subr.mxu0 0.0
    %3319 = vmatpush1.msra.mxu0 %v175
    %3320 = vmatprep.subr.mxu0 0.0
    %3321 = vmatpush1.msra.mxu0 %v176
    %3322 = vmatprep.subr.mxu0 0.0
    %3323 = vmatpush1.msra.mxu0 %v177
    %3324 = vmatprep.subr.mxu0 0.0
    %3325 = vmatpush1.msra.mxu0 %v178
    %3326 = vmatprep.subr.mxu0 0.0
    %3327 = vmatpush1.msra.mxu0 0.0
    %3328 = vmatprep.subr.mxu0 0.0
    %3329 = vmatpush1.msra.mxu0 0.0
    %3330 = vmatprep.subr.mxu0 0.0
    %3331 = vmatpush1.msra.mxu0 0.0
    %3332 = vmatprep.subr.mxu0 0.0
    %3333 = vmatpush1.msra.mxu0 0.0
    %3334 = vmatprep.subr.mxu0 0.0
    %3335 = vmatpush1.msra.mxu0 0.0
    %3336 = vmatprep.subr.mxu0 0.0
    %3337 = vmatpush1.msra.mxu0 0.0
    %3338 = vmatprep.subr.mxu0 0.0
    %3339 = vmatpush1.msra.mxu0 0.0
    %3340 = vmatprep.subr.mxu0 0.0
    %3341 = vmatpush1.msra.mxu0 0.0
    %3342 = vmatprep.subr.mxu0 0.0
    %3343 = vmatpush1.msra.mxu0 0.0
    %3344 = vmatprep.subr.mxu0 0.0
    %3345 = vmatpush1.msra.mxu0 0.0
    %3346 = vmatprep.subr.mxu0 0.0
    %3347 = vmatpush1.msra.mxu0 0.0
    %3348 = vmatprep.subr.mxu0 0.0
    %3349 = vmatpush1.msra.mxu0 0.0
    %3350 = vmatprep.subr.mxu0 0.0
    %3351 = vmatpush1.msra.mxu0 0.0
    %3352 = vmatprep.subr.mxu0 0.0
    %3353 = vmatpush1.msra.mxu0 0.0
    %3354 = vmatprep.subr.mxu0 0.0
    %3355 = vmatpush1.msra.mxu0 0.0
    %3356 = vmatprep.subr.mxu0 0.0
    %3357 = vmatpush1.msra.mxu0 0.0
    %3358 = vmatprep.subr.mxu0 0.0
    %3359 = vmatpush1.msra.mxu0 0.0
    %3360 = vmatprep.subr.mxu0 0.0
    %3361 = vmatpush1.msra.mxu0 0.0
    %3362 = vmatprep.subr.mxu0 0.0
    %3363 = vmatpush1.msra.mxu0 0.0
    %3364 = vmatprep.subr.mxu0 0.0
    %3365 = vmatpush1.msra.mxu0 0.0
    %3366 = vmatprep.subr.mxu0 0.0
    %3367 = vmatpush1.msra.mxu0 0.0
    %3368 = vmatprep.subr.mxu0 0.0
    %3369 = vmatpush1.msra.mxu0 0.0
    %3370 = vmatprep.subr.mxu0 0.0
    %3371 = vmatpush1.msra.mxu0 0.0
    %3372 = vmatprep.subr.mxu0 0.0
    %3373 = vmatpush1.msra.mxu0 0.0
    %3374 = vmatprep.subr.mxu0 0.0
    %3375 = vmatpush1.msra.mxu0 0.0
    %3376 = vmatprep.subr.mxu0 0.0
    %3377 = vmatpush1.msra.mxu0 0.0
    %3378 = vmatprep.subr.mxu0 0.0
    %3379 = vmatpush1.msra.mxu0 0.0
    %3380 = vmatprep.subr.mxu0 0.0
    %3381 = vmatpush1.msra.mxu0 0.0
    %3382 = vmatprep.mubr.f32.mxu0 0.0
    %3383 = vmatmul.mubr.f32.gmra.mrb[0].mxu0 %v3316
    %v3384 = vpop.f32.mrb[0].mxu0
    %v3385 = vadd.f32 %v219, %v3384
    %v3386 = vpop.f32.mrb[0].mxu0
    %3387 = vdwg.mxu0
    %3388 = vmatprep.subr.mxu0 0.0
    %3389 = vmatpush1.msra.mxu0 %v180
    %3390 = vmatprep.subr.mxu0 0.0
    %3391 = vmatpush1.msra.mxu0 %v181
    %3392 = vmatprep.subr.mxu0 0.0
    %3393 = vmatpush1.msra.mxu0 %v182
    %3394 = vmatprep.subr.mxu0 0.0
    %3395 = vmatpush1.msra.mxu0 %v183
    %3396 = vmatprep.subr.mxu0 0.0
    %3397 = vmatpush1.msra.mxu0 0.0
    %3398 = vmatprep.subr.mxu0 0.0
    %3399 = vmatpush1.msra.mxu0 0.0
    %3400 = vmatprep.subr.mxu0 0.0
    %3401 = vmatpush1.msra.mxu0 0.0
    %3402 = vmatprep.subr.mxu0 0.0
    %3403 = vmatpush1.msra.mxu0 0.0
    %3404 = vmatprep.subr.mxu0 0.0
    %3405 = vmatpush1.msra.mxu0 0.0
    %3406 = vmatprep.subr.mxu0 0.0
    %3407 = vmatpush1.msra.mxu0 0.0
    %3408 = vmatprep.subr.mxu0 0.0
    %3409 = vmatpush1.msra.mxu0 0.0
    %3410 = vmatprep.subr.mxu0 0.0
    %3411 = vmatpush1.msra.mxu0 0.0
    %3412 = vmatprep.subr.mxu0 0.0
    %3413 = vmatpush1.msra.mxu0 0.0
    %3414 = vmatprep.subr.mxu0 0.0
    %3415 = vmatpush1.msra.mxu0 0.0
    %3416 = vmatprep.subr.mxu0 0.0
    %3417 = vmatpush1.msra.mxu0 0.0
    %3418 = vmatprep.subr.mxu0 0.0
    %3419 = vmatpush1.msra.mxu0 0.0
    %3420 = vmatprep.subr.mxu0 0.0
    %3421 = vmatpush1.msra.mxu0 0.0
    %3422 = vmatprep.subr.mxu0 0.0
    %3423 = vmatpush1.msra.mxu0 0.0
    %3424 = vmatprep.subr.mxu0 0.0
    %3425 = vmatpush1.msra.mxu0 0.0
    %3426 = vmatprep.subr.mxu0 0.0
    %3427 = vmatpush1.msra.mxu0 0.0
    %3428 = vmatprep.subr.mxu0 0.0
    %3429 = vmatpush1.msra.mxu0 0.0
    %3430 = vmatprep.subr.mxu0 0.0
    %3431 = vmatpush1.msra.mxu0 0.0
    %3432 = vmatprep.subr.mxu0 0.0
    %3433 = vmatpush1.msra.mxu0 0.0
    %3434 = vmatprep.subr.mxu0 0.0
    %3435 = vmatpush1.msra.mxu0 0.0
    %3436 = vmatprep.subr.mxu0 0.0
    %3437 = vmatpush1.msra.mxu0 0.0
    %3438 = vmatprep.subr.mxu0 0.0
    %3439 = vmatpush1.msra.mxu0 0.0
    %3440 = vmatprep.subr.mxu0 0.0
    %3441 = vmatpush1.msra.mxu0 0.0
    %3442 = vmatprep.subr.mxu0 0.0
    %3443 = vmatpush1.msra.mxu0 0.0
    %3444 = vmatprep.subr.mxu0 0.0
    %3445 = vmatpush1.msra.mxu0 0.0
    %3446 = vmatprep.subr.mxu0 0.0
    %3447 = vmatpush1.msra.mxu0 0.0
    %3448 = vmatprep.subr.mxu0 0.0
    %3449 = vmatpush1.msra.mxu0 0.0
    %3450 = vmatprep.subr.mxu0 0.0
    %3451 = vmatpush1.msra.mxu0 0.0
    %3452 = vmatprep.mubr.f32.mxu0 0.0
    %3453 = vmatmul.mubr.f32.gmra.mrb[0].mxu0 %v3316
    %v3454 = vpop.f32.mrb[0].mxu0
    %v3455 = vadd.f32 %v298, %v3454
    %v3456 = vpop.f32.mrb[0].mxu0
    %3457 = vdwg.mxu0
    %3458 = vmatprep.subr.mxu0 0.0
    %3459 = vmatpush1.msra.mxu0 %v185
    %3460 = vmatprep.subr.mxu0 0.0
    %3461 = vmatpush1.msra.mxu0 %v186
    %3462 = vmatprep.subr.mxu0 0.0
    %3463 = vmatpush1.msra.mxu0 %v187
    %3464 = vmatprep.subr.mxu0 0.0
    %3465 = vmatpush1.msra.mxu0 %v188
    %3466 = vmatprep.subr.mxu0 0.0
    %3467 = vmatpush1.msra.mxu0 0.0
    %3468 = vmatprep.subr.mxu0 0.0
    %3469 = vmatpush1.msra.mxu0 0.0
    %3470 = vmatprep.subr.mxu0 0.0
    %3471 = vmatpush1.msra.mxu0 0.0
    %3472 = vmatprep.subr.mxu0 0.0
    %3473 = vmatpush1.msra.mxu0 0.0
    %3474 = vmatprep.subr.mxu0 0.0
    %3475 = vmatpush1.msra.mxu0 0.0
    %3476 = vmatprep.subr.mxu0 0.0
    %3477 = vmatpush1.msra.mxu0 0.0
    %3478 = vmatprep.subr.mxu0 0.0
    %3479 = vmatpush1.msra.mxu0 0.0
    %3480 = vmatprep.subr.mxu0 0.0
    %3481 = vmatpush1.msra.mxu0 0.0
    %3482 = vmatprep.subr.mxu0 0.0
    %3483 = vmatpush1.msra.mxu0 0.0
    %3484 = vmatprep.subr.mxu0 0.0
    %3485 = vmatpush1.msra.mxu0 0.0
    %3486 = vmatprep.subr.mxu0 0.0
    %3487 = vmatpush1.msra.mxu0 0.0
    %3488 = vmatprep.subr.mxu0 0.0
    %3489 = vmatpush1.msra.mxu0 0.0
    %3490 = vmatprep.subr.mxu0 0.0
    %3491 = vmatpush1.msra.mxu0 0.0
    %3492 = vmatprep.subr.mxu0 0.0
    %3493 = vmatpush1.msra.mxu0 0.0
    %3494 = vmatprep.subr.mxu0 0.0
    %3495 = vmatpush1.msra.mxu0 0.0
    %3496 = vmatprep.subr.mxu0 0.0
    %3497 = vmatpush1.msra.mxu0 0.0
    %3498 = vmatprep.subr.mxu0 0.0
    %3499 = vmatpush1.msra.mxu0 0.0
    %3500 = vmatprep.subr.mxu0 0.0
    %3501 = vmatpush1.msra.mxu0 0.0
    %3502 = vmatprep.subr.mxu0 0.0
    %3503 = vmatpush1.msra.mxu0 0.0
    %3504 = vmatprep.subr.mxu0 0.0
    %3505 = vmatpush1.msra.mxu0 0.0
    %3506 = vmatprep.subr.mxu0 0.0
    %3507 = vmatpush1.msra.mxu0 0.0
    %3508 = vmatprep.subr.mxu0 0.0
    %3509 = vmatpush1.msra.mxu0 0.0
    %3510 = vmatprep.subr.mxu0 0.0
    %3511 = vmatpush1.msra.mxu0 0.0
    %3512 = vmatprep.subr.mxu0 0.0
    %3513 = vmatpush1.msra.mxu0 0.0
    %3514 = vmatprep.subr.mxu0 0.0
    %3515 = vmatpush1.msra.mxu0 0.0
    %3516 = vmatprep.subr.mxu0 0.0
    %3517 = vmatpush1.msra.mxu0 0.0
    %3518 = vmatprep.subr.mxu0 0.0
    %3519 = vmatpush1.msra.mxu0 0.0
    %3520 = vmatprep.subr.mxu0 0.0
    %3521 = vmatpush1.msra.mxu0 0.0
    %3522 = vmatprep.mubr.f32.mxu0 0.0
    %3523 = vmatmul.mubr.f32.gmra.mrb[0].mxu0 %v3316
    %v3524 = vpop.f32.mrb[0].mxu0
    %v3525 = vadd.f32 %v374, %v3524
    %v3526 = vpop.f32.mrb[0].mxu0
    %3527 = vdwg.mxu0
    %v3529 = vrot.slane %v3385, 4
    %v3531 = vadd.f32 %v171, %v3529
    %v3532 = vxor.u32 %v3531, 2147483648
    %v3533 = vmul.f32 %v3532, 1.442695
    %v3534 = vpow.pop %v3533
    %v3535 = vadd.f32 %v3534, 1.0
    %v3536 = vrcp.pop %v3535
    %v3537 = vmul.f32 1.0, %v3536
    %v3539 = vrot.slane %v3455, 4
    %3540 = vrot.lane.b32.xlu0 %v3539, 32
    %v3541 = vpop.permute.xlu0 %3540
    %v3543 = vadd.f32 %v171, %v3541
    %v3544 = vxor.u32 %v3543, 2147483648
    %v3545 = vmul.f32 %v3544, 1.442695
    %v3546 = vpow.pop %v3545
    %v3547 = vadd.f32 %v3546, 1.0
    %v3548 = vrcp.pop %v3547
    %v3549 = vmul.f32 1.0, %v3548
    %v3551 = vrot.slane %v3525, 4
    %v3553 = vmul.f32 %v3537, %v3551
    %3555 = vrot.lane.b32.xlu0 %v3553, 64
    %v3556 = vpop.permute.xlu0 %3555
    %v3558 = vadd.f32 %v171, %v3556
    %v3559 = vtanh.pop %v3558
    %v3560 = vsub.f32 1.0, %v3549
    %3562 = vrot.lane.b32.xlu0 %v3559, 96
    %v3563 = vpop.permute.xlu0 %3562
    %v3565 = vmul.f32 %v3560, %v3563
    %v3566 = vrot.slane %v3053, 6
    %v3568 = vmul.f32 %v3549, %v3566
    %v3569 = vadd.f32 %v3565, %v3568
    %v3571 = vrot.slane %v3311, 4
    %v3572 = vsel %vm91, %v3571, 0
    %3574 = vmatprep.subr.mxu0 0.0
    %3575 = vmatpush1.msra.mxu0 %v195
    %3576 = vmatprep.subr.mxu0 0.0
    %3577 = vmatpush1.msra.mxu0 %v196
    %3578 = vmatprep.subr.mxu0 0.0
    %3579 = vmatpush1.msra.mxu0 %v197
    %3580 = vmatprep.subr.mxu0 0.0
    %3581 = vmatpush1.msra.mxu0 %v198
    %3582 = vmatprep.subr.mxu0 0.0
    %3583 = vmatpush1.msra.mxu0 0.0
    %3584 = vmatprep.subr.mxu0 0.0
    %3585 = vmatpush1.msra.mxu0 0.0
    %3586 = vmatprep.subr.mxu0 0.0
    %3587 = vmatpush1.msra.mxu0 0.0
    %3588 = vmatprep.subr.mxu0 0.0
    %3589 = vmatpush1.msra.mxu0 0.0
    %3590 = vmatprep.subr.mxu0 0.0
    %3591 = vmatpush1.msra.mxu0 0.0
    %3592 = vmatprep.subr.mxu0 0.0
    %3593 = vmatpush1.msra.mxu0 0.0
    %3594 = vmatprep.subr.mxu0 0.0
    %3595 = vmatpush1.msra.mxu0 0.0
    %3596 = vmatprep.subr.mxu0 0.0
    %3597 = vmatpush1.msra.mxu0 0.0
    %3598 = vmatprep.subr.mxu0 0.0
    %3599 = vmatpush1.msra.mxu0 0.0
    %3600 = vmatprep.subr.mxu0 0.0
    %3601 = vmatpush1.msra.mxu0 0.0
    %3602 = vmatprep.subr.mxu0 0.0
    %3603 = vmatpush1.msra.mxu0 0.0
    %3604 = vmatprep.subr.mxu0 0.0
    %3605 = vmatpush1.msra.mxu0 0.0
    %3606 = vmatprep.subr.mxu0 0.0
    %3607 = vmatpush1.msra.mxu0 0.0
    %3608 = vmatprep.subr.mxu0 0.0
    %3609 = vmatpush1.msra.mxu0 0.0
    %3610 = vmatprep.subr.mxu0 0.0
    %3611 = vmatpush1.msra.mxu0 0.0
    %3612 = vmatprep.subr.mxu0 0.0
    %3613 = vmatpush1.msra.mxu0 0.0
    %3614 = vmatprep.subr.mxu0 0.0
    %3615 = vmatpush1.msra.mxu0 0.0
    %3616 = vmatprep.subr.mxu0 0.0
    %3617 = vmatpush1.msra.mxu0 0.0
    %3618 = vmatprep.subr.mxu0 0.0
    %3619 = vmatpush1.msra.mxu0 0.0
    %3620 = vmatprep.subr.mxu0 0.0
    %3621 = vmatpush1.msra.mxu0 0.0
    %3622 = vmatprep.subr.mxu0 0.0
    %3623 = vmatpush1.msra.mxu0 0.0
    %3624 = vmatprep.subr.mxu0 0.0
    %3625 = vmatpush1.msra.mxu0 0.0
    %3626 = vmatprep.subr.mxu0 0.0
    %3627 = vmatpush1.msra.mxu0 0.0
    %3628 = vmatprep.subr.mxu0 0.0
    %3629 = vmatpush1.msra.mxu0 0.0
    %3630 = vmatprep.subr.mxu0 0.0
    %3631 = vmatpush1.msra.mxu0 0.0
    %3632 = vmatprep.subr.mxu0 0.0
    %3633 = vmatpush1.msra.mxu0 0.0
    %3634 = vmatprep.subr.mxu0 0.0
    %3635 = vmatpush1.msra.mxu0 0.0
    %3636 = vmatprep.subr.mxu0 0.0
    %3637 = vmatpush1.msra.mxu0 0.0
    %3638 = vmatprep.mubr.f32.mxu0 0.0
    %3639 = vmatmul.mubr.f32.gmra.mrb[0].mxu0 %v3572
    %v3640 = vpop.f32.mrb[0].mxu0
    %v3641 = vadd.f32 %v483, %v3640
    %v3642 = vpop.f32.mrb[0].mxu0
    %3643 = vdwg.mxu0
    %3644 = vmatprep.subr.mxu0 0.0
    %3645 = vmatpush1.msra.mxu0 %v200
    %3646 = vmatprep.subr.mxu0 0.0
    %3647 = vmatpush1.msra.mxu0 %v201
    %3648 = vmatprep.subr.mxu0 0.0
    %3649 = vmatpush1.msra.mxu0 %v202
    %3650 = vmatprep.subr.mxu0 0.0
    %3651 = vmatpush1.msra.mxu0 %v203
    %3652 = vmatprep.subr.mxu0 0.0
    %3653 = vmatpush1.msra.mxu0 0.0
    %3654 = vmatprep.subr.mxu0 0.0
    %3655 = vmatpush1.msra.mxu0 0.0
    %3656 = vmatprep.subr.mxu0 0.0
    %3657 = vmatpush1.msra.mxu0 0.0
    %3658 = vmatprep.subr.mxu0 0.0
    %3659 = vmatpush1.msra.mxu0 0.0
    %3660 = vmatprep.subr.mxu0 0.0
    %3661 = vmatpush1.msra.mxu0 0.0
    %3662 = vmatprep.subr.mxu0 0.0
    %3663 = vmatpush1.msra.mxu0 0.0
    %3664 = vmatprep.subr.mxu0 0.0
    %3665 = vmatpush1.msra.mxu0 0.0
    %3666 = vmatprep.subr.mxu0 0.0
    %3667 = vmatpush1.msra.mxu0 0.0
    %3668 = vmatprep.subr.mxu0 0.0
    %3669 = vmatpush1.msra.mxu0 0.0
    %3670 = vmatprep.subr.mxu0 0.0
    %3671 = vmatpush1.msra.mxu0 0.0
    %3672 = vmatprep.subr.mxu0 0.0
    %3673 = vmatpush1.msra.mxu0 0.0
    %3674 = vmatprep.subr.mxu0 0.0
    %3675 = vmatpush1.msra.mxu0 0.0
    %3676 = vmatprep.subr.mxu0 0.0
    %3677 = vmatpush1.msra.mxu0 0.0
    %3678 = vmatprep.subr.mxu0 0.0
    %3679 = vmatpush1.msra.mxu0 0.0
    %3680 = vmatprep.subr.mxu0 0.0
    %3681 = vmatpush1.msra.mxu0 0.0
    %3682 = vmatprep.subr.mxu0 0.0
    %3683 = vmatpush1.msra.mxu0 0.0
    %3684 = vmatprep.subr.mxu0 0.0
    %3685 = vmatpush1.msra.mxu0 0.0
    %3686 = vmatprep.subr.mxu0 0.0
    %3687 = vmatpush1.msra.mxu0 0.0
    %3688 = vmatprep.subr.mxu0 0.0
    %3689 = vmatpush1.msra.mxu0 0.0
    %3690 = vmatprep.subr.mxu0 0.0
    %3691 = vmatpush1.msra.mxu0 0.0
    %3692 = vmatprep.subr.mxu0 0.0
    %3693 = vmatpush1.msra.mxu0 0.0
    %3694 = vmatprep.subr.mxu0 0.0
    %3695 = vmatpush1.msra.mxu0 0.0
    %3696 = vmatprep.subr.mxu0 0.0
    %3697 = vmatpush1.msra.mxu0 0.0
    %3698 = vmatprep.subr.mxu0 0.0
    %3699 = vmatpush1.msra.mxu0 0.0
    %3700 = vmatprep.subr.mxu0 0.0
    %3701 = vmatpush1.msra.mxu0 0.0
    %3702 = vmatprep.subr.mxu0 0.0
    %3703 = vmatpush1.msra.mxu0 0.0
    %3704 = vmatprep.subr.mxu0 0.0
    %3705 = vmatpush1.msra.mxu0 0.0
    %3706 = vmatprep.subr.mxu0 0.0
    %3707 = vmatpush1.msra.mxu0 0.0
    %3708 = vmatprep.mubr.f32.mxu0 0.0
    %3709 = vmatmul.mubr.f32.gmra.mrb[0].mxu0 %v3572
    %v3710 = vpop.f32.mrb[0].mxu0
    %v3711 = vadd.f32 %v559, %v3710
    %v3712 = vpop.f32.mrb[0].mxu0
    %3713 = vdwg.mxu0
    %3714 = vmatprep.subr.mxu0 0.0
    %3715 = vmatpush1.msra.mxu0 %v205
    %3716 = vmatprep.subr.mxu0 0.0
    %3717 = vmatpush1.msra.mxu0 %v206
    %3718 = vmatprep.subr.mxu0 0.0
    %3719 = vmatpush1.msra.mxu0 %v207
    %3720 = vmatprep.subr.mxu0 0.0
    %3721 = vmatpush1.msra.mxu0 %v208
    %3722 = vmatprep.subr.mxu0 0.0
    %3723 = vmatpush1.msra.mxu0 0.0
    %3724 = vmatprep.subr.mxu0 0.0
    %3725 = vmatpush1.msra.mxu0 0.0
    %3726 = vmatprep.subr.mxu0 0.0
    %3727 = vmatpush1.msra.mxu0 0.0
    %3728 = vmatprep.subr.mxu0 0.0
    %3729 = vmatpush1.msra.mxu0 0.0
    %3730 = vmatprep.subr.mxu0 0.0
    %3731 = vmatpush1.msra.mxu0 0.0
    %3732 = vmatprep.subr.mxu0 0.0
    %3733 = vmatpush1.msra.mxu0 0.0
    %3734 = vmatprep.subr.mxu0 0.0
    %3735 = vmatpush1.msra.mxu0 0.0
    %3736 = vmatprep.subr.mxu0 0.0
    %3737 = vmatpush1.msra.mxu0 0.0
    %3738 = vmatprep.subr.mxu0 0.0
    %3739 = vmatpush1.msra.mxu0 0.0
    %3740 = vmatprep.subr.mxu0 0.0
    %3741 = vmatpush1.msra.mxu0 0.0
    %3742 = vmatprep.subr.mxu0 0.0
    %3743 = vmatpush1.msra.mxu0 0.0
    %3744 = vmatprep.subr.mxu0 0.0
    %3745 = vmatpush1.msra.mxu0 0.0
    %3746 = vmatprep.subr.mxu0 0.0
    %3747 = vmatpush1.msra.mxu0 0.0
    %3748 = vmatprep.subr.mxu0 0.0
    %3749 = vmatpush1.msra.mxu0 0.0
    %3750 = vmatprep.subr.mxu0 0.0
    %3751 = vmatpush1.msra.mxu0 0.0
    %3752 = vmatprep.subr.mxu0 0.0
    %3753 = vmatpush1.msra.mxu0 0.0
    %3754 = vmatprep.subr.mxu0 0.0
    %3755 = vmatpush1.msra.mxu0 0.0
    %3756 = vmatprep.subr.mxu0 0.0
    %3757 = vmatpush1.msra.mxu0 0.0
    %3758 = vmatprep.subr.mxu0 0.0
    %3759 = vmatpush1.msra.mxu0 0.0
    %3760 = vmatprep.subr.mxu0 0.0
    %3761 = vmatpush1.msra.mxu0 0.0
    %3762 = vmatprep.subr.mxu0 0.0
    %3763 = vmatpush1.msra.mxu0 0.0
    %3764 = vmatprep.subr.mxu0 0.0
    %3765 = vmatpush1.msra.mxu0 0.0
    %3766 = vmatprep.subr.mxu0 0.0
    %3767 = vmatpush1.msra.mxu0 0.0
    %3768 = vmatprep.subr.mxu0 0.0
    %3769 = vmatpush1.msra.mxu0 0.0
    %3770 = vmatprep.subr.mxu0 0.0
    %3771 = vmatpush1.msra.mxu0 0.0
    %3772 = vmatprep.subr.mxu0 0.0
    %3773 = vmatpush1.msra.mxu0 0.0
    %3774 = vmatprep.subr.mxu0 0.0
    %3775 = vmatpush1.msra.mxu0 0.0
    %3776 = vmatprep.subr.mxu0 0.0
    %3777 = vmatpush1.msra.mxu0 0.0
    %3778 = vmatprep.mubr.f32.mxu0 0.0
    %3779 = vmatmul.mubr.f32.gmra.mrb[0].mxu0 %v3572
    %v3780 = vpop.f32.mrb[0].mxu0
    %v3781 = vadd.f32 %v635, %v3780
    %v3782 = vpop.f32.mrb[0].mxu0
    %3783 = vdwg.mxu0
    %v3785 = vrot.slane %v3641, 6
    %3786 = vrot.lane.b32.xlu0 %v3785, 96
    %v3787 = vpop.permute.xlu0 %3786
    %v3789 = vadd.f32 %v165, %v3787
    %v3790 = vxor.u32 %v3789, 2147483648
    %v3791 = vmul.f32 %v3790, 1.442695
    %v3792 = vpow.pop %v3791
    %v3793 = vadd.f32 %v3792, 1.0
    %v3794 = vrcp.pop %v3793
    %v3795 = vmul.f32 1.0, %v3794
    %v3797 = vrot.slane %v3711, 6
    %v3799 = vadd.f32 %v167, %v3797
    %v3800 = vxor.u32 %v3799, 2147483648
    %v3801 = vmul.f32 %v3800, 1.442695
    %v3802 = vpow.pop %v3801
    %v3803 = vadd.f32 %v3802, 1.0
    %v3804 = vrcp.pop %v3803
    %v3805 = vmul.f32 1.0, %v3804
    %v3807 = vrot.slane %v3781, 6
    %3808 = vrot.lane.b32.xlu0 %v3807, 96
    %v3809 = vpop.permute.xlu0 %3808
    %v3811 = vmul.f32 %v3795, %v3809
    %3813 = vrot.lane.b32.xlu0 %v3811, 64
    %v3814 = vpop.permute.xlu0 %3813
    %v3816 = vadd.f32 %v167, %v3814
    %v3817 = vtanh.pop %v3816
    %v3818 = vsub.f32 1.0, %v3805
    %3820 = vrot.lane.b32.xlu0 %v3817, 96
    %v3821 = vpop.permute.xlu0 %3820
    %v3823 = vmul.f32 %v3818, %v3821
    %v3824 = vrot.slane %v3311, 2
    %v3826 = vmul.f32 %v3805, %v3824
    %v3827 = vadd.f32 %v3823, %v3826
    %v3829 = vrot.slane %v3569, 4
    %3830 = vrot.lane.b32.xlu0 %v3829, 96
    %v3831 = vpop.permute.xlu0 %3830
    %v3832 = vsel %vm91, %v3831, 0
    %3834 = vmatprep.subr.mxu0 0.0
    %3835 = vmatpush1.msra.mxu0 %v175
    %3836 = vmatprep.subr.mxu0 0.0
    %3837 = vmatpush1.msra.mxu0 %v176
    %3838 = vmatprep.subr.mxu0 0.0
    %3839 = vmatpush1.msra.mxu0 %v177
    %3840 = vmatprep.subr.mxu0 0.0
    %3841 = vmatpush1.msra.mxu0 %v178
    %3842 = vmatprep.subr.mxu0 0.0
    %3843 = vmatpush1.msra.mxu0 0.0
    %3844 = vmatprep.subr.mxu0 0.0
    %3845 = vmatpush1.msra.mxu0 0.0
    %3846 = vmatprep.subr.mxu0 0.0
    %3847 = vmatpush1.msra.mxu0 0.0
    %3848 = vmatprep.subr.mxu0 0.0
    %3849 = vmatpush1.msra.mxu0 0.0
    %3850 = vmatprep.subr.mxu0 0.0
    %3851 = vmatpush1.msra.mxu0 0.0
    %3852 = vmatprep.subr.mxu0 0.0
    %3853 = vmatpush1.msra.mxu0 0.0
    %3854 = vmatprep.subr.mxu0 0.0
    %3855 = vmatpush1.msra.mxu0 0.0
    %3856 = vmatprep.subr.mxu0 0.0
    %3857 = vmatpush1.msra.mxu0 0.0
    %3858 = vmatprep.subr.mxu0 0.0
    %3859 = vmatpush1.msra.mxu0 0.0
    %3860 = vmatprep.subr.mxu0 0.0
    %3861 = vmatpush1.msra.mxu0 0.0
    %3862 = vmatprep.subr.mxu0 0.0
    %3863 = vmatpush1.msra.mxu0 0.0
    %3864 = vmatprep.subr.mxu0 0.0
    %3865 = vmatpush1.msra.mxu0 0.0
    %3866 = vmatprep.subr.mxu0 0.0
    %3867 = vmatpush1.msra.mxu0 0.0
    %3868 = vmatprep.subr.mxu0 0.0
    %3869 = vmatpush1.msra.mxu0 0.0
    %3870 = vmatprep.subr.mxu0 0.0
    %3871 = vmatpush1.msra.mxu0 0.0
    %3872 = vmatprep.subr.mxu0 0.0
    %3873 = vmatpush1.msra.mxu0 0.0
    %3874 = vmatprep.subr.mxu0 0.0
    %3875 = vmatpush1.msra.mxu0 0.0
    %3876 = vmatprep.subr.mxu0 0.0
    %3877 = vmatpush1.msra.mxu0 0.0
    %3878 = vmatprep.subr.mxu0 0.0
    %3879 = vmatpush1.msra.mxu0 0.0
    %3880 = vmatprep.subr.mxu0 0.0
    %3881 = vmatpush1.msra.mxu0 0.0
    %3882 = vmatprep.subr.mxu0 0.0
    %3883 = vmatpush1.msra.mxu0 0.0
    %3884 = vmatprep.subr.mxu0 0.0
    %3885 = vmatpush1.msra.mxu0 0.0
    %3886 = vmatprep.subr.mxu0 0.0
    %3887 = vmatpush1.msra.mxu0 0.0
    %3888 = vmatprep.subr.mxu0 0.0
    %3889 = vmatpush1.msra.mxu0 0.0
    %3890 = vmatprep.subr.mxu0 0.0
    %3891 = vmatpush1.msra.mxu0 0.0
    %3892 = vmatprep.subr.mxu0 0.0
    %3893 = vmatpush1.msra.mxu0 0.0
    %3894 = vmatprep.subr.mxu0 0.0
    %3895 = vmatpush1.msra.mxu0 0.0
    %3896 = vmatprep.subr.mxu0 0.0
    %3897 = vmatpush1.msra.mxu0 0.0
    %3898 = vmatprep.mubr.f32.mxu0 0.0
    %3899 = vmatmul.mubr.f32.gmra.mrb[0].mxu0 %v3832
    %v3900 = vpop.f32.mrb[0].mxu0
    %v3901 = vadd.f32 %v219, %v3900
    %v3902 = vpop.f32.mrb[0].mxu0
    %3903 = vdwg.mxu0
    %3904 = vmatprep.subr.mxu0 0.0
    %3905 = vmatpush1.msra.mxu0 %v180
    %3906 = vmatprep.subr.mxu0 0.0
    %3907 = vmatpush1.msra.mxu0 %v181
    %3908 = vmatprep.subr.mxu0 0.0
    %3909 = vmatpush1.msra.mxu0 %v182
    %3910 = vmatprep.subr.mxu0 0.0
    %3911 = vmatpush1.msra.mxu0 %v183
    %3912 = vmatprep.subr.mxu0 0.0
    %3913 = vmatpush1.msra.mxu0 0.0
    %3914 = vmatprep.subr.mxu0 0.0
    %3915 = vmatpush1.msra.mxu0 0.0
    %3916 = vmatprep.subr.mxu0 0.0
    %3917 = vmatpush1.msra.mxu0 0.0
    %3918 = vmatprep.subr.mxu0 0.0
    %3919 = vmatpush1.msra.mxu0 0.0
    %3920 = vmatprep.subr.mxu0 0.0
    %3921 = vmatpush1.msra.mxu0 0.0
    %3922 = vmatprep.subr.mxu0 0.0
    %3923 = vmatpush1.msra.mxu0 0.0
    %3924 = vmatprep.subr.mxu0 0.0
    %3925 = vmatpush1.msra.mxu0 0.0
    %3926 = vmatprep.subr.mxu0 0.0
    %3927 = vmatpush1.msra.mxu0 0.0
    %3928 = vmatprep.subr.mxu0 0.0
    %3929 = vmatpush1.msra.mxu0 0.0
    %3930 = vmatprep.subr.mxu0 0.0
    %3931 = vmatpush1.msra.mxu0 0.0
    %3932 = vmatprep.subr.mxu0 0.0
    %3933 = vmatpush1.msra.mxu0 0.0
    %3934 = vmatprep.subr.mxu0 0.0
    %3935 = vmatpush1.msra.mxu0 0.0
    %3936 = vmatprep.subr.mxu0 0.0
    %3937 = vmatpush1.msra.mxu0 0.0
    %3938 = vmatprep.subr.mxu0 0.0
    %3939 = vmatpush1.msra.mxu0 0.0
    %3940 = vmatprep.subr.mxu0 0.0
    %3941 = vmatpush1.msra.mxu0 0.0
    %3942 = vmatprep.subr.mxu0 0.0
    %3943 = vmatpush1.msra.mxu0 0.0
    %3944 = vmatprep.subr.mxu0 0.0
    %3945 = vmatpush1.msra.mxu0 0.0
    %3946 = vmatprep.subr.mxu0 0.0
    %3947 = vmatpush1.msra.mxu0 0.0
    %3948 = vmatprep.subr.mxu0 0.0
    %3949 = vmatpush1.msra.mxu0 0.0
    %3950 = vmatprep.subr.mxu0 0.0
    %3951 = vmatpush1.msra.mxu0 0.0
    %3952 = vmatprep.subr.mxu0 0.0
    %3953 = vmatpush1.msra.mxu0 0.0
    %3954 = vmatprep.subr.mxu0 0.0
    %3955 = vmatpush1.msra.mxu0 0.0
    %3956 = vmatprep.subr.mxu0 0.0
    %3957 = vmatpush1.msra.mxu0 0.0
    %3958 = vmatprep.subr.mxu0 0.0
    %3959 = vmatpush1.msra.mxu0 0.0
    %3960 = vmatprep.subr.mxu0 0.0
    %3961 = vmatpush1.msra.mxu0 0.0
    %3962 = vmatprep.subr.mxu0 0.0
    %3963 = vmatpush1.msra.mxu0 0.0
    %3964 = vmatprep.subr.mxu0 0.0
    %3965 = vmatpush1.msra.mxu0 0.0
    %3966 = vmatprep.subr.mxu0 0.0
    %3967 = vmatpush1.msra.mxu0 0.0
    %3968 = vmatprep.mubr.f32.mxu0 0.0
    %3969 = vmatmul.mubr.f32.gmra.mrb[0].mxu0 %v3832
    %v3970 = vpop.f32.mrb[0].mxu0
    %v3971 = vadd.f32 %v298, %v3970
    %v3972 = vpop.f32.mrb[0].mxu0
    %3973 = vdwg.mxu0
    %3974 = vmatprep.subr.mxu0 0.0
    %3975 = vmatpush1.msra.mxu0 %v185
    %3976 = vmatprep.subr.mxu0 0.0
    %3977 = vmatpush1.msra.mxu0 %v186
    %3978 = vmatprep.subr.mxu0 0.0
    %3979 = vmatpush1.msra.mxu0 %v187
    %3980 = vmatprep.subr.mxu0 0.0
    %3981 = vmatpush1.msra.mxu0 %v188
    %3982 = vmatprep.subr.mxu0 0.0
    %3983 = vmatpush1.msra.mxu0 0.0
    %3984 = vmatprep.subr.mxu0 0.0
    %3985 = vmatpush1.msra.mxu0 0.0
    %3986 = vmatprep.subr.mxu0 0.0
    %3987 = vmatpush1.msra.mxu0 0.0
    %3988 = vmatprep.subr.mxu0 0.0
    %3989 = vmatpush1.msra.mxu0 0.0
    %3990 = vmatprep.subr.mxu0 0.0
    %3991 = vmatpush1.msra.mxu0 0.0
    %3992 = vmatprep.subr.mxu0 0.0
    %3993 = vmatpush1.msra.mxu0 0.0
    %3994 = vmatprep.subr.mxu0 0.0
    %3995 = vmatpush1.msra.mxu0 0.0
    %3996 = vmatprep.subr.mxu0 0.0
    %3997 = vmatpush1.msra.mxu0 0.0
    %3998 = vmatprep.subr.mxu0 0.0
    %3999 = vmatpush1.msra.mxu0 0.0
    %4000 = vmatprep.subr.mxu0 0.0
    %4001 = vmatpush1.msra.mxu0 0.0
    %4002 = vmatprep.subr.mxu0 0.0
    %4003 = vmatpush1.msra.mxu0 0.0
    %4004 = vmatprep.subr.mxu0 0.0
    %4005 = vmatpush1.msra.mxu0 0.0
    %4006 = vmatprep.subr.mxu0 0.0
    %4007 = vmatpush1.msra.mxu0 0.0
    %4008 = vmatprep.subr.mxu0 0.0
    %4009 = vmatpush1.msra.mxu0 0.0
    %4010 = vmatprep.subr.mxu0 0.0
    %4011 = vmatpush1.msra.mxu0 0.0
    %4012 = vmatprep.subr.mxu0 0.0
    %4013 = vmatpush1.msra.mxu0 0.0
    %4014 = vmatprep.subr.mxu0 0.0
    %4015 = vmatpush1.msra.mxu0 0.0
    %4016 = vmatprep.subr.mxu0 0.0
    %4017 = vmatpush1.msra.mxu0 0.0
    %4018 = vmatprep.subr.mxu0 0.0
    %4019 = vmatpush1.msra.mxu0 0.0
    %4020 = vmatprep.subr.mxu0 0.0
    %4021 = vmatpush1.msra.mxu0 0.0
    %4022 = vmatprep.subr.mxu0 0.0
    %4023 = vmatpush1.msra.mxu0 0.0
    %4024 = vmatprep.subr.mxu0 0.0
    %4025 = vmatpush1.msra.mxu0 0.0
    %4026 = vmatprep.subr.mxu0 0.0
    %4027 = vmatpush1.msra.mxu0 0.0
    %4028 = vmatprep.subr.mxu0 0.0
    %4029 = vmatpush1.msra.mxu0 0.0
    %4030 = vmatprep.subr.mxu0 0.0
    %4031 = vmatpush1.msra.mxu0 0.0
    %4032 = vmatprep.subr.mxu0 0.0
    %4033 = vmatpush1.msra.mxu0 0.0
    %4034 = vmatprep.subr.mxu0 0.0
    %4035 = vmatpush1.msra.mxu0 0.0
    %4036 = vmatprep.subr.mxu0 0.0
    %4037 = vmatpush1.msra.mxu0 0.0
    %4038 = vmatprep.mubr.f32.mxu0 0.0
    %4039 = vmatmul.mubr.f32.gmra.mrb[0].mxu0 %v3832
    %v4040 = vpop.f32.mrb[0].mxu0
    %v4041 = vadd.f32 %v374, %v4040
    %v4042 = vpop.f32.mrb[0].mxu0
    %4043 = vdwg.mxu0
    %v4045 = vrot.slane %v3901, 2
    %v4047 = vadd.f32 %v171, %v4045
    %v4048 = vxor.u32 %v4047, 2147483648
    %v4049 = vmul.f32 %v4048, 1.442695
    %v4050 = vpow.pop %v4049
    %v4051 = vadd.f32 %v4050, 1.0
    %v4052 = vrcp.pop %v4051
    %v4053 = vmul.f32 1.0, %v4052
    %v4055 = vrot.slane %v3971, 2
    %4056 = vrot.lane.b32.xlu0 %v4055, 32
    %v4057 = vpop.permute.xlu0 %4056
    %v4059 = vadd.f32 %v171, %v4057
    %v4060 = vxor.u32 %v4059, 2147483648
    %v4061 = vmul.f32 %v4060, 1.442695
    %v4062 = vpow.pop %v4061
    %v4063 = vadd.f32 %v4062, 1.0
    %v4064 = vrcp.pop %v4063
    %v4065 = vmul.f32 1.0, %v4064
    %v4067 = vrot.slane %v4041, 2
    %v4069 = vmul.f32 %v4053, %v4067
    %4071 = vrot.lane.b32.xlu0 %v4069, 64
    %v4072 = vpop.permute.xlu0 %4071
    %v4074 = vadd.f32 %v171, %v4072
    %v4075 = vtanh.pop %v4074
    %v4076 = vsub.f32 1.0, %v4065
    %4078 = vrot.lane.b32.xlu0 %v4075, 96
    %v4079 = vpop.permute.xlu0 %4078
    %v4081 = vmul.f32 %v4076, %v4079
    %v4082 = vrot.slane %v3569, 6
    %v4084 = vmul.f32 %v4065, %v4082
    %v4085 = vadd.f32 %v4081, %v4084
    %v4087 = vrot.slane %v3827, 2
    %v4088 = vsel %vm91, %v4087, 0
    %4090 = vmatprep.subr.mxu0 0.0
    %4091 = vmatpush1.msra.mxu0 %v195
    %4092 = vmatprep.subr.mxu0 0.0
    %4093 = vmatpush1.msra.mxu0 %v196
    %4094 = vmatprep.subr.mxu0 0.0
    %4095 = vmatpush1.msra.mxu0 %v197
    %4096 = vmatprep.subr.mxu0 0.0
    %4097 = vmatpush1.msra.mxu0 %v198
    %4098 = vmatprep.subr.mxu0 0.0
    %4099 = vmatpush1.msra.mxu0 0.0
    %4100 = vmatprep.subr.mxu0 0.0
    %4101 = vmatpush1.msra.mxu0 0.0
    %4102 = vmatprep.subr.mxu0 0.0
    %4103 = vmatpush1.msra.mxu0 0.0
    %4104 = vmatprep.subr.mxu0 0.0
    %4105 = vmatpush1.msra.mxu0 0.0
    %4106 = vmatprep.subr.mxu0 0.0
    %4107 = vmatpush1.msra.mxu0 0.0
    %4108 = vmatprep.subr.mxu0 0.0
    %4109 = vmatpush1.msra.mxu0 0.0
    %4110 = vmatprep.subr.mxu0 0.0
    %4111 = vmatpush1.msra.mxu0 0.0
    %4112 = vmatprep.subr.mxu0 0.0
    %4113 = vmatpush1.msra.mxu0 0.0
    %4114 = vmatprep.subr.mxu0 0.0
    %4115 = vmatpush1.msra.mxu0 0.0
    %4116 = vmatprep.subr.mxu0 0.0
    %4117 = vmatpush1.msra.mxu0 0.0
    %4118 = vmatprep.subr.mxu0 0.0
    %4119 = vmatpush1.msra.mxu0 0.0
    %4120 = vmatprep.subr.mxu0 0.0
    %4121 = vmatpush1.msra.mxu0 0.0
    %4122 = vmatprep.subr.mxu0 0.0
    %4123 = vmatpush1.msra.mxu0 0.0
    %4124 = vmatprep.subr.mxu0 0.0
    %4125 = vmatpush1.msra.mxu0 0.0
    %4126 = vmatprep.subr.mxu0 0.0
    %4127 = vmatpush1.msra.mxu0 0.0
    %4128 = vmatprep.subr.mxu0 0.0
    %4129 = vmatpush1.msra.mxu0 0.0
    %4130 = vmatprep.subr.mxu0 0.0
    %4131 = vmatpush1.msra.mxu0 0.0
    %4132 = vmatprep.subr.mxu0 0.0
    %4133 = vmatpush1.msra.mxu0 0.0
    %4134 = vmatprep.subr.mxu0 0.0
    %4135 = vmatpush1.msra.mxu0 0.0
    %4136 = vmatprep.subr.mxu0 0.0
    %4137 = vmatpush1.msra.mxu0 0.0
    %4138 = vmatprep.subr.mxu0 0.0
    %4139 = vmatpush1.msra.mxu0 0.0
    %4140 = vmatprep.subr.mxu0 0.0
    %4141 = vmatpush1.msra.mxu0 0.0
    %4142 = vmatprep.subr.mxu0 0.0
    %4143 = vmatpush1.msra.mxu0 0.0
    %4144 = vmatprep.subr.mxu0 0.0
    %4145 = vmatpush1.msra.mxu0 0.0
    %4146 = vmatprep.subr.mxu0 0.0
    %4147 = vmatpush1.msra.mxu0 0.0
    %4148 = vmatprep.subr.mxu0 0.0
    %4149 = vmatpush1.msra.mxu0 0.0
    %4150 = vmatprep.subr.mxu0 0.0
    %4151 = vmatpush1.msra.mxu0 0.0
    %4152 = vmatprep.subr.mxu0 0.0
    %4153 = vmatpush1.msra.mxu0 0.0
    %4154 = vmatprep.mubr.f32.mxu0 0.0
    %4155 = vmatmul.mubr.f32.gmra.mrb[0].mxu0 %v4088
    %v4156 = vpop.f32.mrb[0].mxu0
    %v4157 = vadd.f32 %v483, %v4156
    %v4158 = vpop.f32.mrb[0].mxu0
    %4159 = vdwg.mxu0
    %4160 = vmatprep.subr.mxu0 0.0
    %4161 = vmatpush1.msra.mxu0 %v200
    %4162 = vmatprep.subr.mxu0 0.0
    %4163 = vmatpush1.msra.mxu0 %v201
    %4164 = vmatprep.subr.mxu0 0.0
    %4165 = vmatpush1.msra.mxu0 %v202
    %4166 = vmatprep.subr.mxu0 0.0
    %4167 = vmatpush1.msra.mxu0 %v203
    %4168 = vmatprep.subr.mxu0 0.0
    %4169 = vmatpush1.msra.mxu0 0.0
    %4170 = vmatprep.subr.mxu0 0.0
    %4171 = vmatpush1.msra.mxu0 0.0
    %4172 = vmatprep.subr.mxu0 0.0
    %4173 = vmatpush1.msra.mxu0 0.0
    %4174 = vmatprep.subr.mxu0 0.0
    %4175 = vmatpush1.msra.mxu0 0.0
    %4176 = vmatprep.subr.mxu0 0.0
    %4177 = vmatpush1.msra.mxu0 0.0
    %4178 = vmatprep.subr.mxu0 0.0
    %4179 = vmatpush1.msra.mxu0 0.0
    %4180 = vmatprep.subr.mxu0 0.0
    %4181 = vmatpush1.msra.mxu0 0.0
    %4182 = vmatprep.subr.mxu0 0.0
    %4183 = vmatpush1.msra.mxu0 0.0
    %4184 = vmatprep.subr.mxu0 0.0
    %4185 = vmatpush1.msra.mxu0 0.0
    %4186 = vmatprep.subr.mxu0 0.0
    %4187 = vmatpush1.msra.mxu0 0.0
    %4188 = vmatprep.subr.mxu0 0.0
    %4189 = vmatpush1.msra.mxu0 0.0
    %4190 = vmatprep.subr.mxu0 0.0
    %4191 = vmatpush1.msra.mxu0 0.0
    %4192 = vmatprep.subr.mxu0 0.0
    %4193 = vmatpush1.msra.mxu0 0.0
    %4194 = vmatprep.subr.mxu0 0.0
    %4195 = vmatpush1.msra.mxu0 0.0
    %4196 = vmatprep.subr.mxu0 0.0
    %4197 = vmatpush1.msra.mxu0 0.0
    %4198 = vmatprep.subr.mxu0 0.0
    %4199 = vmatpush1.msra.mxu0 0.0
    %4200 = vmatprep.subr.mxu0 0.0
    %4201 = vmatpush1.msra.mxu0 0.0
    %4202 = vmatprep.subr.mxu0 0.0
    %4203 = vmatpush1.msra.mxu0 0.0
    %4204 = vmatprep.subr.mxu0 0.0
    %4205 = vmatpush1.msra.mxu0 0.0
    %4206 = vmatprep.subr.mxu0 0.0
    %4207 = vmatpush1.msra.mxu0 0.0
    %4208 = vmatprep.subr.mxu0 0.0
    %4209 = vmatpush1.msra.mxu0 0.0
    %4210 = vmatprep.subr.mxu0 0.0
    %4211 = vmatpush1.msra.mxu0 0.0
    %4212 = vmatprep.subr.mxu0 0.0
    %4213 = vmatpush1.msra.mxu0 0.0
    %4214 = vmatprep.subr.mxu0 0.0
    %4215 = vmatpush1.msra.mxu0 0.0
    %4216 = vmatprep.subr.mxu0 0.0
    %4217 = vmatpush1.msra.mxu0 0.0
    %4218 = vmatprep.subr.mxu0 0.0
    %4219 = vmatpush1.msra.mxu0 0.0
    %4220 = vmatprep.subr.mxu0 0.0
    %4221 = vmatpush1.msra.mxu0 0.0
    %4222 = vmatprep.subr.mxu0 0.0
    %4223 = vmatpush1.msra.mxu0 0.0
    %4224 = vmatprep.mubr.f32.mxu0 0.0
    %4225 = vmatmul.mubr.f32.gmra.mrb[0].mxu0 %v4088
    %v4226 = vpop.f32.mrb[0].mxu0
    %v4227 = vadd.f32 %v559, %v4226
    %v4228 = vpop.f32.mrb[0].mxu0
    %4229 = vdwg.mxu0
    %4230 = vmatprep.subr.mxu0 0.0
    %4231 = vmatpush1.msra.mxu0 %v205
    %4232 = vmatprep.subr.mxu0 0.0
    %4233 = vmatpush1.msra.mxu0 %v206
    %4234 = vmatprep.subr.mxu0 0.0
    %4235 = vmatpush1.msra.mxu0 %v207
    %4236 = vmatprep.subr.mxu0 0.0
    %4237 = vmatpush1.msra.mxu0 %v208
    %4238 = vmatprep.subr.mxu0 0.0
    %4239 = vmatpush1.msra.mxu0 0.0
    %4240 = vmatprep.subr.mxu0 0.0
    %4241 = vmatpush1.msra.mxu0 0.0
    %4242 = vmatprep.subr.mxu0 0.0
    %4243 = vmatpush1.msra.mxu0 0.0
    %4244 = vmatprep.subr.mxu0 0.0
    %4245 = vmatpush1.msra.mxu0 0.0
    %4246 = vmatprep.subr.mxu0 0.0
    %4247 = vmatpush1.msra.mxu0 0.0
    %4248 = vmatprep.subr.mxu0 0.0
    %4249 = vmatpush1.msra.mxu0 0.0
    %4250 = vmatprep.subr.mxu0 0.0
    %4251 = vmatpush1.msra.mxu0 0.0
    %4252 = vmatprep.subr.mxu0 0.0
    %4253 = vmatpush1.msra.mxu0 0.0
    %4254 = vmatprep.subr.mxu0 0.0
    %4255 = vmatpush1.msra.mxu0 0.0
    %4256 = vmatprep.subr.mxu0 0.0
    %4257 = vmatpush1.msra.mxu0 0.0
    %4258 = vmatprep.subr.mxu0 0.0
    %4259 = vmatpush1.msra.mxu0 0.0
    %4260 = vmatprep.subr.mxu0 0.0
    %4261 = vmatpush1.msra.mxu0 0.0
    %4262 = vmatprep.subr.mxu0 0.0
    %4263 = vmatpush1.msra.mxu0 0.0
    %4264 = vmatprep.subr.mxu0 0.0
    %4265 = vmatpush1.msra.mxu0 0.0
    %4266 = vmatprep.subr.mxu0 0.0
    %4267 = vmatpush1.msra.mxu0 0.0
    %4268 = vmatprep.subr.mxu0 0.0
    %4269 = vmatpush1.msra.mxu0 0.0
    %4270 = vmatprep.subr.mxu0 0.0
    %4271 = vmatpush1.msra.mxu0 0.0
    %4272 = vmatprep.subr.mxu0 0.0
    %4273 = vmatpush1.msra.mxu0 0.0
    %4274 = vmatprep.subr.mxu0 0.0
    %4275 = vmatpush1.msra.mxu0 0.0
    %4276 = vmatprep.subr.mxu0 0.0
    %4277 = vmatpush1.msra.mxu0 0.0
    %4278 = vmatprep.subr.mxu0 0.0
    %4279 = vmatpush1.msra.mxu0 0.0
    %4280 = vmatprep.subr.mxu0 0.0
    %4281 = vmatpush1.msra.mxu0 0.0
    %4282 = vmatprep.subr.mxu0 0.0
    %4283 = vmatpush1.msra.mxu0 0.0
    %4284 = vmatprep.subr.mxu0 0.0
    %4285 = vmatpush1.msra.mxu0 0.0
    %4286 = vmatprep.subr.mxu0 0.0
    %4287 = vmatpush1.msra.mxu0 0.0
    %4288 = vmatprep.subr.mxu0 0.0
    %4289 = vmatpush1.msra.mxu0 0.0
    %4290 = vmatprep.subr.mxu0 0.0
    %4291 = vmatpush1.msra.mxu0 0.0
    %4292 = vmatprep.subr.mxu0 0.0
    %4293 = vmatpush1.msra.mxu0 0.0
    %4294 = vmatprep.mubr.f32.mxu0 0.0
    %4295 = vmatmul.mubr.f32.gmra.mrb[0].mxu0 %v4088
    %v4296 = vpop.f32.mrb[0].mxu0
    %v4297 = vadd.f32 %v635, %v4296
    %v4298 = vpop.f32.mrb[0].mxu0
    %4299 = vdwg.mxu0
    %4301 = vrot.lane.b32.xlu0 %v4157, 96
    %v4302 = vpop.permute.xlu0 %4301
    %v4304 = vadd.f32 %v165, %v4302
    %v4305 = vxor.u32 %v4304, 2147483648
    %v4306 = vmul.f32 %v4305, 1.442695
    %v4307 = vpow.pop %v4306
    %v4308 = vadd.f32 %v4307, 1.0
    %v4309 = vrcp.pop %v4308
    %v4310 = vmul.f32 1.0, %v4309
    %v4311 = vadd.f32 %v167, %v4227
    %v4312 = vxor.u32 %v4311, 2147483648
    %v4313 = vmul.f32 %v4312, 1.442695
    %v4314 = vpow.pop %v4313
    %v4315 = vadd.f32 %v4314, 1.0
    %v4316 = vrcp.pop %v4315
    %v4317 = vmul.f32 1.0, %v4316
    %4319 = vrot.lane.b32.xlu0 %v4297, 96
    %v4320 = vpop.permute.xlu0 %4319
    %v4322 = vmul.f32 %v4310, %v4320
    %4324 = vrot.lane.b32.xlu0 %v4322, 64
    %v4325 = vpop.permute.xlu0 %4324
    %v4327 = vadd.f32 %v167, %v4325
    %v4328 = vtanh.pop %v4327
    %v4329 = vsub.f32 1.0, %v4317
    %4331 = vrot.lane.b32.xlu0 %v4328, 96
    %v4332 = vpop.permute.xlu0 %4331
    %v4334 = vmul.f32 %v4329, %v4332
    %v4336 = vmul.f32 %v4317, %v4087
    %v4337 = vadd.f32 %v4334, %v4336
    %4340 = vrot.lane.b32.xlu0 %v4337, 32
    %v4341 = vpop.permute.xlu0 %4340
    %v4343 = vsel %vm91, %v751, %v4341
    %v4344 = vld [vmem:[%s5] sm:$0xff]
    %v4345 = vld [vmem:[%s5 + $0x8] sm:$0xff]
    %v4346 = vld [vmem:[%s5 + $0x10] sm:$0xff]
    %v4347 = vld [vmem:[%s5 + $0x18] sm:$0xff]
    %v4348 = vld [vmem:[%s5 + $0x20] sm:$0xff]
    %v4349 = vld [vmem:[%s5 + $0x28] sm:$0xff]
    %v4350 = vld [vmem:[%s5 + $0x30] sm:$0xff]
    %v4351 = vld [vmem:[%s5 + $0x38] sm:$0xff]
    %v4352 = vld [vmem:[%s5 + $0x40] sm:$0xff]
    %v4353 = vld [vmem:[%s5 + $0x48] sm:$0xff]
    %v4354 = vld [vmem:[%s5 + $0x50] sm:$0xff]
    %v4355 = vld [vmem:[%s5 + $0x58] sm:$0xff]
    %v4356 = vld [vmem:[%s5 + $0x60] sm:$0xff]
    %v4357 = vld [vmem:[%s5 + $0x68] sm:$0xff]
    %v4358 = vld [vmem:[%s5 + $0x70] sm:$0xff]
    %v4359 = vld [vmem:[%s5 + $0x78] sm:$0xff]
    %v4360 = vld [vmem:[%s6] sm:$0x3]
    %v4362 = vlaneseq
    %v4363 = vshrl.u32 %v4362, 7
    %v4364 = vsub.s32 0, %v4363
    %v4365 = vrot.slane %v4360, %v4364
    %v4366 = vlaneseq
    %v4367 = vshrl.u32 %v4366, 7
    %v4368 = vsub.s32 1, %v4367
    %v4369 = vrot.slane %v4360, %v4368
    %vm4372 = vcmask 523264
    %v4374 = vsel %vm4372, %v4343, 0
    %4376 = vmatprep.subr.mxu0 %v4345
    %4377 = vmatpush1.msra.mxu0 %v4344
    %4378 = vmatprep.subr.mxu0 %v4347
    %4379 = vmatpush1.msra.mxu0 %v4346
    %4380 = vmatprep.subr.mxu0 %v4349
    %4381 = vmatpush1.msra.mxu0 %v4348
    %4382 = vmatprep.subr.mxu0 %v4351
    %4383 = vmatpush1.msra.mxu0 %v4350
    %4384 = vmatprep.subr.mxu0 %v4353
    %4385 = vmatpush1.msra.mxu0 %v4352
    %4386 = vmatprep.subr.mxu0 %v4355
    %4387 = vmatpush1.msra.mxu0 %v4354
    %4388 = vmatprep.subr.mxu0 %v4357
    %4389 = vmatpush1.msra.mxu0 %v4356
    %4390 = vmatprep.subr.mxu0 %v4359
    %4391 = vmatpush1.msra.mxu0 %v4358
    %4392 = vmatprep.subr.mxu0 0.0
    %4393 = vmatpush1.msra.mxu0 0.0
    %4394 = vmatprep.subr.mxu0 0.0
    %4395 = vmatpush1.msra.mxu0 0.0
    %4396 = vmatprep.subr.mxu0 0.0
    %4397 = vmatpush1.msra.mxu0 0.0
    %4398 = vmatprep.subr.mxu0 0.0
    %4399 = vmatpush1.msra.mxu0 0.0
    %4400 = vmatprep.subr.mxu0 0.0
    %4401 = vmatpush1.msra.mxu0 0.0
    %4402 = vmatprep.subr.mxu0 0.0
    %4403 = vmatpush1.msra.mxu0 0.0
    %4404 = vmatprep.subr.mxu0 0.0
    %4405 = vmatpush1.msra.mxu0 0.0
    %4406 = vmatprep.subr.mxu0 0.0
    %4407 = vmatpush1.msra.mxu0 0.0
    %4408 = vmatprep.subr.mxu0 0.0
    %4409 = vmatpush1.msra.mxu0 0.0
    %4410 = vmatprep.subr.mxu0 0.0
    %4411 = vmatpush1.msra.mxu0 0.0
    %4412 = vmatprep.subr.mxu0 0.0
    %4413 = vmatpush1.msra.mxu0 0.0
    %4414 = vmatprep.subr.mxu0 0.0
    %4415 = vmatpush1.msra.mxu0 0.0
    %4416 = vmatprep.subr.mxu0 0.0
    %4417 = vmatpush1.msra.mxu0 0.0
    %4418 = vmatprep.subr.mxu0 0.0
    %4419 = vmatpush1.msra.mxu0 0.0
    %4420 = vmatprep.subr.mxu0 0.0
    %4421 = vmatpush1.msra.mxu0 0.0
    %4422 = vmatprep.subr.mxu0 0.0
    %4423 = vmatpush1.msra.mxu0 0.0
    %4424 = vmatprep.subr.mxu0 0.0
    %4425 = vmatpush1.msra.mxu0 0.0
    %4426 = vmatprep.subr.mxu0 0.0
    %4427 = vmatpush1.msra.mxu0 0.0
    %4428 = vmatprep.subr.mxu0 0.0
    %4429 = vmatpush1.msra.mxu0 0.0
    %4430 = vmatprep.subr.mxu0 0.0
    %4431 = vmatpush1.msra.mxu0 0.0
    %4432 = vmatprep.subr.mxu0 0.0
    %4433 = vmatpush1.msra.mxu0 0.0
    %4434 = vmatprep.subr.mxu0 0.0
    %4435 = vmatpush1.msra.mxu0 0.0
    %4436 = vmatprep.subr.mxu0 0.0
    %4437 = vmatpush1.msra.mxu0 0.0
    %4438 = vmatprep.subr.mxu0 0.0
    %4439 = vmatpush1.msra.mxu0 0.0
    %4440 = vmatprep.mubr.f32.mxu0 0.0
    %4441 = vmatmul.mubr.f32.gmra.mrb[0].mxu0 %v4374
    %v4442 = vpop.f32.mrb[0].mxu0
    %v4443 = vadd.f32 %v4365, %v4442
    %v4444 = vpop.f32.mrb[0].mxu0
    %v4445 = vadd.f32 %v4369, %v4444
    %4446 = vdwg.mxu0
    %4447 = vrot.lane.b32.xlu0 %v1005, 96
    %v4448 = vpop.permute.xlu0 %4447
    %4450 = vrot.lane.b32.xlu0 %v3827, 32
    %v4451 = vpop.permute.xlu0 %4450
    %v4453 = vsel %vm91, %v4448, %v4451
    %v4455 = vrot.slane %v4453, 2
    %v4456 = vsel %vm4372, %v4455, 0
    %4458 = vmatprep.subr.mxu0 %v4345
    %4459 = vmatpush1.msra.mxu0 %v4344
    %4460 = vmatprep.subr.mxu0 %v4347
    %4461 = vmatpush1.msra.mxu0 %v4346
    %4462 = vmatprep.subr.mxu0 %v4349
    %4463 = vmatpush1.msra.mxu0 %v4348
    %4464 = vmatprep.subr.mxu0 %v4351
    %4465 = vmatpush1.msra.mxu0 %v4350
    %4466 = vmatprep.subr.mxu0 %v4353
    %4467 = vmatpush1.msra.mxu0 %v4352
    %4468 = vmatprep.subr.mxu0 %v4355
    %4469 = vmatpush1.msra.mxu0 %v4354
    %4470 = vmatprep.subr.mxu0 %v4357
    %4471 = vmatpush1.msra.mxu0 %v4356
    %4472 = vmatprep.subr.mxu0 %v4359
    %4473 = vmatpush1.msra.mxu0 %v4358
    %4474 = vmatprep.subr.mxu0 0.0
    %4475 = vmatpush1.msra.mxu0 0.0
    %4476 = vmatprep.subr.mxu0 0.0
    %4477 = vmatpush1.msra.mxu0 0.0
    %4478 = vmatprep.subr.mxu0 0.0
    %4479 = vmatpush1.msra.mxu0 0.0
    %4480 = vmatprep.subr.mxu0 0.0
    %4481 = vmatpush1.msra.mxu0 0.0
    %4482 = vmatprep.subr.mxu0 0.0
    %4483 = vmatpush1.msra.mxu0 0.0
    %4484 = vmatprep.subr.mxu0 0.0
    %4485 = vmatpush1.msra.mxu0 0.0
    %4486 = vmatprep.subr.mxu0 0.0
    %4487 = vmatpush1.msra.mxu0 0.0
    %4488 = vmatprep.subr.mxu0 0.0
    %4489 = vmatpush1.msra.mxu0 0.0
    %4490 = vmatprep.subr.mxu0 0.0
    %4491 = vmatpush1.msra.mxu0 0.0
    %4492 = vmatprep.subr.mxu0 0.0
    %4493 = vmatpush1.msra.mxu0 0.0
    %4494 = vmatprep.subr.mxu0 0.0
    %4495 = vmatpush1.msra.mxu0 0.0
    %4496 = vmatprep.subr.mxu0 0.0
    %4497 = vmatpush1.msra.mxu0 0.0
    %4498 = vmatprep.subr.mxu0 0.0
    %4499 = vmatpush1.msra.mxu0 0.0
    %4500 = vmatprep.subr.mxu0 0.0
    %4501 = vmatpush1.msra.mxu0 0.0
    %4502 = vmatprep.subr.mxu0 0.0
    %4503 = vmatpush1.msra.mxu0 0.0
    %4504 = vmatprep.subr.mxu0 0.0
    %4505 = vmatpush1.msra.mxu0 0.0
    %4506 = vmatprep.subr.mxu0 0.0
    %4507 = vmatpush1.msra.mxu0 0.0
    %4508 = vmatprep.subr.mxu0 0.0
    %4509 = vmatpush1.msra.mxu0 0.0
    %4510 = vmatprep.subr.mxu0 0.0
    %4511 = vmatpush1.msra.mxu0 0.0
    %4512 = vmatprep.subr.mxu0 0.0
    %4513 = vmatpush1.msra.mxu0 0.0
    %4514 = vmatprep.subr.mxu0 0.0
    %4515 = vmatpush1.msra.mxu0 0.0
    %4516 = vmatprep.subr.mxu0 0.0
    %4517 = vmatpush1.msra.mxu0 0.0
    %4518 = vmatprep.subr.mxu0 0.0
    %4519 = vmatpush1.msra.mxu0 0.0
    %4520 = vmatprep.subr.mxu0 0.0
    %4521 = vmatpush1.msra.mxu0 0.0
    %4522 = vmatprep.mubr.f32.mxu0 0.0
    %4523 = vmatmul.mubr.f32.gmra.mrb[0].mxu0 %v4456
    %v4524 = vpop.f32.mrb[0].mxu0
    %v4525 = vadd.f32 %v4365, %v4524
    %v4526 = vpop.f32.mrb[0].mxu0
    %v4527 = vadd.f32 %v4369, %v4526
    %4528 = vdwg.mxu0
    %4529 = vrot.lane.b32.xlu0 %v1521, 96
    %v4530 = vpop.permute.xlu0 %4529
    %4532 = vrot.lane.b32.xlu0 %v3311, 32
    %v4533 = vpop.permute.xlu0 %4532
    %v4535 = vsel %vm91, %v4530, %v4533
    %v4537 = vrot.slane %v4535, 4
    %v4538 = vsel %vm4372, %v4537, 0
    %4540 = vmatprep.subr.mxu0 %v4345
    %4541 = vmatpush1.msra.mxu0 %v4344
    %4542 = vmatprep.subr.mxu0 %v4347
    %4543 = vmatpush1.msra.mxu0 %v4346
    %4544 = vmatprep.subr.mxu0 %v4349
    %4545 = vmatpush1.msra.mxu0 %v4348
    %4546 = vmatprep.subr.mxu0 %v4351
    %4547 = vmatpush1.msra.mxu0 %v4350
    %4548 = vmatprep.subr.mxu0 %v4353
    %4549 = vmatpush1.msra.mxu0 %v4352
    %4550 = vmatprep.subr.mxu0 %v4355
    %4551 = vmatpush1.msra.mxu0 %v4354
    %4552 = vmatprep.subr.mxu0 %v4357
    %4553 = vmatpush1.msra.mxu0 %v4356
    %4554 = vmatprep.subr.mxu0 %v4359
    %4555 = vmatpush1.msra.mxu0 %v4358
    %4556 = vmatprep.subr.mxu0 0.0
    %4557 = vmatpush1.msra.mxu0 0.0
    %4558 = vmatprep.subr.mxu0 0.0
    %4559 = vmatpush1.msra.mxu0 0.0
    %4560 = vmatprep.subr.mxu0 0.0
    %4561 = vmatpush1.msra.mxu0 0.0
    %4562 = vmatprep.subr.mxu0 0.0
    %4563 = vmatpush1.msra.mxu0 0.0
    %4564 = vmatprep.subr.mxu0 0.0
    %4565 = vmatpush1.msra.mxu0 0.0
    %4566 = vmatprep.subr.mxu0 0.0
    %4567 = vmatpush1.msra.mxu0 0.0
    %4568 = vmatprep.subr.mxu0 0.0
    %4569 = vmatpush1.msra.mxu0 0.0
    %4570 = vmatprep.subr.mxu0 0.0
    %4571 = vmatpush1.msra.mxu0 0.0
    %4572 = vmatprep.subr.mxu0 0.0
    %4573 = vmatpush1.msra.mxu0 0.0
    %4574 = vmatprep.subr.mxu0 0.0
    %4575 = vmatpush1.msra.mxu0 0.0
    %4576 = vmatprep.subr.mxu0 0.0
    %4577 = vmatpush1.msra.mxu0 0.0
    %4578 = vmatprep.subr.mxu0 0.0
    %4579 = vmatpush1.msra.mxu0 0.0
    %4580 = vmatprep.subr.mxu0 0.0
    %4581 = vmatpush1.msra.mxu0 0.0
    %4582 = vmatprep.subr.mxu0 0.0
    %4583 = vmatpush1.msra.mxu0 0.0
    %4584 = vmatprep.subr.mxu0 0.0
    %4585 = vmatpush1.msra.mxu0 0.0
    %4586 = vmatprep.subr.mxu0 0.0
    %4587 = vmatpush1.msra.mxu0 0.0
    %4588 = vmatprep.subr.mxu0 0.0
    %4589 = vmatpush1.msra.mxu0 0.0
    %4590 = vmatprep.subr.mxu0 0.0
    %4591 = vmatpush1.msra.mxu0 0.0
    %4592 = vmatprep.subr.mxu0 0.0
    %4593 = vmatpush1.msra.mxu0 0.0
    %4594 = vmatprep.subr.mxu0 0.0
    %4595 = vmatpush1.msra.mxu0 0.0
    %4596 = vmatprep.subr.mxu0 0.0
    %4597 = vmatpush1.msra.mxu0 0.0
    %4598 = vmatprep.subr.mxu0 0.0
    %4599 = vmatpush1.msra.mxu0 0.0
    %4600 = vmatprep.subr.mxu0 0.0
    %4601 = vmatpush1.msra.mxu0 0.0
    %4602 = vmatprep.subr.mxu0 0.0
    %4603 = vmatpush1.msra.mxu0 0.0
    %4604 = vmatprep.mubr.f32.mxu0 0.0
    %4605 = vmatmul.mubr.f32.gmra.mrb[0].mxu0 %v4538
    %v4606 = vpop.f32.mrb[0].mxu0
    %v4607 = vadd.f32 %v4365, %v4606
    %v4608 = vpop.f32.mrb[0].mxu0
    %v4609 = vadd.f32 %v4369, %v4608
    %4610 = vdwg.mxu0
    %4611 = vrot.lane.b32.xlu0 %v2037, 96
    %v4612 = vpop.permute.xlu0 %4611
    %4614 = vrot.lane.b32.xlu0 %v2796, 32
    %v4615 = vpop.permute.xlu0 %4614
    %v4617 = vsel %vm91, %v4612, %v4615
    %v4619 = vrot.slane %v4617, 6
    %v4620 = vsel %vm4372, %v4619, 0
    %4622 = vmatprep.subr.mxu0 %v4345
    %4623 = vmatpush1.msra.mxu0 %v4344
    %4624 = vmatprep.subr.mxu0 %v4347
    %4625 = vmatpush1.msra.mxu0 %v4346
    %4626 = vmatprep.subr.mxu0 %v4349
    %4627 = vmatpush1.msra.mxu0 %v4348
    %4628 = vmatprep.subr.mxu0 %v4351
    %4629 = vmatpush1.msra.mxu0 %v4350
    %4630 = vmatprep.subr.mxu0 %v4353
    %4631 = vmatpush1.msra.mxu0 %v4352
    %4632 = vmatprep.subr.mxu0 %v4355
    %4633 = vmatpush1.msra.mxu0 %v4354
    %4634 = vmatprep.subr.mxu0 %v4357
    %4635 = vmatpush1.msra.mxu0 %v4356
    %4636 = vmatprep.subr.mxu0 %v4359
    %4637 = vmatpush1.msra.mxu0 %v4358
    %4638 = vmatprep.subr.mxu0 0.0
    %4639 = vmatpush1.msra.mxu0 0.0
    %4640 = vmatprep.subr.mxu0 0.0
    %4641 = vmatpush1.msra.mxu0 0.0
    %4642 = vmatprep.subr.mxu0 0.0
    %4643 = vmatpush1.msra.mxu0 0.0
    %4644 = vmatprep.subr.mxu0 0.0
    %4645 = vmatpush1.msra.mxu0 0.0
    %4646 = vmatprep.subr.mxu0 0.0
    %4647 = vmatpush1.msra.mxu0 0.0
    %4648 = vmatprep.subr.mxu0 0.0
    %4649 = vmatpush1.msra.mxu0 0.0
    %4650 = vmatprep.subr.mxu0 0.0
    %4651 = vmatpush1.msra.mxu0 0.0
    %4652 = vmatprep.subr.mxu0 0.0
    %4653 = vmatpush1.msra.mxu0 0.0
    %4654 = vmatprep.subr.mxu0 0.0
    %4655 = vmatpush1.msra.mxu0 0.0
    %4656 = vmatprep.subr.mxu0 0.0
    %4657 = vmatpush1.msra.mxu0 0.0
    %4658 = vmatprep.subr.mxu0 0.0
    %4659 = vmatpush1.msra.mxu0 0.0
    %4660 = vmatprep.subr.mxu0 0.0
    %4661 = vmatpush1.msra.mxu0 0.0
    %4662 = vmatprep.subr.mxu0 0.0
    %4663 = vmatpush1.msra.mxu0 0.0
    %4664 = vmatprep.subr.mxu0 0.0
    %4665 = vmatpush1.msra.mxu0 0.0
    %4666 = vmatprep.subr.mxu0 0.0
    %4667 = vmatpush1.msra.mxu0 0.0
    %4668 = vmatprep.subr.mxu0 0.0
    %4669 = vmatpush1.msra.mxu0 0.0
    %4670 = vmatprep.subr.mxu0 0.0
    %4671 = vmatpush1.msra.mxu0 0.0
    %4672 = vmatprep.subr.mxu0 0.0
    %4673 = vmatpush1.msra.mxu0 0.0
    %4674 = vmatprep.subr.mxu0 0.0
    %4675 = vmatpush1.msra.mxu0 0.0
    %4676 = vmatprep.subr.mxu0 0.0
    %4677 = vmatpush1.msra.mxu0 0.0
    %4678 = vmatprep.subr.mxu0 0.0
    %4679 = vmatpush1.msra.mxu0 0.0
    %4680 = vmatprep.subr.mxu0 0.0
    %4681 = vmatpush1.msra.mxu0 0.0
    %4682 = vmatprep.subr.mxu0 0.0
    %4683 = vmatpush1.msra.mxu0 0.0
    %4684 = vmatprep.subr.mxu0 0.0
    %4685 = vmatpush1.msra.mxu0 0.0
    %4686 = vmatprep.mubr.f32.mxu0 0.0
    %4687 = vmatmul.mubr.f32.gmra.mrb[0].mxu0 %v4620
    %v4688 = vpop.f32.mrb[0].mxu0
    %v4689 = vadd.f32 %v4365, %v4688
    %v4690 = vpop.f32.mrb[0].mxu0
    %v4691 = vadd.f32 %v4369, %v4690
    %4692 = vdwg.mxu0
    %4694 = vrot.lane.b32.xlu0 %v2289, 32
    %v4695 = vpop.permute.xlu0 %4694
    %v4697 = vsel %vm91, %v2799, %v4695
    %v4699 = vsel %vm4372, %v4697, 0
    %4701 = vmatprep.subr.mxu0 %v4345
    %4702 = vmatpush1.msra.mxu0 %v4344
    %4703 = vmatprep.subr.mxu0 %v4347
    %4704 = vmatpush1.msra.mxu0 %v4346
    %4705 = vmatprep.subr.mxu0 %v4349
    %4706 = vmatpush1.msra.mxu0 %v4348
    %4707 = vmatprep.subr.mxu0 %v4351
    %4708 = vmatpush1.msra.mxu0 %v4350
    %4709 = vmatprep.subr.mxu0 %v4353
    %4710 = vmatpush1.msra.mxu0 %v4352
    %4711 = vmatprep.subr.mxu0 %v4355
    %4712 = vmatpush1.msra.mxu0 %v4354
    %4713 = vmatprep.subr.mxu0 %v4357
    %4714 = vmatpush1.msra.mxu0 %v4356
    %4715 = vmatprep.subr.mxu0 %v4359
    %4716 = vmatpush1.msra.mxu0 %v4358
    %4717 = vmatprep.subr.mxu0 0.0
    %4718 = vmatpush1.msra.mxu0 0.0
    %4719 = vmatprep.subr.mxu0 0.0
    %4720 = vmatpush1.msra.mxu0 0.0
    %4721 = vmatprep.subr.mxu0 0.0
    %4722 = vmatpush1.msra.mxu0 0.0
    %4723 = vmatprep.subr.mxu0 0.0
    %4724 = vmatpush1.msra.mxu0 0.0
    %4725 = vmatprep.subr.mxu0 0.0
    %4726 = vmatpush1.msra.mxu0 0.0
    %4727 = vmatprep.subr.mxu0 0.0
    %4728 = vmatpush1.msra.mxu0 0.0
    %4729 = vmatprep.subr.mxu0 0.0
    %4730 = vmatpush1.msra.mxu0 0.0
    %4731 = vmatprep.subr.mxu0 0.0
    %4732 = vmatpush1.msra.mxu0 0.0
    %4733 = vmatprep.subr.mxu0 0.0
    %4734 = vmatpush1.msra.mxu0 0.0
    %4735 = vmatprep.subr.mxu0 0.0
    %4736 = vmatpush1.msra.mxu0 0.0
    %4737 = vmatprep.subr.mxu0 0.0
    %4738 = vmatpush1.msra.mxu0 0.0
    %4739 = vmatprep.subr.mxu0 0.0
    %4740 = vmatpush1.msra.mxu0 0.0
    %4741 = vmatprep.subr.mxu0 0.0
    %4742 = vmatpush1.msra.mxu0 0.0
    %4743 = vmatprep.subr.mxu0 0.0
    %4744 = vmatpush1.msra.mxu0 0.0
    %4745 = vmatprep.subr.mxu0 0.0
    %4746 = vmatpush1.msra.mxu0 0.0
    %4747 = vmatprep.subr.mxu0 0.0
    %4748 = vmatpush1.msra.mxu0 0.0
    %4749 = vmatprep.subr.mxu0 0.0
    %4750 = vmatpush1.msra.mxu0 0.0
    %4751 = vmatprep.subr.mxu0 0.0
    %4752 = vmatpush1.msra.mxu0 0.0
    %4753 = vmatprep.subr.mxu0 0.0
    %4754 = vmatpush1.msra.mxu0 0.0
    %4755 = vmatprep.subr.mxu0 0.0
    %4756 = vmatpush1.msra.mxu0 0.0
    %4757 = vmatprep.subr.mxu0 0.0
    %4758 = vmatpush1.msra.mxu0 0.0
    %4759 = vmatprep.subr.mxu0 0.0
    %4760 = vmatpush1.msra.mxu0 0.0
    %4761 = vmatprep.subr.mxu0 0.0
    %4762 = vmatpush1.msra.mxu0 0.0
    %4763 = vmatprep.subr.mxu0 0.0
    %4764 = vmatpush1.msra.mxu0 0.0
    %4765 = vmatprep.mubr.f32.mxu0 0.0
    %4766 = vmatmul.mubr.f32.gmra.mrb[0].mxu0 %v4699
    %v4767 = vpop.f32.mrb[0].mxu0
    %v4768 = vadd.f32 %v4365, %v4767
    %v4769 = vpop.f32.mrb[0].mxu0
    %v4770 = vadd.f32 %v4369, %v4769
    %4771 = vdwg.mxu0
    %4772 = vrot.lane.b32.xlu0 %v3053, 96
    %v4773 = vpop.permute.xlu0 %4772
    %4775 = vrot.lane.b32.xlu0 %v1779, 32
    %v4776 = vpop.permute.xlu0 %4775
    %v4778 = vsel %vm91, %v4773, %v4776
    %v4780 = vrot.slane %v4778, 2
    %v4781 = vsel %vm4372, %v4780, 0
    %4783 = vmatprep.subr.mxu0 %v4345
    %4784 = vmatpush1.msra.mxu0 %v4344
    %4785 = vmatprep.subr.mxu0 %v4347
    %4786 = vmatpush1.msra.mxu0 %v4346
    %4787 = vmatprep.subr.mxu0 %v4349
    %4788 = vmatpush1.msra.mxu0 %v4348
    %4789 = vmatprep.subr.mxu0 %v4351
    %4790 = vmatpush1.msra.mxu0 %v4350
    %4791 = vmatprep.subr.mxu0 %v4353
    %4792 = vmatpush1.msra.mxu0 %v4352
    %4793 = vmatprep.subr.mxu0 %v4355
    %4794 = vmatpush1.msra.mxu0 %v4354
    %4795 = vmatprep.subr.mxu0 %v4357
    %4796 = vmatpush1.msra.mxu0 %v4356
    %4797 = vmatprep.subr.mxu0 %v4359
    %4798 = vmatpush1.msra.mxu0 %v4358
    %4799 = vmatprep.subr.mxu0 0.0
    %4800 = vmatpush1.msra.mxu0 0.0
    %4801 = vmatprep.subr.mxu0 0.0
    %4802 = vmatpush1.msra.mxu0 0.0
    %4803 = vmatprep.subr.mxu0 0.0
    %4804 = vmatpush1.msra.mxu0 0.0
    %4805 = vmatprep.subr.mxu0 0.0
    %4806 = vmatpush1.msra.mxu0 0.0
    %4807 = vmatprep.subr.mxu0 0.0
    %4808 = vmatpush1.msra.mxu0 0.0
    %4809 = vmatprep.subr.mxu0 0.0
    %4810 = vmatpush1.msra.mxu0 0.0
    %4811 = vmatprep.subr.mxu0 0.0
    %4812 = vmatpush1.msra.mxu0 0.0
    %4813 = vmatprep.subr.mxu0 0.0
    %4814 = vmatpush1.msra.mxu0 0.0
    %4815 = vmatprep.subr.mxu0 0.0
    %4816 = vmatpush1.msra.mxu0 0.0
    %4817 = vmatprep.subr.mxu0 0.0
    %4818 = vmatpush1.msra.mxu0 0.0
    %4819 = vmatprep.subr.mxu0 0.0
    %4820 = vmatpush1.msra.mxu0 0.0
    %4821 = vmatprep.subr.mxu0 0.0
    %4822 = vmatpush1.msra.mxu0 0.0
    %4823 = vmatprep.subr.mxu0 0.0
    %4824 = vmatpush1.msra.mxu0 0.0
    %4825 = vmatprep.subr.mxu0 0.0
    %4826 = vmatpush1.msra.mxu0 0.0
    %4827 = vmatprep.subr.mxu0 0.0
    %4828 = vmatpush1.msra.mxu0 0.0
    %4829 = vmatprep.subr.mxu0 0.0
    %4830 = vmatpush1.msra.mxu0 0.0
    %4831 = vmatprep.subr.mxu0 0.0
    %4832 = vmatpush1.msra.mxu0 0.0
    %4833 = vmatprep.subr.mxu0 0.0
    %4834 = vmatpush1.msra.mxu0 0.0
    %4835 = vmatprep.subr.mxu0 0.0
    %4836 = vmatpush1.msra.mxu0 0.0
    %4837 = vmatprep.subr.mxu0 0.0
    %4838 = vmatpush1.msra.mxu0 0.0
    %4839 = vmatprep.subr.mxu0 0.0
    %4840 = vmatpush1.msra.mxu0 0.0
    %4841 = vmatprep.subr.mxu0 0.0
    %4842 = vmatpush1.msra.mxu0 0.0
    %4843 = vmatprep.subr.mxu0 0.0
    %4844 = vmatpush1.msra.mxu0 0.0
    %4845 = vmatprep.subr.mxu0 0.0
    %4846 = vmatpush1.msra.mxu0 0.0
    %4847 = vmatprep.mubr.f32.mxu0 0.0
    %4848 = vmatmul.mubr.f32.gmra.mrb[0].mxu0 %v4781
    %v4849 = vpop.f32.mrb[0].mxu0
    %v4850 = vadd.f32 %v4365, %v4849
    %v4851 = vpop.f32.mrb[0].mxu0
    %v4852 = vadd.f32 %v4369, %v4851
    %4853 = vdwg.mxu0
    %4854 = vrot.lane.b32.xlu0 %v3569, 96
    %v4855 = vpop.permute.xlu0 %4854
    %4857 = vrot.lane.b32.xlu0 %v1263, 32
    %v4858 = vpop.permute.xlu0 %4857
    %v4860 = vsel %vm91, %v4855, %v4858
    %v4862 = vrot.slane %v4860, 4
    %v4863 = vsel %vm4372, %v4862, 0
    %4865 = vmatprep.subr.mxu0 %v4345
    %4866 = vmatpush1.msra.mxu0 %v4344
    %4867 = vmatprep.subr.mxu0 %v4347
    %4868 = vmatpush1.msra.mxu0 %v4346
    %4869 = vmatprep.subr.mxu0 %v4349
    %4870 = vmatpush1.msra.mxu0 %v4348
    %4871 = vmatprep.subr.mxu0 %v4351
    %4872 = vmatpush1.msra.mxu0 %v4350
    %4873 = vmatprep.subr.mxu0 %v4353
    %4874 = vmatpush1.msra.mxu0 %v4352
    %4875 = vmatprep.subr.mxu0 %v4355
    %4876 = vmatpush1.msra.mxu0 %v4354
    %4877 = vmatprep.subr.mxu0 %v4357
    %4878 = vmatpush1.msra.mxu0 %v4356
    %4879 = vmatprep.subr.mxu0 %v4359
    %4880 = vmatpush1.msra.mxu0 %v4358
    %4881 = vmatprep.subr.mxu0 0.0
    %4882 = vmatpush1.msra.mxu0 0.0
    %4883 = vmatprep.subr.mxu0 0.0
    %4884 = vmatpush1.msra.mxu0 0.0
    %4885 = vmatprep.subr.mxu0 0.0
    %4886 = vmatpush1.msra.mxu0 0.0
    %4887 = vmatprep.subr.mxu0 0.0
    %4888 = vmatpush1.msra.mxu0 0.0
    %4889 = vmatprep.subr.mxu0 0.0
    %4890 = vmatpush1.msra.mxu0 0.0
    %4891 = vmatprep.subr.mxu0 0.0
    %4892 = vmatpush1.msra.mxu0 0.0
    %4893 = vmatprep.subr.mxu0 0.0
    %4894 = vmatpush1.msra.mxu0 0.0
    %4895 = vmatprep.subr.mxu0 0.0
    %4896 = vmatpush1.msra.mxu0 0.0
    %4897 = vmatprep.subr.mxu0 0.0
    %4898 = vmatpush1.msra.mxu0 0.0
    %4899 = vmatprep.subr.mxu0 0.0
    %4900 = vmatpush1.msra.mxu0 0.0
    %4901 = vmatprep.subr.mxu0 0.0
    %4902 = vmatpush1.msra.mxu0 0.0
    %4903 = vmatprep.subr.mxu0 0.0
    %4904 = vmatpush1.msra.mxu0 0.0
    %4905 = vmatprep.subr.mxu0 0.0
    %4906 = vmatpush1.msra.mxu0 0.0
    %4907 = vmatprep.subr.mxu0 0.0
    %4908 = vmatpush1.msra.mxu0 0.0
    %4909 = vmatprep.subr.mxu0 0.0
    %4910 = vmatpush1.msra.mxu0 0.0
    %4911 = vmatprep.subr.mxu0 0.0
    %4912 = vmatpush1.msra.mxu0 0.0
    %4913 = vmatprep.subr.mxu0 0.0
    %4914 = vmatpush1.msra.mxu0 0.0
    %4915 = vmatprep.subr.mxu0 0.0
    %4916 = vmatpush1.msra.mxu0 0.0
    %4917 = vmatprep.subr.mxu0 0.0
    %4918 = vmatpush1.msra.mxu0 0.0
    %4919 = vmatprep.subr.mxu0 0.0
    %4920 = vmatpush1.msra.mxu0 0.0
    %4921 = vmatprep.subr.mxu0 0.0
    %4922 = vmatpush1.msra.mxu0 0.0
    %4923 = vmatprep.subr.mxu0 0.0
    %4924 = vmatpush1.msra.mxu0 0.0
    %4925 = vmatprep.subr.mxu0 0.0
    %4926 = vmatpush1.msra.mxu0 0.0
    %4927 = vmatprep.subr.mxu0 0.0
    %4928 = vmatpush1.msra.mxu0 0.0
    %4929 = vmatprep.mubr.f32.mxu0 0.0
    %4930 = vmatmul.mubr.f32.gmra.mrb[0].mxu0 %v4863
    %v4931 = vpop.f32.mrb[0].mxu0
    %v4932 = vadd.f32 %v4365, %v4931
    %v4933 = vpop.f32.mrb[0].mxu0
    %v4934 = vadd.f32 %v4369, %v4933
    %4935 = vdwg.mxu0
    %4937 = vrot.lane.b32.xlu0 %v4085, 96
    %v4938 = vpop.permute.xlu0 %4937
    %4940 = vrot.lane.b32.xlu0 %v748, 32
    %v4941 = vpop.permute.xlu0 %4940
    %v4943 = vsel %vm91, %v4938, %v4941
    %v4945 = vrot.slane %v4943, 6
    %v4946 = vsel %vm4372, %v4945, 0
    %4948 = vmatprep.subr.mxu0 %v4345
    %4949 = vmatpush1.msra.mxu0 %v4344
    %4950 = vmatprep.subr.mxu0 %v4347
    %4951 = vmatpush1.msra.mxu0 %v4346
    %4952 = vmatprep.subr.mxu0 %v4349
    %4953 = vmatpush1.msra.mxu0 %v4348
    %4954 = vmatprep.subr.mxu0 %v4351
    %4955 = vmatpush1.msra.mxu0 %v4350
    %4956 = vmatprep.subr.mxu0 %v4353
    %4957 = vmatpush1.msra.mxu0 %v4352
    %4958 = vmatprep.subr.mxu0 %v4355
    %4959 = vmatpush1.msra.mxu0 %v4354
    %4960 = vmatprep.subr.mxu0 %v4357
    %4961 = vmatpush1.msra.mxu0 %v4356
    %4962 = vmatprep.subr.mxu0 %v4359
    %4963 = vmatpush1.msra.mxu0 %v4358
    %4964 = vmatprep.subr.mxu0 0.0
    %4965 = vmatpush1.msra.mxu0 0.0
    %4966 = vmatprep.subr.mxu0 0.0
    %4967 = vmatpush1.msra.mxu0 0.0
    %4968 = vmatprep.subr.mxu0 0.0
    %4969 = vmatpush1.msra.mxu0 0.0
    %4970 = vmatprep.subr.mxu0 0.0
    %4971 = vmatpush1.msra.mxu0 0.0
    %4972 = vmatprep.subr.mxu0 0.0
    %4973 = vmatpush1.msra.mxu0 0.0
    %4974 = vmatprep.subr.mxu0 0.0
    %4975 = vmatpush1.msra.mxu0 0.0
    %4976 = vmatprep.subr.mxu0 0.0
    %4977 = vmatpush1.msra.mxu0 0.0
    %4978 = vmatprep.subr.mxu0 0.0
    %4979 = vmatpush1.msra.mxu0 0.0
    %4980 = vmatprep.subr.mxu0 0.0
    %4981 = vmatpush1.msra.mxu0 0.0
    %4982 = vmatprep.subr.mxu0 0.0
    %4983 = vmatpush1.msra.mxu0 0.0
    %4984 = vmatprep.subr.mxu0 0.0
    %4985 = vmatpush1.msra.mxu0 0.0
    %4986 = vmatprep.subr.mxu0 0.0
    %4987 = vmatpush1.msra.mxu0 0.0
    %4988 = vmatprep.subr.mxu0 0.0
    %4989 = vmatpush1.msra.mxu0 0.0
    %4990 = vmatprep.subr.mxu0 0.0
    %4991 = vmatpush1.msra.mxu0 0.0
    %4992 = vmatprep.subr.mxu0 0.0
    %4993 = vmatpush1.msra.mxu0 0.0
    %4994 = vmatprep.subr.mxu0 0.0
    %4995 = vmatpush1.msra.mxu0 0.0
    %4996 = vmatprep.subr.mxu0 0.0
    %4997 = vmatpush1.msra.mxu0 0.0
    %4998 = vmatprep.subr.mxu0 0.0
    %4999 = vmatpush1.msra.mxu0 0.0
    %5000 = vmatprep.subr.mxu0 0.0
    %5001 = vmatpush1.msra.mxu0 0.0
    %5002 = vmatprep.subr.mxu0 0.0
    %5003 = vmatpush1.msra.mxu0 0.0
    %5004 = vmatprep.subr.mxu0 0.0
    %5005 = vmatpush1.msra.mxu0 0.0
    %5006 = vmatprep.subr.mxu0 0.0
    %5007 = vmatpush1.msra.mxu0 0.0
    %5008 = vmatprep.subr.mxu0 0.0
    %5009 = vmatpush1.msra.mxu0 0.0
    %5010 = vmatprep.subr.mxu0 0.0
    %5011 = vmatpush1.msra.mxu0 0.0
    %5012 = vmatprep.mubr.f32.mxu0 0.0
    %5013 = vmatmul.mubr.f32.gmra.mrb[0].mxu0 %v4946
    %v5014 = vpop.f32.mrb[0].mxu0
    %v5015 = vadd.f32 %v4365, %v5014
    %v5016 = vpop.f32.mrb[0].mxu0
    %v5017 = vadd.f32 %v4369, %v5016
    %5018 = vdwg.mxu0
    %v5019 = vld [vmem:[%s7] sm:$0xff]
    %v5020 = vld [vmem:[%s7 + $0x8] sm:$0xff]
    %v5021 = vld [vmem:[%s7 + $0x10] sm:$0xff]
    %v5022 = vld [vmem:[%s7 + $0x18] sm:$0xff]
    %s5023 = scalar_lea.vmem %s7, 32
    %v5024 = vld [vmem:[%s5023] sm:$0xff]
    %v5025 = vld [vmem:[%s5023 + $0x8] sm:$0xff]
    %v5026 = vld [vmem:[%s5023 + $0x10] sm:$0xff]
    %v5027 = vld [vmem:[%s5023 + $0x18] sm:$0xff]
    %s5028 = scalar_lea.vmem %s7, 64
    %v5029 = vld [vmem:[%s5028] sm:$0xff]
    %v5030 = vld [vmem:[%s5028 + $0x8] sm:$0xff]
    %v5031 = vld [vmem:[%s5028 + $0x10] sm:$0xff]
    %v5032 = vld [vmem:[%s5028 + $0x18] sm:$0xff]
    %v5033 = vld [vmem:[%s8] sm:$0x1]
    %s5034 = scalar_lea.vmem %s8, 1
    %v5035 = vld [vmem:[%s5034] sm:$0x1]
    %s5036 = scalar_lea.vmem %s8, 2
    %v5037 = vld [vmem:[%s5036] sm:$0x1]
    %s5038 = scalar_lea.vmem %s7, 96
    %v5039 = vld [vmem:[%s5038] sm:$0xff]
    %v5040 = vld [vmem:[%s5038 + $0x8] sm:$0xff]
    %v5041 = vld [vmem:[%s5038 + $0x10] sm:$0xff]
    %v5042 = vld [vmem:[%s5038 + $0x18] sm:$0xff]
    %s5043 = scalar_lea.vmem %s7, 128
    %v5044 = vld [vmem:[%s5043] sm:$0xff]
    %v5045 = vld [vmem:[%s5043 + $0x8] sm:$0xff]
    %v5046 = vld [vmem:[%s5043 + $0x10] sm:$0xff]
    %v5047 = vld [vmem:[%s5043 + $0x18] sm:$0xff]
    %s5048 = scalar_lea.vmem %s7, 160
    %v5049 = vld [vmem:[%s5048] sm:$0xff]
    %v5050 = vld [vmem:[%s5048 + $0x8] sm:$0xff]
    %v5051 = vld [vmem:[%s5048 + $0x10] sm:$0xff]
    %v5052 = vld [vmem:[%s5048 + $0x18] sm:$0xff]
    %s5053 = scalar_lea.vmem %s8, 3
    %v5054 = vld [vmem:[%s5053] sm:$0x1]
    %s5055 = scalar_lea.vmem %s8, 4
    %v5056 = vld [vmem:[%s5055] sm:$0x1]
    %s5057 = scalar_lea.vmem %s8, 5
    %v5058 = vld [vmem:[%s5057] sm:$0x1]
    %v5060 = vlaneseq
    %v5061 = vshrl.u32 %v5060, 7
    %v5062 = vsub.s32 0, %v5061
    %v5063 = vrot.slane %v5033, %v5062
    %5065 = vmatprep.subr.mxu0 0.0
    %5066 = vmatpush1.msra.mxu0 %v5019
    %5067 = vmatprep.subr.mxu0 0.0
    %5068 = vmatpush1.msra.mxu0 %v5020
    %5069 = vmatprep.subr.mxu0 0.0
    %5070 = vmatpush1.msra.mxu0 %v5021
    %5071 = vmatprep.subr.mxu0 0.0
    %5072 = vmatpush1.msra.mxu0 %v5022
    %5073 = vmatprep.subr.mxu0 0.0
    %5074 = vmatpush1.msra.mxu0 0.0
    %5075 = vmatprep.subr.mxu0 0.0
    %5076 = vmatpush1.msra.mxu0 0.0
    %5077 = vmatprep.subr.mxu0 0.0
    %5078 = vmatpush1.msra.mxu0 0.0
    %5079 = vmatprep.subr.mxu0 0.0
    %5080 = vmatpush1.msra.mxu0 0.0
    %5081 = vmatprep.subr.mxu0 0.0
    %5082 = vmatpush1.msra.mxu0 0.0
    %5083 = vmatprep.subr.mxu0 0.0
    %5084 = vmatpush1.msra.mxu0 0.0
    %5085 = vmatprep.subr.mxu0 0.0
    %5086 = vmatpush1.msra.mxu0 0.0
    %5087 = vmatprep.subr.mxu0 0.0
    %5088 = vmatpush1.msra.mxu0 0.0
    %5089 = vmatprep.subr.mxu0 0.0
    %5090 = vmatpush1.msra.mxu0 0.0
    %5091 = vmatprep.subr.mxu0 0.0
    %5092 = vmatpush1.msra.mxu0 0.0
    %5093 = vmatprep.subr.mxu0 0.0
    %5094 = vmatpush1.msra.mxu0 0.0
    %5095 = vmatprep.subr.mxu0 0.0
    %5096 = vmatpush1.msra.mxu0 0.0
    %5097 = vmatprep.subr.mxu0 0.0
    %5098 = vmatpush1.msra.mxu0 0.0
    %5099 = vmatprep.subr.mxu0 0.0
    %5100 = vmatpush1.msra.mxu0 0.0
    %5101 = vmatprep.subr.mxu0 0.0
    %5102 = vmatpush1.msra.mxu0 0.0
    %5103 = vmatprep.subr.mxu0 0.0
    %5104 = vmatpush1.msra.mxu0 0.0
    %5105 = vmatprep.subr.mxu0 0.0
    %5106 = vmatpush1.msra.mxu0 0.0
    %5107 = vmatprep.subr.mxu0 0.0
    %5108 = vmatpush1.msra.mxu0 0.0
    %5109 = vmatprep.subr.mxu0 0.0
    %5110 = vmatpush1.msra.mxu0 0.0
    %5111 = vmatprep.subr.mxu0 0.0
    %5112 = vmatpush1.msra.mxu0 0.0
    %5113 = vmatprep.subr.mxu0 0.0
    %5114 = vmatpush1.msra.mxu0 0.0
    %5115 = vmatprep.subr.mxu0 0.0
    %5116 = vmatpush1.msra.mxu0 0.0
    %5117 = vmatprep.subr.mxu0 0.0
    %5118 = vmatpush1.msra.mxu0 0.0
    %5119 = vmatprep.subr.mxu0 0.0
    %5120 = vmatpush1.msra.mxu0 0.0
    %5121 = vmatprep.subr.mxu0 0.0
    %5122 = vmatpush1.msra.mxu0 0.0
    %5123 = vmatprep.subr.mxu0 0.0
    %5124 = vmatpush1.msra.mxu0 0.0
    %5125 = vmatprep.subr.mxu0 0.0
    %5126 = vmatpush1.msra.mxu0 0.0
    %5127 = vmatprep.subr.mxu0 0.0
    %5128 = vmatpush1.msra.mxu0 0.0
    %5129 = vmatprep.mubr.f32.mxu0 0.0
    %5130 = vmatmul.mubr.f32.gmra.mrb[0].mxu0 %v222
    %v5131 = vpop.f32.mrb[0].mxu0
    %v5132 = vadd.f32 %v5063, %v5131
    %v5133 = vpop.f32.mrb[0].mxu0
    %5134 = vdwg.mxu0
    %v5136 = vlaneseq
    %v5137 = vshrl.u32 %v5136, 7
    %v5138 = vsub.s32 0, %v5137
    %v5139 = vrot.slane %v5035, %v5138
    %5141 = vmatprep.subr.mxu0 0.0
    %5142 = vmatpush1.msra.mxu0 %v5024
    %5143 = vmatprep.subr.mxu0 0.0
    %5144 = vmatpush1.msra.mxu0 %v5025
    %5145 = vmatprep.subr.mxu0 0.0
    %5146 = vmatpush1.msra.mxu0 %v5026
    %5147 = vmatprep.subr.mxu0 0.0
    %5148 = vmatpush1.msra.mxu0 %v5027
    %5149 = vmatprep.subr.mxu0 0.0
    %5150 = vmatpush1.msra.mxu0 0.0
    %5151 = vmatprep.subr.mxu0 0.0
    %5152 = vmatpush1.msra.mxu0 0.0
    %5153 = vmatprep.subr.mxu0 0.0
    %5154 = vmatpush1.msra.mxu0 0.0
    %5155 = vmatprep.subr.mxu0 0.0
    %5156 = vmatpush1.msra.mxu0 0.0
    %5157 = vmatprep.subr.mxu0 0.0
    %5158 = vmatpush1.msra.mxu0 0.0
    %5159 = vmatprep.subr.mxu0 0.0
    %5160 = vmatpush1.msra.mxu0 0.0
    %5161 = vmatprep.subr.mxu0 0.0
    %5162 = vmatpush1.msra.mxu0 0.0
    %5163 = vmatprep.subr.mxu0 0.0
    %5164 = vmatpush1.msra.mxu0 0.0
    %5165 = vmatprep.subr.mxu0 0.0
    %5166 = vmatpush1.msra.mxu0 0.0
    %5167 = vmatprep.subr.mxu0 0.0
    %5168 = vmatpush1.msra.mxu0 0.0
    %5169 = vmatprep.subr.mxu0 0.0
    %5170 = vmatpush1.msra.mxu0 0.0
    %5171 = vmatprep.subr.mxu0 0.0
    %5172 = vmatpush1.msra.mxu0 0.0
    %5173 = vmatprep.subr.mxu0 0.0
    %5174 = vmatpush1.msra.mxu0 0.0
    %5175 = vmatprep.subr.mxu0 0.0
    %5176 = vmatpush1.msra.mxu0 0.0
    %5177 = vmatprep.subr.mxu0 0.0
    %5178 = vmatpush1.msra.mxu0 0.0
    %5179 = vmatprep.subr.mxu0 0.0
    %5180 = vmatpush1.msra.mxu0 0.0
    %5181 = vmatprep.subr.mxu0 0.0
    %5182 = vmatpush1.msra.mxu0 0.0
    %5183 = vmatprep.subr.mxu0 0.0
    %5184 = vmatpush1.msra.mxu0 0.0
    %5185 = vmatprep.subr.mxu0 0.0
    %5186 = vmatpush1.msra.mxu0 0.0
    %5187 = vmatprep.subr.mxu0 0.0
    %5188 = vmatpush1.msra.mxu0 0.0
    %5189 = vmatprep.subr.mxu0 0.0
    %5190 = vmatpush1.msra.mxu0 0.0
    %5191 = vmatprep.subr.mxu0 0.0
    %5192 = vmatpush1.msra.mxu0 0.0
    %5193 = vmatprep.subr.mxu0 0.0
    %5194 = vmatpush1.msra.mxu0 0.0
    %5195 = vmatprep.subr.mxu0 0.0
    %5196 = vmatpush1.msra.mxu0 0.0
    %5197 = vmatprep.subr.mxu0 0.0
    %5198 = vmatpush1.msra.mxu0 0.0
    %5199 = vmatprep.subr.mxu0 0.0
    %5200 = vmatpush1.msra.mxu0 0.0
    %5201 = vmatprep.subr.mxu0 0.0
    %5202 = vmatpush1.msra.mxu0 0.0
    %5203 = vmatprep.subr.mxu0 0.0
    %5204 = vmatpush1.msra.mxu0 0.0
    %5205 = vmatprep.mubr.f32.mxu0 0.0
    %5206 = vmatmul.mubr.f32.gmra.mrb[0].mxu0 %v222
    %v5207 = vpop.f32.mrb[0].mxu0
    %v5208 = vadd.f32 %v5139, %v5207
    %v5209 = vpop.f32.mrb[0].mxu0
    %5210 = vdwg.mxu0
    %v5212 = vlaneseq
    %v5213 = vshrl.u32 %v5212, 7
    %v5214 = vsub.s32 0, %v5213
    %v5215 = vrot.slane %v5037, %v5214
    %5217 = vmatprep.subr.mxu0 0.0
    %5218 = vmatpush1.msra.mxu0 %v5029
    %5219 = vmatprep.subr.mxu0 0.0
    %5220 = vmatpush1.msra.mxu0 %v5030
    %5221 = vmatprep.subr.mxu0 0.0
    %5222 = vmatpush1.msra.mxu0 %v5031
    %5223 = vmatprep.subr.mxu0 0.0
    %5224 = vmatpush1.msra.mxu0 %v5032
    %5225 = vmatprep.subr.mxu0 0.0
    %5226 = vmatpush1.msra.mxu0 0.0
    %5227 = vmatprep.subr.mxu0 0.0
    %5228 = vmatpush1.msra.mxu0 0.0
    %5229 = vmatprep.subr.mxu0 0.0
    %5230 = vmatpush1.msra.mxu0 0.0
    %5231 = vmatprep.subr.mxu0 0.0
    %5232 = vmatpush1.msra.mxu0 0.0
    %5233 = vmatprep.subr.mxu0 0.0
    %5234 = vmatpush1.msra.mxu0 0.0
    %5235 = vmatprep.subr.mxu0 0.0
    %5236 = vmatpush1.msra.mxu0 0.0
    %5237 = vmatprep.subr.mxu0 0.0
    %5238 = vmatpush1.msra.mxu0 0.0
    %5239 = vmatprep.subr.mxu0 0.0
    %5240 = vmatpush1.msra.mxu0 0.0
    %5241 = vmatprep.subr.mxu0 0.0
    %5242 = vmatpush1.msra.mxu0 0.0
    %5243 = vmatprep.subr.mxu0 0.0
    %5244 = vmatpush1.msra.mxu0 0.0
    %5245 = vmatprep.subr.mxu0 0.0
    %5246 = vmatpush1.msra.mxu0 0.0
    %5247 = vmatprep.subr.mxu0 0.0
    %5248 = vmatpush1.msra.mxu0 0.0
    %5249 = vmatprep.subr.mxu0 0.0
    %5250 = vmatpush1.msra.mxu0 0.0
    %5251 = vmatprep.subr.mxu0 0.0
    %5252 = vmatpush1.msra.mxu0 0.0
    %5253 = vmatprep.subr.mxu0 0.0
    %5254 = vmatpush1.msra.mxu0 0.0
    %5255 = vmatprep.subr.mxu0 0.0
    %5256 = vmatpush1.msra.mxu0 0.0
    %5257 = vmatprep.subr.mxu0 0.0
    %5258 = vmatpush1.msra.mxu0 0.0
    %5259 = vmatprep.subr.mxu0 0.0
    %5260 = vmatpush1.msra.mxu0 0.0
    %5261 = vmatprep.subr.mxu0 0.0
    %5262 = vmatpush1.msra.mxu0 0.0
    %5263 = vmatprep.subr.mxu0 0.0
    %5264 = vmatpush1.msra.mxu0 0.0
    %5265 = vmatprep.subr.mxu0 0.0
    %5266 = vmatpush1.msra.mxu0 0.0
    %5267 = vmatprep.subr.mxu0 0.0
    %5268 = vmatpush1.msra.mxu0 0.0
    %5269 = vmatprep.subr.mxu0 0.0
    %5270 = vmatpush1.msra.mxu0 0.0
    %5271 = vmatprep.subr.mxu0 0.0
    %5272 = vmatpush1.msra.mxu0 0.0
    %5273 = vmatprep.subr.mxu0 0.0
    %5274 = vmatpush1.msra.mxu0 0.0
    %5275 = vmatprep.subr.mxu0 0.0
    %5276 = vmatpush1.msra.mxu0 0.0
    %5277 = vmatprep.subr.mxu0 0.0
    %5278 = vmatpush1.msra.mxu0 0.0
    %5279 = vmatprep.subr.mxu0 0.0
    %5280 = vmatpush1.msra.mxu0 0.0
    %5281 = vmatprep.mubr.f32.mxu0 0.0
    %5282 = vmatmul.mubr.f32.gmra.mrb[0].mxu0 %v222
    %v5283 = vpop.f32.mrb[0].mxu0
    %v5284 = vadd.f32 %v5215, %v5283
    %v5285 = vpop.f32.mrb[0].mxu0
    %5286 = vdwg.mxu0
    %v5287 = vadd.f32 %v4443, %v5132
    %v5288 = vxor.u32 %v5287, 2147483648
    %v5289 = vmul.f32 %v5288, 1.442695
    %v5290 = vpow.pop %v5289
    %v5291 = vadd.f32 %v5290, 1.0
    %v5292 = vrcp.pop %v5291
    %v5293 = vmul.f32 1.0, %v5292
    %5295 = vrot.lane.b32.xlu0 %v5208, 32
    %v5296 = vpop.permute.xlu0 %5295
    %v5298 = vadd.f32 %v4443, %v5296
    %v5299 = vxor.u32 %v5298, 2147483648
    %v5300 = vmul.f32 %v5299, 1.442695
    %v5301 = vpow.pop %v5300
    %v5302 = vadd.f32 %v5301, 1.0
    %v5303 = vrcp.pop %v5302
    %v5304 = vmul.f32 1.0, %v5303
    %v5305 = vmul.f32 %v5293, %v5284
    %5307 = vrot.lane.b32.xlu0 %v5305, 64
    %v5308 = vpop.permute.xlu0 %5307
    %v5310 = vadd.f32 %v4443, %v5308
    %v5311 = vtanh.pop %v5310
    %v5312 = vsub.f32 1.0, %v5304
    %5314 = vrot.lane.b32.xlu0 %v5311, 96
    %v5315 = vpop.permute.xlu0 %5314
    %v5317 = vmul.f32 %v5312, %v5315
    %v5318 = vmul.f32 %v5304, 0.0
    %v5319 = vadd.f32 %v5317, %v5318
    %v5321 = vlaneseq
    %v5322 = vshrl.u32 %v5321, 7
    %v5323 = vsub.s32 0, %v5322
    %v5324 = vrot.slane %v5054, %v5323
    %5326 = vmatprep.subr.mxu0 0.0
    %5327 = vmatpush1.msra.mxu0 %v5039
    %5328 = vmatprep.subr.mxu0 0.0
    %5329 = vmatpush1.msra.mxu0 %v5040
    %5330 = vmatprep.subr.mxu0 0.0
    %5331 = vmatpush1.msra.mxu0 %v5041
    %5332 = vmatprep.subr.mxu0 0.0
    %5333 = vmatpush1.msra.mxu0 %v5042
    %5334 = vmatprep.subr.mxu0 0.0
    %5335 = vmatpush1.msra.mxu0 0.0
    %5336 = vmatprep.subr.mxu0 0.0
    %5337 = vmatpush1.msra.mxu0 0.0
    %5338 = vmatprep.subr.mxu0 0.0
    %5339 = vmatpush1.msra.mxu0 0.0
    %5340 = vmatprep.subr.mxu0 0.0
    %5341 = vmatpush1.msra.mxu0 0.0
    %5342 = vmatprep.subr.mxu0 0.0
    %5343 = vmatpush1.msra.mxu0 0.0
    %5344 = vmatprep.subr.mxu0 0.0
    %5345 = vmatpush1.msra.mxu0 0.0
    %5346 = vmatprep.subr.mxu0 0.0
    %5347 = vmatpush1.msra.mxu0 0.0
    %5348 = vmatprep.subr.mxu0 0.0
    %5349 = vmatpush1.msra.mxu0 0.0
    %5350 = vmatprep.subr.mxu0 0.0
    %5351 = vmatpush1.msra.mxu0 0.0
    %5352 = vmatprep.subr.mxu0 0.0
    %5353 = vmatpush1.msra.mxu0 0.0
    %5354 = vmatprep.subr.mxu0 0.0
    %5355 = vmatpush1.msra.mxu0 0.0
    %5356 = vmatprep.subr.mxu0 0.0
    %5357 = vmatpush1.msra.mxu0 0.0
    %5358 = vmatprep.subr.mxu0 0.0
    %5359 = vmatpush1.msra.mxu0 0.0
    %5360 = vmatprep.subr.mxu0 0.0
    %5361 = vmatpush1.msra.mxu0 0.0
    %5362 = vmatprep.subr.mxu0 0.0
    %5363 = vmatpush1.msra.mxu0 0.0
    %5364 = vmatprep.subr.mxu0 0.0
    %5365 = vmatpush1.msra.mxu0 0.0
    %5366 = vmatprep.subr.mxu0 0.0
    %5367 = vmatpush1.msra.mxu0 0.0
    %5368 = vmatprep.subr.mxu0 0.0
    %5369 = vmatpush1.msra.mxu0 0.0
    %5370 = vmatprep.subr.mxu0 0.0
    %5371 = vmatpush1.msra.mxu0 0.0
    %5372 = vmatprep.subr.mxu0 0.0
    %5373 = vmatpush1.msra.mxu0 0.0
    %5374 = vmatprep.subr.mxu0 0.0
    %5375 = vmatpush1.msra.mxu0 0.0
    %5376 = vmatprep.subr.mxu0 0.0
    %5377 = vmatpush1.msra.mxu0 0.0
    %5378 = vmatprep.subr.mxu0 0.0
    %5379 = vmatpush1.msra.mxu0 0.0
    %5380 = vmatprep.subr.mxu0 0.0
    %5381 = vmatpush1.msra.mxu0 0.0
    %5382 = vmatprep.subr.mxu0 0.0
    %5383 = vmatpush1.msra.mxu0 0.0
    %5384 = vmatprep.subr.mxu0 0.0
    %5385 = vmatpush1.msra.mxu0 0.0
    %5386 = vmatprep.subr.mxu0 0.0
    %5387 = vmatpush1.msra.mxu0 0.0
    %5388 = vmatprep.subr.mxu0 0.0
    %5389 = vmatpush1.msra.mxu0 0.0
    %5390 = vmatprep.mubr.f32.mxu0 0.0
    %5391 = vmatmul.mubr.f32.gmra.mrb[0].mxu0 %v222
    %v5392 = vpop.f32.mrb[0].mxu0
    %v5393 = vadd.f32 %v5324, %v5392
    %v5394 = vpop.f32.mrb[0].mxu0
    %5395 = vdwg.mxu0
    %v5397 = vlaneseq
    %v5398 = vshrl.u32 %v5397, 7
    %v5399 = vsub.s32 0, %v5398
    %v5400 = vrot.slane %v5056, %v5399
    %5402 = vmatprep.subr.mxu0 0.0
    %5403 = vmatpush1.msra.mxu0 %v5044
    %5404 = vmatprep.subr.mxu0 0.0
    %5405 = vmatpush1.msra.mxu0 %v5045
    %5406 = vmatprep.subr.mxu0 0.0
    %5407 = vmatpush1.msra.mxu0 %v5046
    %5408 = vmatprep.subr.mxu0 0.0
    %5409 = vmatpush1.msra.mxu0 %v5047
    %5410 = vmatprep.subr.mxu0 0.0
    %5411 = vmatpush1.msra.mxu0 0.0
    %5412 = vmatprep.subr.mxu0 0.0
    %5413 = vmatpush1.msra.mxu0 0.0
    %5414 = vmatprep.subr.mxu0 0.0
    %5415 = vmatpush1.msra.mxu0 0.0
    %5416 = vmatprep.subr.mxu0 0.0
    %5417 = vmatpush1.msra.mxu0 0.0
    %5418 = vmatprep.subr.mxu0 0.0
    %5419 = vmatpush1.msra.mxu0 0.0
    %5420 = vmatprep.subr.mxu0 0.0
    %5421 = vmatpush1.msra.mxu0 0.0
    %5422 = vmatprep.subr.mxu0 0.0
    %5423 = vmatpush1.msra.mxu0 0.0
    %5424 = vmatprep.subr.mxu0 0.0
    %5425 = vmatpush1.msra.mxu0 0.0
    %5426 = vmatprep.subr.mxu0 0.0
    %5427 = vmatpush1.msra.mxu0 0.0
    %5428 = vmatprep.subr.mxu0 0.0
    %5429 = vmatpush1.msra.mxu0 0.0
    %5430 = vmatprep.subr.mxu0 0.0
    %5431 = vmatpush1.msra.mxu0 0.0
    %5432 = vmatprep.subr.mxu0 0.0
    %5433 = vmatpush1.msra.mxu0 0.0
    %5434 = vmatprep.subr.mxu0 0.0
    %5435 = vmatpush1.msra.mxu0 0.0
    %5436 = vmatprep.subr.mxu0 0.0
    %5437 = vmatpush1.msra.mxu0 0.0
    %5438 = vmatprep.subr.mxu0 0.0
    %5439 = vmatpush1.msra.mxu0 0.0
    %5440 = vmatprep.subr.mxu0 0.0
    %5441 = vmatpush1.msra.mxu0 0.0
    %5442 = vmatprep.subr.mxu0 0.0
    %5443 = vmatpush1.msra.mxu0 0.0
    %5444 = vmatprep.subr.mxu0 0.0
    %5445 = vmatpush1.msra.mxu0 0.0
    %5446 = vmatprep.subr.mxu0 0.0
    %5447 = vmatpush1.msra.mxu0 0.0
    %5448 = vmatprep.subr.mxu0 0.0
    %5449 = vmatpush1.msra.mxu0 0.0
    %5450 = vmatprep.subr.mxu0 0.0
    %5451 = vmatpush1.msra.mxu0 0.0
    %5452 = vmatprep.subr.mxu0 0.0
    %5453 = vmatpush1.msra.mxu0 0.0
    %5454 = vmatprep.subr.mxu0 0.0
    %5455 = vmatpush1.msra.mxu0 0.0
    %5456 = vmatprep.subr.mxu0 0.0
    %5457 = vmatpush1.msra.mxu0 0.0
    %5458 = vmatprep.subr.mxu0 0.0
    %5459 = vmatpush1.msra.mxu0 0.0
    %5460 = vmatprep.subr.mxu0 0.0
    %5461 = vmatpush1.msra.mxu0 0.0
    %5462 = vmatprep.subr.mxu0 0.0
    %5463 = vmatpush1.msra.mxu0 0.0
    %5464 = vmatprep.subr.mxu0 0.0
    %5465 = vmatpush1.msra.mxu0 0.0
    %5466 = vmatprep.mubr.f32.mxu0 0.0
    %5467 = vmatmul.mubr.f32.gmra.mrb[0].mxu0 %v222
    %v5468 = vpop.f32.mrb[0].mxu0
    %v5469 = vadd.f32 %v5400, %v5468
    %v5470 = vpop.f32.mrb[0].mxu0
    %5471 = vdwg.mxu0
    %v5473 = vlaneseq
    %v5474 = vshrl.u32 %v5473, 7
    %v5475 = vsub.s32 0, %v5474
    %v5476 = vrot.slane %v5058, %v5475
    %5478 = vmatprep.subr.mxu0 0.0
    %5479 = vmatpush1.msra.mxu0 %v5049
    %5480 = vmatprep.subr.mxu0 0.0
    %5481 = vmatpush1.msra.mxu0 %v5050
    %5482 = vmatprep.subr.mxu0 0.0
    %5483 = vmatpush1.msra.mxu0 %v5051
    %5484 = vmatprep.subr.mxu0 0.0
    %5485 = vmatpush1.msra.mxu0 %v5052
    %5486 = vmatprep.subr.mxu0 0.0
    %5487 = vmatpush1.msra.mxu0 0.0
    %5488 = vmatprep.subr.mxu0 0.0
    %5489 = vmatpush1.msra.mxu0 0.0
    %5490 = vmatprep.subr.mxu0 0.0
    %5491 = vmatpush1.msra.mxu0 0.0
    %5492 = vmatprep.subr.mxu0 0.0
    %5493 = vmatpush1.msra.mxu0 0.0
    %5494 = vmatprep.subr.mxu0 0.0
    %5495 = vmatpush1.msra.mxu0 0.0
    %5496 = vmatprep.subr.mxu0 0.0
    %5497 = vmatpush1.msra.mxu0 0.0
    %5498 = vmatprep.subr.mxu0 0.0
    %5499 = vmatpush1.msra.mxu0 0.0
    %5500 = vmatprep.subr.mxu0 0.0
    %5501 = vmatpush1.msra.mxu0 0.0
    %5502 = vmatprep.subr.mxu0 0.0
    %5503 = vmatpush1.msra.mxu0 0.0
    %5504 = vmatprep.subr.mxu0 0.0
    %5505 = vmatpush1.msra.mxu0 0.0
    %5506 = vmatprep.subr.mxu0 0.0
    %5507 = vmatpush1.msra.mxu0 0.0
    %5508 = vmatprep.subr.mxu0 0.0
    %5509 = vmatpush1.msra.mxu0 0.0
    %5510 = vmatprep.subr.mxu0 0.0
    %5511 = vmatpush1.msra.mxu0 0.0
    %5512 = vmatprep.subr.mxu0 0.0
    %5513 = vmatpush1.msra.mxu0 0.0
    %5514 = vmatprep.subr.mxu0 0.0
    %5515 = vmatpush1.msra.mxu0 0.0
    %5516 = vmatprep.subr.mxu0 0.0
    %5517 = vmatpush1.msra.mxu0 0.0
    %5518 = vmatprep.subr.mxu0 0.0
    %5519 = vmatpush1.msra.mxu0 0.0
    %5520 = vmatprep.subr.mxu0 0.0
    %5521 = vmatpush1.msra.mxu0 0.0
    %5522 = vmatprep.subr.mxu0 0.0
    %5523 = vmatpush1.msra.mxu0 0.0
    %5524 = vmatprep.subr.mxu0 0.0
    %5525 = vmatpush1.msra.mxu0 0.0
    %5526 = vmatprep.subr.mxu0 0.0
    %5527 = vmatpush1.msra.mxu0 0.0
    %5528 = vmatprep.subr.mxu0 0.0
    %5529 = vmatpush1.msra.mxu0 0.0
    %5530 = vmatprep.subr.mxu0 0.0
    %5531 = vmatpush1.msra.mxu0 0.0
    %5532 = vmatprep.subr.mxu0 0.0
    %5533 = vmatpush1.msra.mxu0 0.0
    %5534 = vmatprep.subr.mxu0 0.0
    %5535 = vmatpush1.msra.mxu0 0.0
    %5536 = vmatprep.subr.mxu0 0.0
    %5537 = vmatpush1.msra.mxu0 0.0
    %5538 = vmatprep.subr.mxu0 0.0
    %5539 = vmatpush1.msra.mxu0 0.0
    %5540 = vmatprep.subr.mxu0 0.0
    %5541 = vmatpush1.msra.mxu0 0.0
    %5542 = vmatprep.mubr.f32.mxu0 0.0
    %5543 = vmatmul.mubr.f32.gmra.mrb[0].mxu0 %v222
    %v5544 = vpop.f32.mrb[0].mxu0
    %v5545 = vadd.f32 %v5476, %v5544
    %v5546 = vpop.f32.mrb[0].mxu0
    %5547 = vdwg.mxu0
    %5549 = vrot.lane.b32.xlu0 %v5393, 96
    %v5550 = vpop.permute.xlu0 %5549
    %v5552 = vadd.f32 %v5015, %v5550
    %v5553 = vxor.u32 %v5552, 2147483648
    %v5554 = vmul.f32 %v5553, 1.442695
    %v5555 = vpow.pop %v5554
    %v5556 = vadd.f32 %v5555, 1.0
    %v5557 = vrcp.pop %v5556
    %v5558 = vmul.f32 1.0, %v5557
    %v5559 = vadd.f32 %v5017, %v5469
    %v5560 = vxor.u32 %v5559, 2147483648
    %v5561 = vmul.f32 %v5560, 1.442695
    %v5562 = vpow.pop %v5561
    %v5563 = vadd.f32 %v5562, 1.0
    %v5564 = vrcp.pop %v5563
    %v5565 = vmul.f32 1.0, %v5564
    %5567 = vrot.lane.b32.xlu0 %v5545, 96
    %v5568 = vpop.permute.xlu0 %5567
    %v5570 = vmul.f32 %v5558, %v5568
    %5572 = vrot.lane.b32.xlu0 %v5570, 64
    %v5573 = vpop.permute.xlu0 %5572
    %v5575 = vadd.f32 %v5017, %v5573
    %v5576 = vtanh.pop %v5575
    %v5577 = vsub.f32 1.0, %v5565
    %5579 = vrot.lane.b32.xlu0 %v5576, 96
    %v5580 = vpop.permute.xlu0 %5579
    %v5582 = vmul.f32 %v5577, %v5580
    %v5583 = vmul.f32 %v5565, 0.0
    %v5584 = vadd.f32 %v5582, %v5583
    %v5585 = vadd.f32 %v5319, 0.0
    %v5586 = vadd.f32 %v5584, 0.0
    %5588 = vrot.lane.b32.xlu0 %v5319, 96
    %v5589 = vpop.permute.xlu0 %5588
    %v5590 = vsel %vm91, %v5589, 0
    %5592 = vmatprep.subr.mxu0 0.0
    %5593 = vmatpush1.msra.mxu0 %v5019
    %5594 = vmatprep.subr.mxu0 0.0
    %5595 = vmatpush1.msra.mxu0 %v5020
    %5596 = vmatprep.subr.mxu0 0.0
    %5597 = vmatpush1.msra.mxu0 %v5021
    %5598 = vmatprep.subr.mxu0 0.0
    %5599 = vmatpush1.msra.mxu0 %v5022
    %5600 = vmatprep.subr.mxu0 0.0
    %5601 = vmatpush1.msra.mxu0 0.0
    %5602 = vmatprep.subr.mxu0 0.0
    %5603 = vmatpush1.msra.mxu0 0.0
    %5604 = vmatprep.subr.mxu0 0.0
    %5605 = vmatpush1.msra.mxu0 0.0
    %5606 = vmatprep.subr.mxu0 0.0
    %5607 = vmatpush1.msra.mxu0 0.0
    %5608 = vmatprep.subr.mxu0 0.0
    %5609 = vmatpush1.msra.mxu0 0.0
    %5610 = vmatprep.subr.mxu0 0.0
    %5611 = vmatpush1.msra.mxu0 0.0
    %5612 = vmatprep.subr.mxu0 0.0
    %5613 = vmatpush1.msra.mxu0 0.0
    %5614 = vmatprep.subr.mxu0 0.0
    %5615 = vmatpush1.msra.mxu0 0.0
    %5616 = vmatprep.subr.mxu0 0.0
    %5617 = vmatpush1.msra.mxu0 0.0
    %5618 = vmatprep.subr.mxu0 0.0
    %5619 = vmatpush1.msra.mxu0 0.0
    %5620 = vmatprep.subr.mxu0 0.0
    %5621 = vmatpush1.msra.mxu0 0.0
    %5622 = vmatprep.subr.mxu0 0.0
    %5623 = vmatpush1.msra.mxu0 0.0
    %5624 = vmatprep.subr.mxu0 0.0
    %5625 = vmatpush1.msra.mxu0 0.0
    %5626 = vmatprep.subr.mxu0 0.0
    %5627 = vmatpush1.msra.mxu0 0.0
    %5628 = vmatprep.subr.mxu0 0.0
    %5629 = vmatpush1.msra.mxu0 0.0
    %5630 = vmatprep.subr.mxu0 0.0
    %5631 = vmatpush1.msra.mxu0 0.0
    %5632 = vmatprep.subr.mxu0 0.0
    %5633 = vmatpush1.msra.mxu0 0.0
    %5634 = vmatprep.subr.mxu0 0.0
    %5635 = vmatpush1.msra.mxu0 0.0
    %5636 = vmatprep.subr.mxu0 0.0
    %5637 = vmatpush1.msra.mxu0 0.0
    %5638 = vmatprep.subr.mxu0 0.0
    %5639 = vmatpush1.msra.mxu0 0.0
    %5640 = vmatprep.subr.mxu0 0.0
    %5641 = vmatpush1.msra.mxu0 0.0
    %5642 = vmatprep.subr.mxu0 0.0
    %5643 = vmatpush1.msra.mxu0 0.0
    %5644 = vmatprep.subr.mxu0 0.0
    %5645 = vmatpush1.msra.mxu0 0.0
    %5646 = vmatprep.subr.mxu0 0.0
    %5647 = vmatpush1.msra.mxu0 0.0
    %5648 = vmatprep.subr.mxu0 0.0
    %5649 = vmatpush1.msra.mxu0 0.0
    %5650 = vmatprep.subr.mxu0 0.0
    %5651 = vmatpush1.msra.mxu0 0.0
    %5652 = vmatprep.subr.mxu0 0.0
    %5653 = vmatpush1.msra.mxu0 0.0
    %5654 = vmatprep.subr.mxu0 0.0
    %5655 = vmatpush1.msra.mxu0 0.0
    %5656 = vmatprep.mubr.f32.mxu0 0.0
    %5657 = vmatmul.mubr.f32.gmra.mrb[0].mxu0 %v5590
    %v5658 = vpop.f32.mrb[0].mxu0
    %v5659 = vadd.f32 %v5063, %v5658
    %v5660 = vpop.f32.mrb[0].mxu0
    %5661 = vdwg.mxu0
    %5662 = vmatprep.subr.mxu0 0.0
    %5663 = vmatpush1.msra.mxu0 %v5024
    %5664 = vmatprep.subr.mxu0 0.0
    %5665 = vmatpush1.msra.mxu0 %v5025
    %5666 = vmatprep.subr.mxu0 0.0
    %5667 = vmatpush1.msra.mxu0 %v5026
    %5668 = vmatprep.subr.mxu0 0.0
    %5669 = vmatpush1.msra.mxu0 %v5027
    %5670 = vmatprep.subr.mxu0 0.0
    %5671 = vmatpush1.msra.mxu0 0.0
    %5672 = vmatprep.subr.mxu0 0.0
    %5673 = vmatpush1.msra.mxu0 0.0
    %5674 = vmatprep.subr.mxu0 0.0
    %5675 = vmatpush1.msra.mxu0 0.0
    %5676 = vmatprep.subr.mxu0 0.0
    %5677 = vmatpush1.msra.mxu0 0.0
    %5678 = vmatprep.subr.mxu0 0.0
    %5679 = vmatpush1.msra.mxu0 0.0
    %5680 = vmatprep.subr.mxu0 0.0
    %5681 = vmatpush1.msra.mxu0 0.0
    %5682 = vmatprep.subr.mxu0 0.0
    %5683 = vmatpush1.msra.mxu0 0.0
    %5684 = vmatprep.subr.mxu0 0.0
    %5685 = vmatpush1.msra.mxu0 0.0
    %5686 = vmatprep.subr.mxu0 0.0
    %5687 = vmatpush1.msra.mxu0 0.0
    %5688 = vmatprep.subr.mxu0 0.0
    %5689 = vmatpush1.msra.mxu0 0.0
    %5690 = vmatprep.subr.mxu0 0.0
    %5691 = vmatpush1.msra.mxu0 0.0
    %5692 = vmatprep.subr.mxu0 0.0
    %5693 = vmatpush1.msra.mxu0 0.0
    %5694 = vmatprep.subr.mxu0 0.0
    %5695 = vmatpush1.msra.mxu0 0.0
    %5696 = vmatprep.subr.mxu0 0.0
    %5697 = vmatpush1.msra.mxu0 0.0
    %5698 = vmatprep.subr.mxu0 0.0
    %5699 = vmatpush1.msra.mxu0 0.0
    %5700 = vmatprep.subr.mxu0 0.0
    %5701 = vmatpush1.msra.mxu0 0.0
    %5702 = vmatprep.subr.mxu0 0.0
    %5703 = vmatpush1.msra.mxu0 0.0
    %5704 = vmatprep.subr.mxu0 0.0
    %5705 = vmatpush1.msra.mxu0 0.0
    %5706 = vmatprep.subr.mxu0 0.0
    %5707 = vmatpush1.msra.mxu0 0.0
    %5708 = vmatprep.subr.mxu0 0.0
    %5709 = vmatpush1.msra.mxu0 0.0
    %5710 = vmatprep.subr.mxu0 0.0
    %5711 = vmatpush1.msra.mxu0 0.0
    %5712 = vmatprep.subr.mxu0 0.0
    %5713 = vmatpush1.msra.mxu0 0.0
    %5714 = vmatprep.subr.mxu0 0.0
    %5715 = vmatpush1.msra.mxu0 0.0
    %5716 = vmatprep.subr.mxu0 0.0
    %5717 = vmatpush1.msra.mxu0 0.0
    %5718 = vmatprep.subr.mxu0 0.0
    %5719 = vmatpush1.msra.mxu0 0.0
    %5720 = vmatprep.subr.mxu0 0.0
    %5721 = vmatpush1.msra.mxu0 0.0
    %5722 = vmatprep.subr.mxu0 0.0
    %5723 = vmatpush1.msra.mxu0 0.0
    %5724 = vmatprep.subr.mxu0 0.0
    %5725 = vmatpush1.msra.mxu0 0.0
    %5726 = vmatprep.mubr.f32.mxu0 0.0
    %5727 = vmatmul.mubr.f32.gmra.mrb[0].mxu0 %v5590
    %v5728 = vpop.f32.mrb[0].mxu0
    %v5729 = vadd.f32 %v5139, %v5728
    %v5730 = vpop.f32.mrb[0].mxu0
    %5731 = vdwg.mxu0
    %5732 = vmatprep.subr.mxu0 0.0
    %5733 = vmatpush1.msra.mxu0 %v5029
    %5734 = vmatprep.subr.mxu0 0.0
    %5735 = vmatpush1.msra.mxu0 %v5030
    %5736 = vmatprep.subr.mxu0 0.0
    %5737 = vmatpush1.msra.mxu0 %v5031
    %5738 = vmatprep.subr.mxu0 0.0
    %5739 = vmatpush1.msra.mxu0 %v5032
    %5740 = vmatprep.subr.mxu0 0.0
    %5741 = vmatpush1.msra.mxu0 0.0
    %5742 = vmatprep.subr.mxu0 0.0
    %5743 = vmatpush1.msra.mxu0 0.0
    %5744 = vmatprep.subr.mxu0 0.0
    %5745 = vmatpush1.msra.mxu0 0.0
    %5746 = vmatprep.subr.mxu0 0.0
    %5747 = vmatpush1.msra.mxu0 0.0
    %5748 = vmatprep.subr.mxu0 0.0
    %5749 = vmatpush1.msra.mxu0 0.0
    %5750 = vmatprep.subr.mxu0 0.0
    %5751 = vmatpush1.msra.mxu0 0.0
    %5752 = vmatprep.subr.mxu0 0.0
    %5753 = vmatpush1.msra.mxu0 0.0
    %5754 = vmatprep.subr.mxu0 0.0
    %5755 = vmatpush1.msra.mxu0 0.0
    %5756 = vmatprep.subr.mxu0 0.0
    %5757 = vmatpush1.msra.mxu0 0.0
    %5758 = vmatprep.subr.mxu0 0.0
    %5759 = vmatpush1.msra.mxu0 0.0
    %5760 = vmatprep.subr.mxu0 0.0
    %5761 = vmatpush1.msra.mxu0 0.0
    %5762 = vmatprep.subr.mxu0 0.0
    %5763 = vmatpush1.msra.mxu0 0.0
    %5764 = vmatprep.subr.mxu0 0.0
    %5765 = vmatpush1.msra.mxu0 0.0
    %5766 = vmatprep.subr.mxu0 0.0
    %5767 = vmatpush1.msra.mxu0 0.0
    %5768 = vmatprep.subr.mxu0 0.0
    %5769 = vmatpush1.msra.mxu0 0.0
    %5770 = vmatprep.subr.mxu0 0.0
    %5771 = vmatpush1.msra.mxu0 0.0
    %5772 = vmatprep.subr.mxu0 0.0
    %5773 = vmatpush1.msra.mxu0 0.0
    %5774 = vmatprep.subr.mxu0 0.0
    %5775 = vmatpush1.msra.mxu0 0.0
    %5776 = vmatprep.subr.mxu0 0.0
    %5777 = vmatpush1.msra.mxu0 0.0
    %5778 = vmatprep.subr.mxu0 0.0
    %5779 = vmatpush1.msra.mxu0 0.0
    %5780 = vmatprep.subr.mxu0 0.0
    %5781 = vmatpush1.msra.mxu0 0.0
    %5782 = vmatprep.subr.mxu0 0.0
    %5783 = vmatpush1.msra.mxu0 0.0
    %5784 = vmatprep.subr.mxu0 0.0
    %5785 = vmatpush1.msra.mxu0 0.0
    %5786 = vmatprep.subr.mxu0 0.0
    %5787 = vmatpush1.msra.mxu0 0.0
    %5788 = vmatprep.subr.mxu0 0.0
    %5789 = vmatpush1.msra.mxu0 0.0
    %5790 = vmatprep.subr.mxu0 0.0
    %5791 = vmatpush1.msra.mxu0 0.0
    %5792 = vmatprep.subr.mxu0 0.0
    %5793 = vmatpush1.msra.mxu0 0.0
    %5794 = vmatprep.subr.mxu0 0.0
    %5795 = vmatpush1.msra.mxu0 0.0
    %5796 = vmatprep.mubr.f32.mxu0 0.0
    %5797 = vmatmul.mubr.f32.gmra.mrb[0].mxu0 %v5590
    %v5798 = vpop.f32.mrb[0].mxu0
    %v5799 = vadd.f32 %v5215, %v5798
    %v5800 = vpop.f32.mrb[0].mxu0
    %5801 = vdwg.mxu0
    %v5802 = vadd.f32 %v4525, %v5659
    %v5803 = vxor.u32 %v5802, 2147483648
    %v5804 = vmul.f32 %v5803, 1.442695
    %v5805 = vpow.pop %v5804
    %v5806 = vadd.f32 %v5805, 1.0
    %v5807 = vrcp.pop %v5806
    %v5808 = vmul.f32 1.0, %v5807
    %5810 = vrot.lane.b32.xlu0 %v5729, 32
    %v5811 = vpop.permute.xlu0 %5810
    %v5813 = vadd.f32 %v4525, %v5811
    %v5814 = vxor.u32 %v5813, 2147483648
    %v5815 = vmul.f32 %v5814, 1.442695
    %v5816 = vpow.pop %v5815
    %v5817 = vadd.f32 %v5816, 1.0
    %v5818 = vrcp.pop %v5817
    %v5819 = vmul.f32 1.0, %v5818
    %v5820 = vmul.f32 %v5808, %v5799
    %5822 = vrot.lane.b32.xlu0 %v5820, 64
    %v5823 = vpop.permute.xlu0 %5822
    %v5825 = vadd.f32 %v4525, %v5823
    %v5826 = vtanh.pop %v5825
    %v5827 = vsub.f32 1.0, %v5819
    %5829 = vrot.lane.b32.xlu0 %v5826, 96
    %v5830 = vpop.permute.xlu0 %5829
    %v5832 = vmul.f32 %v5827, %v5830
    %v5833 = vmul.f32 %v5819, %v5319
    %v5834 = vadd.f32 %v5832, %v5833
    %v5836 = vsel %vm91, %v5584, 0
    %5838 = vmatprep.subr.mxu0 0.0
    %5839 = vmatpush1.msra.mxu0 %v5039
    %5840 = vmatprep.subr.mxu0 0.0
    %5841 = vmatpush1.msra.mxu0 %v5040
    %5842 = vmatprep.subr.mxu0 0.0
    %5843 = vmatpush1.msra.mxu0 %v5041
    %5844 = vmatprep.subr.mxu0 0.0
    %5845 = vmatpush1.msra.mxu0 %v5042
    %5846 = vmatprep.subr.mxu0 0.0
    %5847 = vmatpush1.msra.mxu0 0.0
    %5848 = vmatprep.subr.mxu0 0.0
    %5849 = vmatpush1.msra.mxu0 0.0
    %5850 = vmatprep.subr.mxu0 0.0
    %5851 = vmatpush1.msra.mxu0 0.0
    %5852 = vmatprep.subr.mxu0 0.0
    %5853 = vmatpush1.msra.mxu0 0.0
    %5854 = vmatprep.subr.mxu0 0.0
    %5855 = vmatpush1.msra.mxu0 0.0
    %5856 = vmatprep.subr.mxu0 0.0
    %5857 = vmatpush1.msra.mxu0 0.0
    %5858 = vmatprep.subr.mxu0 0.0
    %5859 = vmatpush1.msra.mxu0 0.0
    %5860 = vmatprep.subr.mxu0 0.0
    %5861 = vmatpush1.msra.mxu0 0.0
    %5862 = vmatprep.subr.mxu0 0.0
    %5863 = vmatpush1.msra.mxu0 0.0
    %5864 = vmatprep.subr.mxu0 0.0
    %5865 = vmatpush1.msra.mxu0 0.0
    %5866 = vmatprep.subr.mxu0 0.0
    %5867 = vmatpush1.msra.mxu0 0.0
    %5868 = vmatprep.subr.mxu0 0.0
    %5869 = vmatpush1.msra.mxu0 0.0
    %5870 = vmatprep.subr.mxu0 0.0
    %5871 = vmatpush1.msra.mxu0 0.0
    %5872 = vmatprep.subr.mxu0 0.0
    %5873 = vmatpush1.msra.mxu0 0.0
    %5874 = vmatprep.subr.mxu0 0.0
    %5875 = vmatpush1.msra.mxu0 0.0
    %5876 = vmatprep.subr.mxu0 0.0
    %5877 = vmatpush1.msra.mxu0 0.0
    %5878 = vmatprep.subr.mxu0 0.0
    %5879 = vmatpush1.msra.mxu0 0.0
    %5880 = vmatprep.subr.mxu0 0.0
    %5881 = vmatpush1.msra.mxu0 0.0
    %5882 = vmatprep.subr.mxu0 0.0
    %5883 = vmatpush1.msra.mxu0 0.0
    %5884 = vmatprep.subr.mxu0 0.0
    %5885 = vmatpush1.msra.mxu0 0.0
    %5886 = vmatprep.subr.mxu0 0.0
    %5887 = vmatpush1.msra.mxu0 0.0
    %5888 = vmatprep.subr.mxu0 0.0
    %5889 = vmatpush1.msra.mxu0 0.0
    %5890 = vmatprep.subr.mxu0 0.0
    %5891 = vmatpush1.msra.mxu0 0.0
    %5892 = vmatprep.subr.mxu0 0.0
    %5893 = vmatpush1.msra.mxu0 0.0
    %5894 = vmatprep.subr.mxu0 0.0
    %5895 = vmatpush1.msra.mxu0 0.0
    %5896 = vmatprep.subr.mxu0 0.0
    %5897 = vmatpush1.msra.mxu0 0.0
    %5898 = vmatprep.subr.mxu0 0.0
    %5899 = vmatpush1.msra.mxu0 0.0
    %5900 = vmatprep.subr.mxu0 0.0
    %5901 = vmatpush1.msra.mxu0 0.0
    %5902 = vmatprep.mubr.f32.mxu0 0.0
    %5903 = vmatmul.mubr.f32.gmra.mrb[0].mxu0 %v5836
    %v5904 = vpop.f32.mrb[0].mxu0
    %v5905 = vadd.f32 %v5324, %v5904
    %v5906 = vpop.f32.mrb[0].mxu0
    %5907 = vdwg.mxu0
    %5908 = vmatprep.subr.mxu0 0.0
    %5909 = vmatpush1.msra.mxu0 %v5044
    %5910 = vmatprep.subr.mxu0 0.0
    %5911 = vmatpush1.msra.mxu0 %v5045
    %5912 = vmatprep.subr.mxu0 0.0
    %5913 = vmatpush1.msra.mxu0 %v5046
    %5914 = vmatprep.subr.mxu0 0.0
    %5915 = vmatpush1.msra.mxu0 %v5047
    %5916 = vmatprep.subr.mxu0 0.0
    %5917 = vmatpush1.msra.mxu0 0.0
    %5918 = vmatprep.subr.mxu0 0.0
    %5919 = vmatpush1.msra.mxu0 0.0
    %5920 = vmatprep.subr.mxu0 0.0
    %5921 = vmatpush1.msra.mxu0 0.0
    %5922 = vmatprep.subr.mxu0 0.0
    %5923 = vmatpush1.msra.mxu0 0.0
    %5924 = vmatprep.subr.mxu0 0.0
    %5925 = vmatpush1.msra.mxu0 0.0
    %5926 = vmatprep.subr.mxu0 0.0
    %5927 = vmatpush1.msra.mxu0 0.0
    %5928 = vmatprep.subr.mxu0 0.0
    %5929 = vmatpush1.msra.mxu0 0.0
    %5930 = vmatprep.subr.mxu0 0.0
    %5931 = vmatpush1.msra.mxu0 0.0
    %5932 = vmatprep.subr.mxu0 0.0
    %5933 = vmatpush1.msra.mxu0 0.0
    %5934 = vmatprep.subr.mxu0 0.0
    %5935 = vmatpush1.msra.mxu0 0.0
    %5936 = vmatprep.subr.mxu0 0.0
    %5937 = vmatpush1.msra.mxu0 0.0
    %5938 = vmatprep.subr.mxu0 0.0
    %5939 = vmatpush1.msra.mxu0 0.0
    %5940 = vmatprep.subr.mxu0 0.0
    %5941 = vmatpush1.msra.mxu0 0.0
    %5942 = vmatprep.subr.mxu0 0.0
    %5943 = vmatpush1.msra.mxu0 0.0
    %5944 = vmatprep.subr.mxu0 0.0
    %5945 = vmatpush1.msra.mxu0 0.0
    %5946 = vmatprep.subr.mxu0 0.0
    %5947 = vmatpush1.msra.mxu0 0.0
    %5948 = vmatprep.subr.mxu0 0.0
    %5949 = vmatpush1.msra.mxu0 0.0
    %5950 = vmatprep.subr.mxu0 0.0
    %5951 = vmatpush1.msra.mxu0 0.0
    %5952 = vmatprep.subr.mxu0 0.0
    %5953 = vmatpush1.msra.mxu0 0.0
    %5954 = vmatprep.subr.mxu0 0.0
    %5955 = vmatpush1.msra.mxu0 0.0
    %5956 = vmatprep.subr.mxu0 0.0
    %5957 = vmatpush1.msra.mxu0 0.0
    %5958 = vmatprep.subr.mxu0 0.0
    %5959 = vmatpush1.msra.mxu0 0.0
    %5960 = vmatprep.subr.mxu0 0.0
    %5961 = vmatpush1.msra.mxu0 0.0
    %5962 = vmatprep.subr.mxu0 0.0
    %5963 = vmatpush1.msra.mxu0 0.0
    %5964 = vmatprep.subr.mxu0 0.0
    %5965 = vmatpush1.msra.mxu0 0.0
    %5966 = vmatprep.subr.mxu0 0.0
    %5967 = vmatpush1.msra.mxu0 0.0
    %5968 = vmatprep.subr.mxu0 0.0
    %5969 = vmatpush1.msra.mxu0 0.0
    %5970 = vmatprep.subr.mxu0 0.0
    %5971 = vmatpush1.msra.mxu0 0.0
    %5972 = vmatprep.mubr.f32.mxu0 0.0
    %5973 = vmatmul.mubr.f32.gmra.mrb[0].mxu0 %v5836
    %v5974 = vpop.f32.mrb[0].mxu0
    %v5975 = vadd.f32 %v5400, %v5974
    %v5976 = vpop.f32.mrb[0].mxu0
    %5977 = vdwg.mxu0
    %5978 = vmatprep.subr.mxu0 0.0
    %5979 = vmatpush1.msra.mxu0 %v5049
    %5980 = vmatprep.subr.mxu0 0.0
    %5981 = vmatpush1.msra.mxu0 %v5050
    %5982 = vmatprep.subr.mxu0 0.0
    %5983 = vmatpush1.msra.mxu0 %v5051
    %5984 = vmatprep.subr.mxu0 0.0
    %5985 = vmatpush1.msra.mxu0 %v5052
    %5986 = vmatprep.subr.mxu0 0.0
    %5987 = vmatpush1.msra.mxu0 0.0
    %5988 = vmatprep.subr.mxu0 0.0
    %5989 = vmatpush1.msra.mxu0 0.0
    %5990 = vmatprep.subr.mxu0 0.0
    %5991 = vmatpush1.msra.mxu0 0.0
    %5992 = vmatprep.subr.mxu0 0.0
    %5993 = vmatpush1.msra.mxu0 0.0
    %5994 = vmatprep.subr.mxu0 0.0
    %5995 = vmatpush1.msra.mxu0 0.0
    %5996 = vmatprep.subr.mxu0 0.0
    %5997 = vmatpush1.msra.mxu0 0.0
    %5998 = vmatprep.subr.mxu0 0.0
    %5999 = vmatpush1.msra.mxu0 0.0
    %6000 = vmatprep.subr.mxu0 0.0
    %6001 = vmatpush1.msra.mxu0 0.0
    %6002 = vmatprep.subr.mxu0 0.0
    %6003 = vmatpush1.msra.mxu0 0.0
    %6004 = vmatprep.subr.mxu0 0.0
    %6005 = vmatpush1.msra.mxu0 0.0
    %6006 = vmatprep.subr.mxu0 0.0
    %6007 = vmatpush1.msra.mxu0 0.0
    %6008 = vmatprep.subr.mxu0 0.0
    %6009 = vmatpush1.msra.mxu0 0.0
    %6010 = vmatprep.subr.mxu0 0.0
    %6011 = vmatpush1.msra.mxu0 0.0
    %6012 = vmatprep.subr.mxu0 0.0
    %6013 = vmatpush1.msra.mxu0 0.0
    %6014 = vmatprep.subr.mxu0 0.0
    %6015 = vmatpush1.msra.mxu0 0.0
    %6016 = vmatprep.subr.mxu0 0.0
    %6017 = vmatpush1.msra.mxu0 0.0
    %6018 = vmatprep.subr.mxu0 0.0
    %6019 = vmatpush1.msra.mxu0 0.0
    %6020 = vmatprep.subr.mxu0 0.0
    %6021 = vmatpush1.msra.mxu0 0.0
    %6022 = vmatprep.subr.mxu0 0.0
    %6023 = vmatpush1.msra.mxu0 0.0
    %6024 = vmatprep.subr.mxu0 0.0
    %6025 = vmatpush1.msra.mxu0 0.0
    %6026 = vmatprep.subr.mxu0 0.0
    %6027 = vmatpush1.msra.mxu0 0.0
    %6028 = vmatprep.subr.mxu0 0.0
    %6029 = vmatpush1.msra.mxu0 0.0
    %6030 = vmatprep.subr.mxu0 0.0
    %6031 = vmatpush1.msra.mxu0 0.0
    %6032 = vmatprep.subr.mxu0 0.0
    %6033 = vmatpush1.msra.mxu0 0.0
    %6034 = vmatprep.subr.mxu0 0.0
    %6035 = vmatpush1.msra.mxu0 0.0
    %6036 = vmatprep.subr.mxu0 0.0
    %6037 = vmatpush1.msra.mxu0 0.0
    %6038 = vmatprep.subr.mxu0 0.0
    %6039 = vmatpush1.msra.mxu0 0.0
    %6040 = vmatprep.subr.mxu0 0.0
    %6041 = vmatpush1.msra.mxu0 0.0
    %6042 = vmatprep.mubr.f32.mxu0 0.0
    %6043 = vmatmul.mubr.f32.gmra.mrb[0].mxu0 %v5836
    %v6044 = vpop.f32.mrb[0].mxu0
    %v6045 = vadd.f32 %v5476, %v6044
    %v6046 = vpop.f32.mrb[0].mxu0
    %6047 = vdwg.mxu0
    %6049 = vrot.lane.b32.xlu0 %v5905, 96
    %v6050 = vpop.permute.xlu0 %6049
    %v6052 = vadd.f32 %v4932, %v6050
    %v6053 = vxor.u32 %v6052, 2147483648
    %v6054 = vmul.f32 %v6053, 1.442695
    %v6055 = vpow.pop %v6054
    %v6056 = vadd.f32 %v6055, 1.0
    %v6057 = vrcp.pop %v6056
    %v6058 = vmul.f32 1.0, %v6057
    %v6059 = vadd.f32 %v4934, %v5975
    %v6060 = vxor.u32 %v6059, 2147483648
    %v6061 = vmul.f32 %v6060, 1.442695
    %v6062 = vpow.pop %v6061
    %v6063 = vadd.f32 %v6062, 1.0
    %v6064 = vrcp.pop %v6063
    %v6065 = vmul.f32 1.0, %v6064
    %6067 = vrot.lane.b32.xlu0 %v6045, 96
    %v6068 = vpop.permute.xlu0 %6067
    %v6070 = vmul.f32 %v6058, %v6068
    %6072 = vrot.lane.b32.xlu0 %v6070, 64
    %v6073 = vpop.permute.xlu0 %6072
    %v6075 = vadd.f32 %v4934, %v6073
    %v6076 = vtanh.pop %v6075
    %v6077 = vsub.f32 1.0, %v6065
    %6079 = vrot.lane.b32.xlu0 %v6076, 96
    %v6080 = vpop.permute.xlu0 %6079
    %v6082 = vmul.f32 %v6077, %v6080
    %v6083 = vmul.f32 %v6065, %v5584
    %v6084 = vadd.f32 %v6082, %v6083
    %v6085 = vadd.f32 %v5585, %v5834
    %v6086 = vadd.f32 %v5586, %v6084
    %v6087 = vmax.f32 %v5319, %v5834
    %v6088 = vmax.f32 %v5584, %v6084
    %6090 = vrot.lane.b32.xlu0 %v5834, 96
    %v6091 = vpop.permute.xlu0 %6090
    %v6092 = vsel %vm91, %v6091, 0
    %6094 = vmatprep.subr.mxu0 0.0
    %6095 = vmatpush1.msra.mxu0 %v5019
    %6096 = vmatprep.subr.mxu0 0.0
    %6097 = vmatpush1.msra.mxu0 %v5020
    %6098 = vmatprep.subr.mxu0 0.0
    %6099 = vmatpush1.msra.mxu0 %v5021
    %6100 = vmatprep.subr.mxu0 0.0
    %6101 = vmatpush1.msra.mxu0 %v5022
    %6102 = vmatprep.subr.mxu0 0.0
    %6103 = vmatpush1.msra.mxu0 0.0
    %6104 = vmatprep.subr.mxu0 0.0
    %6105 = vmatpush1.msra.mxu0 0.0
    %6106 = vmatprep.subr.mxu0 0.0
    %6107 = vmatpush1.msra.mxu0 0.0
    %6108 = vmatprep.subr.mxu0 0.0
    %6109 = vmatpush1.msra.mxu0 0.0
    %6110 = vmatprep.subr.mxu0 0.0
    %6111 = vmatpush1.msra.mxu0 0.0
    %6112 = vmatprep.subr.mxu0 0.0
    %6113 = vmatpush1.msra.mxu0 0.0
    %6114 = vmatprep.subr.mxu0 0.0
    %6115 = vmatpush1.msra.mxu0 0.0
    %6116 = vmatprep.subr.mxu0 0.0
    %6117 = vmatpush1.msra.mxu0 0.0
    %6118 = vmatprep.subr.mxu0 0.0
    %6119 = vmatpush1.msra.mxu0 0.0
    %6120 = vmatprep.subr.mxu0 0.0
    %6121 = vmatpush1.msra.mxu0 0.0
    %6122 = vmatprep.subr.mxu0 0.0
    %6123 = vmatpush1.msra.mxu0 0.0
    %6124 = vmatprep.subr.mxu0 0.0
    %6125 = vmatpush1.msra.mxu0 0.0
    %6126 = vmatprep.subr.mxu0 0.0
    %6127 = vmatpush1.msra.mxu0 0.0
    %6128 = vmatprep.subr.mxu0 0.0
    %6129 = vmatpush1.msra.mxu0 0.0
    %6130 = vmatprep.subr.mxu0 0.0
    %6131 = vmatpush1.msra.mxu0 0.0
    %6132 = vmatprep.subr.mxu0 0.0
    %6133 = vmatpush1.msra.mxu0 0.0
    %6134 = vmatprep.subr.mxu0 0.0
    %6135 = vmatpush1.msra.mxu0 0.0
    %6136 = vmatprep.subr.mxu0 0.0
    %6137 = vmatpush1.msra.mxu0 0.0
    %6138 = vmatprep.subr.mxu0 0.0
    %6139 = vmatpush1.msra.mxu0 0.0
    %6140 = vmatprep.subr.mxu0 0.0
    %6141 = vmatpush1.msra.mxu0 0.0
    %6142 = vmatprep.subr.mxu0 0.0
    %6143 = vmatpush1.msra.mxu0 0.0
    %6144 = vmatprep.subr.mxu0 0.0
    %6145 = vmatpush1.msra.mxu0 0.0
    %6146 = vmatprep.subr.mxu0 0.0
    %6147 = vmatpush1.msra.mxu0 0.0
    %6148 = vmatprep.subr.mxu0 0.0
    %6149 = vmatpush1.msra.mxu0 0.0
    %6150 = vmatprep.subr.mxu0 0.0
    %6151 = vmatpush1.msra.mxu0 0.0
    %6152 = vmatprep.subr.mxu0 0.0
    %6153 = vmatpush1.msra.mxu0 0.0
    %6154 = vmatprep.subr.mxu0 0.0
    %6155 = vmatpush1.msra.mxu0 0.0
    %6156 = vmatprep.subr.mxu0 0.0
    %6157 = vmatpush1.msra.mxu0 0.0
    %6158 = vmatprep.mubr.f32.mxu0 0.0
    %6159 = vmatmul.mubr.f32.gmra.mrb[0].mxu0 %v6092
    %v6160 = vpop.f32.mrb[0].mxu0
    %v6161 = vadd.f32 %v5063, %v6160
    %v6162 = vpop.f32.mrb[0].mxu0
    %6163 = vdwg.mxu0
    %6164 = vmatprep.subr.mxu0 0.0
    %6165 = vmatpush1.msra.mxu0 %v5024
    %6166 = vmatprep.subr.mxu0 0.0
    %6167 = vmatpush1.msra.mxu0 %v5025
    %6168 = vmatprep.subr.mxu0 0.0
    %6169 = vmatpush1.msra.mxu0 %v5026
    %6170 = vmatprep.subr.mxu0 0.0
    %6171 = vmatpush1.msra.mxu0 %v5027
    %6172 = vmatprep.subr.mxu0 0.0
    %6173 = vmatpush1.msra.mxu0 0.0
    %6174 = vmatprep.subr.mxu0 0.0
    %6175 = vmatpush1.msra.mxu0 0.0
    %6176 = vmatprep.subr.mxu0 0.0
    %6177 = vmatpush1.msra.mxu0 0.0
    %6178 = vmatprep.subr.mxu0 0.0
    %6179 = vmatpush1.msra.mxu0 0.0
    %6180 = vmatprep.subr.mxu0 0.0
    %6181 = vmatpush1.msra.mxu0 0.0
    %6182 = vmatprep.subr.mxu0 0.0
    %6183 = vmatpush1.msra.mxu0 0.0
    %6184 = vmatprep.subr.mxu0 0.0
    %6185 = vmatpush1.msra.mxu0 0.0
    %6186 = vmatprep.subr.mxu0 0.0
    %6187 = vmatpush1.msra.mxu0 0.0
    %6188 = vmatprep.subr.mxu0 0.0
    %6189 = vmatpush1.msra.mxu0 0.0
    %6190 = vmatprep.subr.mxu0 0.0
    %6191 = vmatpush1.msra.mxu0 0.0
    %6192 = vmatprep.subr.mxu0 0.0
    %6193 = vmatpush1.msra.mxu0 0.0
    %6194 = vmatprep.subr.mxu0 0.0
    %6195 = vmatpush1.msra.mxu0 0.0
    %6196 = vmatprep.subr.mxu0 0.0
    %6197 = vmatpush1.msra.mxu0 0.0
    %6198 = vmatprep.subr.mxu0 0.0
    %6199 = vmatpush1.msra.mxu0 0.0
    %6200 = vmatprep.subr.mxu0 0.0
    %6201 = vmatpush1.msra.mxu0 0.0
    %6202 = vmatprep.subr.mxu0 0.0
    %6203 = vmatpush1.msra.mxu0 0.0
    %6204 = vmatprep.subr.mxu0 0.0
    %6205 = vmatpush1.msra.mxu0 0.0
    %6206 = vmatprep.subr.mxu0 0.0
    %6207 = vmatpush1.msra.mxu0 0.0
    %6208 = vmatprep.subr.mxu0 0.0
    %6209 = vmatpush1.msra.mxu0 0.0
    %6210 = vmatprep.subr.mxu0 0.0
    %6211 = vmatpush1.msra.mxu0 0.0
    %6212 = vmatprep.subr.mxu0 0.0
    %6213 = vmatpush1.msra.mxu0 0.0
    %6214 = vmatprep.subr.mxu0 0.0
    %6215 = vmatpush1.msra.mxu0 0.0
    %6216 = vmatprep.subr.mxu0 0.0
    %6217 = vmatpush1.msra.mxu0 0.0
    %6218 = vmatprep.subr.mxu0 0.0
    %6219 = vmatpush1.msra.mxu0 0.0
    %6220 = vmatprep.subr.mxu0 0.0
    %6221 = vmatpush1.msra.mxu0 0.0
    %6222 = vmatprep.subr.mxu0 0.0
    %6223 = vmatpush1.msra.mxu0 0.0
    %6224 = vmatprep.subr.mxu0 0.0
    %6225 = vmatpush1.msra.mxu0 0.0
    %6226 = vmatprep.subr.mxu0 0.0
    %6227 = vmatpush1.msra.mxu0 0.0
    %6228 = vmatprep.mubr.f32.mxu0 0.0
    %6229 = vmatmul.mubr.f32.gmra.mrb[0].mxu0 %v6092
    %v6230 = vpop.f32.mrb[0].mxu0
    %v6231 = vadd.f32 %v5139, %v6230
    %v6232 = vpop.f32.mrb[0].mxu0
    %6233 = vdwg.mxu0
    %6234 = vmatprep.subr.mxu0 0.0
    %6235 = vmatpush1.msra.mxu0 %v5029
    %6236 = vmatprep.subr.mxu0 0.0
    %6237 = vmatpush1.msra.mxu0 %v5030
    %6238 = vmatprep.subr.mxu0 0.0
    %6239 = vmatpush1.msra.mxu0 %v5031
    %6240 = vmatprep.subr.mxu0 0.0
    %6241 = vmatpush1.msra.mxu0 %v5032
    %6242 = vmatprep.subr.mxu0 0.0
    %6243 = vmatpush1.msra.mxu0 0.0
    %6244 = vmatprep.subr.mxu0 0.0
    %6245 = vmatpush1.msra.mxu0 0.0
    %6246 = vmatprep.subr.mxu0 0.0
    %6247 = vmatpush1.msra.mxu0 0.0
    %6248 = vmatprep.subr.mxu0 0.0
    %6249 = vmatpush1.msra.mxu0 0.0
    %6250 = vmatprep.subr.mxu0 0.0
    %6251 = vmatpush1.msra.mxu0 0.0
    %6252 = vmatprep.subr.mxu0 0.0
    %6253 = vmatpush1.msra.mxu0 0.0
    %6254 = vmatprep.subr.mxu0 0.0
    %6255 = vmatpush1.msra.mxu0 0.0
    %6256 = vmatprep.subr.mxu0 0.0
    %6257 = vmatpush1.msra.mxu0 0.0
    %6258 = vmatprep.subr.mxu0 0.0
    %6259 = vmatpush1.msra.mxu0 0.0
    %6260 = vmatprep.subr.mxu0 0.0
    %6261 = vmatpush1.msra.mxu0 0.0
    %6262 = vmatprep.subr.mxu0 0.0
    %6263 = vmatpush1.msra.mxu0 0.0
    %6264 = vmatprep.subr.mxu0 0.0
    %6265 = vmatpush1.msra.mxu0 0.0
    %6266 = vmatprep.subr.mxu0 0.0
    %6267 = vmatpush1.msra.mxu0 0.0
    %6268 = vmatprep.subr.mxu0 0.0
    %6269 = vmatpush1.msra.mxu0 0.0
    %6270 = vmatprep.subr.mxu0 0.0
    %6271 = vmatpush1.msra.mxu0 0.0
    %6272 = vmatprep.subr.mxu0 0.0
    %6273 = vmatpush1.msra.mxu0 0.0
    %6274 = vmatprep.subr.mxu0 0.0
    %6275 = vmatpush1.msra.mxu0 0.0
    %6276 = vmatprep.subr.mxu0 0.0
    %6277 = vmatpush1.msra.mxu0 0.0
    %6278 = vmatprep.subr.mxu0 0.0
    %6279 = vmatpush1.msra.mxu0 0.0
    %6280 = vmatprep.subr.mxu0 0.0
    %6281 = vmatpush1.msra.mxu0 0.0
    %6282 = vmatprep.subr.mxu0 0.0
    %6283 = vmatpush1.msra.mxu0 0.0
    %6284 = vmatprep.subr.mxu0 0.0
    %6285 = vmatpush1.msra.mxu0 0.0
    %6286 = vmatprep.subr.mxu0 0.0
    %6287 = vmatpush1.msra.mxu0 0.0
    %6288 = vmatprep.subr.mxu0 0.0
    %6289 = vmatpush1.msra.mxu0 0.0
    %6290 = vmatprep.subr.mxu0 0.0
    %6291 = vmatpush1.msra.mxu0 0.0
    %6292 = vmatprep.subr.mxu0 0.0
    %6293 = vmatpush1.msra.mxu0 0.0
    %6294 = vmatprep.subr.mxu0 0.0
    %6295 = vmatpush1.msra.mxu0 0.0
    %6296 = vmatprep.subr.mxu0 0.0
    %6297 = vmatpush1.msra.mxu0 0.0
    %6298 = vmatprep.mubr.f32.mxu0 0.0
    %6299 = vmatmul.mubr.f32.gmra.mrb[0].mxu0 %v6092
    %v6300 = vpop.f32.mrb[0].mxu0
    %v6301 = vadd.f32 %v5215, %v6300
    %v6302 = vpop.f32.mrb[0].mxu0
    %6303 = vdwg.mxu0
    %v6304 = vadd.f32 %v4607, %v6161
    %v6305 = vxor.u32 %v6304, 2147483648
    %v6306 = vmul.f32 %v6305, 1.442695
    %v6307 = vpow.pop %v6306
    %v6308 = vadd.f32 %v6307, 1.0
    %v6309 = vrcp.pop %v6308
    %v6310 = vmul.f32 1.0, %v6309
    %6312 = vrot.lane.b32.xlu0 %v6231, 32
    %v6313 = vpop.permute.xlu0 %6312
    %v6315 = vadd.f32 %v4607, %v6313
    %v6316 = vxor.u32 %v6315, 2147483648
    %v6317 = vmul.f32 %v6316, 1.442695
    %v6318 = vpow.pop %v6317
    %v6319 = vadd.f32 %v6318, 1.0
    %v6320 = vrcp.pop %v6319
    %v6321 = vmul.f32 1.0, %v6320
    %v6322 = vmul.f32 %v6310, %v6301
    %6324 = vrot.lane.b32.xlu0 %v6322, 64
    %v6325 = vpop.permute.xlu0 %6324
    %v6327 = vadd.f32 %v4607, %v6325
    %v6328 = vtanh.pop %v6327
    %v6329 = vsub.f32 1.0, %v6321
    %6331 = vrot.lane.b32.xlu0 %v6328, 96
    %v6332 = vpop.permute.xlu0 %6331
    %v6334 = vmul.f32 %v6329, %v6332
    %v6335 = vmul.f32 %v6321, %v5834
    %v6336 = vadd.f32 %v6334, %v6335
    %v6338 = vsel %vm91, %v6084, 0
    %6340 = vmatprep.subr.mxu0 0.0
    %6341 = vmatpush1.msra.mxu0 %v5039
    %6342 = vmatprep.subr.mxu0 0.0
    %6343 = vmatpush1.msra.mxu0 %v5040
    %6344 = vmatprep.subr.mxu0 0.0
    %6345 = vmatpush1.msra.mxu0 %v5041
    %6346 = vmatprep.subr.mxu0 0.0
    %6347 = vmatpush1.msra.mxu0 %v5042
    %6348 = vmatprep.subr.mxu0 0.0
    %6349 = vmatpush1.msra.mxu0 0.0
    %6350 = vmatprep.subr.mxu0 0.0
    %6351 = vmatpush1.msra.mxu0 0.0
    %6352 = vmatprep.subr.mxu0 0.0
    %6353 = vmatpush1.msra.mxu0 0.0
    %6354 = vmatprep.subr.mxu0 0.0
    %6355 = vmatpush1.msra.mxu0 0.0
    %6356 = vmatprep.subr.mxu0 0.0
    %6357 = vmatpush1.msra.mxu0 0.0
    %6358 = vmatprep.subr.mxu0 0.0
    %6359 = vmatpush1.msra.mxu0 0.0
    %6360 = vmatprep.subr.mxu0 0.0
    %6361 = vmatpush1.msra.mxu0 0.0
    %6362 = vmatprep.subr.mxu0 0.0
    %6363 = vmatpush1.msra.mxu0 0.0
    %6364 = vmatprep.subr.mxu0 0.0
    %6365 = vmatpush1.msra.mxu0 0.0
    %6366 = vmatprep.subr.mxu0 0.0
    %6367 = vmatpush1.msra.mxu0 0.0
    %6368 = vmatprep.subr.mxu0 0.0
    %6369 = vmatpush1.msra.mxu0 0.0
    %6370 = vmatprep.subr.mxu0 0.0
    %6371 = vmatpush1.msra.mxu0 0.0
    %6372 = vmatprep.subr.mxu0 0.0
    %6373 = vmatpush1.msra.mxu0 0.0
    %6374 = vmatprep.subr.mxu0 0.0
    %6375 = vmatpush1.msra.mxu0 0.0
    %6376 = vmatprep.subr.mxu0 0.0
    %6377 = vmatpush1.msra.mxu0 0.0
    %6378 = vmatprep.subr.mxu0 0.0
    %6379 = vmatpush1.msra.mxu0 0.0
    %6380 = vmatprep.subr.mxu0 0.0
    %6381 = vmatpush1.msra.mxu0 0.0
    %6382 = vmatprep.subr.mxu0 0.0
    %6383 = vmatpush1.msra.mxu0 0.0
    %6384 = vmatprep.subr.mxu0 0.0
    %6385 = vmatpush1.msra.mxu0 0.0
    %6386 = vmatprep.subr.mxu0 0.0
    %6387 = vmatpush1.msra.mxu0 0.0
    %6388 = vmatprep.subr.mxu0 0.0
    %6389 = vmatpush1.msra.mxu0 0.0
    %6390 = vmatprep.subr.mxu0 0.0
    %6391 = vmatpush1.msra.mxu0 0.0
    %6392 = vmatprep.subr.mxu0 0.0
    %6393 = vmatpush1.msra.mxu0 0.0
    %6394 = vmatprep.subr.mxu0 0.0
    %6395 = vmatpush1.msra.mxu0 0.0
    %6396 = vmatprep.subr.mxu0 0.0
    %6397 = vmatpush1.msra.mxu0 0.0
    %6398 = vmatprep.subr.mxu0 0.0
    %6399 = vmatpush1.msra.mxu0 0.0
    %6400 = vmatprep.subr.mxu0 0.0
    %6401 = vmatpush1.msra.mxu0 0.0
    %6402 = vmatprep.subr.mxu0 0.0
    %6403 = vmatpush1.msra.mxu0 0.0
    %6404 = vmatprep.mubr.f32.mxu0 0.0
    %6405 = vmatmul.mubr.f32.gmra.mrb[0].mxu0 %v6338
    %v6406 = vpop.f32.mrb[0].mxu0
    %v6407 = vadd.f32 %v5324, %v6406
    %v6408 = vpop.f32.mrb[0].mxu0
    %6409 = vdwg.mxu0
    %6410 = vmatprep.subr.mxu0 0.0
    %6411 = vmatpush1.msra.mxu0 %v5044
    %6412 = vmatprep.subr.mxu0 0.0
    %6413 = vmatpush1.msra.mxu0 %v5045
    %6414 = vmatprep.subr.mxu0 0.0
    %6415 = vmatpush1.msra.mxu0 %v5046
    %6416 = vmatprep.subr.mxu0 0.0
    %6417 = vmatpush1.msra.mxu0 %v5047
    %6418 = vmatprep.subr.mxu0 0.0
    %6419 = vmatpush1.msra.mxu0 0.0
    %6420 = vmatprep.subr.mxu0 0.0
    %6421 = vmatpush1.msra.mxu0 0.0
    %6422 = vmatprep.subr.mxu0 0.0
    %6423 = vmatpush1.msra.mxu0 0.0
    %6424 = vmatprep.subr.mxu0 0.0
    %6425 = vmatpush1.msra.mxu0 0.0
    %6426 = vmatprep.subr.mxu0 0.0
    %6427 = vmatpush1.msra.mxu0 0.0
    %6428 = vmatprep.subr.mxu0 0.0
    %6429 = vmatpush1.msra.mxu0 0.0
    %6430 = vmatprep.subr.mxu0 0.0
    %6431 = vmatpush1.msra.mxu0 0.0
    %6432 = vmatprep.subr.mxu0 0.0
    %6433 = vmatpush1.msra.mxu0 0.0
    %6434 = vmatprep.subr.mxu0 0.0
    %6435 = vmatpush1.msra.mxu0 0.0
    %6436 = vmatprep.subr.mxu0 0.0
    %6437 = vmatpush1.msra.mxu0 0.0
    %6438 = vmatprep.subr.mxu0 0.0
    %6439 = vmatpush1.msra.mxu0 0.0
    %6440 = vmatprep.subr.mxu0 0.0
    %6441 = vmatpush1.msra.mxu0 0.0
    %6442 = vmatprep.subr.mxu0 0.0
    %6443 = vmatpush1.msra.mxu0 0.0
    %6444 = vmatprep.subr.mxu0 0.0
    %6445 = vmatpush1.msra.mxu0 0.0
    %6446 = vmatprep.subr.mxu0 0.0
    %6447 = vmatpush1.msra.mxu0 0.0
    %6448 = vmatprep.subr.mxu0 0.0
    %6449 = vmatpush1.msra.mxu0 0.0
    %6450 = vmatprep.subr.mxu0 0.0
    %6451 = vmatpush1.msra.mxu0 0.0
    %6452 = vmatprep.subr.mxu0 0.0
    %6453 = vmatpush1.msra.mxu0 0.0
    %6454 = vmatprep.subr.mxu0 0.0
    %6455 = vmatpush1.msra.mxu0 0.0
    %6456 = vmatprep.subr.mxu0 0.0
    %6457 = vmatpush1.msra.mxu0 0.0
    %6458 = vmatprep.subr.mxu0 0.0
    %6459 = vmatpush1.msra.mxu0 0.0
    %6460 = vmatprep.subr.mxu0 0.0
    %6461 = vmatpush1.msra.mxu0 0.0
    %6462 = vmatprep.subr.mxu0 0.0
    %6463 = vmatpush1.msra.mxu0 0.0
    %6464 = vmatprep.subr.mxu0 0.0
    %6465 = vmatpush1.msra.mxu0 0.0
    %6466 = vmatprep.subr.mxu0 0.0
    %6467 = vmatpush1.msra.mxu0 0.0
    %6468 = vmatprep.subr.mxu0 0.0
    %6469 = vmatpush1.msra.mxu0 0.0
    %6470 = vmatprep.subr.mxu0 0.0
    %6471 = vmatpush1.msra.mxu0 0.0
    %6472 = vmatprep.subr.mxu0 0.0
    %6473 = vmatpush1.msra.mxu0 0.0
    %6474 = vmatprep.mubr.f32.mxu0 0.0
    %6475 = vmatmul.mubr.f32.gmra.mrb[0].mxu0 %v6338
    %v6476 = vpop.f32.mrb[0].mxu0
    %v6477 = vadd.f32 %v5400, %v6476
    %v6478 = vpop.f32.mrb[0].mxu0
    %6479 = vdwg.mxu0
    %6480 = vmatprep.subr.mxu0 0.0
    %6481 = vmatpush1.msra.mxu0 %v5049
    %6482 = vmatprep.subr.mxu0 0.0
    %6483 = vmatpush1.msra.mxu0 %v5050
    %6484 = vmatprep.subr.mxu0 0.0
    %6485 = vmatpush1.msra.mxu0 %v5051
    %6486 = vmatprep.subr.mxu0 0.0
    %6487 = vmatpush1.msra.mxu0 %v5052
    %6488 = vmatprep.subr.mxu0 0.0
    %6489 = vmatpush1.msra.mxu0 0.0
    %6490 = vmatprep.subr.mxu0 0.0
    %6491 = vmatpush1.msra.mxu0 0.0
    %6492 = vmatprep.subr.mxu0 0.0
    %6493 = vmatpush1.msra.mxu0 0.0
    %6494 = vmatprep.subr.mxu0 0.0
    %6495 = vmatpush1.msra.mxu0 0.0
    %6496 = vmatprep.subr.mxu0 0.0
    %6497 = vmatpush1.msra.mxu0 0.0
    %6498 = vmatprep.subr.mxu0 0.0
    %6499 = vmatpush1.msra.mxu0 0.0
    %6500 = vmatprep.subr.mxu0 0.0
    %6501 = vmatpush1.msra.mxu0 0.0
    %6502 = vmatprep.subr.mxu0 0.0
    %6503 = vmatpush1.msra.mxu0 0.0
    %6504 = vmatprep.subr.mxu0 0.0
    %6505 = vmatpush1.msra.mxu0 0.0
    %6506 = vmatprep.subr.mxu0 0.0
    %6507 = vmatpush1.msra.mxu0 0.0
    %6508 = vmatprep.subr.mxu0 0.0
    %6509 = vmatpush1.msra.mxu0 0.0
    %6510 = vmatprep.subr.mxu0 0.0
    %6511 = vmatpush1.msra.mxu0 0.0
    %6512 = vmatprep.subr.mxu0 0.0
    %6513 = vmatpush1.msra.mxu0 0.0
    %6514 = vmatprep.subr.mxu0 0.0
    %6515 = vmatpush1.msra.mxu0 0.0
    %6516 = vmatprep.subr.mxu0 0.0
    %6517 = vmatpush1.msra.mxu0 0.0
    %6518 = vmatprep.subr.mxu0 0.0
    %6519 = vmatpush1.msra.mxu0 0.0
    %6520 = vmatprep.subr.mxu0 0.0
    %6521 = vmatpush1.msra.mxu0 0.0
    %6522 = vmatprep.subr.mxu0 0.0
    %6523 = vmatpush1.msra.mxu0 0.0
    %6524 = vmatprep.subr.mxu0 0.0
    %6525 = vmatpush1.msra.mxu0 0.0
    %6526 = vmatprep.subr.mxu0 0.0
    %6527 = vmatpush1.msra.mxu0 0.0
    %6528 = vmatprep.subr.mxu0 0.0
    %6529 = vmatpush1.msra.mxu0 0.0
    %6530 = vmatprep.subr.mxu0 0.0
    %6531 = vmatpush1.msra.mxu0 0.0
    %6532 = vmatprep.subr.mxu0 0.0
    %6533 = vmatpush1.msra.mxu0 0.0
    %6534 = vmatprep.subr.mxu0 0.0
    %6535 = vmatpush1.msra.mxu0 0.0
    %6536 = vmatprep.subr.mxu0 0.0
    %6537 = vmatpush1.msra.mxu0 0.0
    %6538 = vmatprep.subr.mxu0 0.0
    %6539 = vmatpush1.msra.mxu0 0.0
    %6540 = vmatprep.subr.mxu0 0.0
    %6541 = vmatpush1.msra.mxu0 0.0
    %6542 = vmatprep.subr.mxu0 0.0
    %6543 = vmatpush1.msra.mxu0 0.0
    %6544 = vmatprep.mubr.f32.mxu0 0.0
    %6545 = vmatmul.mubr.f32.gmra.mrb[0].mxu0 %v6338
    %v6546 = vpop.f32.mrb[0].mxu0
    %v6547 = vadd.f32 %v5476, %v6546
    %v6548 = vpop.f32.mrb[0].mxu0
    %6549 = vdwg.mxu0
    %6551 = vrot.lane.b32.xlu0 %v6407, 96
    %v6552 = vpop.permute.xlu0 %6551
    %v6554 = vadd.f32 %v4850, %v6552
    %v6555 = vxor.u32 %v6554, 2147483648
    %v6556 = vmul.f32 %v6555, 1.442695
    %v6557 = vpow.pop %v6556
    %v6558 = vadd.f32 %v6557, 1.0
    %v6559 = vrcp.pop %v6558
    %v6560 = vmul.f32 1.0, %v6559
    %v6561 = vadd.f32 %v4852, %v6477
    %v6562 = vxor.u32 %v6561, 2147483648
    %v6563 = vmul.f32 %v6562, 1.442695
    %v6564 = vpow.pop %v6563
    %v6565 = vadd.f32 %v6564, 1.0
    %v6566 = vrcp.pop %v6565
    %v6567 = vmul.f32 1.0, %v6566
    %6569 = vrot.lane.b32.xlu0 %v6547, 96
    %v6570 = vpop.permute.xlu0 %6569
    %v6572 = vmul.f32 %v6560, %v6570
    %6574 = vrot.lane.b32.xlu0 %v6572, 64
    %v6575 = vpop.permute.xlu0 %6574
    %v6577 = vadd.f32 %v4852, %v6575
    %v6578 = vtanh.pop %v6577
    %v6579 = vsub.f32 1.0, %v6567
    %6581 = vrot.lane.b32.xlu0 %v6578, 96
    %v6582 = vpop.permute.xlu0 %6581
    %v6584 = vmul.f32 %v6579, %v6582
    %v6585 = vmul.f32 %v6567, %v6084
    %v6586 = vadd.f32 %v6584, %v6585
    %v6587 = vadd.f32 %v6085, %v6336
    %v6588 = vadd.f32 %v6086, %v6586
    %v6589 = vmax.f32 %v6087, %v6336
    %v6590 = vmax.f32 %v6088, %v6586
    %6592 = vrot.lane.b32.xlu0 %v6336, 96
    %v6593 = vpop.permute.xlu0 %6592
    %v6594 = vsel %vm91, %v6593, 0
    %6596 = vmatprep.subr.mxu0 0.0
    %6597 = vmatpush1.msra.mxu0 %v5019
    %6598 = vmatprep.subr.mxu0 0.0
    %6599 = vmatpush1.msra.mxu0 %v5020
    %6600 = vmatprep.subr.mxu0 0.0
    %6601 = vmatpush1.msra.mxu0 %v5021
    %6602 = vmatprep.subr.mxu0 0.0
    %6603 = vmatpush1.msra.mxu0 %v5022
    %6604 = vmatprep.subr.mxu0 0.0
    %6605 = vmatpush1.msra.mxu0 0.0
    %6606 = vmatprep.subr.mxu0 0.0
    %6607 = vmatpush1.msra.mxu0 0.0
    %6608 = vmatprep.subr.mxu0 0.0
    %6609 = vmatpush1.msra.mxu0 0.0
    %6610 = vmatprep.subr.mxu0 0.0
    %6611 = vmatpush1.msra.mxu0 0.0
    %6612 = vmatprep.subr.mxu0 0.0
    %6613 = vmatpush1.msra.mxu0 0.0
    %6614 = vmatprep.subr.mxu0 0.0
    %6615 = vmatpush1.msra.mxu0 0.0
    %6616 = vmatprep.subr.mxu0 0.0
    %6617 = vmatpush1.msra.mxu0 0.0
    %6618 = vmatprep.subr.mxu0 0.0
    %6619 = vmatpush1.msra.mxu0 0.0
    %6620 = vmatprep.subr.mxu0 0.0
    %6621 = vmatpush1.msra.mxu0 0.0
    %6622 = vmatprep.subr.mxu0 0.0
    %6623 = vmatpush1.msra.mxu0 0.0
    %6624 = vmatprep.subr.mxu0 0.0
    %6625 = vmatpush1.msra.mxu0 0.0
    %6626 = vmatprep.subr.mxu0 0.0
    %6627 = vmatpush1.msra.mxu0 0.0
    %6628 = vmatprep.subr.mxu0 0.0
    %6629 = vmatpush1.msra.mxu0 0.0
    %6630 = vmatprep.subr.mxu0 0.0
    %6631 = vmatpush1.msra.mxu0 0.0
    %6632 = vmatprep.subr.mxu0 0.0
    %6633 = vmatpush1.msra.mxu0 0.0
    %6634 = vmatprep.subr.mxu0 0.0
    %6635 = vmatpush1.msra.mxu0 0.0
    %6636 = vmatprep.subr.mxu0 0.0
    %6637 = vmatpush1.msra.mxu0 0.0
    %6638 = vmatprep.subr.mxu0 0.0
    %6639 = vmatpush1.msra.mxu0 0.0
    %6640 = vmatprep.subr.mxu0 0.0
    %6641 = vmatpush1.msra.mxu0 0.0
    %6642 = vmatprep.subr.mxu0 0.0
    %6643 = vmatpush1.msra.mxu0 0.0
    %6644 = vmatprep.subr.mxu0 0.0
    %6645 = vmatpush1.msra.mxu0 0.0
    %6646 = vmatprep.subr.mxu0 0.0
    %6647 = vmatpush1.msra.mxu0 0.0
    %6648 = vmatprep.subr.mxu0 0.0
    %6649 = vmatpush1.msra.mxu0 0.0
    %6650 = vmatprep.subr.mxu0 0.0
    %6651 = vmatpush1.msra.mxu0 0.0
    %6652 = vmatprep.subr.mxu0 0.0
    %6653 = vmatpush1.msra.mxu0 0.0
    %6654 = vmatprep.subr.mxu0 0.0
    %6655 = vmatpush1.msra.mxu0 0.0
    %6656 = vmatprep.subr.mxu0 0.0
    %6657 = vmatpush1.msra.mxu0 0.0
    %6658 = vmatprep.subr.mxu0 0.0
    %6659 = vmatpush1.msra.mxu0 0.0
    %6660 = vmatprep.mubr.f32.mxu0 0.0
    %6661 = vmatmul.mubr.f32.gmra.mrb[0].mxu0 %v6594
    %v6662 = vpop.f32.mrb[0].mxu0
    %v6663 = vadd.f32 %v5063, %v6662
    %v6664 = vpop.f32.mrb[0].mxu0
    %6665 = vdwg.mxu0
    %6666 = vmatprep.subr.mxu0 0.0
    %6667 = vmatpush1.msra.mxu0 %v5024
    %6668 = vmatprep.subr.mxu0 0.0
    %6669 = vmatpush1.msra.mxu0 %v5025
    %6670 = vmatprep.subr.mxu0 0.0
    %6671 = vmatpush1.msra.mxu0 %v5026
    %6672 = vmatprep.subr.mxu0 0.0
    %6673 = vmatpush1.msra.mxu0 %v5027
    %6674 = vmatprep.subr.mxu0 0.0
    %6675 = vmatpush1.msra.mxu0 0.0
    %6676 = vmatprep.subr.mxu0 0.0
    %6677 = vmatpush1.msra.mxu0 0.0
    %6678 = vmatprep.subr.mxu0 0.0
    %6679 = vmatpush1.msra.mxu0 0.0
    %6680 = vmatprep.subr.mxu0 0.0
    %6681 = vmatpush1.msra.mxu0 0.0
    %6682 = vmatprep.subr.mxu0 0.0
    %6683 = vmatpush1.msra.mxu0 0.0
    %6684 = vmatprep.subr.mxu0 0.0
    %6685 = vmatpush1.msra.mxu0 0.0
    %6686 = vmatprep.subr.mxu0 0.0
    %6687 = vmatpush1.msra.mxu0 0.0
    %6688 = vmatprep.subr.mxu0 0.0
    %6689 = vmatpush1.msra.mxu0 0.0
    %6690 = vmatprep.subr.mxu0 0.0
    %6691 = vmatpush1.msra.mxu0 0.0
    %6692 = vmatprep.subr.mxu0 0.0
    %6693 = vmatpush1.msra.mxu0 0.0
    %6694 = vmatprep.subr.mxu0 0.0
    %6695 = vmatpush1.msra.mxu0 0.0
    %6696 = vmatprep.subr.mxu0 0.0
    %6697 = vmatpush1.msra.mxu0 0.0
    %6698 = vmatprep.subr.mxu0 0.0
    %6699 = vmatpush1.msra.mxu0 0.0
    %6700 = vmatprep.subr.mxu0 0.0
    %6701 = vmatpush1.msra.mxu0 0.0
    %6702 = vmatprep.subr.mxu0 0.0
    %6703 = vmatpush1.msra.mxu0 0.0
    %6704 = vmatprep.subr.mxu0 0.0
    %6705 = vmatpush1.msra.mxu0 0.0
    %6706 = vmatprep.subr.mxu0 0.0
    %6707 = vmatpush1.msra.mxu0 0.0
    %6708 = vmatprep.subr.mxu0 0.0
    %6709 = vmatpush1.msra.mxu0 0.0
    %6710 = vmatprep.subr.mxu0 0.0
    %6711 = vmatpush1.msra.mxu0 0.0
    %6712 = vmatprep.subr.mxu0 0.0
    %6713 = vmatpush1.msra.mxu0 0.0
    %6714 = vmatprep.subr.mxu0 0.0
    %6715 = vmatpush1.msra.mxu0 0.0
    %6716 = vmatprep.subr.mxu0 0.0
    %6717 = vmatpush1.msra.mxu0 0.0
    %6718 = vmatprep.subr.mxu0 0.0
    %6719 = vmatpush1.msra.mxu0 0.0
    %6720 = vmatprep.subr.mxu0 0.0
    %6721 = vmatpush1.msra.mxu0 0.0
    %6722 = vmatprep.subr.mxu0 0.0
    %6723 = vmatpush1.msra.mxu0 0.0
    %6724 = vmatprep.subr.mxu0 0.0
    %6725 = vmatpush1.msra.mxu0 0.0
    %6726 = vmatprep.subr.mxu0 0.0
    %6727 = vmatpush1.msra.mxu0 0.0
    %6728 = vmatprep.subr.mxu0 0.0
    %6729 = vmatpush1.msra.mxu0 0.0
    %6730 = vmatprep.mubr.f32.mxu0 0.0
    %6731 = vmatmul.mubr.f32.gmra.mrb[0].mxu0 %v6594
    %v6732 = vpop.f32.mrb[0].mxu0
    %v6733 = vadd.f32 %v5139, %v6732
    %v6734 = vpop.f32.mrb[0].mxu0
    %6735 = vdwg.mxu0
    %6736 = vmatprep.subr.mxu0 0.0
    %6737 = vmatpush1.msra.mxu0 %v5029
    %6738 = vmatprep.subr.mxu0 0.0
    %6739 = vmatpush1.msra.mxu0 %v5030
    %6740 = vmatprep.subr.mxu0 0.0
    %6741 = vmatpush1.msra.mxu0 %v5031
    %6742 = vmatprep.subr.mxu0 0.0
    %6743 = vmatpush1.msra.mxu0 %v5032
    %6744 = vmatprep.subr.mxu0 0.0
    %6745 = vmatpush1.msra.mxu0 0.0
    %6746 = vmatprep.subr.mxu0 0.0
    %6747 = vmatpush1.msra.mxu0 0.0
    %6748 = vmatprep.subr.mxu0 0.0
    %6749 = vmatpush1.msra.mxu0 0.0
    %6750 = vmatprep.subr.mxu0 0.0
    %6751 = vmatpush1.msra.mxu0 0.0
    %6752 = vmatprep.subr.mxu0 0.0
    %6753 = vmatpush1.msra.mxu0 0.0
    %6754 = vmatprep.subr.mxu0 0.0
    %6755 = vmatpush1.msra.mxu0 0.0
    %6756 = vmatprep.subr.mxu0 0.0
    %6757 = vmatpush1.msra.mxu0 0.0
    %6758 = vmatprep.subr.mxu0 0.0
    %6759 = vmatpush1.msra.mxu0 0.0
    %6760 = vmatprep.subr.mxu0 0.0
    %6761 = vmatpush1.msra.mxu0 0.0
    %6762 = vmatprep.subr.mxu0 0.0
    %6763 = vmatpush1.msra.mxu0 0.0
    %6764 = vmatprep.subr.mxu0 0.0
    %6765 = vmatpush1.msra.mxu0 0.0
    %6766 = vmatprep.subr.mxu0 0.0
    %6767 = vmatpush1.msra.mxu0 0.0
    %6768 = vmatprep.subr.mxu0 0.0
    %6769 = vmatpush1.msra.mxu0 0.0
    %6770 = vmatprep.subr.mxu0 0.0
    %6771 = vmatpush1.msra.mxu0 0.0
    %6772 = vmatprep.subr.mxu0 0.0
    %6773 = vmatpush1.msra.mxu0 0.0
    %6774 = vmatprep.subr.mxu0 0.0
    %6775 = vmatpush1.msra.mxu0 0.0
    %6776 = vmatprep.subr.mxu0 0.0
    %6777 = vmatpush1.msra.mxu0 0.0
    %6778 = vmatprep.subr.mxu0 0.0
    %6779 = vmatpush1.msra.mxu0 0.0
    %6780 = vmatprep.subr.mxu0 0.0
    %6781 = vmatpush1.msra.mxu0 0.0
    %6782 = vmatprep.subr.mxu0 0.0
    %6783 = vmatpush1.msra.mxu0 0.0
    %6784 = vmatprep.subr.mxu0 0.0
    %6785 = vmatpush1.msra.mxu0 0.0
    %6786 = vmatprep.subr.mxu0 0.0
    %6787 = vmatpush1.msra.mxu0 0.0
    %6788 = vmatprep.subr.mxu0 0.0
    %6789 = vmatpush1.msra.mxu0 0.0
    %6790 = vmatprep.subr.mxu0 0.0
    %6791 = vmatpush1.msra.mxu0 0.0
    %6792 = vmatprep.subr.mxu0 0.0
    %6793 = vmatpush1.msra.mxu0 0.0
    %6794 = vmatprep.subr.mxu0 0.0
    %6795 = vmatpush1.msra.mxu0 0.0
    %6796 = vmatprep.subr.mxu0 0.0
    %6797 = vmatpush1.msra.mxu0 0.0
    %6798 = vmatprep.subr.mxu0 0.0
    %6799 = vmatpush1.msra.mxu0 0.0
    %6800 = vmatprep.mubr.f32.mxu0 0.0
    %6801 = vmatmul.mubr.f32.gmra.mrb[0].mxu0 %v6594
    %v6802 = vpop.f32.mrb[0].mxu0
    %v6803 = vadd.f32 %v5215, %v6802
    %v6804 = vpop.f32.mrb[0].mxu0
    %6805 = vdwg.mxu0
    %v6806 = vadd.f32 %v4689, %v6663
    %v6807 = vxor.u32 %v6806, 2147483648
    %v6808 = vmul.f32 %v6807, 1.442695
    %v6809 = vpow.pop %v6808
    %v6810 = vadd.f32 %v6809, 1.0
    %v6811 = vrcp.pop %v6810
    %v6812 = vmul.f32 1.0, %v6811
    %6814 = vrot.lane.b32.xlu0 %v6733, 32
    %v6815 = vpop.permute.xlu0 %6814
    %v6817 = vadd.f32 %v4689, %v6815
    %v6818 = vxor.u32 %v6817, 2147483648
    %v6819 = vmul.f32 %v6818, 1.442695
    %v6820 = vpow.pop %v6819
    %v6821 = vadd.f32 %v6820, 1.0
    %v6822 = vrcp.pop %v6821
    %v6823 = vmul.f32 1.0, %v6822
    %v6824 = vmul.f32 %v6812, %v6803
    %6826 = vrot.lane.b32.xlu0 %v6824, 64
    %v6827 = vpop.permute.xlu0 %6826
    %v6829 = vadd.f32 %v4689, %v6827
    %v6830 = vtanh.pop %v6829
    %v6831 = vsub.f32 1.0, %v6823
    %6833 = vrot.lane.b32.xlu0 %v6830, 96
    %v6834 = vpop.permute.xlu0 %6833
    %v6836 = vmul.f32 %v6831, %v6834
    %v6837 = vmul.f32 %v6823, %v6336
    %v6838 = vadd.f32 %v6836, %v6837
    %v6840 = vsel %vm91, %v6586, 0
    %6842 = vmatprep.subr.mxu0 0.0
    %6843 = vmatpush1.msra.mxu0 %v5039
    %6844 = vmatprep.subr.mxu0 0.0
    %6845 = vmatpush1.msra.mxu0 %v5040
    %6846 = vmatprep.subr.mxu0 0.0
    %6847 = vmatpush1.msra.mxu0 %v5041
    %6848 = vmatprep.subr.mxu0 0.0
    %6849 = vmatpush1.msra.mxu0 %v5042
    %6850 = vmatprep.subr.mxu0 0.0
    %6851 = vmatpush1.msra.mxu0 0.0
    %6852 = vmatprep.subr.mxu0 0.0
    %6853 = vmatpush1.msra.mxu0 0.0
    %6854 = vmatprep.subr.mxu0 0.0
    %6855 = vmatpush1.msra.mxu0 0.0
    %6856 = vmatprep.subr.mxu0 0.0
    %6857 = vmatpush1.msra.mxu0 0.0
    %6858 = vmatprep.subr.mxu0 0.0
    %6859 = vmatpush1.msra.mxu0 0.0
    %6860 = vmatprep.subr.mxu0 0.0
    %6861 = vmatpush1.msra.mxu0 0.0
    %6862 = vmatprep.subr.mxu0 0.0
    %6863 = vmatpush1.msra.mxu0 0.0
    %6864 = vmatprep.subr.mxu0 0.0
    %6865 = vmatpush1.msra.mxu0 0.0
    %6866 = vmatprep.subr.mxu0 0.0
    %6867 = vmatpush1.msra.mxu0 0.0
    %6868 = vmatprep.subr.mxu0 0.0
    %6869 = vmatpush1.msra.mxu0 0.0
    %6870 = vmatprep.subr.mxu0 0.0
    %6871 = vmatpush1.msra.mxu0 0.0
    %6872 = vmatprep.subr.mxu0 0.0
    %6873 = vmatpush1.msra.mxu0 0.0
    %6874 = vmatprep.subr.mxu0 0.0
    %6875 = vmatpush1.msra.mxu0 0.0
    %6876 = vmatprep.subr.mxu0 0.0
    %6877 = vmatpush1.msra.mxu0 0.0
    %6878 = vmatprep.subr.mxu0 0.0
    %6879 = vmatpush1.msra.mxu0 0.0
    %6880 = vmatprep.subr.mxu0 0.0
    %6881 = vmatpush1.msra.mxu0 0.0
    %6882 = vmatprep.subr.mxu0 0.0
    %6883 = vmatpush1.msra.mxu0 0.0
    %6884 = vmatprep.subr.mxu0 0.0
    %6885 = vmatpush1.msra.mxu0 0.0
    %6886 = vmatprep.subr.mxu0 0.0
    %6887 = vmatpush1.msra.mxu0 0.0
    %6888 = vmatprep.subr.mxu0 0.0
    %6889 = vmatpush1.msra.mxu0 0.0
    %6890 = vmatprep.subr.mxu0 0.0
    %6891 = vmatpush1.msra.mxu0 0.0
    %6892 = vmatprep.subr.mxu0 0.0
    %6893 = vmatpush1.msra.mxu0 0.0
    %6894 = vmatprep.subr.mxu0 0.0
    %6895 = vmatpush1.msra.mxu0 0.0
    %6896 = vmatprep.subr.mxu0 0.0
    %6897 = vmatpush1.msra.mxu0 0.0
    %6898 = vmatprep.subr.mxu0 0.0
    %6899 = vmatpush1.msra.mxu0 0.0
    %6900 = vmatprep.subr.mxu0 0.0
    %6901 = vmatpush1.msra.mxu0 0.0
    %6902 = vmatprep.subr.mxu0 0.0
    %6903 = vmatpush1.msra.mxu0 0.0
    %6904 = vmatprep.subr.mxu0 0.0
    %6905 = vmatpush1.msra.mxu0 0.0
    %6906 = vmatprep.mubr.f32.mxu0 0.0
    %6907 = vmatmul.mubr.f32.gmra.mrb[0].mxu0 %v6840
    %v6908 = vpop.f32.mrb[0].mxu0
    %v6909 = vadd.f32 %v5324, %v6908
    %v6910 = vpop.f32.mrb[0].mxu0
    %6911 = vdwg.mxu0
    %6912 = vmatprep.subr.mxu0 0.0
    %6913 = vmatpush1.msra.mxu0 %v5044
    %6914 = vmatprep.subr.mxu0 0.0
    %6915 = vmatpush1.msra.mxu0 %v5045
    %6916 = vmatprep.subr.mxu0 0.0
    %6917 = vmatpush1.msra.mxu0 %v5046
    %6918 = vmatprep.subr.mxu0 0.0
    %6919 = vmatpush1.msra.mxu0 %v5047
    %6920 = vmatprep.subr.mxu0 0.0
    %6921 = vmatpush1.msra.mxu0 0.0
    %6922 = vmatprep.subr.mxu0 0.0
    %6923 = vmatpush1.msra.mxu0 0.0
    %6924 = vmatprep.subr.mxu0 0.0
    %6925 = vmatpush1.msra.mxu0 0.0
    %6926 = vmatprep.subr.mxu0 0.0
    %6927 = vmatpush1.msra.mxu0 0.0
    %6928 = vmatprep.subr.mxu0 0.0
    %6929 = vmatpush1.msra.mxu0 0.0
    %6930 = vmatprep.subr.mxu0 0.0
    %6931 = vmatpush1.msra.mxu0 0.0
    %6932 = vmatprep.subr.mxu0 0.0
    %6933 = vmatpush1.msra.mxu0 0.0
    %6934 = vmatprep.subr.mxu0 0.0
    %6935 = vmatpush1.msra.mxu0 0.0
    %6936 = vmatprep.subr.mxu0 0.0
    %6937 = vmatpush1.msra.mxu0 0.0
    %6938 = vmatprep.subr.mxu0 0.0
    %6939 = vmatpush1.msra.mxu0 0.0
    %6940 = vmatprep.subr.mxu0 0.0
    %6941 = vmatpush1.msra.mxu0 0.0
    %6942 = vmatprep.subr.mxu0 0.0
    %6943 = vmatpush1.msra.mxu0 0.0
    %6944 = vmatprep.subr.mxu0 0.0
    %6945 = vmatpush1.msra.mxu0 0.0
    %6946 = vmatprep.subr.mxu0 0.0
    %6947 = vmatpush1.msra.mxu0 0.0
    %6948 = vmatprep.subr.mxu0 0.0
    %6949 = vmatpush1.msra.mxu0 0.0
    %6950 = vmatprep.subr.mxu0 0.0
    %6951 = vmatpush1.msra.mxu0 0.0
    %6952 = vmatprep.subr.mxu0 0.0
    %6953 = vmatpush1.msra.mxu0 0.0
    %6954 = vmatprep.subr.mxu0 0.0
    %6955 = vmatpush1.msra.mxu0 0.0
    %6956 = vmatprep.subr.mxu0 0.0
    %6957 = vmatpush1.msra.mxu0 0.0
    %6958 = vmatprep.subr.mxu0 0.0
    %6959 = vmatpush1.msra.mxu0 0.0
    %6960 = vmatprep.subr.mxu0 0.0
    %6961 = vmatpush1.msra.mxu0 0.0
    %6962 = vmatprep.subr.mxu0 0.0
    %6963 = vmatpush1.msra.mxu0 0.0
    %6964 = vmatprep.subr.mxu0 0.0
    %6965 = vmatpush1.msra.mxu0 0.0
    %6966 = vmatprep.subr.mxu0 0.0
    %6967 = vmatpush1.msra.mxu0 0.0
    %6968 = vmatprep.subr.mxu0 0.0
    %6969 = vmatpush1.msra.mxu0 0.0
    %6970 = vmatprep.subr.mxu0 0.0
    %6971 = vmatpush1.msra.mxu0 0.0
    %6972 = vmatprep.subr.mxu0 0.0
    %6973 = vmatpush1.msra.mxu0 0.0
    %6974 = vmatprep.subr.mxu0 0.0
    %6975 = vmatpush1.msra.mxu0 0.0
    %6976 = vmatprep.mubr.f32.mxu0 0.0
    %6977 = vmatmul.mubr.f32.gmra.mrb[0].mxu0 %v6840
    %v6978 = vpop.f32.mrb[0].mxu0
    %v6979 = vadd.f32 %v5400, %v6978
    %v6980 = vpop.f32.mrb[0].mxu0
    %6981 = vdwg.mxu0
    %6982 = vmatprep.subr.mxu0 0.0
    %6983 = vmatpush1.msra.mxu0 %v5049
    %6984 = vmatprep.subr.mxu0 0.0
    %6985 = vmatpush1.msra.mxu0 %v5050
    %6986 = vmatprep.subr.mxu0 0.0
    %6987 = vmatpush1.msra.mxu0 %v5051
    %6988 = vmatprep.subr.mxu0 0.0
    %6989 = vmatpush1.msra.mxu0 %v5052
    %6990 = vmatprep.subr.mxu0 0.0
    %6991 = vmatpush1.msra.mxu0 0.0
    %6992 = vmatprep.subr.mxu0 0.0
    %6993 = vmatpush1.msra.mxu0 0.0
    %6994 = vmatprep.subr.mxu0 0.0
    %6995 = vmatpush1.msra.mxu0 0.0
    %6996 = vmatprep.subr.mxu0 0.0
    %6997 = vmatpush1.msra.mxu0 0.0
    %6998 = vmatprep.subr.mxu0 0.0
    %6999 = vmatpush1.msra.mxu0 0.0
    %7000 = vmatprep.subr.mxu0 0.0
    %7001 = vmatpush1.msra.mxu0 0.0
    %7002 = vmatprep.subr.mxu0 0.0
    %7003 = vmatpush1.msra.mxu0 0.0
    %7004 = vmatprep.subr.mxu0 0.0
    %7005 = vmatpush1.msra.mxu0 0.0
    %7006 = vmatprep.subr.mxu0 0.0
    %7007 = vmatpush1.msra.mxu0 0.0
    %7008 = vmatprep.subr.mxu0 0.0
    %7009 = vmatpush1.msra.mxu0 0.0
    %7010 = vmatprep.subr.mxu0 0.0
    %7011 = vmatpush1.msra.mxu0 0.0
    %7012 = vmatprep.subr.mxu0 0.0
    %7013 = vmatpush1.msra.mxu0 0.0
    %7014 = vmatprep.subr.mxu0 0.0
    %7015 = vmatpush1.msra.mxu0 0.0
    %7016 = vmatprep.subr.mxu0 0.0
    %7017 = vmatpush1.msra.mxu0 0.0
    %7018 = vmatprep.subr.mxu0 0.0
    %7019 = vmatpush1.msra.mxu0 0.0
    %7020 = vmatprep.subr.mxu0 0.0
    %7021 = vmatpush1.msra.mxu0 0.0
    %7022 = vmatprep.subr.mxu0 0.0
    %7023 = vmatpush1.msra.mxu0 0.0
    %7024 = vmatprep.subr.mxu0 0.0
    %7025 = vmatpush1.msra.mxu0 0.0
    %7026 = vmatprep.subr.mxu0 0.0
    %7027 = vmatpush1.msra.mxu0 0.0
    %7028 = vmatprep.subr.mxu0 0.0
    %7029 = vmatpush1.msra.mxu0 0.0
    %7030 = vmatprep.subr.mxu0 0.0
    %7031 = vmatpush1.msra.mxu0 0.0
    %7032 = vmatprep.subr.mxu0 0.0
    %7033 = vmatpush1.msra.mxu0 0.0
    %7034 = vmatprep.subr.mxu0 0.0
    %7035 = vmatpush1.msra.mxu0 0.0
    %7036 = vmatprep.subr.mxu0 0.0
    %7037 = vmatpush1.msra.mxu0 0.0
    %7038 = vmatprep.subr.mxu0 0.0
    %7039 = vmatpush1.msra.mxu0 0.0
    %7040 = vmatprep.subr.mxu0 0.0
    %7041 = vmatpush1.msra.mxu0 0.0
    %7042 = vmatprep.subr.mxu0 0.0
    %7043 = vmatpush1.msra.mxu0 0.0
    %7044 = vmatprep.subr.mxu0 0.0
    %7045 = vmatpush1.msra.mxu0 0.0
    %7046 = vmatprep.mubr.f32.mxu0 0.0
    %7047 = vmatmul.mubr.f32.gmra.mrb[0].mxu0 %v6840
    %v7048 = vpop.f32.mrb[0].mxu0
    %v7049 = vadd.f32 %v5476, %v7048
    %v7050 = vpop.f32.mrb[0].mxu0
    %7051 = vdwg.mxu0
    %7053 = vrot.lane.b32.xlu0 %v6909, 96
    %v7054 = vpop.permute.xlu0 %7053
    %v7056 = vadd.f32 %v4768, %v7054
    %v7057 = vxor.u32 %v7056, 2147483648
    %v7058 = vmul.f32 %v7057, 1.442695
    %v7059 = vpow.pop %v7058
    %v7060 = vadd.f32 %v7059, 1.0
    %v7061 = vrcp.pop %v7060
    %v7062 = vmul.f32 1.0, %v7061
    %v7063 = vadd.f32 %v4770, %v6979
    %v7064 = vxor.u32 %v7063, 2147483648
    %v7065 = vmul.f32 %v7064, 1.442695
    %v7066 = vpow.pop %v7065
    %v7067 = vadd.f32 %v7066, 1.0
    %v7068 = vrcp.pop %v7067
    %v7069 = vmul.f32 1.0, %v7068
    %7071 = vrot.lane.b32.xlu0 %v7049, 96
    %v7072 = vpop.permute.xlu0 %7071
    %v7074 = vmul.f32 %v7062, %v7072
    %7076 = vrot.lane.b32.xlu0 %v7074, 64
    %v7077 = vpop.permute.xlu0 %7076
    %v7079 = vadd.f32 %v4770, %v7077
    %v7080 = vtanh.pop %v7079
    %v7081 = vsub.f32 1.0, %v7069
    %7083 = vrot.lane.b32.xlu0 %v7080, 96
    %v7084 = vpop.permute.xlu0 %7083
    %v7086 = vmul.f32 %v7081, %v7084
    %v7087 = vmul.f32 %v7069, %v6586
    %v7088 = vadd.f32 %v7086, %v7087
    %v7089 = vadd.f32 %v6587, %v6838
    %v7090 = vadd.f32 %v6588, %v7088
    %v7091 = vmax.f32 %v6589, %v6838
    %v7092 = vmax.f32 %v6590, %v7088
    %7094 = vrot.lane.b32.xlu0 %v6838, 96
    %v7095 = vpop.permute.xlu0 %7094
    %v7096 = vsel %vm91, %v7095, 0
    %7098 = vmatprep.subr.mxu0 0.0
    %7099 = vmatpush1.msra.mxu0 %v5019
    %7100 = vmatprep.subr.mxu0 0.0
    %7101 = vmatpush1.msra.mxu0 %v5020
    %7102 = vmatprep.subr.mxu0 0.0
    %7103 = vmatpush1.msra.mxu0 %v5021
    %7104 = vmatprep.subr.mxu0 0.0
    %7105 = vmatpush1.msra.mxu0 %v5022
    %7106 = vmatprep.subr.mxu0 0.0
    %7107 = vmatpush1.msra.mxu0 0.0
    %7108 = vmatprep.subr.mxu0 0.0
    %7109 = vmatpush1.msra.mxu0 0.0
    %7110 = vmatprep.subr.mxu0 0.0
    %7111 = vmatpush1.msra.mxu0 0.0
    %7112 = vmatprep.subr.mxu0 0.0
    %7113 = vmatpush1.msra.mxu0 0.0
    %7114 = vmatprep.subr.mxu0 0.0
    %7115 = vmatpush1.msra.mxu0 0.0
    %7116 = vmatprep.subr.mxu0 0.0
    %7117 = vmatpush1.msra.mxu0 0.0
    %7118 = vmatprep.subr.mxu0 0.0
    %7119 = vmatpush1.msra.mxu0 0.0
    %7120 = vmatprep.subr.mxu0 0.0
    %7121 = vmatpush1.msra.mxu0 0.0
    %7122 = vmatprep.subr.mxu0 0.0
    %7123 = vmatpush1.msra.mxu0 0.0
    %7124 = vmatprep.subr.mxu0 0.0
    %7125 = vmatpush1.msra.mxu0 0.0
    %7126 = vmatprep.subr.mxu0 0.0
    %7127 = vmatpush1.msra.mxu0 0.0
    %7128 = vmatprep.subr.mxu0 0.0
    %7129 = vmatpush1.msra.mxu0 0.0
    %7130 = vmatprep.subr.mxu0 0.0
    %7131 = vmatpush1.msra.mxu0 0.0
    %7132 = vmatprep.subr.mxu0 0.0
    %7133 = vmatpush1.msra.mxu0 0.0
    %7134 = vmatprep.subr.mxu0 0.0
    %7135 = vmatpush1.msra.mxu0 0.0
    %7136 = vmatprep.subr.mxu0 0.0
    %7137 = vmatpush1.msra.mxu0 0.0
    %7138 = vmatprep.subr.mxu0 0.0
    %7139 = vmatpush1.msra.mxu0 0.0
    %7140 = vmatprep.subr.mxu0 0.0
    %7141 = vmatpush1.msra.mxu0 0.0
    %7142 = vmatprep.subr.mxu0 0.0
    %7143 = vmatpush1.msra.mxu0 0.0
    %7144 = vmatprep.subr.mxu0 0.0
    %7145 = vmatpush1.msra.mxu0 0.0
    %7146 = vmatprep.subr.mxu0 0.0
    %7147 = vmatpush1.msra.mxu0 0.0
    %7148 = vmatprep.subr.mxu0 0.0
    %7149 = vmatpush1.msra.mxu0 0.0
    %7150 = vmatprep.subr.mxu0 0.0
    %7151 = vmatpush1.msra.mxu0 0.0
    %7152 = vmatprep.subr.mxu0 0.0
    %7153 = vmatpush1.msra.mxu0 0.0
    %7154 = vmatprep.subr.mxu0 0.0
    %7155 = vmatpush1.msra.mxu0 0.0
    %7156 = vmatprep.subr.mxu0 0.0
    %7157 = vmatpush1.msra.mxu0 0.0
    %7158 = vmatprep.subr.mxu0 0.0
    %7159 = vmatpush1.msra.mxu0 0.0
    %7160 = vmatprep.subr.mxu0 0.0
    %7161 = vmatpush1.msra.mxu0 0.0
    %7162 = vmatprep.mubr.f32.mxu0 0.0
    %7163 = vmatmul.mubr.f32.gmra.mrb[0].mxu0 %v7096
    %v7164 = vpop.f32.mrb[0].mxu0
    %v7165 = vadd.f32 %v5063, %v7164
    %v7166 = vpop.f32.mrb[0].mxu0
    %7167 = vdwg.mxu0
    %7168 = vmatprep.subr.mxu0 0.0
    %7169 = vmatpush1.msra.mxu0 %v5024
    %7170 = vmatprep.subr.mxu0 0.0
    %7171 = vmatpush1.msra.mxu0 %v5025
    %7172 = vmatprep.subr.mxu0 0.0
    %7173 = vmatpush1.msra.mxu0 %v5026
    %7174 = vmatprep.subr.mxu0 0.0
    %7175 = vmatpush1.msra.mxu0 %v5027
    %7176 = vmatprep.subr.mxu0 0.0
    %7177 = vmatpush1.msra.mxu0 0.0
    %7178 = vmatprep.subr.mxu0 0.0
    %7179 = vmatpush1.msra.mxu0 0.0
    %7180 = vmatprep.subr.mxu0 0.0
    %7181 = vmatpush1.msra.mxu0 0.0
    %7182 = vmatprep.subr.mxu0 0.0
    %7183 = vmatpush1.msra.mxu0 0.0
    %7184 = vmatprep.subr.mxu0 0.0
    %7185 = vmatpush1.msra.mxu0 0.0
    %7186 = vmatprep.subr.mxu0 0.0
    %7187 = vmatpush1.msra.mxu0 0.0
    %7188 = vmatprep.subr.mxu0 0.0
    %7189 = vmatpush1.msra.mxu0 0.0
    %7190 = vmatprep.subr.mxu0 0.0
    %7191 = vmatpush1.msra.mxu0 0.0
    %7192 = vmatprep.subr.mxu0 0.0
    %7193 = vmatpush1.msra.mxu0 0.0
    %7194 = vmatprep.subr.mxu0 0.0
    %7195 = vmatpush1.msra.mxu0 0.0
    %7196 = vmatprep.subr.mxu0 0.0
    %7197 = vmatpush1.msra.mxu0 0.0
    %7198 = vmatprep.subr.mxu0 0.0
    %7199 = vmatpush1.msra.mxu0 0.0
    %7200 = vmatprep.subr.mxu0 0.0
    %7201 = vmatpush1.msra.mxu0 0.0
    %7202 = vmatprep.subr.mxu0 0.0
    %7203 = vmatpush1.msra.mxu0 0.0
    %7204 = vmatprep.subr.mxu0 0.0
    %7205 = vmatpush1.msra.mxu0 0.0
    %7206 = vmatprep.subr.mxu0 0.0
    %7207 = vmatpush1.msra.mxu0 0.0
    %7208 = vmatprep.subr.mxu0 0.0
    %7209 = vmatpush1.msra.mxu0 0.0
    %7210 = vmatprep.subr.mxu0 0.0
    %7211 = vmatpush1.msra.mxu0 0.0
    %7212 = vmatprep.subr.mxu0 0.0
    %7213 = vmatpush1.msra.mxu0 0.0
    %7214 = vmatprep.subr.mxu0 0.0
    %7215 = vmatpush1.msra.mxu0 0.0
    %7216 = vmatprep.subr.mxu0 0.0
    %7217 = vmatpush1.msra.mxu0 0.0
    %7218 = vmatprep.subr.mxu0 0.0
    %7219 = vmatpush1.msra.mxu0 0.0
    %7220 = vmatprep.subr.mxu0 0.0
    %7221 = vmatpush1.msra.mxu0 0.0
    %7222 = vmatprep.subr.mxu0 0.0
    %7223 = vmatpush1.msra.mxu0 0.0
    %7224 = vmatprep.subr.mxu0 0.0
    %7225 = vmatpush1.msra.mxu0 0.0
    %7226 = vmatprep.subr.mxu0 0.0
    %7227 = vmatpush1.msra.mxu0 0.0
    %7228 = vmatprep.subr.mxu0 0.0
    %7229 = vmatpush1.msra.mxu0 0.0
    %7230 = vmatprep.subr.mxu0 0.0
    %7231 = vmatpush1.msra.mxu0 0.0
    %7232 = vmatprep.mubr.f32.mxu0 0.0
    %7233 = vmatmul.mubr.f32.gmra.mrb[0].mxu0 %v7096
    %v7234 = vpop.f32.mrb[0].mxu0
    %v7235 = vadd.f32 %v5139, %v7234
    %v7236 = vpop.f32.mrb[0].mxu0
    %7237 = vdwg.mxu0
    %7238 = vmatprep.subr.mxu0 0.0
    %7239 = vmatpush1.msra.mxu0 %v5029
    %7240 = vmatprep.subr.mxu0 0.0
    %7241 = vmatpush1.msra.mxu0 %v5030
    %7242 = vmatprep.subr.mxu0 0.0
    %7243 = vmatpush1.msra.mxu0 %v5031
    %7244 = vmatprep.subr.mxu0 0.0
    %7245 = vmatpush1.msra.mxu0 %v5032
    %7246 = vmatprep.subr.mxu0 0.0
    %7247 = vmatpush1.msra.mxu0 0.0
    %7248 = vmatprep.subr.mxu0 0.0
    %7249 = vmatpush1.msra.mxu0 0.0
    %7250 = vmatprep.subr.mxu0 0.0
    %7251 = vmatpush1.msra.mxu0 0.0
    %7252 = vmatprep.subr.mxu0 0.0
    %7253 = vmatpush1.msra.mxu0 0.0
    %7254 = vmatprep.subr.mxu0 0.0
    %7255 = vmatpush1.msra.mxu0 0.0
    %7256 = vmatprep.subr.mxu0 0.0
    %7257 = vmatpush1.msra.mxu0 0.0
    %7258 = vmatprep.subr.mxu0 0.0
    %7259 = vmatpush1.msra.mxu0 0.0
    %7260 = vmatprep.subr.mxu0 0.0
    %7261 = vmatpush1.msra.mxu0 0.0
    %7262 = vmatprep.subr.mxu0 0.0
    %7263 = vmatpush1.msra.mxu0 0.0
    %7264 = vmatprep.subr.mxu0 0.0
    %7265 = vmatpush1.msra.mxu0 0.0
    %7266 = vmatprep.subr.mxu0 0.0
    %7267 = vmatpush1.msra.mxu0 0.0
    %7268 = vmatprep.subr.mxu0 0.0
    %7269 = vmatpush1.msra.mxu0 0.0
    %7270 = vmatprep.subr.mxu0 0.0
    %7271 = vmatpush1.msra.mxu0 0.0
    %7272 = vmatprep.subr.mxu0 0.0
    %7273 = vmatpush1.msra.mxu0 0.0
    %7274 = vmatprep.subr.mxu0 0.0
    %7275 = vmatpush1.msra.mxu0 0.0
    %7276 = vmatprep.subr.mxu0 0.0
    %7277 = vmatpush1.msra.mxu0 0.0
    %7278 = vmatprep.subr.mxu0 0.0
    %7279 = vmatpush1.msra.mxu0 0.0
    %7280 = vmatprep.subr.mxu0 0.0
    %7281 = vmatpush1.msra.mxu0 0.0
    %7282 = vmatprep.subr.mxu0 0.0
    %7283 = vmatpush1.msra.mxu0 0.0
    %7284 = vmatprep.subr.mxu0 0.0
    %7285 = vmatpush1.msra.mxu0 0.0
    %7286 = vmatprep.subr.mxu0 0.0
    %7287 = vmatpush1.msra.mxu0 0.0
    %7288 = vmatprep.subr.mxu0 0.0
    %7289 = vmatpush1.msra.mxu0 0.0
    %7290 = vmatprep.subr.mxu0 0.0
    %7291 = vmatpush1.msra.mxu0 0.0
    %7292 = vmatprep.subr.mxu0 0.0
    %7293 = vmatpush1.msra.mxu0 0.0
    %7294 = vmatprep.subr.mxu0 0.0
    %7295 = vmatpush1.msra.mxu0 0.0
    %7296 = vmatprep.subr.mxu0 0.0
    %7297 = vmatpush1.msra.mxu0 0.0
    %7298 = vmatprep.subr.mxu0 0.0
    %7299 = vmatpush1.msra.mxu0 0.0
    %7300 = vmatprep.subr.mxu0 0.0
    %7301 = vmatpush1.msra.mxu0 0.0
    %7302 = vmatprep.mubr.f32.mxu0 0.0
    %7303 = vmatmul.mubr.f32.gmra.mrb[0].mxu0 %v7096
    %v7304 = vpop.f32.mrb[0].mxu0
    %v7305 = vadd.f32 %v5215, %v7304
    %v7306 = vpop.f32.mrb[0].mxu0
    %7307 = vdwg.mxu0
    %v7308 = vadd.f32 %v4768, %v7165
    %v7309 = vxor.u32 %v7308, 2147483648
    %v7310 = vmul.f32 %v7309, 1.442695
    %v7311 = vpow.pop %v7310
    %v7312 = vadd.f32 %v7311, 1.0
    %v7313 = vrcp.pop %v7312
    %v7314 = vmul.f32 1.0, %v7313
    %7316 = vrot.lane.b32.xlu0 %v7235, 32
    %v7317 = vpop.permute.xlu0 %7316
    %v7319 = vadd.f32 %v4768, %v7317
    %v7320 = vxor.u32 %v7319, 2147483648
    %v7321 = vmul.f32 %v7320, 1.442695
    %v7322 = vpow.pop %v7321
    %v7323 = vadd.f32 %v7322, 1.0
    %v7324 = vrcp.pop %v7323
    %v7325 = vmul.f32 1.0, %v7324
    %v7326 = vmul.f32 %v7314, %v7305
    %7328 = vrot.lane.b32.xlu0 %v7326, 64
    %v7329 = vpop.permute.xlu0 %7328
    %v7331 = vadd.f32 %v4768, %v7329
    %v7332 = vtanh.pop %v7331
    %v7333 = vsub.f32 1.0, %v7325
    %7335 = vrot.lane.b32.xlu0 %v7332, 96
    %v7336 = vpop.permute.xlu0 %7335
    %v7338 = vmul.f32 %v7333, %v7336
    %v7339 = vmul.f32 %v7325, %v6838
    %v7340 = vadd.f32 %v7338, %v7339
    %v7342 = vsel %vm91, %v7088, 0
    %7344 = vmatprep.subr.mxu0 0.0
    %7345 = vmatpush1.msra.mxu0 %v5039
    %7346 = vmatprep.subr.mxu0 0.0
    %7347 = vmatpush1.msra.mxu0 %v5040
    %7348 = vmatprep.subr.mxu0 0.0
    %7349 = vmatpush1.msra.mxu0 %v5041
    %7350 = vmatprep.subr.mxu0 0.0
    %7351 = vmatpush1.msra.mxu0 %v5042
    %7352 = vmatprep.subr.mxu0 0.0
    %7353 = vmatpush1.msra.mxu0 0.0
    %7354 = vmatprep.subr.mxu0 0.0
    %7355 = vmatpush1.msra.mxu0 0.0
    %7356 = vmatprep.subr.mxu0 0.0
    %7357 = vmatpush1.msra.mxu0 0.0
    %7358 = vmatprep.subr.mxu0 0.0
    %7359 = vmatpush1.msra.mxu0 0.0
    %7360 = vmatprep.subr.mxu0 0.0
    %7361 = vmatpush1.msra.mxu0 0.0
    %7362 = vmatprep.subr.mxu0 0.0
    %7363 = vmatpush1.msra.mxu0 0.0
    %7364 = vmatprep.subr.mxu0 0.0
    %7365 = vmatpush1.msra.mxu0 0.0
    %7366 = vmatprep.subr.mxu0 0.0
    %7367 = vmatpush1.msra.mxu0 0.0
    %7368 = vmatprep.subr.mxu0 0.0
    %7369 = vmatpush1.msra.mxu0 0.0
    %7370 = vmatprep.subr.mxu0 0.0
    %7371 = vmatpush1.msra.mxu0 0.0
    %7372 = vmatprep.subr.mxu0 0.0
    %7373 = vmatpush1.msra.mxu0 0.0
    %7374 = vmatprep.subr.mxu0 0.0
    %7375 = vmatpush1.msra.mxu0 0.0
    %7376 = vmatprep.subr.mxu0 0.0
    %7377 = vmatpush1.msra.mxu0 0.0
    %7378 = vmatprep.subr.mxu0 0.0
    %7379 = vmatpush1.msra.mxu0 0.0
    %7380 = vmatprep.subr.mxu0 0.0
    %7381 = vmatpush1.msra.mxu0 0.0
    %7382 = vmatprep.subr.mxu0 0.0
    %7383 = vmatpush1.msra.mxu0 0.0
    %7384 = vmatprep.subr.mxu0 0.0
    %7385 = vmatpush1.msra.mxu0 0.0
    %7386 = vmatprep.subr.mxu0 0.0
    %7387 = vmatpush1.msra.mxu0 0.0
    %7388 = vmatprep.subr.mxu0 0.0
    %7389 = vmatpush1.msra.mxu0 0.0
    %7390 = vmatprep.subr.mxu0 0.0
    %7391 = vmatpush1.msra.mxu0 0.0
    %7392 = vmatprep.subr.mxu0 0.0
    %7393 = vmatpush1.msra.mxu0 0.0
    %7394 = vmatprep.subr.mxu0 0.0
    %7395 = vmatpush1.msra.mxu0 0.0
    %7396 = vmatprep.subr.mxu0 0.0
    %7397 = vmatpush1.msra.mxu0 0.0
    %7398 = vmatprep.subr.mxu0 0.0
    %7399 = vmatpush1.msra.mxu0 0.0
    %7400 = vmatprep.subr.mxu0 0.0
    %7401 = vmatpush1.msra.mxu0 0.0
    %7402 = vmatprep.subr.mxu0 0.0
    %7403 = vmatpush1.msra.mxu0 0.0
    %7404 = vmatprep.subr.mxu0 0.0
    %7405 = vmatpush1.msra.mxu0 0.0
    %7406 = vmatprep.subr.mxu0 0.0
    %7407 = vmatpush1.msra.mxu0 0.0
    %7408 = vmatprep.mubr.f32.mxu0 0.0
    %7409 = vmatmul.mubr.f32.gmra.mrb[0].mxu0 %v7342
    %v7410 = vpop.f32.mrb[0].mxu0
    %v7411 = vadd.f32 %v5324, %v7410
    %v7412 = vpop.f32.mrb[0].mxu0
    %7413 = vdwg.mxu0
    %7414 = vmatprep.subr.mxu0 0.0
    %7415 = vmatpush1.msra.mxu0 %v5044
    %7416 = vmatprep.subr.mxu0 0.0
    %7417 = vmatpush1.msra.mxu0 %v5045
    %7418 = vmatprep.subr.mxu0 0.0
    %7419 = vmatpush1.msra.mxu0 %v5046
    %7420 = vmatprep.subr.mxu0 0.0
    %7421 = vmatpush1.msra.mxu0 %v5047
    %7422 = vmatprep.subr.mxu0 0.0
    %7423 = vmatpush1.msra.mxu0 0.0
    %7424 = vmatprep.subr.mxu0 0.0
    %7425 = vmatpush1.msra.mxu0 0.0
    %7426 = vmatprep.subr.mxu0 0.0
    %7427 = vmatpush1.msra.mxu0 0.0
    %7428 = vmatprep.subr.mxu0 0.0
    %7429 = vmatpush1.msra.mxu0 0.0
    %7430 = vmatprep.subr.mxu0 0.0
    %7431 = vmatpush1.msra.mxu0 0.0
    %7432 = vmatprep.subr.mxu0 0.0
    %7433 = vmatpush1.msra.mxu0 0.0
    %7434 = vmatprep.subr.mxu0 0.0
    %7435 = vmatpush1.msra.mxu0 0.0
    %7436 = vmatprep.subr.mxu0 0.0
    %7437 = vmatpush1.msra.mxu0 0.0
    %7438 = vmatprep.subr.mxu0 0.0
    %7439 = vmatpush1.msra.mxu0 0.0
    %7440 = vmatprep.subr.mxu0 0.0
    %7441 = vmatpush1.msra.mxu0 0.0
    %7442 = vmatprep.subr.mxu0 0.0
    %7443 = vmatpush1.msra.mxu0 0.0
    %7444 = vmatprep.subr.mxu0 0.0
    %7445 = vmatpush1.msra.mxu0 0.0
    %7446 = vmatprep.subr.mxu0 0.0
    %7447 = vmatpush1.msra.mxu0 0.0
    %7448 = vmatprep.subr.mxu0 0.0
    %7449 = vmatpush1.msra.mxu0 0.0
    %7450 = vmatprep.subr.mxu0 0.0
    %7451 = vmatpush1.msra.mxu0 0.0
    %7452 = vmatprep.subr.mxu0 0.0
    %7453 = vmatpush1.msra.mxu0 0.0
    %7454 = vmatprep.subr.mxu0 0.0
    %7455 = vmatpush1.msra.mxu0 0.0
    %7456 = vmatprep.subr.mxu0 0.0
    %7457 = vmatpush1.msra.mxu0 0.0
    %7458 = vmatprep.subr.mxu0 0.0
    %7459 = vmatpush1.msra.mxu0 0.0
    %7460 = vmatprep.subr.mxu0 0.0
    %7461 = vmatpush1.msra.mxu0 0.0
    %7462 = vmatprep.subr.mxu0 0.0
    %7463 = vmatpush1.msra.mxu0 0.0
    %7464 = vmatprep.subr.mxu0 0.0
    %7465 = vmatpush1.msra.mxu0 0.0
    %7466 = vmatprep.subr.mxu0 0.0
    %7467 = vmatpush1.msra.mxu0 0.0
    %7468 = vmatprep.subr.mxu0 0.0
    %7469 = vmatpush1.msra.mxu0 0.0
    %7470 = vmatprep.subr.mxu0 0.0
    %7471 = vmatpush1.msra.mxu0 0.0
    %7472 = vmatprep.subr.mxu0 0.0
    %7473 = vmatpush1.msra.mxu0 0.0
    %7474 = vmatprep.subr.mxu0 0.0
    %7475 = vmatpush1.msra.mxu0 0.0
    %7476 = vmatprep.subr.mxu0 0.0
    %7477 = vmatpush1.msra.mxu0 0.0
    %7478 = vmatprep.mubr.f32.mxu0 0.0
    %7479 = vmatmul.mubr.f32.gmra.mrb[0].mxu0 %v7342
    %v7480 = vpop.f32.mrb[0].mxu0
    %v7481 = vadd.f32 %v5400, %v7480
    %v7482 = vpop.f32.mrb[0].mxu0
    %7483 = vdwg.mxu0
    %7484 = vmatprep.subr.mxu0 0.0
    %7485 = vmatpush1.msra.mxu0 %v5049
    %7486 = vmatprep.subr.mxu0 0.0
    %7487 = vmatpush1.msra.mxu0 %v5050
    %7488 = vmatprep.subr.mxu0 0.0
    %7489 = vmatpush1.msra.mxu0 %v5051
    %7490 = vmatprep.subr.mxu0 0.0
    %7491 = vmatpush1.msra.mxu0 %v5052
    %7492 = vmatprep.subr.mxu0 0.0
    %7493 = vmatpush1.msra.mxu0 0.0
    %7494 = vmatprep.subr.mxu0 0.0
    %7495 = vmatpush1.msra.mxu0 0.0
    %7496 = vmatprep.subr.mxu0 0.0
    %7497 = vmatpush1.msra.mxu0 0.0
    %7498 = vmatprep.subr.mxu0 0.0
    %7499 = vmatpush1.msra.mxu0 0.0
    %7500 = vmatprep.subr.mxu0 0.0
    %7501 = vmatpush1.msra.mxu0 0.0
    %7502 = vmatprep.subr.mxu0 0.0
    %7503 = vmatpush1.msra.mxu0 0.0
    %7504 = vmatprep.subr.mxu0 0.0
    %7505 = vmatpush1.msra.mxu0 0.0
    %7506 = vmatprep.subr.mxu0 0.0
    %7507 = vmatpush1.msra.mxu0 0.0
    %7508 = vmatprep.subr.mxu0 0.0
    %7509 = vmatpush1.msra.mxu0 0.0
    %7510 = vmatprep.subr.mxu0 0.0
    %7511 = vmatpush1.msra.mxu0 0.0
    %7512 = vmatprep.subr.mxu0 0.0
    %7513 = vmatpush1.msra.mxu0 0.0
    %7514 = vmatprep.subr.mxu0 0.0
    %7515 = vmatpush1.msra.mxu0 0.0
    %7516 = vmatprep.subr.mxu0 0.0
    %7517 = vmatpush1.msra.mxu0 0.0
    %7518 = vmatprep.subr.mxu0 0.0
    %7519 = vmatpush1.msra.mxu0 0.0
    %7520 = vmatprep.subr.mxu0 0.0
    %7521 = vmatpush1.msra.mxu0 0.0
    %7522 = vmatprep.subr.mxu0 0.0
    %7523 = vmatpush1.msra.mxu0 0.0
    %7524 = vmatprep.subr.mxu0 0.0
    %7525 = vmatpush1.msra.mxu0 0.0
    %7526 = vmatprep.subr.mxu0 0.0
    %7527 = vmatpush1.msra.mxu0 0.0
    %7528 = vmatprep.subr.mxu0 0.0
    %7529 = vmatpush1.msra.mxu0 0.0
    %7530 = vmatprep.subr.mxu0 0.0
    %7531 = vmatpush1.msra.mxu0 0.0
    %7532 = vmatprep.subr.mxu0 0.0
    %7533 = vmatpush1.msra.mxu0 0.0
    %7534 = vmatprep.subr.mxu0 0.0
    %7535 = vmatpush1.msra.mxu0 0.0
    %7536 = vmatprep.subr.mxu0 0.0
    %7537 = vmatpush1.msra.mxu0 0.0
    %7538 = vmatprep.subr.mxu0 0.0
    %7539 = vmatpush1.msra.mxu0 0.0
    %7540 = vmatprep.subr.mxu0 0.0
    %7541 = vmatpush1.msra.mxu0 0.0
    %7542 = vmatprep.subr.mxu0 0.0
    %7543 = vmatpush1.msra.mxu0 0.0
    %7544 = vmatprep.subr.mxu0 0.0
    %7545 = vmatpush1.msra.mxu0 0.0
    %7546 = vmatprep.subr.mxu0 0.0
    %7547 = vmatpush1.msra.mxu0 0.0
    %7548 = vmatprep.mubr.f32.mxu0 0.0
    %7549 = vmatmul.mubr.f32.gmra.mrb[0].mxu0 %v7342
    %v7550 = vpop.f32.mrb[0].mxu0
    %v7551 = vadd.f32 %v5476, %v7550
    %v7552 = vpop.f32.mrb[0].mxu0
    %7553 = vdwg.mxu0
    %7555 = vrot.lane.b32.xlu0 %v7411, 96
    %v7556 = vpop.permute.xlu0 %7555
    %v7558 = vadd.f32 %v4689, %v7556
    %v7559 = vxor.u32 %v7558, 2147483648
    %v7560 = vmul.f32 %v7559, 1.442695
    %v7561 = vpow.pop %v7560
    %v7562 = vadd.f32 %v7561, 1.0
    %v7563 = vrcp.pop %v7562
    %v7564 = vmul.f32 1.0, %v7563
    %v7565 = vadd.f32 %v4691, %v7481
    %v7566 = vxor.u32 %v7565, 2147483648
    %v7567 = vmul.f32 %v7566, 1.442695
    %v7568 = vpow.pop %v7567
    %v7569 = vadd.f32 %v7568, 1.0
    %v7570 = vrcp.pop %v7569
    %v7571 = vmul.f32 1.0, %v7570
    %7573 = vrot.lane.b32.xlu0 %v7551, 96
    %v7574 = vpop.permute.xlu0 %7573
    %v7576 = vmul.f32 %v7564, %v7574
    %7578 = vrot.lane.b32.xlu0 %v7576, 64
    %v7579 = vpop.permute.xlu0 %7578
    %v7581 = vadd.f32 %v4691, %v7579
    %v7582 = vtanh.pop %v7581
    %v7583 = vsub.f32 1.0, %v7571
    %7585 = vrot.lane.b32.xlu0 %v7582, 96
    %v7586 = vpop.permute.xlu0 %7585
    %v7588 = vmul.f32 %v7583, %v7586
    %v7589 = vmul.f32 %v7571, %v7088
    %v7590 = vadd.f32 %v7588, %v7589
    %v7591 = vadd.f32 %v7089, %v7340
    %v7592 = vadd.f32 %v7090, %v7590
    %v7593 = vmax.f32 %v7091, %v7340
    %v7594 = vmax.f32 %v7092, %v7590
    %7596 = vrot.lane.b32.xlu0 %v7340, 96
    %v7597 = vpop.permute.xlu0 %7596
    %v7598 = vsel %vm91, %v7597, 0
    %7600 = vmatprep.subr.mxu0 0.0
    %7601 = vmatpush1.msra.mxu0 %v5019
    %7602 = vmatprep.subr.mxu0 0.0
    %7603 = vmatpush1.msra.mxu0 %v5020
    %7604 = vmatprep.subr.mxu0 0.0
    %7605 = vmatpush1.msra.mxu0 %v5021
    %7606 = vmatprep.subr.mxu0 0.0
    %7607 = vmatpush1.msra.mxu0 %v5022
    %7608 = vmatprep.subr.mxu0 0.0
    %7609 = vmatpush1.msra.mxu0 0.0
    %7610 = vmatprep.subr.mxu0 0.0
    %7611 = vmatpush1.msra.mxu0 0.0
    %7612 = vmatprep.subr.mxu0 0.0
    %7613 = vmatpush1.msra.mxu0 0.0
    %7614 = vmatprep.subr.mxu0 0.0
    %7615 = vmatpush1.msra.mxu0 0.0
    %7616 = vmatprep.subr.mxu0 0.0
    %7617 = vmatpush1.msra.mxu0 0.0
    %7618 = vmatprep.subr.mxu0 0.0
    %7619 = vmatpush1.msra.mxu0 0.0
    %7620 = vmatprep.subr.mxu0 0.0
    %7621 = vmatpush1.msra.mxu0 0.0
    %7622 = vmatprep.subr.mxu0 0.0
    %7623 = vmatpush1.msra.mxu0 0.0
    %7624 = vmatprep.subr.mxu0 0.0
    %7625 = vmatpush1.msra.mxu0 0.0
    %7626 = vmatprep.subr.mxu0 0.0
    %7627 = vmatpush1.msra.mxu0 0.0
    %7628 = vmatprep.subr.mxu0 0.0
    %7629 = vmatpush1.msra.mxu0 0.0
    %7630 = vmatprep.subr.mxu0 0.0
    %7631 = vmatpush1.msra.mxu0 0.0
    %7632 = vmatprep.subr.mxu0 0.0
    %7633 = vmatpush1.msra.mxu0 0.0
    %7634 = vmatprep.subr.mxu0 0.0
    %7635 = vmatpush1.msra.mxu0 0.0
    %7636 = vmatprep.subr.mxu0 0.0
    %7637 = vmatpush1.msra.mxu0 0.0
    %7638 = vmatprep.subr.mxu0 0.0
    %7639 = vmatpush1.msra.mxu0 0.0
    %7640 = vmatprep.subr.mxu0 0.0
    %7641 = vmatpush1.msra.mxu0 0.0
    %7642 = vmatprep.subr.mxu0 0.0
    %7643 = vmatpush1.msra.mxu0 0.0
    %7644 = vmatprep.subr.mxu0 0.0
    %7645 = vmatpush1.msra.mxu0 0.0
    %7646 = vmatprep.subr.mxu0 0.0
    %7647 = vmatpush1.msra.mxu0 0.0
    %7648 = vmatprep.subr.mxu0 0.0
    %7649 = vmatpush1.msra.mxu0 0.0
    %7650 = vmatprep.subr.mxu0 0.0
    %7651 = vmatpush1.msra.mxu0 0.0
    %7652 = vmatprep.subr.mxu0 0.0
    %7653 = vmatpush1.msra.mxu0 0.0
    %7654 = vmatprep.subr.mxu0 0.0
    %7655 = vmatpush1.msra.mxu0 0.0
    %7656 = vmatprep.subr.mxu0 0.0
    %7657 = vmatpush1.msra.mxu0 0.0
    %7658 = vmatprep.subr.mxu0 0.0
    %7659 = vmatpush1.msra.mxu0 0.0
    %7660 = vmatprep.subr.mxu0 0.0
    %7661 = vmatpush1.msra.mxu0 0.0
    %7662 = vmatprep.subr.mxu0 0.0
    %7663 = vmatpush1.msra.mxu0 0.0
    %7664 = vmatprep.mubr.f32.mxu0 0.0
    %7665 = vmatmul.mubr.f32.gmra.mrb[0].mxu0 %v7598
    %v7666 = vpop.f32.mrb[0].mxu0
    %v7667 = vadd.f32 %v5063, %v7666
    %v7668 = vpop.f32.mrb[0].mxu0
    %7669 = vdwg.mxu0
    %7670 = vmatprep.subr.mxu0 0.0
    %7671 = vmatpush1.msra.mxu0 %v5024
    %7672 = vmatprep.subr.mxu0 0.0
    %7673 = vmatpush1.msra.mxu0 %v5025
    %7674 = vmatprep.subr.mxu0 0.0
    %7675 = vmatpush1.msra.mxu0 %v5026
    %7676 = vmatprep.subr.mxu0 0.0
    %7677 = vmatpush1.msra.mxu0 %v5027
    %7678 = vmatprep.subr.mxu0 0.0
    %7679 = vmatpush1.msra.mxu0 0.0
    %7680 = vmatprep.subr.mxu0 0.0
    %7681 = vmatpush1.msra.mxu0 0.0
    %7682 = vmatprep.subr.mxu0 0.0
    %7683 = vmatpush1.msra.mxu0 0.0
    %7684 = vmatprep.subr.mxu0 0.0
    %7685 = vmatpush1.msra.mxu0 0.0
    %7686 = vmatprep.subr.mxu0 0.0
    %7687 = vmatpush1.msra.mxu0 0.0
    %7688 = vmatprep.subr.mxu0 0.0
    %7689 = vmatpush1.msra.mxu0 0.0
    %7690 = vmatprep.subr.mxu0 0.0
    %7691 = vmatpush1.msra.mxu0 0.0
    %7692 = vmatprep.subr.mxu0 0.0
    %7693 = vmatpush1.msra.mxu0 0.0
    %7694 = vmatprep.subr.mxu0 0.0
    %7695 = vmatpush1.msra.mxu0 0.0
    %7696 = vmatprep.subr.mxu0 0.0
    %7697 = vmatpush1.msra.mxu0 0.0
    %7698 = vmatprep.subr.mxu0 0.0
    %7699 = vmatpush1.msra.mxu0 0.0
    %7700 = vmatprep.subr.mxu0 0.0
    %7701 = vmatpush1.msra.mxu0 0.0
    %7702 = vmatprep.subr.mxu0 0.0
    %7703 = vmatpush1.msra.mxu0 0.0
    %7704 = vmatprep.subr.mxu0 0.0
    %7705 = vmatpush1.msra.mxu0 0.0
    %7706 = vmatprep.subr.mxu0 0.0
    %7707 = vmatpush1.msra.mxu0 0.0
    %7708 = vmatprep.subr.mxu0 0.0
    %7709 = vmatpush1.msra.mxu0 0.0
    %7710 = vmatprep.subr.mxu0 0.0
    %7711 = vmatpush1.msra.mxu0 0.0
    %7712 = vmatprep.subr.mxu0 0.0
    %7713 = vmatpush1.msra.mxu0 0.0
    %7714 = vmatprep.subr.mxu0 0.0
    %7715 = vmatpush1.msra.mxu0 0.0
    %7716 = vmatprep.subr.mxu0 0.0
    %7717 = vmatpush1.msra.mxu0 0.0
    %7718 = vmatprep.subr.mxu0 0.0
    %7719 = vmatpush1.msra.mxu0 0.0
    %7720 = vmatprep.subr.mxu0 0.0
    %7721 = vmatpush1.msra.mxu0 0.0
    %7722 = vmatprep.subr.mxu0 0.0
    %7723 = vmatpush1.msra.mxu0 0.0
    %7724 = vmatprep.subr.mxu0 0.0
    %7725 = vmatpush1.msra.mxu0 0.0
    %7726 = vmatprep.subr.mxu0 0.0
    %7727 = vmatpush1.msra.mxu0 0.0
    %7728 = vmatprep.subr.mxu0 0.0
    %7729 = vmatpush1.msra.mxu0 0.0
    %7730 = vmatprep.subr.mxu0 0.0
    %7731 = vmatpush1.msra.mxu0 0.0
    %7732 = vmatprep.subr.mxu0 0.0
    %7733 = vmatpush1.msra.mxu0 0.0
    %7734 = vmatprep.mubr.f32.mxu0 0.0
    %7735 = vmatmul.mubr.f32.gmra.mrb[0].mxu0 %v7598
    %v7736 = vpop.f32.mrb[0].mxu0
    %v7737 = vadd.f32 %v5139, %v7736
    %v7738 = vpop.f32.mrb[0].mxu0
    %7739 = vdwg.mxu0
    %7740 = vmatprep.subr.mxu0 0.0
    %7741 = vmatpush1.msra.mxu0 %v5029
    %7742 = vmatprep.subr.mxu0 0.0
    %7743 = vmatpush1.msra.mxu0 %v5030
    %7744 = vmatprep.subr.mxu0 0.0
    %7745 = vmatpush1.msra.mxu0 %v5031
    %7746 = vmatprep.subr.mxu0 0.0
    %7747 = vmatpush1.msra.mxu0 %v5032
    %7748 = vmatprep.subr.mxu0 0.0
    %7749 = vmatpush1.msra.mxu0 0.0
    %7750 = vmatprep.subr.mxu0 0.0
    %7751 = vmatpush1.msra.mxu0 0.0
    %7752 = vmatprep.subr.mxu0 0.0
    %7753 = vmatpush1.msra.mxu0 0.0
    %7754 = vmatprep.subr.mxu0 0.0
    %7755 = vmatpush1.msra.mxu0 0.0
    %7756 = vmatprep.subr.mxu0 0.0
    %7757 = vmatpush1.msra.mxu0 0.0
    %7758 = vmatprep.subr.mxu0 0.0
    %7759 = vmatpush1.msra.mxu0 0.0
    %7760 = vmatprep.subr.mxu0 0.0
    %7761 = vmatpush1.msra.mxu0 0.0
    %7762 = vmatprep.subr.mxu0 0.0
    %7763 = vmatpush1.msra.mxu0 0.0
    %7764 = vmatprep.subr.mxu0 0.0
    %7765 = vmatpush1.msra.mxu0 0.0
    %7766 = vmatprep.subr.mxu0 0.0
    %7767 = vmatpush1.msra.mxu0 0.0
    %7768 = vmatprep.subr.mxu0 0.0
    %7769 = vmatpush1.msra.mxu0 0.0
    %7770 = vmatprep.subr.mxu0 0.0
    %7771 = vmatpush1.msra.mxu0 0.0
    %7772 = vmatprep.subr.mxu0 0.0
    %7773 = vmatpush1.msra.mxu0 0.0
    %7774 = vmatprep.subr.mxu0 0.0
    %7775 = vmatpush1.msra.mxu0 0.0
    %7776 = vmatprep.subr.mxu0 0.0
    %7777 = vmatpush1.msra.mxu0 0.0
    %7778 = vmatprep.subr.mxu0 0.0
    %7779 = vmatpush1.msra.mxu0 0.0
    %7780 = vmatprep.subr.mxu0 0.0
    %7781 = vmatpush1.msra.mxu0 0.0
    %7782 = vmatprep.subr.mxu0 0.0
    %7783 = vmatpush1.msra.mxu0 0.0
    %7784 = vmatprep.subr.mxu0 0.0
    %7785 = vmatpush1.msra.mxu0 0.0
    %7786 = vmatprep.subr.mxu0 0.0
    %7787 = vmatpush1.msra.mxu0 0.0
    %7788 = vmatprep.subr.mxu0 0.0
    %7789 = vmatpush1.msra.mxu0 0.0
    %7790 = vmatprep.subr.mxu0 0.0
    %7791 = vmatpush1.msra.mxu0 0.0
    %7792 = vmatprep.subr.mxu0 0.0
    %7793 = vmatpush1.msra.mxu0 0.0
    %7794 = vmatprep.subr.mxu0 0.0
    %7795 = vmatpush1.msra.mxu0 0.0
    %7796 = vmatprep.subr.mxu0 0.0
    %7797 = vmatpush1.msra.mxu0 0.0
    %7798 = vmatprep.subr.mxu0 0.0
    %7799 = vmatpush1.msra.mxu0 0.0
    %7800 = vmatprep.subr.mxu0 0.0
    %7801 = vmatpush1.msra.mxu0 0.0
    %7802 = vmatprep.subr.mxu0 0.0
    %7803 = vmatpush1.msra.mxu0 0.0
    %7804 = vmatprep.mubr.f32.mxu0 0.0
    %7805 = vmatmul.mubr.f32.gmra.mrb[0].mxu0 %v7598
    %v7806 = vpop.f32.mrb[0].mxu0
    %v7807 = vadd.f32 %v5215, %v7806
    %v7808 = vpop.f32.mrb[0].mxu0
    %7809 = vdwg.mxu0
    %v7810 = vadd.f32 %v4850, %v7667
    %v7811 = vxor.u32 %v7810, 2147483648
    %v7812 = vmul.f32 %v7811, 1.442695
    %v7813 = vpow.pop %v7812
    %v7814 = vadd.f32 %v7813, 1.0
    %v7815 = vrcp.pop %v7814
    %v7816 = vmul.f32 1.0, %v7815
    %7818 = vrot.lane.b32.xlu0 %v7737, 32
    %v7819 = vpop.permute.xlu0 %7818
    %v7821 = vadd.f32 %v4850, %v7819
    %v7822 = vxor.u32 %v7821, 2147483648
    %v7823 = vmul.f32 %v7822, 1.442695
    %v7824 = vpow.pop %v7823
    %v7825 = vadd.f32 %v7824, 1.0
    %v7826 = vrcp.pop %v7825
    %v7827 = vmul.f32 1.0, %v7826
    %v7828 = vmul.f32 %v7816, %v7807
    %7830 = vrot.lane.b32.xlu0 %v7828, 64
    %v7831 = vpop.permute.xlu0 %7830
    %v7833 = vadd.f32 %v4850, %v7831
    %v7834 = vtanh.pop %v7833
    %v7835 = vsub.f32 1.0, %v7827
    %7837 = vrot.lane.b32.xlu0 %v7834, 96
    %v7838 = vpop.permute.xlu0 %7837
    %v7840 = vmul.f32 %v7835, %v7838
    %v7841 = vmul.f32 %v7827, %v7340
    %v7842 = vadd.f32 %v7840, %v7841
    %v7844 = vsel %vm91, %v7590, 0
    %7846 = vmatprep.subr.mxu0 0.0
    %7847 = vmatpush1.msra.mxu0 %v5039
    %7848 = vmatprep.subr.mxu0 0.0
    %7849 = vmatpush1.msra.mxu0 %v5040
    %7850 = vmatprep.subr.mxu0 0.0
    %7851 = vmatpush1.msra.mxu0 %v5041
    %7852 = vmatprep.subr.mxu0 0.0
    %7853 = vmatpush1.msra.mxu0 %v5042
    %7854 = vmatprep.subr.mxu0 0.0
    %7855 = vmatpush1.msra.mxu0 0.0
    %7856 = vmatprep.subr.mxu0 0.0
    %7857 = vmatpush1.msra.mxu0 0.0
    %7858 = vmatprep.subr.mxu0 0.0
    %7859 = vmatpush1.msra.mxu0 0.0
    %7860 = vmatprep.subr.mxu0 0.0
    %7861 = vmatpush1.msra.mxu0 0.0
    %7862 = vmatprep.subr.mxu0 0.0
    %7863 = vmatpush1.msra.mxu0 0.0
    %7864 = vmatprep.subr.mxu0 0.0
    %7865 = vmatpush1.msra.mxu0 0.0
    %7866 = vmatprep.subr.mxu0 0.0
    %7867 = vmatpush1.msra.mxu0 0.0
    %7868 = vmatprep.subr.mxu0 0.0
    %7869 = vmatpush1.msra.mxu0 0.0
    %7870 = vmatprep.subr.mxu0 0.0
    %7871 = vmatpush1.msra.mxu0 0.0
    %7872 = vmatprep.subr.mxu0 0.0
    %7873 = vmatpush1.msra.mxu0 0.0
    %7874 = vmatprep.subr.mxu0 0.0
    %7875 = vmatpush1.msra.mxu0 0.0
    %7876 = vmatprep.subr.mxu0 0.0
    %7877 = vmatpush1.msra.mxu0 0.0
    %7878 = vmatprep.subr.mxu0 0.0
    %7879 = vmatpush1.msra.mxu0 0.0
    %7880 = vmatprep.subr.mxu0 0.0
    %7881 = vmatpush1.msra.mxu0 0.0
    %7882 = vmatprep.subr.mxu0 0.0
    %7883 = vmatpush1.msra.mxu0 0.0
    %7884 = vmatprep.subr.mxu0 0.0
    %7885 = vmatpush1.msra.mxu0 0.0
    %7886 = vmatprep.subr.mxu0 0.0
    %7887 = vmatpush1.msra.mxu0 0.0
    %7888 = vmatprep.subr.mxu0 0.0
    %7889 = vmatpush1.msra.mxu0 0.0
    %7890 = vmatprep.subr.mxu0 0.0
    %7891 = vmatpush1.msra.mxu0 0.0
    %7892 = vmatprep.subr.mxu0 0.0
    %7893 = vmatpush1.msra.mxu0 0.0
    %7894 = vmatprep.subr.mxu0 0.0
    %7895 = vmatpush1.msra.mxu0 0.0
    %7896 = vmatprep.subr.mxu0 0.0
    %7897 = vmatpush1.msra.mxu0 0.0
    %7898 = vmatprep.subr.mxu0 0.0
    %7899 = vmatpush1.msra.mxu0 0.0
    %7900 = vmatprep.subr.mxu0 0.0
    %7901 = vmatpush1.msra.mxu0 0.0
    %7902 = vmatprep.subr.mxu0 0.0
    %7903 = vmatpush1.msra.mxu0 0.0
    %7904 = vmatprep.subr.mxu0 0.0
    %7905 = vmatpush1.msra.mxu0 0.0
    %7906 = vmatprep.subr.mxu0 0.0
    %7907 = vmatpush1.msra.mxu0 0.0
    %7908 = vmatprep.subr.mxu0 0.0
    %7909 = vmatpush1.msra.mxu0 0.0
    %7910 = vmatprep.mubr.f32.mxu0 0.0
    %7911 = vmatmul.mubr.f32.gmra.mrb[0].mxu0 %v7844
    %v7912 = vpop.f32.mrb[0].mxu0
    %v7913 = vadd.f32 %v5324, %v7912
    %v7914 = vpop.f32.mrb[0].mxu0
    %7915 = vdwg.mxu0
    %7916 = vmatprep.subr.mxu0 0.0
    %7917 = vmatpush1.msra.mxu0 %v5044
    %7918 = vmatprep.subr.mxu0 0.0
    %7919 = vmatpush1.msra.mxu0 %v5045
    %7920 = vmatprep.subr.mxu0 0.0
    %7921 = vmatpush1.msra.mxu0 %v5046
    %7922 = vmatprep.subr.mxu0 0.0
    %7923 = vmatpush1.msra.mxu0 %v5047
    %7924 = vmatprep.subr.mxu0 0.0
    %7925 = vmatpush1.msra.mxu0 0.0
    %7926 = vmatprep.subr.mxu0 0.0
    %7927 = vmatpush1.msra.mxu0 0.0
    %7928 = vmatprep.subr.mxu0 0.0
    %7929 = vmatpush1.msra.mxu0 0.0
    %7930 = vmatprep.subr.mxu0 0.0
    %7931 = vmatpush1.msra.mxu0 0.0
    %7932 = vmatprep.subr.mxu0 0.0
    %7933 = vmatpush1.msra.mxu0 0.0
    %7934 = vmatprep.subr.mxu0 0.0
    %7935 = vmatpush1.msra.mxu0 0.0
    %7936 = vmatprep.subr.mxu0 0.0
    %7937 = vmatpush1.msra.mxu0 0.0
    %7938 = vmatprep.subr.mxu0 0.0
    %7939 = vmatpush1.msra.mxu0 0.0
    %7940 = vmatprep.subr.mxu0 0.0
    %7941 = vmatpush1.msra.mxu0 0.0
    %7942 = vmatprep.subr.mxu0 0.0
    %7943 = vmatpush1.msra.mxu0 0.0
    %7944 = vmatprep.subr.mxu0 0.0
    %7945 = vmatpush1.msra.mxu0 0.0
    %7946 = vmatprep.subr.mxu0 0.0
    %7947 = vmatpush1.msra.mxu0 0.0
    %7948 = vmatprep.subr.mxu0 0.0
    %7949 = vmatpush1.msra.mxu0 0.0
    %7950 = vmatprep.subr.mxu0 0.0
    %7951 = vmatpush1.msra.mxu0 0.0
    %7952 = vmatprep.subr.mxu0 0.0
    %7953 = vmatpush1.msra.mxu0 0.0
    %7954 = vmatprep.subr.mxu0 0.0
    %7955 = vmatpush1.msra.mxu0 0.0
    %7956 = vmatprep.subr.mxu0 0.0
    %7957 = vmatpush1.msra.mxu0 0.0
    %7958 = vmatprep.subr.mxu0 0.0
    %7959 = vmatpush1.msra.mxu0 0.0
    %7960 = vmatprep.subr.mxu0 0.0
    %7961 = vmatpush1.msra.mxu0 0.0
    %7962 = vmatprep.subr.mxu0 0.0
    %7963 = vmatpush1.msra.mxu0 0.0
    %7964 = vmatprep.subr.mxu0 0.0
    %7965 = vmatpush1.msra.mxu0 0.0
    %7966 = vmatprep.subr.mxu0 0.0
    %7967 = vmatpush1.msra.mxu0 0.0
    %7968 = vmatprep.subr.mxu0 0.0
    %7969 = vmatpush1.msra.mxu0 0.0
    %7970 = vmatprep.subr.mxu0 0.0
    %7971 = vmatpush1.msra.mxu0 0.0
    %7972 = vmatprep.subr.mxu0 0.0
    %7973 = vmatpush1.msra.mxu0 0.0
    %7974 = vmatprep.subr.mxu0 0.0
    %7975 = vmatpush1.msra.mxu0 0.0
    %7976 = vmatprep.subr.mxu0 0.0
    %7977 = vmatpush1.msra.mxu0 0.0
    %7978 = vmatprep.subr.mxu0 0.0
    %7979 = vmatpush1.msra.mxu0 0.0
    %7980 = vmatprep.mubr.f32.mxu0 0.0
    %7981 = vmatmul.mubr.f32.gmra.mrb[0].mxu0 %v7844
    %v7982 = vpop.f32.mrb[0].mxu0
    %v7983 = vadd.f32 %v5400, %v7982
    %v7984 = vpop.f32.mrb[0].mxu0
    %7985 = vdwg.mxu0
    %7986 = vmatprep.subr.mxu0 0.0
    %7987 = vmatpush1.msra.mxu0 %v5049
    %7988 = vmatprep.subr.mxu0 0.0
    %7989 = vmatpush1.msra.mxu0 %v5050
    %7990 = vmatprep.subr.mxu0 0.0
    %7991 = vmatpush1.msra.mxu0 %v5051
    %7992 = vmatprep.subr.mxu0 0.0
    %7993 = vmatpush1.msra.mxu0 %v5052
    %7994 = vmatprep.subr.mxu0 0.0
    %7995 = vmatpush1.msra.mxu0 0.0
    %7996 = vmatprep.subr.mxu0 0.0
    %7997 = vmatpush1.msra.mxu0 0.0
    %7998 = vmatprep.subr.mxu0 0.0
    %7999 = vmatpush1.msra.mxu0 0.0
    %8000 = vmatprep.subr.mxu0 0.0
    %8001 = vmatpush1.msra.mxu0 0.0
    %8002 = vmatprep.subr.mxu0 0.0
    %8003 = vmatpush1.msra.mxu0 0.0
    %8004 = vmatprep.subr.mxu0 0.0
    %8005 = vmatpush1.msra.mxu0 0.0
    %8006 = vmatprep.subr.mxu0 0.0
    %8007 = vmatpush1.msra.mxu0 0.0
    %8008 = vmatprep.subr.mxu0 0.0
    %8009 = vmatpush1.msra.mxu0 0.0
    %8010 = vmatprep.subr.mxu0 0.0
    %8011 = vmatpush1.msra.mxu0 0.0
    %8012 = vmatprep.subr.mxu0 0.0
    %8013 = vmatpush1.msra.mxu0 0.0
    %8014 = vmatprep.subr.mxu0 0.0
    %8015 = vmatpush1.msra.mxu0 0.0
    %8016 = vmatprep.subr.mxu0 0.0
    %8017 = vmatpush1.msra.mxu0 0.0
    %8018 = vmatprep.subr.mxu0 0.0
    %8019 = vmatpush1.msra.mxu0 0.0
    %8020 = vmatprep.subr.mxu0 0.0
    %8021 = vmatpush1.msra.mxu0 0.0
    %8022 = vmatprep.subr.mxu0 0.0
    %8023 = vmatpush1.msra.mxu0 0.0
    %8024 = vmatprep.subr.mxu0 0.0
    %8025 = vmatpush1.msra.mxu0 0.0
    %8026 = vmatprep.subr.mxu0 0.0
    %8027 = vmatpush1.msra.mxu0 0.0
    %8028 = vmatprep.subr.mxu0 0.0
    %8029 = vmatpush1.msra.mxu0 0.0
    %8030 = vmatprep.subr.mxu0 0.0
    %8031 = vmatpush1.msra.mxu0 0.0
    %8032 = vmatprep.subr.mxu0 0.0
    %8033 = vmatpush1.msra.mxu0 0.0
    %8034 = vmatprep.subr.mxu0 0.0
    %8035 = vmatpush1.msra.mxu0 0.0
    %8036 = vmatprep.subr.mxu0 0.0
    %8037 = vmatpush1.msra.mxu0 0.0
    %8038 = vmatprep.subr.mxu0 0.0
    %8039 = vmatpush1.msra.mxu0 0.0
    %8040 = vmatprep.subr.mxu0 0.0
    %8041 = vmatpush1.msra.mxu0 0.0
    %8042 = vmatprep.subr.mxu0 0.0
    %8043 = vmatpush1.msra.mxu0 0.0
    %8044 = vmatprep.subr.mxu0 0.0
    %8045 = vmatpush1.msra.mxu0 0.0
    %8046 = vmatprep.subr.mxu0 0.0
    %8047 = vmatpush1.msra.mxu0 0.0
    %8048 = vmatprep.subr.mxu0 0.0
    %8049 = vmatpush1.msra.mxu0 0.0
    %8050 = vmatprep.mubr.f32.mxu0 0.0
    %8051 = vmatmul.mubr.f32.gmra.mrb[0].mxu0 %v7844
    %v8052 = vpop.f32.mrb[0].mxu0
    %v8053 = vadd.f32 %v5476, %v8052
    %v8054 = vpop.f32.mrb[0].mxu0
    %8055 = vdwg.mxu0
    %8057 = vrot.lane.b32.xlu0 %v7913, 96
    %v8058 = vpop.permute.xlu0 %8057
    %v8060 = vadd.f32 %v4607, %v8058
    %v8061 = vxor.u32 %v8060, 2147483648
    %v8062 = vmul.f32 %v8061, 1.442695
    %v8063 = vpow.pop %v8062
    %v8064 = vadd.f32 %v8063, 1.0
    %v8065 = vrcp.pop %v8064
    %v8066 = vmul.f32 1.0, %v8065
    %v8067 = vadd.f32 %v4609, %v7983
    %v8068 = vxor.u32 %v8067, 2147483648
    %v8069 = vmul.f32 %v8068, 1.442695
    %v8070 = vpow.pop %v8069
    %v8071 = vadd.f32 %v8070, 1.0
    %v8072 = vrcp.pop %v8071
    %v8073 = vmul.f32 1.0, %v8072
    %8075 = vrot.lane.b32.xlu0 %v8053, 96
    %v8076 = vpop.permute.xlu0 %8075
    %v8078 = vmul.f32 %v8066, %v8076
    %8080 = vrot.lane.b32.xlu0 %v8078, 64
    %v8081 = vpop.permute.xlu0 %8080
    %v8083 = vadd.f32 %v4609, %v8081
    %v8084 = vtanh.pop %v8083
    %v8085 = vsub.f32 1.0, %v8073
    %8087 = vrot.lane.b32.xlu0 %v8084, 96
    %v8088 = vpop.permute.xlu0 %8087
    %v8090 = vmul.f32 %v8085, %v8088
    %v8091 = vmul.f32 %v8073, %v7590
    %v8092 = vadd.f32 %v8090, %v8091
    %v8093 = vadd.f32 %v7591, %v7842
    %v8094 = vadd.f32 %v7592, %v8092
    %v8095 = vmax.f32 %v7593, %v7842
    %v8096 = vmax.f32 %v7594, %v8092
    %8098 = vrot.lane.b32.xlu0 %v7842, 96
    %v8099 = vpop.permute.xlu0 %8098
    %v8100 = vsel %vm91, %v8099, 0
    %8102 = vmatprep.subr.mxu0 0.0
    %8103 = vmatpush1.msra.mxu0 %v5019
    %8104 = vmatprep.subr.mxu0 0.0
    %8105 = vmatpush1.msra.mxu0 %v5020
    %8106 = vmatprep.subr.mxu0 0.0
    %8107 = vmatpush1.msra.mxu0 %v5021
    %8108 = vmatprep.subr.mxu0 0.0
    %8109 = vmatpush1.msra.mxu0 %v5022
    %8110 = vmatprep.subr.mxu0 0.0
    %8111 = vmatpush1.msra.mxu0 0.0
    %8112 = vmatprep.subr.mxu0 0.0
    %8113 = vmatpush1.msra.mxu0 0.0
    %8114 = vmatprep.subr.mxu0 0.0
    %8115 = vmatpush1.msra.mxu0 0.0
    %8116 = vmatprep.subr.mxu0 0.0
    %8117 = vmatpush1.msra.mxu0 0.0
    %8118 = vmatprep.subr.mxu0 0.0
    %8119 = vmatpush1.msra.mxu0 0.0
    %8120 = vmatprep.subr.mxu0 0.0
    %8121 = vmatpush1.msra.mxu0 0.0
    %8122 = vmatprep.subr.mxu0 0.0
    %8123 = vmatpush1.msra.mxu0 0.0
    %8124 = vmatprep.subr.mxu0 0.0
    %8125 = vmatpush1.msra.mxu0 0.0
    %8126 = vmatprep.subr.mxu0 0.0
    %8127 = vmatpush1.msra.mxu0 0.0
    %8128 = vmatprep.subr.mxu0 0.0
    %8129 = vmatpush1.msra.mxu0 0.0
    %8130 = vmatprep.subr.mxu0 0.0
    %8131 = vmatpush1.msra.mxu0 0.0
    %8132 = vmatprep.subr.mxu0 0.0
    %8133 = vmatpush1.msra.mxu0 0.0
    %8134 = vmatprep.subr.mxu0 0.0
    %8135 = vmatpush1.msra.mxu0 0.0
    %8136 = vmatprep.subr.mxu0 0.0
    %8137 = vmatpush1.msra.mxu0 0.0
    %8138 = vmatprep.subr.mxu0 0.0
    %8139 = vmatpush1.msra.mxu0 0.0
    %8140 = vmatprep.subr.mxu0 0.0
    %8141 = vmatpush1.msra.mxu0 0.0
    %8142 = vmatprep.subr.mxu0 0.0
    %8143 = vmatpush1.msra.mxu0 0.0
    %8144 = vmatprep.subr.mxu0 0.0
    %8145 = vmatpush1.msra.mxu0 0.0
    %8146 = vmatprep.subr.mxu0 0.0
    %8147 = vmatpush1.msra.mxu0 0.0
    %8148 = vmatprep.subr.mxu0 0.0
    %8149 = vmatpush1.msra.mxu0 0.0
    %8150 = vmatprep.subr.mxu0 0.0
    %8151 = vmatpush1.msra.mxu0 0.0
    %8152 = vmatprep.subr.mxu0 0.0
    %8153 = vmatpush1.msra.mxu0 0.0
    %8154 = vmatprep.subr.mxu0 0.0
    %8155 = vmatpush1.msra.mxu0 0.0
    %8156 = vmatprep.subr.mxu0 0.0
    %8157 = vmatpush1.msra.mxu0 0.0
    %8158 = vmatprep.subr.mxu0 0.0
    %8159 = vmatpush1.msra.mxu0 0.0
    %8160 = vmatprep.subr.mxu0 0.0
    %8161 = vmatpush1.msra.mxu0 0.0
    %8162 = vmatprep.subr.mxu0 0.0
    %8163 = vmatpush1.msra.mxu0 0.0
    %8164 = vmatprep.subr.mxu0 0.0
    %8165 = vmatpush1.msra.mxu0 0.0
    %8166 = vmatprep.mubr.f32.mxu0 0.0
    %8167 = vmatmul.mubr.f32.gmra.mrb[0].mxu0 %v8100
    %v8168 = vpop.f32.mrb[0].mxu0
    %v8169 = vadd.f32 %v5063, %v8168
    %v8170 = vpop.f32.mrb[0].mxu0
    %8171 = vdwg.mxu0
    %8172 = vmatprep.subr.mxu0 0.0
    %8173 = vmatpush1.msra.mxu0 %v5024
    %8174 = vmatprep.subr.mxu0 0.0
    %8175 = vmatpush1.msra.mxu0 %v5025
    %8176 = vmatprep.subr.mxu0 0.0
    %8177 = vmatpush1.msra.mxu0 %v5026
    %8178 = vmatprep.subr.mxu0 0.0
    %8179 = vmatpush1.msra.mxu0 %v5027
    %8180 = vmatprep.subr.mxu0 0.0
    %8181 = vmatpush1.msra.mxu0 0.0
    %8182 = vmatprep.subr.mxu0 0.0
    %8183 = vmatpush1.msra.mxu0 0.0
    %8184 = vmatprep.subr.mxu0 0.0
    %8185 = vmatpush1.msra.mxu0 0.0
    %8186 = vmatprep.subr.mxu0 0.0
    %8187 = vmatpush1.msra.mxu0 0.0
    %8188 = vmatprep.subr.mxu0 0.0
    %8189 = vmatpush1.msra.mxu0 0.0
    %8190 = vmatprep.subr.mxu0 0.0
    %8191 = vmatpush1.msra.mxu0 0.0
    %8192 = vmatprep.subr.mxu0 0.0
    %8193 = vmatpush1.msra.mxu0 0.0
    %8194 = vmatprep.subr.mxu0 0.0
    %8195 = vmatpush1.msra.mxu0 0.0
    %8196 = vmatprep.subr.mxu0 0.0
    %8197 = vmatpush1.msra.mxu0 0.0
    %8198 = vmatprep.subr.mxu0 0.0
    %8199 = vmatpush1.msra.mxu0 0.0
    %8200 = vmatprep.subr.mxu0 0.0
    %8201 = vmatpush1.msra.mxu0 0.0
    %8202 = vmatprep.subr.mxu0 0.0
    %8203 = vmatpush1.msra.mxu0 0.0
    %8204 = vmatprep.subr.mxu0 0.0
    %8205 = vmatpush1.msra.mxu0 0.0
    %8206 = vmatprep.subr.mxu0 0.0
    %8207 = vmatpush1.msra.mxu0 0.0
    %8208 = vmatprep.subr.mxu0 0.0
    %8209 = vmatpush1.msra.mxu0 0.0
    %8210 = vmatprep.subr.mxu0 0.0
    %8211 = vmatpush1.msra.mxu0 0.0
    %8212 = vmatprep.subr.mxu0 0.0
    %8213 = vmatpush1.msra.mxu0 0.0
    %8214 = vmatprep.subr.mxu0 0.0
    %8215 = vmatpush1.msra.mxu0 0.0
    %8216 = vmatprep.subr.mxu0 0.0
    %8217 = vmatpush1.msra.mxu0 0.0
    %8218 = vmatprep.subr.mxu0 0.0
    %8219 = vmatpush1.msra.mxu0 0.0
    %8220 = vmatprep.subr.mxu0 0.0
    %8221 = vmatpush1.msra.mxu0 0.0
    %8222 = vmatprep.subr.mxu0 0.0
    %8223 = vmatpush1.msra.mxu0 0.0
    %8224 = vmatprep.subr.mxu0 0.0
    %8225 = vmatpush1.msra.mxu0 0.0
    %8226 = vmatprep.subr.mxu0 0.0
    %8227 = vmatpush1.msra.mxu0 0.0
    %8228 = vmatprep.subr.mxu0 0.0
    %8229 = vmatpush1.msra.mxu0 0.0
    %8230 = vmatprep.subr.mxu0 0.0
    %8231 = vmatpush1.msra.mxu0 0.0
    %8232 = vmatprep.subr.mxu0 0.0
    %8233 = vmatpush1.msra.mxu0 0.0
    %8234 = vmatprep.subr.mxu0 0.0
    %8235 = vmatpush1.msra.mxu0 0.0
    %8236 = vmatprep.mubr.f32.mxu0 0.0
    %8237 = vmatmul.mubr.f32.gmra.mrb[0].mxu0 %v8100
    %v8238 = vpop.f32.mrb[0].mxu0
    %v8239 = vadd.f32 %v5139, %v8238
    %v8240 = vpop.f32.mrb[0].mxu0
    %8241 = vdwg.mxu0
    %8242 = vmatprep.subr.mxu0 0.0
    %8243 = vmatpush1.msra.mxu0 %v5029
    %8244 = vmatprep.subr.mxu0 0.0
    %8245 = vmatpush1.msra.mxu0 %v5030
    %8246 = vmatprep.subr.mxu0 0.0
    %8247 = vmatpush1.msra.mxu0 %v5031
    %8248 = vmatprep.subr.mxu0 0.0
    %8249 = vmatpush1.msra.mxu0 %v5032
    %8250 = vmatprep.subr.mxu0 0.0
    %8251 = vmatpush1.msra.mxu0 0.0
    %8252 = vmatprep.subr.mxu0 0.0
    %8253 = vmatpush1.msra.mxu0 0.0
    %8254 = vmatprep.subr.mxu0 0.0
    %8255 = vmatpush1.msra.mxu0 0.0
    %8256 = vmatprep.subr.mxu0 0.0
    %8257 = vmatpush1.msra.mxu0 0.0
    %8258 = vmatprep.subr.mxu0 0.0
    %8259 = vmatpush1.msra.mxu0 0.0
    %8260 = vmatprep.subr.mxu0 0.0
    %8261 = vmatpush1.msra.mxu0 0.0
    %8262 = vmatprep.subr.mxu0 0.0
    %8263 = vmatpush1.msra.mxu0 0.0
    %8264 = vmatprep.subr.mxu0 0.0
    %8265 = vmatpush1.msra.mxu0 0.0
    %8266 = vmatprep.subr.mxu0 0.0
    %8267 = vmatpush1.msra.mxu0 0.0
    %8268 = vmatprep.subr.mxu0 0.0
    %8269 = vmatpush1.msra.mxu0 0.0
    %8270 = vmatprep.subr.mxu0 0.0
    %8271 = vmatpush1.msra.mxu0 0.0
    %8272 = vmatprep.subr.mxu0 0.0
    %8273 = vmatpush1.msra.mxu0 0.0
    %8274 = vmatprep.subr.mxu0 0.0
    %8275 = vmatpush1.msra.mxu0 0.0
    %8276 = vmatprep.subr.mxu0 0.0
    %8277 = vmatpush1.msra.mxu0 0.0
    %8278 = vmatprep.subr.mxu0 0.0
    %8279 = vmatpush1.msra.mxu0 0.0
    %8280 = vmatprep.subr.mxu0 0.0
    %8281 = vmatpush1.msra.mxu0 0.0
    %8282 = vmatprep.subr.mxu0 0.0
    %8283 = vmatpush1.msra.mxu0 0.0
    %8284 = vmatprep.subr.mxu0 0.0
    %8285 = vmatpush1.msra.mxu0 0.0
    %8286 = vmatprep.subr.mxu0 0.0
    %8287 = vmatpush1.msra.mxu0 0.0
    %8288 = vmatprep.subr.mxu0 0.0
    %8289 = vmatpush1.msra.mxu0 0.0
    %8290 = vmatprep.subr.mxu0 0.0
    %8291 = vmatpush1.msra.mxu0 0.0
    %8292 = vmatprep.subr.mxu0 0.0
    %8293 = vmatpush1.msra.mxu0 0.0
    %8294 = vmatprep.subr.mxu0 0.0
    %8295 = vmatpush1.msra.mxu0 0.0
    %8296 = vmatprep.subr.mxu0 0.0
    %8297 = vmatpush1.msra.mxu0 0.0
    %8298 = vmatprep.subr.mxu0 0.0
    %8299 = vmatpush1.msra.mxu0 0.0
    %8300 = vmatprep.subr.mxu0 0.0
    %8301 = vmatpush1.msra.mxu0 0.0
    %8302 = vmatprep.subr.mxu0 0.0
    %8303 = vmatpush1.msra.mxu0 0.0
    %8304 = vmatprep.subr.mxu0 0.0
    %8305 = vmatpush1.msra.mxu0 0.0
    %8306 = vmatprep.mubr.f32.mxu0 0.0
    %8307 = vmatmul.mubr.f32.gmra.mrb[0].mxu0 %v8100
    %v8308 = vpop.f32.mrb[0].mxu0
    %v8309 = vadd.f32 %v5215, %v8308
    %v8310 = vpop.f32.mrb[0].mxu0
    %8311 = vdwg.mxu0
    %v8312 = vadd.f32 %v4932, %v8169
    %v8313 = vxor.u32 %v8312, 2147483648
    %v8314 = vmul.f32 %v8313, 1.442695
    %v8315 = vpow.pop %v8314
    %v8316 = vadd.f32 %v8315, 1.0
    %v8317 = vrcp.pop %v8316
    %v8318 = vmul.f32 1.0, %v8317
    %8320 = vrot.lane.b32.xlu0 %v8239, 32
    %v8321 = vpop.permute.xlu0 %8320
    %v8323 = vadd.f32 %v4932, %v8321
    %v8324 = vxor.u32 %v8323, 2147483648
    %v8325 = vmul.f32 %v8324, 1.442695
    %v8326 = vpow.pop %v8325
    %v8327 = vadd.f32 %v8326, 1.0
    %v8328 = vrcp.pop %v8327
    %v8329 = vmul.f32 1.0, %v8328
    %v8330 = vmul.f32 %v8318, %v8309
    %8332 = vrot.lane.b32.xlu0 %v8330, 64
    %v8333 = vpop.permute.xlu0 %8332
    %v8335 = vadd.f32 %v4932, %v8333
    %v8336 = vtanh.pop %v8335
    %v8337 = vsub.f32 1.0, %v8329
    %8339 = vrot.lane.b32.xlu0 %v8336, 96
    %v8340 = vpop.permute.xlu0 %8339
    %v8342 = vmul.f32 %v8337, %v8340
    %v8343 = vmul.f32 %v8329, %v7842
    %v8344 = vadd.f32 %v8342, %v8343
    %v8346 = vsel %vm91, %v8092, 0
    %8348 = vmatprep.subr.mxu0 0.0
    %8349 = vmatpush1.msra.mxu0 %v5039
    %8350 = vmatprep.subr.mxu0 0.0
    %8351 = vmatpush1.msra.mxu0 %v5040
    %8352 = vmatprep.subr.mxu0 0.0
    %8353 = vmatpush1.msra.mxu0 %v5041
    %8354 = vmatprep.subr.mxu0 0.0
    %8355 = vmatpush1.msra.mxu0 %v5042
    %8356 = vmatprep.subr.mxu0 0.0
    %8357 = vmatpush1.msra.mxu0 0.0
    %8358 = vmatprep.subr.mxu0 0.0
    %8359 = vmatpush1.msra.mxu0 0.0
    %8360 = vmatprep.subr.mxu0 0.0
    %8361 = vmatpush1.msra.mxu0 0.0
    %8362 = vmatprep.subr.mxu0 0.0
    %8363 = vmatpush1.msra.mxu0 0.0
    %8364 = vmatprep.subr.mxu0 0.0
    %8365 = vmatpush1.msra.mxu0 0.0
    %8366 = vmatprep.subr.mxu0 0.0
    %8367 = vmatpush1.msra.mxu0 0.0
    %8368 = vmatprep.subr.mxu0 0.0
    %8369 = vmatpush1.msra.mxu0 0.0
    %8370 = vmatprep.subr.mxu0 0.0
    %8371 = vmatpush1.msra.mxu0 0.0
    %8372 = vmatprep.subr.mxu0 0.0
    %8373 = vmatpush1.msra.mxu0 0.0
    %8374 = vmatprep.subr.mxu0 0.0
    %8375 = vmatpush1.msra.mxu0 0.0
    %8376 = vmatprep.subr.mxu0 0.0
    %8377 = vmatpush1.msra.mxu0 0.0
    %8378 = vmatprep.subr.mxu0 0.0
    %8379 = vmatpush1.msra.mxu0 0.0
    %8380 = vmatprep.subr.mxu0 0.0
    %8381 = vmatpush1.msra.mxu0 0.0
    %8382 = vmatprep.subr.mxu0 0.0
    %8383 = vmatpush1.msra.mxu0 0.0
    %8384 = vmatprep.subr.mxu0 0.0
    %8385 = vmatpush1.msra.mxu0 0.0
    %8386 = vmatprep.subr.mxu0 0.0
    %8387 = vmatpush1.msra.mxu0 0.0
    %8388 = vmatprep.subr.mxu0 0.0
    %8389 = vmatpush1.msra.mxu0 0.0
    %8390 = vmatprep.subr.mxu0 0.0
    %8391 = vmatpush1.msra.mxu0 0.0
    %8392 = vmatprep.subr.mxu0 0.0
    %8393 = vmatpush1.msra.mxu0 0.0
    %8394 = vmatprep.subr.mxu0 0.0
    %8395 = vmatpush1.msra.mxu0 0.0
    %8396 = vmatprep.subr.mxu0 0.0
    %8397 = vmatpush1.msra.mxu0 0.0
    %8398 = vmatprep.subr.mxu0 0.0
    %8399 = vmatpush1.msra.mxu0 0.0
    %8400 = vmatprep.subr.mxu0 0.0
    %8401 = vmatpush1.msra.mxu0 0.0
    %8402 = vmatprep.subr.mxu0 0.0
    %8403 = vmatpush1.msra.mxu0 0.0
    %8404 = vmatprep.subr.mxu0 0.0
    %8405 = vmatpush1.msra.mxu0 0.0
    %8406 = vmatprep.subr.mxu0 0.0
    %8407 = vmatpush1.msra.mxu0 0.0
    %8408 = vmatprep.subr.mxu0 0.0
    %8409 = vmatpush1.msra.mxu0 0.0
    %8410 = vmatprep.subr.mxu0 0.0
    %8411 = vmatpush1.msra.mxu0 0.0
    %8412 = vmatprep.mubr.f32.mxu0 0.0
    %8413 = vmatmul.mubr.f32.gmra.mrb[0].mxu0 %v8346
    %v8414 = vpop.f32.mrb[0].mxu0
    %v8415 = vadd.f32 %v5324, %v8414
    %v8416 = vpop.f32.mrb[0].mxu0
    %8417 = vdwg.mxu0
    %8418 = vmatprep.subr.mxu0 0.0
    %8419 = vmatpush1.msra.mxu0 %v5044
    %8420 = vmatprep.subr.mxu0 0.0
    %8421 = vmatpush1.msra.mxu0 %v5045
    %8422 = vmatprep.subr.mxu0 0.0
    %8423 = vmatpush1.msra.mxu0 %v5046
    %8424 = vmatprep.subr.mxu0 0.0
    %8425 = vmatpush1.msra.mxu0 %v5047
    %8426 = vmatprep.subr.mxu0 0.0
    %8427 = vmatpush1.msra.mxu0 0.0
    %8428 = vmatprep.subr.mxu0 0.0
    %8429 = vmatpush1.msra.mxu0 0.0
    %8430 = vmatprep.subr.mxu0 0.0
    %8431 = vmatpush1.msra.mxu0 0.0
    %8432 = vmatprep.subr.mxu0 0.0
    %8433 = vmatpush1.msra.mxu0 0.0
    %8434 = vmatprep.subr.mxu0 0.0
    %8435 = vmatpush1.msra.mxu0 0.0
    %8436 = vmatprep.subr.mxu0 0.0
    %8437 = vmatpush1.msra.mxu0 0.0
    %8438 = vmatprep.subr.mxu0 0.0
    %8439 = vmatpush1.msra.mxu0 0.0
    %8440 = vmatprep.subr.mxu0 0.0
    %8441 = vmatpush1.msra.mxu0 0.0
    %8442 = vmatprep.subr.mxu0 0.0
    %8443 = vmatpush1.msra.mxu0 0.0
    %8444 = vmatprep.subr.mxu0 0.0
    %8445 = vmatpush1.msra.mxu0 0.0
    %8446 = vmatprep.subr.mxu0 0.0
    %8447 = vmatpush1.msra.mxu0 0.0
    %8448 = vmatprep.subr.mxu0 0.0
    %8449 = vmatpush1.msra.mxu0 0.0
    %8450 = vmatprep.subr.mxu0 0.0
    %8451 = vmatpush1.msra.mxu0 0.0
    %8452 = vmatprep.subr.mxu0 0.0
    %8453 = vmatpush1.msra.mxu0 0.0
    %8454 = vmatprep.subr.mxu0 0.0
    %8455 = vmatpush1.msra.mxu0 0.0
    %8456 = vmatprep.subr.mxu0 0.0
    %8457 = vmatpush1.msra.mxu0 0.0
    %8458 = vmatprep.subr.mxu0 0.0
    %8459 = vmatpush1.msra.mxu0 0.0
    %8460 = vmatprep.subr.mxu0 0.0
    %8461 = vmatpush1.msra.mxu0 0.0
    %8462 = vmatprep.subr.mxu0 0.0
    %8463 = vmatpush1.msra.mxu0 0.0
    %8464 = vmatprep.subr.mxu0 0.0
    %8465 = vmatpush1.msra.mxu0 0.0
    %8466 = vmatprep.subr.mxu0 0.0
    %8467 = vmatpush1.msra.mxu0 0.0
    %8468 = vmatprep.subr.mxu0 0.0
    %8469 = vmatpush1.msra.mxu0 0.0
    %8470 = vmatprep.subr.mxu0 0.0
    %8471 = vmatpush1.msra.mxu0 0.0
    %8472 = vmatprep.subr.mxu0 0.0
    %8473 = vmatpush1.msra.mxu0 0.0
    %8474 = vmatprep.subr.mxu0 0.0
    %8475 = vmatpush1.msra.mxu0 0.0
    %8476 = vmatprep.subr.mxu0 0.0
    %8477 = vmatpush1.msra.mxu0 0.0
    %8478 = vmatprep.subr.mxu0 0.0
    %8479 = vmatpush1.msra.mxu0 0.0
    %8480 = vmatprep.subr.mxu0 0.0
    %8481 = vmatpush1.msra.mxu0 0.0
    %8482 = vmatprep.mubr.f32.mxu0 0.0
    %8483 = vmatmul.mubr.f32.gmra.mrb[0].mxu0 %v8346
    %v8484 = vpop.f32.mrb[0].mxu0
    %v8485 = vadd.f32 %v5400, %v8484
    %v8486 = vpop.f32.mrb[0].mxu0
    %8487 = vdwg.mxu0
    %8488 = vmatprep.subr.mxu0 0.0
    %8489 = vmatpush1.msra.mxu0 %v5049
    %8490 = vmatprep.subr.mxu0 0.0
    %8491 = vmatpush1.msra.mxu0 %v5050
    %8492 = vmatprep.subr.mxu0 0.0
    %8493 = vmatpush1.msra.mxu0 %v5051
    %8494 = vmatprep.subr.mxu0 0.0
    %8495 = vmatpush1.msra.mxu0 %v5052
    %8496 = vmatprep.subr.mxu0 0.0
    %8497 = vmatpush1.msra.mxu0 0.0
    %8498 = vmatprep.subr.mxu0 0.0
    %8499 = vmatpush1.msra.mxu0 0.0
    %8500 = vmatprep.subr.mxu0 0.0
    %8501 = vmatpush1.msra.mxu0 0.0
    %8502 = vmatprep.subr.mxu0 0.0
    %8503 = vmatpush1.msra.mxu0 0.0
    %8504 = vmatprep.subr.mxu0 0.0
    %8505 = vmatpush1.msra.mxu0 0.0
    %8506 = vmatprep.subr.mxu0 0.0
    %8507 = vmatpush1.msra.mxu0 0.0
    %8508 = vmatprep.subr.mxu0 0.0
    %8509 = vmatpush1.msra.mxu0 0.0
    %8510 = vmatprep.subr.mxu0 0.0
    %8511 = vmatpush1.msra.mxu0 0.0
    %8512 = vmatprep.subr.mxu0 0.0
    %8513 = vmatpush1.msra.mxu0 0.0
    %8514 = vmatprep.subr.mxu0 0.0
    %8515 = vmatpush1.msra.mxu0 0.0
    %8516 = vmatprep.subr.mxu0 0.0
    %8517 = vmatpush1.msra.mxu0 0.0
    %8518 = vmatprep.subr.mxu0 0.0
    %8519 = vmatpush1.msra.mxu0 0.0
    %8520 = vmatprep.subr.mxu0 0.0
    %8521 = vmatpush1.msra.mxu0 0.0
    %8522 = vmatprep.subr.mxu0 0.0
    %8523 = vmatpush1.msra.mxu0 0.0
    %8524 = vmatprep.subr.mxu0 0.0
    %8525 = vmatpush1.msra.mxu0 0.0
    %8526 = vmatprep.subr.mxu0 0.0
    %8527 = vmatpush1.msra.mxu0 0.0
    %8528 = vmatprep.subr.mxu0 0.0
    %8529 = vmatpush1.msra.mxu0 0.0
    %8530 = vmatprep.subr.mxu0 0.0
    %8531 = vmatpush1.msra.mxu0 0.0
    %8532 = vmatprep.subr.mxu0 0.0
    %8533 = vmatpush1.msra.mxu0 0.0
    %8534 = vmatprep.subr.mxu0 0.0
    %8535 = vmatpush1.msra.mxu0 0.0
    %8536 = vmatprep.subr.mxu0 0.0
    %8537 = vmatpush1.msra.mxu0 0.0
    %8538 = vmatprep.subr.mxu0 0.0
    %8539 = vmatpush1.msra.mxu0 0.0
    %8540 = vmatprep.subr.mxu0 0.0
    %8541 = vmatpush1.msra.mxu0 0.0
    %8542 = vmatprep.subr.mxu0 0.0
    %8543 = vmatpush1.msra.mxu0 0.0
    %8544 = vmatprep.subr.mxu0 0.0
    %8545 = vmatpush1.msra.mxu0 0.0
    %8546 = vmatprep.subr.mxu0 0.0
    %8547 = vmatpush1.msra.mxu0 0.0
    %8548 = vmatprep.subr.mxu0 0.0
    %8549 = vmatpush1.msra.mxu0 0.0
    %8550 = vmatprep.subr.mxu0 0.0
    %8551 = vmatpush1.msra.mxu0 0.0
    %8552 = vmatprep.mubr.f32.mxu0 0.0
    %8553 = vmatmul.mubr.f32.gmra.mrb[0].mxu0 %v8346
    %v8554 = vpop.f32.mrb[0].mxu0
    %v8555 = vadd.f32 %v5476, %v8554
    %v8556 = vpop.f32.mrb[0].mxu0
    %8557 = vdwg.mxu0
    %8559 = vrot.lane.b32.xlu0 %v8415, 96
    %v8560 = vpop.permute.xlu0 %8559
    %v8562 = vadd.f32 %v4525, %v8560
    %v8563 = vxor.u32 %v8562, 2147483648
    %v8564 = vmul.f32 %v8563, 1.442695
    %v8565 = vpow.pop %v8564
    %v8566 = vadd.f32 %v8565, 1.0
    %v8567 = vrcp.pop %v8566
    %v8568 = vmul.f32 1.0, %v8567
    %v8569 = vadd.f32 %v4527, %v8485
    %v8570 = vxor.u32 %v8569, 2147483648
    %v8571 = vmul.f32 %v8570, 1.442695
    %v8572 = vpow.pop %v8571
    %v8573 = vadd.f32 %v8572, 1.0
    %v8574 = vrcp.pop %v8573
    %v8575 = vmul.f32 1.0, %v8574
    %8577 = vrot.lane.b32.xlu0 %v8555, 96
    %v8578 = vpop.permute.xlu0 %8577
    %v8580 = vmul.f32 %v8568, %v8578
    %8582 = vrot.lane.b32.xlu0 %v8580, 64
    %v8583 = vpop.permute.xlu0 %8582
    %v8585 = vadd.f32 %v4527, %v8583
    %v8586 = vtanh.pop %v8585
    %v8587 = vsub.f32 1.0, %v8575
    %8589 = vrot.lane.b32.xlu0 %v8586, 96
    %v8590 = vpop.permute.xlu0 %8589
    %v8592 = vmul.f32 %v8587, %v8590
    %v8593 = vmul.f32 %v8575, %v8092
    %v8594 = vadd.f32 %v8592, %v8593
    %v8595 = vadd.f32 %v8093, %v8344
    %v8596 = vadd.f32 %v8094, %v8594
    %v8597 = vmax.f32 %v8095, %v8344
    %v8598 = vmax.f32 %v8096, %v8594
    %8600 = vrot.lane.b32.xlu0 %v8344, 96
    %v8601 = vpop.permute.xlu0 %8600
    %v8602 = vsel %vm91, %v8601, 0
    %8604 = vmatprep.subr.mxu0 0.0
    %8605 = vmatpush1.msra.mxu0 %v5019
    %8606 = vmatprep.subr.mxu0 0.0
    %8607 = vmatpush1.msra.mxu0 %v5020
    %8608 = vmatprep.subr.mxu0 0.0
    %8609 = vmatpush1.msra.mxu0 %v5021
    %8610 = vmatprep.subr.mxu0 0.0
    %8611 = vmatpush1.msra.mxu0 %v5022
    %8612 = vmatprep.subr.mxu0 0.0
    %8613 = vmatpush1.msra.mxu0 0.0
    %8614 = vmatprep.subr.mxu0 0.0
    %8615 = vmatpush1.msra.mxu0 0.0
    %8616 = vmatprep.subr.mxu0 0.0
    %8617 = vmatpush1.msra.mxu0 0.0
    %8618 = vmatprep.subr.mxu0 0.0
    %8619 = vmatpush1.msra.mxu0 0.0
    %8620 = vmatprep.subr.mxu0 0.0
    %8621 = vmatpush1.msra.mxu0 0.0
    %8622 = vmatprep.subr.mxu0 0.0
    %8623 = vmatpush1.msra.mxu0 0.0
    %8624 = vmatprep.subr.mxu0 0.0
    %8625 = vmatpush1.msra.mxu0 0.0
    %8626 = vmatprep.subr.mxu0 0.0
    %8627 = vmatpush1.msra.mxu0 0.0
    %8628 = vmatprep.subr.mxu0 0.0
    %8629 = vmatpush1.msra.mxu0 0.0
    %8630 = vmatprep.subr.mxu0 0.0
    %8631 = vmatpush1.msra.mxu0 0.0
    %8632 = vmatprep.subr.mxu0 0.0
    %8633 = vmatpush1.msra.mxu0 0.0
    %8634 = vmatprep.subr.mxu0 0.0
    %8635 = vmatpush1.msra.mxu0 0.0
    %8636 = vmatprep.subr.mxu0 0.0
    %8637 = vmatpush1.msra.mxu0 0.0
    %8638 = vmatprep.subr.mxu0 0.0
    %8639 = vmatpush1.msra.mxu0 0.0
    %8640 = vmatprep.subr.mxu0 0.0
    %8641 = vmatpush1.msra.mxu0 0.0
    %8642 = vmatprep.subr.mxu0 0.0
    %8643 = vmatpush1.msra.mxu0 0.0
    %8644 = vmatprep.subr.mxu0 0.0
    %8645 = vmatpush1.msra.mxu0 0.0
    %8646 = vmatprep.subr.mxu0 0.0
    %8647 = vmatpush1.msra.mxu0 0.0
    %8648 = vmatprep.subr.mxu0 0.0
    %8649 = vmatpush1.msra.mxu0 0.0
    %8650 = vmatprep.subr.mxu0 0.0
    %8651 = vmatpush1.msra.mxu0 0.0
    %8652 = vmatprep.subr.mxu0 0.0
    %8653 = vmatpush1.msra.mxu0 0.0
    %8654 = vmatprep.subr.mxu0 0.0
    %8655 = vmatpush1.msra.mxu0 0.0
    %8656 = vmatprep.subr.mxu0 0.0
    %8657 = vmatpush1.msra.mxu0 0.0
    %8658 = vmatprep.subr.mxu0 0.0
    %8659 = vmatpush1.msra.mxu0 0.0
    %8660 = vmatprep.subr.mxu0 0.0
    %8661 = vmatpush1.msra.mxu0 0.0
    %8662 = vmatprep.subr.mxu0 0.0
    %8663 = vmatpush1.msra.mxu0 0.0
    %8664 = vmatprep.subr.mxu0 0.0
    %8665 = vmatpush1.msra.mxu0 0.0
    %8666 = vmatprep.subr.mxu0 0.0
    %8667 = vmatpush1.msra.mxu0 0.0
    %8668 = vmatprep.mubr.f32.mxu0 0.0
    %8669 = vmatmul.mubr.f32.gmra.mrb[0].mxu0 %v8602
    %v8670 = vpop.f32.mrb[0].mxu0
    %v8671 = vadd.f32 %v5063, %v8670
    %v8672 = vpop.f32.mrb[0].mxu0
    %8673 = vdwg.mxu0
    %8674 = vmatprep.subr.mxu0 0.0
    %8675 = vmatpush1.msra.mxu0 %v5024
    %8676 = vmatprep.subr.mxu0 0.0
    %8677 = vmatpush1.msra.mxu0 %v5025
    %8678 = vmatprep.subr.mxu0 0.0
    %8679 = vmatpush1.msra.mxu0 %v5026
    %8680 = vmatprep.subr.mxu0 0.0
    %8681 = vmatpush1.msra.mxu0 %v5027
    %8682 = vmatprep.subr.mxu0 0.0
    %8683 = vmatpush1.msra.mxu0 0.0
    %8684 = vmatprep.subr.mxu0 0.0
    %8685 = vmatpush1.msra.mxu0 0.0
    %8686 = vmatprep.subr.mxu0 0.0
    %8687 = vmatpush1.msra.mxu0 0.0
    %8688 = vmatprep.subr.mxu0 0.0
    %8689 = vmatpush1.msra.mxu0 0.0
    %8690 = vmatprep.subr.mxu0 0.0
    %8691 = vmatpush1.msra.mxu0 0.0
    %8692 = vmatprep.subr.mxu0 0.0
    %8693 = vmatpush1.msra.mxu0 0.0
    %8694 = vmatprep.subr.mxu0 0.0
    %8695 = vmatpush1.msra.mxu0 0.0
    %8696 = vmatprep.subr.mxu0 0.0
    %8697 = vmatpush1.msra.mxu0 0.0
    %8698 = vmatprep.subr.mxu0 0.0
    %8699 = vmatpush1.msra.mxu0 0.0
    %8700 = vmatprep.subr.mxu0 0.0
    %8701 = vmatpush1.msra.mxu0 0.0
    %8702 = vmatprep.subr.mxu0 0.0
    %8703 = vmatpush1.msra.mxu0 0.0
    %8704 = vmatprep.subr.mxu0 0.0
    %8705 = vmatpush1.msra.mxu0 0.0
    %8706 = vmatprep.subr.mxu0 0.0
    %8707 = vmatpush1.msra.mxu0 0.0
    %8708 = vmatprep.subr.mxu0 0.0
    %8709 = vmatpush1.msra.mxu0 0.0
    %8710 = vmatprep.subr.mxu0 0.0
    %8711 = vmatpush1.msra.mxu0 0.0
    %8712 = vmatprep.subr.mxu0 0.0
    %8713 = vmatpush1.msra.mxu0 0.0
    %8714 = vmatprep.subr.mxu0 0.0
    %8715 = vmatpush1.msra.mxu0 0.0
    %8716 = vmatprep.subr.mxu0 0.0
    %8717 = vmatpush1.msra.mxu0 0.0
    %8718 = vmatprep.subr.mxu0 0.0
    %8719 = vmatpush1.msra.mxu0 0.0
    %8720 = vmatprep.subr.mxu0 0.0
    %8721 = vmatpush1.msra.mxu0 0.0
    %8722 = vmatprep.subr.mxu0 0.0
    %8723 = vmatpush1.msra.mxu0 0.0
    %8724 = vmatprep.subr.mxu0 0.0
    %8725 = vmatpush1.msra.mxu0 0.0
    %8726 = vmatprep.subr.mxu0 0.0
    %8727 = vmatpush1.msra.mxu0 0.0
    %8728 = vmatprep.subr.mxu0 0.0
    %8729 = vmatpush1.msra.mxu0 0.0
    %8730 = vmatprep.subr.mxu0 0.0
    %8731 = vmatpush1.msra.mxu0 0.0
    %8732 = vmatprep.subr.mxu0 0.0
    %8733 = vmatpush1.msra.mxu0 0.0
    %8734 = vmatprep.subr.mxu0 0.0
    %8735 = vmatpush1.msra.mxu0 0.0
    %8736 = vmatprep.subr.mxu0 0.0
    %8737 = vmatpush1.msra.mxu0 0.0
    %8738 = vmatprep.mubr.f32.mxu0 0.0
    %8739 = vmatmul.mubr.f32.gmra.mrb[0].mxu0 %v8602
    %v8740 = vpop.f32.mrb[0].mxu0
    %v8741 = vadd.f32 %v5139, %v8740
    %v8742 = vpop.f32.mrb[0].mxu0
    %8743 = vdwg.mxu0
    %8744 = vmatprep.subr.mxu0 0.0
    %8745 = vmatpush1.msra.mxu0 %v5029
    %8746 = vmatprep.subr.mxu0 0.0
    %8747 = vmatpush1.msra.mxu0 %v5030
    %8748 = vmatprep.subr.mxu0 0.0
    %8749 = vmatpush1.msra.mxu0 %v5031
    %8750 = vmatprep.subr.mxu0 0.0
    %8751 = vmatpush1.msra.mxu0 %v5032
    %8752 = vmatprep.subr.mxu0 0.0
    %8753 = vmatpush1.msra.mxu0 0.0
    %8754 = vmatprep.subr.mxu0 0.0
    %8755 = vmatpush1.msra.mxu0 0.0
    %8756 = vmatprep.subr.mxu0 0.0
    %8757 = vmatpush1.msra.mxu0 0.0
    %8758 = vmatprep.subr.mxu0 0.0
    %8759 = vmatpush1.msra.mxu0 0.0
    %8760 = vmatprep.subr.mxu0 0.0
    %8761 = vmatpush1.msra.mxu0 0.0
    %8762 = vmatprep.subr.mxu0 0.0
    %8763 = vmatpush1.msra.mxu0 0.0
    %8764 = vmatprep.subr.mxu0 0.0
    %8765 = vmatpush1.msra.mxu0 0.0
    %8766 = vmatprep.subr.mxu0 0.0
    %8767 = vmatpush1.msra.mxu0 0.0
    %8768 = vmatprep.subr.mxu0 0.0
    %8769 = vmatpush1.msra.mxu0 0.0
    %8770 = vmatprep.subr.mxu0 0.0
    %8771 = vmatpush1.msra.mxu0 0.0
    %8772 = vmatprep.subr.mxu0 0.0
    %8773 = vmatpush1.msra.mxu0 0.0
    %8774 = vmatprep.subr.mxu0 0.0
    %8775 = vmatpush1.msra.mxu0 0.0
    %8776 = vmatprep.subr.mxu0 0.0
    %8777 = vmatpush1.msra.mxu0 0.0
    %8778 = vmatprep.subr.mxu0 0.0
    %8779 = vmatpush1.msra.mxu0 0.0
    %8780 = vmatprep.subr.mxu0 0.0
    %8781 = vmatpush1.msra.mxu0 0.0
    %8782 = vmatprep.subr.mxu0 0.0
    %8783 = vmatpush1.msra.mxu0 0.0
    %8784 = vmatprep.subr.mxu0 0.0
    %8785 = vmatpush1.msra.mxu0 0.0
    %8786 = vmatprep.subr.mxu0 0.0
    %8787 = vmatpush1.msra.mxu0 0.0
    %8788 = vmatprep.subr.mxu0 0.0
    %8789 = vmatpush1.msra.mxu0 0.0
    %8790 = vmatprep.subr.mxu0 0.0
    %8791 = vmatpush1.msra.mxu0 0.0
    %8792 = vmatprep.subr.mxu0 0.0
    %8793 = vmatpush1.msra.mxu0 0.0
    %8794 = vmatprep.subr.mxu0 0.0
    %8795 = vmatpush1.msra.mxu0 0.0
    %8796 = vmatprep.subr.mxu0 0.0
    %8797 = vmatpush1.msra.mxu0 0.0
    %8798 = vmatprep.subr.mxu0 0.0
    %8799 = vmatpush1.msra.mxu0 0.0
    %8800 = vmatprep.subr.mxu0 0.0
    %8801 = vmatpush1.msra.mxu0 0.0
    %8802 = vmatprep.subr.mxu0 0.0
    %8803 = vmatpush1.msra.mxu0 0.0
    %8804 = vmatprep.subr.mxu0 0.0
    %8805 = vmatpush1.msra.mxu0 0.0
    %8806 = vmatprep.subr.mxu0 0.0
    %8807 = vmatpush1.msra.mxu0 0.0
    %8808 = vmatprep.mubr.f32.mxu0 0.0
    %8809 = vmatmul.mubr.f32.gmra.mrb[0].mxu0 %v8602
    %v8810 = vpop.f32.mrb[0].mxu0
    %v8811 = vadd.f32 %v5215, %v8810
    %v8812 = vpop.f32.mrb[0].mxu0
    %8813 = vdwg.mxu0
    %v8814 = vadd.f32 %v5015, %v8671
    %v8815 = vxor.u32 %v8814, 2147483648
    %v8816 = vmul.f32 %v8815, 1.442695
    %v8817 = vpow.pop %v8816
    %v8818 = vadd.f32 %v8817, 1.0
    %v8819 = vrcp.pop %v8818
    %v8820 = vmul.f32 1.0, %v8819
    %8822 = vrot.lane.b32.xlu0 %v8741, 32
    %v8823 = vpop.permute.xlu0 %8822
    %v8825 = vadd.f32 %v5015, %v8823
    %v8826 = vxor.u32 %v8825, 2147483648
    %v8827 = vmul.f32 %v8826, 1.442695
    %v8828 = vpow.pop %v8827
    %v8829 = vadd.f32 %v8828, 1.0
    %v8830 = vrcp.pop %v8829
    %v8831 = vmul.f32 1.0, %v8830
    %v8832 = vmul.f32 %v8820, %v8811
    %8834 = vrot.lane.b32.xlu0 %v8832, 64
    %v8835 = vpop.permute.xlu0 %8834
    %v8837 = vadd.f32 %v5015, %v8835
    %v8838 = vtanh.pop %v8837
    %v8839 = vsub.f32 1.0, %v8831
    %8841 = vrot.lane.b32.xlu0 %v8838, 96
    %v8842 = vpop.permute.xlu0 %8841
    %v8844 = vmul.f32 %v8839, %v8842
    %v8845 = vmul.f32 %v8831, %v8344
    %v8846 = vadd.f32 %v8844, %v8845
    %v8848 = vsel %vm91, %v8594, 0
    %8850 = vmatprep.subr.mxu0 0.0
    %8851 = vmatpush1.msra.mxu0 %v5039
    %8852 = vmatprep.subr.mxu0 0.0
    %8853 = vmatpush1.msra.mxu0 %v5040
    %8854 = vmatprep.subr.mxu0 0.0
    %8855 = vmatpush1.msra.mxu0 %v5041
    %8856 = vmatprep.subr.mxu0 0.0
    %8857 = vmatpush1.msra.mxu0 %v5042
    %8858 = vmatprep.subr.mxu0 0.0
    %8859 = vmatpush1.msra.mxu0 0.0
    %8860 = vmatprep.subr.mxu0 0.0
    %8861 = vmatpush1.msra.mxu0 0.0
    %8862 = vmatprep.subr.mxu0 0.0
    %8863 = vmatpush1.msra.mxu0 0.0
    %8864 = vmatprep.subr.mxu0 0.0
    %8865 = vmatpush1.msra.mxu0 0.0
    %8866 = vmatprep.subr.mxu0 0.0
    %8867 = vmatpush1.msra.mxu0 0.0
    %8868 = vmatprep.subr.mxu0 0.0
    %8869 = vmatpush1.msra.mxu0 0.0
    %8870 = vmatprep.subr.mxu0 0.0
    %8871 = vmatpush1.msra.mxu0 0.0
    %8872 = vmatprep.subr.mxu0 0.0
    %8873 = vmatpush1.msra.mxu0 0.0
    %8874 = vmatprep.subr.mxu0 0.0
    %8875 = vmatpush1.msra.mxu0 0.0
    %8876 = vmatprep.subr.mxu0 0.0
    %8877 = vmatpush1.msra.mxu0 0.0
    %8878 = vmatprep.subr.mxu0 0.0
    %8879 = vmatpush1.msra.mxu0 0.0
    %8880 = vmatprep.subr.mxu0 0.0
    %8881 = vmatpush1.msra.mxu0 0.0
    %8882 = vmatprep.subr.mxu0 0.0
    %8883 = vmatpush1.msra.mxu0 0.0
    %8884 = vmatprep.subr.mxu0 0.0
    %8885 = vmatpush1.msra.mxu0 0.0
    %8886 = vmatprep.subr.mxu0 0.0
    %8887 = vmatpush1.msra.mxu0 0.0
    %8888 = vmatprep.subr.mxu0 0.0
    %8889 = vmatpush1.msra.mxu0 0.0
    %8890 = vmatprep.subr.mxu0 0.0
    %8891 = vmatpush1.msra.mxu0 0.0
    %8892 = vmatprep.subr.mxu0 0.0
    %8893 = vmatpush1.msra.mxu0 0.0
    %8894 = vmatprep.subr.mxu0 0.0
    %8895 = vmatpush1.msra.mxu0 0.0
    %8896 = vmatprep.subr.mxu0 0.0
    %8897 = vmatpush1.msra.mxu0 0.0
    %8898 = vmatprep.subr.mxu0 0.0
    %8899 = vmatpush1.msra.mxu0 0.0
    %8900 = vmatprep.subr.mxu0 0.0
    %8901 = vmatpush1.msra.mxu0 0.0
    %8902 = vmatprep.subr.mxu0 0.0
    %8903 = vmatpush1.msra.mxu0 0.0
    %8904 = vmatprep.subr.mxu0 0.0
    %8905 = vmatpush1.msra.mxu0 0.0
    %8906 = vmatprep.subr.mxu0 0.0
    %8907 = vmatpush1.msra.mxu0 0.0
    %8908 = vmatprep.subr.mxu0 0.0
    %8909 = vmatpush1.msra.mxu0 0.0
    %8910 = vmatprep.subr.mxu0 0.0
    %8911 = vmatpush1.msra.mxu0 0.0
    %8912 = vmatprep.subr.mxu0 0.0
    %8913 = vmatpush1.msra.mxu0 0.0
    %8914 = vmatprep.mubr.f32.mxu0 0.0
    %8915 = vmatmul.mubr.f32.gmra.mrb[0].mxu0 %v8848
    %v8916 = vpop.f32.mrb[0].mxu0
    %v8917 = vadd.f32 %v5324, %v8916
    %v8918 = vpop.f32.mrb[0].mxu0
    %8919 = vdwg.mxu0
    %8920 = vmatprep.subr.mxu0 0.0
    %8921 = vmatpush1.msra.mxu0 %v5044
    %8922 = vmatprep.subr.mxu0 0.0
    %8923 = vmatpush1.msra.mxu0 %v5045
    %8924 = vmatprep.subr.mxu0 0.0
    %8925 = vmatpush1.msra.mxu0 %v5046
    %8926 = vmatprep.subr.mxu0 0.0
    %8927 = vmatpush1.msra.mxu0 %v5047
    %8928 = vmatprep.subr.mxu0 0.0
    %8929 = vmatpush1.msra.mxu0 0.0
    %8930 = vmatprep.subr.mxu0 0.0
    %8931 = vmatpush1.msra.mxu0 0.0
    %8932 = vmatprep.subr.mxu0 0.0
    %8933 = vmatpush1.msra.mxu0 0.0
    %8934 = vmatprep.subr.mxu0 0.0
    %8935 = vmatpush1.msra.mxu0 0.0
    %8936 = vmatprep.subr.mxu0 0.0
    %8937 = vmatpush1.msra.mxu0 0.0
    %8938 = vmatprep.subr.mxu0 0.0
    %8939 = vmatpush1.msra.mxu0 0.0
    %8940 = vmatprep.subr.mxu0 0.0
    %8941 = vmatpush1.msra.mxu0 0.0
    %8942 = vmatprep.subr.mxu0 0.0
    %8943 = vmatpush1.msra.mxu0 0.0
    %8944 = vmatprep.subr.mxu0 0.0
    %8945 = vmatpush1.msra.mxu0 0.0
    %8946 = vmatprep.subr.mxu0 0.0
    %8947 = vmatpush1.msra.mxu0 0.0
    %8948 = vmatprep.subr.mxu0 0.0
    %8949 = vmatpush1.msra.mxu0 0.0
    %8950 = vmatprep.subr.mxu0 0.0
    %8951 = vmatpush1.msra.mxu0 0.0
    %8952 = vmatprep.subr.mxu0 0.0
    %8953 = vmatpush1.msra.mxu0 0.0
    %8954 = vmatprep.subr.mxu0 0.0
    %8955 = vmatpush1.msra.mxu0 0.0
    %8956 = vmatprep.subr.mxu0 0.0
    %8957 = vmatpush1.msra.mxu0 0.0
    %8958 = vmatprep.subr.mxu0 0.0
    %8959 = vmatpush1.msra.mxu0 0.0
    %8960 = vmatprep.subr.mxu0 0.0
    %8961 = vmatpush1.msra.mxu0 0.0
    %8962 = vmatprep.subr.mxu0 0.0
    %8963 = vmatpush1.msra.mxu0 0.0
    %8964 = vmatprep.subr.mxu0 0.0
    %8965 = vmatpush1.msra.mxu0 0.0
    %8966 = vmatprep.subr.mxu0 0.0
    %8967 = vmatpush1.msra.mxu0 0.0
    %8968 = vmatprep.subr.mxu0 0.0
    %8969 = vmatpush1.msra.mxu0 0.0
    %8970 = vmatprep.subr.mxu0 0.0
    %8971 = vmatpush1.msra.mxu0 0.0
    %8972 = vmatprep.subr.mxu0 0.0
    %8973 = vmatpush1.msra.mxu0 0.0
    %8974 = vmatprep.subr.mxu0 0.0
    %8975 = vmatpush1.msra.mxu0 0.0
    %8976 = vmatprep.subr.mxu0 0.0
    %8977 = vmatpush1.msra.mxu0 0.0
    %8978 = vmatprep.subr.mxu0 0.0
    %8979 = vmatpush1.msra.mxu0 0.0
    %8980 = vmatprep.subr.mxu0 0.0
    %8981 = vmatpush1.msra.mxu0 0.0
    %8982 = vmatprep.subr.mxu0 0.0
    %8983 = vmatpush1.msra.mxu0 0.0
    %8984 = vmatprep.mubr.f32.mxu0 0.0
    %8985 = vmatmul.mubr.f32.gmra.mrb[0].mxu0 %v8848
    %v8986 = vpop.f32.mrb[0].mxu0
    %v8987 = vadd.f32 %v5400, %v8986
    %v8988 = vpop.f32.mrb[0].mxu0
    %8989 = vdwg.mxu0
    %8990 = vmatprep.subr.mxu0 0.0
    %8991 = vmatpush1.msra.mxu0 %v5049
    %8992 = vmatprep.subr.mxu0 0.0
    %8993 = vmatpush1.msra.mxu0 %v5050
    %8994 = vmatprep.subr.mxu0 0.0
    %8995 = vmatpush1.msra.mxu0 %v5051
    %8996 = vmatprep.subr.mxu0 0.0
    %8997 = vmatpush1.msra.mxu0 %v5052
    %8998 = vmatprep.subr.mxu0 0.0
    %8999 = vmatpush1.msra.mxu0 0.0
    %9000 = vmatprep.subr.mxu0 0.0
    %9001 = vmatpush1.msra.mxu0 0.0
    %9002 = vmatprep.subr.mxu0 0.0
    %9003 = vmatpush1.msra.mxu0 0.0
    %9004 = vmatprep.subr.mxu0 0.0
    %9005 = vmatpush1.msra.mxu0 0.0
    %9006 = vmatprep.subr.mxu0 0.0
    %9007 = vmatpush1.msra.mxu0 0.0
    %9008 = vmatprep.subr.mxu0 0.0
    %9009 = vmatpush1.msra.mxu0 0.0
    %9010 = vmatprep.subr.mxu0 0.0
    %9011 = vmatpush1.msra.mxu0 0.0
    %9012 = vmatprep.subr.mxu0 0.0
    %9013 = vmatpush1.msra.mxu0 0.0
    %9014 = vmatprep.subr.mxu0 0.0
    %9015 = vmatpush1.msra.mxu0 0.0
    %9016 = vmatprep.subr.mxu0 0.0
    %9017 = vmatpush1.msra.mxu0 0.0
    %9018 = vmatprep.subr.mxu0 0.0
    %9019 = vmatpush1.msra.mxu0 0.0
    %9020 = vmatprep.subr.mxu0 0.0
    %9021 = vmatpush1.msra.mxu0 0.0
    %9022 = vmatprep.subr.mxu0 0.0
    %9023 = vmatpush1.msra.mxu0 0.0
    %9024 = vmatprep.subr.mxu0 0.0
    %9025 = vmatpush1.msra.mxu0 0.0
    %9026 = vmatprep.subr.mxu0 0.0
    %9027 = vmatpush1.msra.mxu0 0.0
    %9028 = vmatprep.subr.mxu0 0.0
    %9029 = vmatpush1.msra.mxu0 0.0
    %9030 = vmatprep.subr.mxu0 0.0
    %9031 = vmatpush1.msra.mxu0 0.0
    %9032 = vmatprep.subr.mxu0 0.0
    %9033 = vmatpush1.msra.mxu0 0.0
    %9034 = vmatprep.subr.mxu0 0.0
    %9035 = vmatpush1.msra.mxu0 0.0
    %9036 = vmatprep.subr.mxu0 0.0
    %9037 = vmatpush1.msra.mxu0 0.0
    %9038 = vmatprep.subr.mxu0 0.0
    %9039 = vmatpush1.msra.mxu0 0.0
    %9040 = vmatprep.subr.mxu0 0.0
    %9041 = vmatpush1.msra.mxu0 0.0
    %9042 = vmatprep.subr.mxu0 0.0
    %9043 = vmatpush1.msra.mxu0 0.0
    %9044 = vmatprep.subr.mxu0 0.0
    %9045 = vmatpush1.msra.mxu0 0.0
    %9046 = vmatprep.subr.mxu0 0.0
    %9047 = vmatpush1.msra.mxu0 0.0
    %9048 = vmatprep.subr.mxu0 0.0
    %9049 = vmatpush1.msra.mxu0 0.0
    %9050 = vmatprep.subr.mxu0 0.0
    %9051 = vmatpush1.msra.mxu0 0.0
    %9052 = vmatprep.subr.mxu0 0.0
    %9053 = vmatpush1.msra.mxu0 0.0
    %9054 = vmatprep.mubr.f32.mxu0 0.0
    %9055 = vmatmul.mubr.f32.gmra.mrb[0].mxu0 %v8848
    %v9056 = vpop.f32.mrb[0].mxu0
    %v9057 = vadd.f32 %v5476, %v9056
    %v9058 = vpop.f32.mrb[0].mxu0
    %9059 = vdwg.mxu0
    %9061 = vrot.lane.b32.xlu0 %v8917, 96
    %v9062 = vpop.permute.xlu0 %9061
    %v9064 = vadd.f32 %v4443, %v9062
    %v9065 = vxor.u32 %v9064, 2147483648
    %v9066 = vmul.f32 %v9065, 1.442695
    %v9067 = vpow.pop %v9066
    %v9068 = vadd.f32 %v9067, 1.0
    %v9069 = vrcp.pop %v9068
    %v9070 = vmul.f32 1.0, %v9069
    %v9071 = vadd.f32 %v4445, %v8987
    %v9072 = vxor.u32 %v9071, 2147483648
    %v9073 = vmul.f32 %v9072, 1.442695
    %v9074 = vpow.pop %v9073
    %v9075 = vadd.f32 %v9074, 1.0
    %v9076 = vrcp.pop %v9075
    %v9077 = vmul.f32 1.0, %v9076
    %9079 = vrot.lane.b32.xlu0 %v9057, 96
    %v9080 = vpop.permute.xlu0 %9079
    %v9082 = vmul.f32 %v9070, %v9080
    %9084 = vrot.lane.b32.xlu0 %v9082, 64
    %v9085 = vpop.permute.xlu0 %9084
    %v9087 = vadd.f32 %v4445, %v9085
    %v9088 = vtanh.pop %v9087
    %v9089 = vsub.f32 1.0, %v9077
    %9091 = vrot.lane.b32.xlu0 %v9088, 96
    %v9092 = vpop.permute.xlu0 %9091
    %v9094 = vmul.f32 %v9089, %v9092
    %v9095 = vmul.f32 %v9077, %v8594
    %v9096 = vadd.f32 %v9094, %v9095
    %v9097 = vadd.f32 %v8595, %v8846
    %v9098 = vadd.f32 %v8596, %v9096
    %v9099 = vmax.f32 %v8597, %v8846
    %v9100 = vmax.f32 %v8598, %v9096
    %v9101 = vmul.f32 %v9097, 0.125
    %v9102 = vmul.f32 %v9098, 0.125
    %9104 = vrot.lane.b32.xlu0 %v9101, 96
    %v9105 = vpop.permute.xlu0 %9104
    %9108 = vrot.lane.b32.xlu0 %v9102, 32
    %v9109 = vpop.permute.xlu0 %9108
    %9112 = vrot.lane.b32.xlu0 %v9099, 32
    %v9113 = vpop.permute.xlu0 %9112
    %9116 = vrot.lane.b32.xlu0 %v9100, 96
    %v9117 = vpop.permute.xlu0 %9116
    %v9119 = vsel %vm91, %v9105, %v9109
    %v9120 = vsel %vm4372, %v9119, %v9113
    %vm9121 = vcmask 785408
    %v9122 = vsel %vm9121, %v9120, %v9117
    %vm9123 = vcmask 1041408
    %v9124 = vsel %vm9123, %v9122, 0.0
    %9125 = vadd.xlane.f32.xlu0 %v9124
    %v9126 = vpop.xlane.xlu0 %9125
    %v9127 = vrcp.pop 128.0
    %v9128 = vmul.f32 %v9126, %v9127
    %v9129 = vsub.f32 %v9122, %v9128
    %v9130 = vmul.f32 %v9129, %v9129
    %v9131 = vsel %vm9123, %v9130, 0.0
    %9132 = vadd.xlane.f32.xlu0 %v9131
    %v9133 = vpop.xlane.xlu0 %9132
    %v9134 = vmul.f32 %v9133, %v9127
    %v9135 = vadd.f32 %v9134, 1e-05
    %v9136 = vrsqrt.pop %v9135
    %v9137 = vmul.f32 %v9129, %v9136
    %v9138 = vld [vmem:[%s9] sm:$0x1]
    %v9140 = vlaneseq
    %v9141 = vshrl.u32 %v9140, 7
    %v9142 = vsub.s32 0, %v9141
    %v9143 = vrot.slane %v9138, %v9142
    %v9145 = vmul.f32 %v9137, %v9143
    %v9146 = vld [vmem:[%s10] sm:$0x1]
    %v9148 = vlaneseq
    %v9149 = vshrl.u32 %v9148, 7
    %v9150 = vsub.s32 0, %v9149
    %v9151 = vrot.slane %v9146, %v9150
    %v9153 = vadd.f32 %v9145, %v9151
    %v9154 = vld [vmem:[%s11] sm:$0xff]
    %v9155 = vld [vmem:[%s11 + $0x8] sm:$0xff]
    %v9156 = vld [vmem:[%s11 + $0x10] sm:$0xff]
    %v9157 = vld [vmem:[%s11 + $0x18] sm:$0xff]
    %v9158 = vld [vmem:[%s11 + $0x20] sm:$0xff]
    %v9159 = vld [vmem:[%s11 + $0x28] sm:$0xff]
    %v9160 = vld [vmem:[%s11 + $0x30] sm:$0xff]
    %v9161 = vld [vmem:[%s11 + $0x38] sm:$0xff]
    %v9162 = vld [vmem:[%s11 + $0x40] sm:$0xff]
    %v9163 = vld [vmem:[%s11 + $0x48] sm:$0xff]
    %v9164 = vld [vmem:[%s11 + $0x50] sm:$0xff]
    %v9165 = vld [vmem:[%s11 + $0x58] sm:$0xff]
    %v9166 = vld [vmem:[%s11 + $0x60] sm:$0xff]
    %v9167 = vld [vmem:[%s11 + $0x68] sm:$0xff]
    %v9168 = vld [vmem:[%s11 + $0x70] sm:$0xff]
    %v9169 = vld [vmem:[%s11 + $0x78] sm:$0xff]
    %v9170 = vld [vmem:[%s12] sm:$0x1]
    %v9172 = vlaneseq
    %v9173 = vshrl.u32 %v9172, 7
    %v9174 = vsub.s32 0, %v9173
    %v9175 = vrot.slane %v9170, %v9174
    %9177 = vmatprep.subr.mxu0 0.0
    %9178 = vmatpush1.msra.mxu0 %v9154
    %9179 = vmatprep.subr.mxu0 0.0
    %9180 = vmatpush1.msra.mxu0 %v9155
    %9181 = vmatprep.subr.mxu0 0.0
    %9182 = vmatpush1.msra.mxu0 %v9156
    %9183 = vmatprep.subr.mxu0 0.0
    %9184 = vmatpush1.msra.mxu0 %v9157
    %9185 = vmatprep.subr.mxu0 0.0
    %9186 = vmatpush1.msra.mxu0 %v9158
    %9187 = vmatprep.subr.mxu0 0.0
    %9188 = vmatpush1.msra.mxu0 %v9159
    %9189 = vmatprep.subr.mxu0 0.0
    %9190 = vmatpush1.msra.mxu0 %v9160
    %9191 = vmatprep.subr.mxu0 0.0
    %9192 = vmatpush1.msra.mxu0 %v9161
    %9193 = vmatprep.subr.mxu0 0.0
    %9194 = vmatpush1.msra.mxu0 %v9162
    %9195 = vmatprep.subr.mxu0 0.0
    %9196 = vmatpush1.msra.mxu0 %v9163
    %9197 = vmatprep.subr.mxu0 0.0
    %9198 = vmatpush1.msra.mxu0 %v9164
    %9199 = vmatprep.subr.mxu0 0.0
    %9200 = vmatpush1.msra.mxu0 %v9165
    %9201 = vmatprep.subr.mxu0 0.0
    %9202 = vmatpush1.msra.mxu0 %v9166
    %9203 = vmatprep.subr.mxu0 0.0
    %9204 = vmatpush1.msra.mxu0 %v9167
    %9205 = vmatprep.subr.mxu0 0.0
    %9206 = vmatpush1.msra.mxu0 %v9168
    %9207 = vmatprep.subr.mxu0 0.0
    %9208 = vmatpush1.msra.mxu0 %v9169
    %9209 = vmatprep.subr.mxu0 0.0
    %9210 = vmatpush1.msra.mxu0 0.0
    %9211 = vmatprep.subr.mxu0 0.0
    %9212 = vmatpush1.msra.mxu0 0.0
    %9213 = vmatprep.subr.mxu0 0.0
    %9214 = vmatpush1.msra.mxu0 0.0
    %9215 = vmatprep.subr.mxu0 0.0
    %9216 = vmatpush1.msra.mxu0 0.0
    %9217 = vmatprep.subr.mxu0 0.0
    %9218 = vmatpush1.msra.mxu0 0.0
    %9219 = vmatprep.subr.mxu0 0.0
    %9220 = vmatpush1.msra.mxu0 0.0
    %9221 = vmatprep.subr.mxu0 0.0
    %9222 = vmatpush1.msra.mxu0 0.0
    %9223 = vmatprep.subr.mxu0 0.0
    %9224 = vmatpush1.msra.mxu0 0.0
    %9225 = vmatprep.subr.mxu0 0.0
    %9226 = vmatpush1.msra.mxu0 0.0
    %9227 = vmatprep.subr.mxu0 0.0
    %9228 = vmatpush1.msra.mxu0 0.0
    %9229 = vmatprep.subr.mxu0 0.0
    %9230 = vmatpush1.msra.mxu0 0.0
    %9231 = vmatprep.subr.mxu0 0.0
    %9232 = vmatpush1.msra.mxu0 0.0
    %9233 = vmatprep.subr.mxu0 0.0
    %9234 = vmatpush1.msra.mxu0 0.0
    %9235 = vmatprep.subr.mxu0 0.0
    %9236 = vmatpush1.msra.mxu0 0.0
    %9237 = vmatprep.subr.mxu0 0.0
    %9238 = vmatpush1.msra.mxu0 0.0
    %9239 = vmatprep.subr.mxu0 0.0
    %9240 = vmatpush1.msra.mxu0 0.0
    %9241 = vmatprep.mubr.f32.mxu0 0.0
    %9242 = vmatmul.mubr.f32.gmra.mrb[0].mxu0 %v9153
    %v9243 = vpop.f32.mrb[0].mxu0
    %v9244 = vadd.f32 %v9175, %v9243
    %v9245 = vpop.f32.mrb[0].mxu0
    %9246 = vdwg.mxu0
    %v9247 = vld [vmem:[%s13] sm:$0xff]
    %v9248 = vld [vmem:[%s13 + $0x8] sm:$0xff]
    %v9249 = vld [vmem:[%s13 + $0x10] sm:$0xff]
    %v9250 = vld [vmem:[%s13 + $0x18] sm:$0xff]
    %v9251 = vld [vmem:[%s13 + $0x20] sm:$0xff]
    %v9252 = vld [vmem:[%s13 + $0x28] sm:$0xff]
    %v9253 = vld [vmem:[%s13 + $0x30] sm:$0xff]
    %v9254 = vld [vmem:[%s13 + $0x38] sm:$0xff]
    %v9255 = vld [vmem:[%s13 + $0x40] sm:$0xff]
    %v9256 = vld [vmem:[%s13 + $0x48] sm:$0xff]
    %v9257 = vld [vmem:[%s13 + $0x50] sm:$0xff]
    %v9258 = vld [vmem:[%s13 + $0x58] sm:$0xff]
    %v9259 = vld [vmem:[%s13 + $0x60] sm:$0xff]
    %v9260 = vld [vmem:[%s13 + $0x68] sm:$0xff]
    %v9261 = vld [vmem:[%s13 + $0x70] sm:$0xff]
    %v9262 = vld [vmem:[%s13 + $0x78] sm:$0xff]
    %v9263 = vld [vmem:[%s14] sm:$0x1]
    %v9265 = vlaneseq
    %v9266 = vshrl.u32 %v9265, 7
    %v9267 = vsub.s32 0, %v9266
    %v9268 = vrot.slane %v9263, %v9267
    %9270 = vmatprep.subr.mxu0 0.0
    %9271 = vmatpush1.msra.mxu0 %v9247
    %9272 = vmatprep.subr.mxu0 0.0
    %9273 = vmatpush1.msra.mxu0 %v9248
    %9274 = vmatprep.subr.mxu0 0.0
    %9275 = vmatpush1.msra.mxu0 %v9249
    %9276 = vmatprep.subr.mxu0 0.0
    %9277 = vmatpush1.msra.mxu0 %v9250
    %9278 = vmatprep.subr.mxu0 0.0
    %9279 = vmatpush1.msra.mxu0 %v9251
    %9280 = vmatprep.subr.mxu0 0.0
    %9281 = vmatpush1.msra.mxu0 %v9252
    %9282 = vmatprep.subr.mxu0 0.0
    %9283 = vmatpush1.msra.mxu0 %v9253
    %9284 = vmatprep.subr.mxu0 0.0
    %9285 = vmatpush1.msra.mxu0 %v9254
    %9286 = vmatprep.subr.mxu0 0.0
    %9287 = vmatpush1.msra.mxu0 %v9255
    %9288 = vmatprep.subr.mxu0 0.0
    %9289 = vmatpush1.msra.mxu0 %v9256
    %9290 = vmatprep.subr.mxu0 0.0
    %9291 = vmatpush1.msra.mxu0 %v9257
    %9292 = vmatprep.subr.mxu0 0.0
    %9293 = vmatpush1.msra.mxu0 %v9258
    %9294 = vmatprep.subr.mxu0 0.0
    %9295 = vmatpush1.msra.mxu0 %v9259
    %9296 = vmatprep.subr.mxu0 0.0
    %9297 = vmatpush1.msra.mxu0 %v9260
    %9298 = vmatprep.subr.mxu0 0.0
    %9299 = vmatpush1.msra.mxu0 %v9261
    %9300 = vmatprep.subr.mxu0 0.0
    %9301 = vmatpush1.msra.mxu0 %v9262
    %9302 = vmatprep.subr.mxu0 0.0
    %9303 = vmatpush1.msra.mxu0 0.0
    %9304 = vmatprep.subr.mxu0 0.0
    %9305 = vmatpush1.msra.mxu0 0.0
    %9306 = vmatprep.subr.mxu0 0.0
    %9307 = vmatpush1.msra.mxu0 0.0
    %9308 = vmatprep.subr.mxu0 0.0
    %9309 = vmatpush1.msra.mxu0 0.0
    %9310 = vmatprep.subr.mxu0 0.0
    %9311 = vmatpush1.msra.mxu0 0.0
    %9312 = vmatprep.subr.mxu0 0.0
    %9313 = vmatpush1.msra.mxu0 0.0
    %9314 = vmatprep.subr.mxu0 0.0
    %9315 = vmatpush1.msra.mxu0 0.0
    %9316 = vmatprep.subr.mxu0 0.0
    %9317 = vmatpush1.msra.mxu0 0.0
    %9318 = vmatprep.subr.mxu0 0.0
    %9319 = vmatpush1.msra.mxu0 0.0
    %9320 = vmatprep.subr.mxu0 0.0
    %9321 = vmatpush1.msra.mxu0 0.0
    %9322 = vmatprep.subr.mxu0 0.0
    %9323 = vmatpush1.msra.mxu0 0.0
    %9324 = vmatprep.subr.mxu0 0.0
    %9325 = vmatpush1.msra.mxu0 0.0
    %9326 = vmatprep.subr.mxu0 0.0
    %9327 = vmatpush1.msra.mxu0 0.0
    %9328 = vmatprep.subr.mxu0 0.0
    %9329 = vmatpush1.msra.mxu0 0.0
    %9330 = vmatprep.subr.mxu0 0.0
    %9331 = vmatpush1.msra.mxu0 0.0
    %9332 = vmatprep.subr.mxu0 0.0
    %9333 = vmatpush1.msra.mxu0 0.0
    %9334 = vmatprep.mubr.f32.mxu0 0.0
    %9335 = vmatmul.mubr.f32.gmra.mrb[0].mxu0 %v9153
    %v9336 = vpop.f32.mrb[0].mxu0
    %v9337 = vadd.f32 %v9268, %v9336
    %v9338 = vpop.f32.mrb[0].mxu0
    %9339 = vdwg.mxu0
    %v9340 = vmax.f32 %v9337, 0.0
    %v9341 = vadd.f32 %v9340, %v9244
    %v9342 = vld [vmem:[%s15] sm:$0xff]
    %v9343 = vld [vmem:[%s15 + $0x8] sm:$0xff]
    %v9344 = vld [vmem:[%s15 + $0x10] sm:$0xff]
    %v9345 = vld [vmem:[%s15 + $0x18] sm:$0xff]
    %v9346 = vld [vmem:[%s16] sm:$0x1]
    %v9348 = vlaneseq
    %v9349 = vshrl.u32 %v9348, 7
    %v9350 = vsub.s32 0, %v9349
    %v9351 = vrot.slane %v9346, %v9350
    %v9354 = vsel %vm91, %v9341, 0
    %9356 = vmatprep.subr.mxu0 0.0
    %9357 = vmatpush1.msra.mxu0 %v9342
    %9358 = vmatprep.subr.mxu0 0.0
    %9359 = vmatpush1.msra.mxu0 %v9343
    %9360 = vmatprep.subr.mxu0 0.0
    %9361 = vmatpush1.msra.mxu0 %v9344
    %9362 = vmatprep.subr.mxu0 0.0
    %9363 = vmatpush1.msra.mxu0 %v9345
    %9364 = vmatprep.subr.mxu0 0.0
    %9365 = vmatpush1.msra.mxu0 0.0
    %9366 = vmatprep.subr.mxu0 0.0
    %9367 = vmatpush1.msra.mxu0 0.0
    %9368 = vmatprep.subr.mxu0 0.0
    %9369 = vmatpush1.msra.mxu0 0.0
    %9370 = vmatprep.subr.mxu0 0.0
    %9371 = vmatpush1.msra.mxu0 0.0
    %9372 = vmatprep.subr.mxu0 0.0
    %9373 = vmatpush1.msra.mxu0 0.0
    %9374 = vmatprep.subr.mxu0 0.0
    %9375 = vmatpush1.msra.mxu0 0.0
    %9376 = vmatprep.subr.mxu0 0.0
    %9377 = vmatpush1.msra.mxu0 0.0
    %9378 = vmatprep.subr.mxu0 0.0
    %9379 = vmatpush1.msra.mxu0 0.0
    %9380 = vmatprep.subr.mxu0 0.0
    %9381 = vmatpush1.msra.mxu0 0.0
    %9382 = vmatprep.subr.mxu0 0.0
    %9383 = vmatpush1.msra.mxu0 0.0
    %9384 = vmatprep.subr.mxu0 0.0
    %9385 = vmatpush1.msra.mxu0 0.0
    %9386 = vmatprep.subr.mxu0 0.0
    %9387 = vmatpush1.msra.mxu0 0.0
    %9388 = vmatprep.subr.mxu0 0.0
    %9389 = vmatpush1.msra.mxu0 0.0
    %9390 = vmatprep.subr.mxu0 0.0
    %9391 = vmatpush1.msra.mxu0 0.0
    %9392 = vmatprep.subr.mxu0 0.0
    %9393 = vmatpush1.msra.mxu0 0.0
    %9394 = vmatprep.subr.mxu0 0.0
    %9395 = vmatpush1.msra.mxu0 0.0
    %9396 = vmatprep.subr.mxu0 0.0
    %9397 = vmatpush1.msra.mxu0 0.0
    %9398 = vmatprep.subr.mxu0 0.0
    %9399 = vmatpush1.msra.mxu0 0.0
    %9400 = vmatprep.subr.mxu0 0.0
    %9401 = vmatpush1.msra.mxu0 0.0
    %9402 = vmatprep.subr.mxu0 0.0
    %9403 = vmatpush1.msra.mxu0 0.0
    %9404 = vmatprep.subr.mxu0 0.0
    %9405 = vmatpush1.msra.mxu0 0.0
    %9406 = vmatprep.subr.mxu0 0.0
    %9407 = vmatpush1.msra.mxu0 0.0
    %9408 = vmatprep.subr.mxu0 0.0
    %9409 = vmatpush1.msra.mxu0 0.0
    %9410 = vmatprep.subr.mxu0 0.0
    %9411 = vmatpush1.msra.mxu0 0.0
    %9412 = vmatprep.subr.mxu0 0.0
    %9413 = vmatpush1.msra.mxu0 0.0
    %9414 = vmatprep.subr.mxu0 0.0
    %9415 = vmatpush1.msra.mxu0 0.0
    %9416 = vmatprep.subr.mxu0 0.0
    %9417 = vmatpush1.msra.mxu0 0.0
    %9418 = vmatprep.subr.mxu0 0.0
    %9419 = vmatpush1.msra.mxu0 0.0
    %9420 = vmatprep.mubr.f32.mxu0 0.0
    %9421 = vmatmul.mubr.f32.gmra.mrb[0].mxu0 %v9354
    %v9422 = vpop.f32.mrb[0].mxu0
    %v9423 = vadd.f32 %v9351, %v9422
    %v9424 = vpop.f32.mrb[0].mxu0
    %9425 = vdwg.mxu0
    %vm9426 = vcmask 25600
    %9427 = vst.msk [vmem:[#allocation5] sm:$0x3] %vm9426, %v9423
    // Predicated region
    $region74: #{rnn_classifier_forward.1} parent=1 // pred_check
      _
    $region75: #{rnn_classifier_forward.1} parent=1 // pred_check_branch
      %9429 = sbr.rel (0) target = $region77
    $region76: #{rnn_classifier_forward.1} parent=1 // pred_region
      %s9431 = ssub.s32 32, 32
      %9432 = vsyncadd [#allocation4], %s9431
      %s9434 = sshll.u32 [#allocation5], 4
      %s9435 = int_to_ptr.vmem [resolvable:$true] %s9434
      %9437 = dma.vmem_to_hbm [thread:$0]  %s9435, 32, %s17, [#allocation4]
    $region77: #{rnn_classifier_forward.1} parent=1 // pred_fallthru
      _
    // Predicated region
    $region78: #{rnn_classifier_forward.1} parent=1 // pred_check
      _
    $region79: #{rnn_classifier_forward.1} parent=1 // pred_check_branch
      %9439 = sbr.rel (0) target = $region81
    $region80: #{rnn_classifier_forward.1} parent=1 // pred_region
      %9440 = dma.done [#allocation4], 32
    $region81: #{rnn_classifier_forward.1} parent=1 // pred_fallthru
      _
    %9441 = vsyncpa [#allocation3], 1
    %9442 = vsyncpa [#allocation4], 1

</llo_original>
